<compile_context>
chip_gen: v7x
topology: tpu7x:2x2x1
jax: 0.10.0
libtpu: 0.0.40
codegen_flags: <defaults>
</compile_context>

<pallas_src>
import functools

import jax
import jax.numpy as jnp
from jax import lax
from jax.experimental import pallas as pl
from jax.experimental.pallas import tpu as pltpu

_SQRT_HALF = 0.7071067811865476

# Matmul operand dtype (accumulation is always f32).  bf16 halves operand
# HBM/VMEM traffic and doubles MXU rate on v6e/v7x; set to jnp.float32 for
# exact-f32 matmul fidelity.
_MM_DTYPE = jnp.bfloat16

# Every grid in this file is a 1-D independent axis -> let Mosaic shard it
# across both TensorCores on v7x (harmless on v5e/v6e).
_PAR1 = pltpu.CompilerParams(dimension_semantics=("parallel",))


def _gelu(x):
    # exact (erf) GELU == torch.nn.GELU() default
    return 0.5 * x * (1.0 + lax.erf(x * _SQRT_HALF))


def _mm(a, b):
    """MXU matmul with bf16 (or f32) operands and f32 accumulation."""
    return jnp.dot(a.astype(_MM_DTYPE), b.astype(_MM_DTYPE),
                   preferred_element_type=jnp.float32)


def _round_up(x, m):
    return ((x + m - 1) // m) * m


def _pad_rows(x, tr):
    r = x.shape[0]
    rp = _round_up(r, tr)
    if rp != r:
        x = jnp.pad(x, ((0, rp - r),) + ((0, 0),) * (x.ndim - 1))
    return x


def _row_tile(r, block_rows=512):
    # Large row tiles for HBM-roofline utilisation; tail handled by padding.
    return min(block_rows, _round_up(r, 8))


# -----------------------------------------------------------------------------
# Kernel 1: fused head — LGPM.conv_init (dim -> 2*dim, split into halves) and
#           the global mixer's conv_init (dim -> 2*dim) + GELU.  Row-tiled,
#           two outputs; the intermediate 2*dim tensor never leaves VMEM.
# -----------------------------------------------------------------------------
def _head_kernel(x_ref, wl_ref, bl_ref, wg_ref, bg_ref, wgi_ref, bgi_ref,
                 ol_ref, og_ref):
    x = x_ref[...]                                            # (TR, D)
    # local half of LGPM.conv_init (no activation)
    ol_ref[...] = (_mm(x, wl_ref[...]) + bl_ref[...]).astype(ol_ref.dtype)
    # global half of LGPM.conv_init, then global conv_init (dim->2*dim) + GELU
    xg = _mm(x, wg_ref[...]) + bg_ref[...]                    # (TR, D)
    og_ref[...] = _gelu(_mm(xg, wgi_ref[...]) + bgi_ref[...]).astype(og_ref.dtype)


def head_fused(x, init_w, init_b, g_init_w, g_init_b):
    R, D = x.shape
    TR = _row_tile(R)
    xp = _pad_rows(x, TR)
    Rp = xp.shape[0]
    # split LGPM.conv_init weights into the local / global halves (trace-time)
    wl, wg = init_w[:, :D], init_w[:, D:]
    bl, bg = init_b[:D], init_b[D:]
    local, x0 = pl.pallas_call(
        _head_kernel,
        out_shape=(jax.ShapeDtypeStruct((Rp, D), jnp.float32),
                   jax.ShapeDtypeStruct((Rp, 2 * D), jnp.float32)),
        grid=(Rp // TR,),
        in_specs=[
            pl.BlockSpec((TR, D), lambda i: (i, 0)),
            pl.BlockSpec((D, D), lambda i: (0, 0)),
            pl.BlockSpec((1, D), lambda i: (0, 0)),
            pl.BlockSpec((D, D), lambda i: (0, 0)),
            pl.BlockSpec((1, D), lambda i: (0, 0)),
            pl.BlockSpec((D, 2 * D), lambda i: (0, 0)),
            pl.BlockSpec((1, 2 * D), lambda i: (0, 0)),
        ],
        out_specs=[
            pl.BlockSpec((TR, D), lambda i: (i, 0)),
            pl.BlockSpec((TR, 2 * D), lambda i: (i, 0)),
        ],
        compiler_params=_PAR1,
    )(xp, wl, bl.reshape(1, D), wg, bg.reshape(1, D),
      g_init_w, g_init_b.reshape(1, 2 * D))
    return local[:R], x0[:R]


# -----------------------------------------------------------------------------
# Kernel 2: fused local mixer — both depthwise 3x3 convs (dilation 1 and 2)
#           in a single kernel (per-half weights zero-padded to full width).
# -----------------------------------------------------------------------------
def _local_dw_kernel(xp_ref, w1_ref, w2_ref, b_ref, o_ref, *, H, W, dmax):
    xp = xp_ref[0]                # (H+2*dmax, W+2*dmax, C)
    w1 = w1_ref[...]              # (3, 3, 1, C)  dilation-1 weights (0 in 2nd half)
    w2 = w2_ref[...]              # (3, 3, 1, C)  dilation-2 weights (0 in 1st half)
    C = xp.shape[-1]
    acc = jnp.zeros((H, W, C), jnp.float32) + b_ref[...]
    for i in range(3):
        for j in range(3):
            r1, c1 = dmax - 1 + i, dmax - 1 + j          # dilation 1
            acc = acc + xp[r1:r1 + H, c1:c1 + W, :] * w1[i, j]
            r2, c2 = dmax - 2 + 2 * i, dmax - 2 + 2 * j  # dilation 2
            acc = acc + xp[r2:r2 + H, c2:c2 + W, :] * w2[i, j]
    o_ref[0] = acc.astype(o_ref.dtype)


def local_dw(x, w1, w2, b):
    # x: (B, H, W, C) with C = dim; first C/2 channels use dilation 1, rest 2.
    B, H, W, C = x.shape
    dmax = 2
    xp = jnp.pad(x, ((0, 0), (dmax, dmax), (dmax, dmax), (0, 0)))
    Hp, Wp = H + 2 * dmax, W + 2 * dmax
    # NOTE: whole-image-per-batch blocks are fine at these sizes; for very
    # large H*W on v7x (64 MiB VMEM) switch to H row-strip tiling with halos.
    return pl.pallas_call(
        functools.partial(_local_dw_kernel, H=H, W=W, dmax=dmax),
        out_shape=jax.ShapeDtypeStruct((B, H, W, C), jnp.float32),
        grid=(B,),
        in_specs=[
            pl.BlockSpec((1, Hp, Wp, C), lambda i: (i, 0, 0, 0)),
            pl.BlockSpec((3, 3, 1, C), lambda i: (0, 0, 0, 0)),
            pl.BlockSpec((3, 3, 1, C), lambda i: (0, 0, 0, 0)),
            pl.BlockSpec((1, 1, C), lambda i: (0, 0, 0)),
        ],
        out_specs=pl.BlockSpec((1, H, W, C), lambda i: (i, 0, 0, 0)),
        compiler_params=_PAR1,
    )(xp, w1, w2, b.reshape(1, 1, C))


# -----------------------------------------------------------------------------
# Kernel 3: fused FourierUnit front end — BatchNorm (eval affine, applied
#           in-kernel with a halo mask) + depthwise 3x3 (fpe) + residual.
# -----------------------------------------------------------------------------
def _fpe_kernel(xp_ref, w_ref, b_ref, s_ref, t_ref, o_ref, *, H, W):
    d = 1
    xp = xp_ref[0]                 # (H+2, W+2, C) raw (pre-BN) padded input
    Hp, Wp, C = xp.shape
    row = lax.broadcasted_iota(jnp.int32, (Hp, Wp, C), 0)
    col = lax.broadcasted_iota(jnp.int32, (Hp, Wp, C), 1)
    inside = (row >= d) & (row < d + H) & (col >= d) & (col < d + W)
    # BN(x) on the valid interior, zeros on the halo (== pad(BN(x)))
    y = jnp.where(inside, xp * s_ref[...] + t_ref[...], 0.0)
    w = w_ref[...]                 # (3, 3, 1, C)
    acc = jnp.zeros((H, W, C), jnp.float32) + b_ref[...]
    for i in range(3):
        for j in range(3):
            acc = acc + y[i:i + H, j:j + W, :] * w[i, j]
    # residual: + BN(x)
    acc = acc + y[d:d + H, d:d + W, :]
    o_ref[0] = acc.astype(o_ref.dtype)


def fpe_fused(f, w, b, bn_scale, bn_shift):
    B, H, W, C = f.shape
    d = 1
    fp = jnp.pad(f, ((0, 0), (d, d), (d, d), (0, 0)))
    Hp, Wp = H + 2 * d, W + 2 * d
    return pl.pallas_call(
        functools.partial(_fpe_kernel, H=H, W=W),
        out_shape=jax.ShapeDtypeStruct((B, H, W, C), jnp.float32),
        grid=(B,),
        in_specs=[
            pl.BlockSpec((1, Hp, Wp, C), lambda i: (i, 0, 0, 0)),
            pl.BlockSpec((3, 3, 1, C), lambda i: (0, 0, 0, 0)),
            pl.BlockSpec((1, 1, C), lambda i: (0, 0, 0)),
            pl.BlockSpec((1, 1, C), lambda i: (0, 0, 0)),
            pl.BlockSpec((1, 1, C), lambda i: (0, 0, 0)),
        ],
        out_specs=pl.BlockSpec((1, H, W, C), lambda i: (i, 0, 0, 0)),
        compiler_params=_PAR1,
    )(fp, w, b.reshape(1, 1, C), bn_scale.reshape(1, 1, C),
      bn_shift.reshape(1, 1, C))


# -----------------------------------------------------------------------------
# Kernel 4: fused dynamic-weight softmax + grouped 1x1 conv (block-diagonal
#           matmul) + dy-weighted group reduction + GELU.  Row-tiled.
# -----------------------------------------------------------------------------
def _fdc_kernel(x_ref, dyw_ref, dyb_ref, wbd_ref, b_ref, o_ref, *, groups, c4):
    x = x_ref[...]                                       # (TR, 4D)
    # dynamic weights: softmax over the `groups` channels (stays in vregs)
    logits = _mm(x, dyw_ref[...]) + dyb_ref[...]         # (TR, groups)
    logits = logits - jnp.max(logits, axis=-1, keepdims=True)
    e = jnp.exp(logits)
    dy = e / jnp.sum(e, axis=-1, keepdims=True)
    # grouped conv as a single lane-dense block-diagonal matmul: (TR, groups*c4)
    y = _mm(x, wbd_ref[...]) + b_ref[...]                # per-group bias included
    acc = jnp.zeros((x.shape[0], c4), jnp.float32)
    for j in range(groups):
        acc = acc + dy[:, j:j + 1] * y[:, j * c4:(j + 1) * c4]
    o_ref[...] = _gelu(acc).astype(o_ref.dtype)


def fdc_fused(x, dyw, dyb, wbd, bfull, groups):
    R, Cin = x.shape
    c4tot = wbd.shape[1]
    c4 = c4tot // groups
    TR = _row_tile(R)
    xp = _pad_rows(x, TR)
    Rp = xp.shape[0]
    out = pl.pallas_call(
        functools.partial(_fdc_kernel, groups=groups, c4=c4),
        out_shape=jax.ShapeDtypeStruct((Rp, c4), jnp.float32),
        grid=(Rp // TR,),
        in_specs=[
            pl.BlockSpec((TR, Cin), lambda i: (i, 0)),
            pl.BlockSpec((Cin, groups), lambda i: (0, 0)),
            pl.BlockSpec((1, groups), lambda i: (0, 0)),
            pl.BlockSpec((Cin, c4tot), lambda i: (0, 0)),
            pl.BlockSpec((1, c4tot), lambda i: (0, 0)),
        ],
        out_specs=pl.BlockSpec((TR, c4), lambda i: (i, 0)),
        compiler_params=_PAR1,
    )(xp, dyw, dyb.reshape(1, groups), wbd, bfull)
    return out[:R]


# -----------------------------------------------------------------------------
# Kernel 5: fused tail — conv_fina(g_fft + x0)+GELU, outer GELU, adaptive avg
#           pool, channel attention (1x1->ReLU->1x1->Sigmoid), scale and final
#           ca_conv.  Per-batch; the 2*dim concat is decomposed into halves so
#           nothing narrow ever round-trips HBM.
# -----------------------------------------------------------------------------
def _tail_kernel(xl_ref, gf_ref, x0_ref, gfw_ref, gfb_ref,
                 w1_ref, b1_ref, w2_ref, b2_ref, wc_ref, bc_ref,
                 o_ref, *, D, inv_hw):
    # global branch: conv_fina( FFC(x) + x0 ) with GELU
    g = gf_ref[0] + x0_ref[0]                            # (HW, 2D)
    xg = _gelu(_mm(g, gfw_ref[...]) + gfb_ref[...])      # (HW, D)
    # LGPM outer GELU applied to both halves of the (virtual) concat
    al = _gelu(xl_ref[0])                                # (HW, D) local half
    ag = _gelu(xg)                                       # (HW, D) global half
    # channel attention: AdaptiveAvgPool2d(1) -> 1x1 -> ReLU -> 1x1 -> Sigmoid
    pool_l = jnp.sum(al, axis=0, keepdims=True) * inv_hw  # (1, D)
    pool_g = jnp.sum(ag, axis=0, keepdims=True) * inv_hw  # (1, D)
    w1 = w1_ref[...]                                     # (2D, D)
    h = (jnp.dot(pool_l, w1[:D], preferred_element_type=jnp.float32)
         + jnp.dot(pool_g, w1[D:], preferred_element_type=jnp.float32)
         + b1_ref[...])
    h = jnp.maximum(h, 0.0)
    s = jnp.dot(h, w2_ref[...], preferred_element_type=jnp.float32) + b2_ref[...]
    s = 1.0 / (1.0 + jnp.exp(-s))                        # (1, 2D)
    sl, sg = s[:, :D], s[:, D:]
    # ca_conv( s * gelu(x) ), decomposed over the two channel halves
    wc = wc_ref[...]                                     # (2D, D)
    y = (_mm(al * sl, wc[:D]) + _mm(ag * sg, wc[D:]) + bc_ref[...])
    o_ref[0] = y.astype(o_ref.dtype)


def tail_fused(xl, g_fft, x0, gfw, gfb, w1, b1, w2, b2, wc, bc):
    B, HW, D = xl.shape
    D2 = 2 * D
    return pl.pallas_call(
        functools.partial(_tail_kernel, D=D, inv_hw=1.0 / HW),
        out_shape=jax.ShapeDtypeStruct((B, HW, D), jnp.float32),
        grid=(B,),
        in_specs=[
            pl.BlockSpec((1, HW, D), lambda i: (i, 0, 0)),
            pl.BlockSpec((1, HW, D2), lambda i: (i, 0, 0)),
            pl.BlockSpec((1, HW, D2), lambda i: (i, 0, 0)),
            pl.BlockSpec((D2, D), lambda i: (0, 0)),
            pl.BlockSpec((1, D), lambda i: (0, 0)),
            pl.BlockSpec((D2, D), lambda i: (0, 0)),
            pl.BlockSpec((1, D), lambda i: (0, 0)),
            pl.BlockSpec((D, D2), lambda i: (0, 0)),
            pl.BlockSpec((1, D2), lambda i: (0, 0)),
            pl.BlockSpec((D2, D), lambda i: (0, 0)),
            pl.BlockSpec((1, D), lambda i: (0, 0)),
        ],
        out_specs=pl.BlockSpec((1, HW, D), lambda i: (i, 0, 0)),
        compiler_params=_PAR1,
    )(xl, g_fft, x0, gfw, gfb.reshape(1, D), w1, b1.reshape(1, D),
      w2, b2.reshape(1, D2), wc, bc.reshape(1, D))


# -----------------------------------------------------------------------------
# Parameters (deterministic, synthetic)
# -----------------------------------------------------------------------------
def init_params(key, dim):
    D = dim
    keys = iter(jax.random.split(key, 32))

    def nrm(shape, scale=0.1):
        return (scale * jax.random.normal(next(keys), shape)).astype(jnp.float32)

    C4 = 4 * D  # FourierUnit spectral channels (real/imag interleave of 2D chans)
    p = {
        # LGPM.conv_init : dim -> 2*dim
        "init_w": nrm((D, 2 * D)), "init_b": nrm((2 * D,)),
        # TokenMixer_For_Local (depthwise 3x3, dilation 1 and 2, dim//2 each)
        "cd1_w": nrm((3, 3, 1, D // 2)), "cd1_b": nrm((D // 2,)),
        "cd2_w": nrm((3, 3, 1, D // 2)), "cd2_b": nrm((D // 2,)),
        # TokenMixer_For_Gloal conv_init / conv_fina
        "g_init_w": nrm((D, 2 * D)), "g_init_b": nrm((2 * D,)),
        "g_fina_w": nrm((2 * D, D)), "g_fina_b": nrm((D,)),
        # FourierUnit(2D, 2D, groups=4)
        "bn_gamma": 1.0 + nrm((C4,)), "bn_beta": nrm((C4,)),
        "bn_mean": jnp.zeros((C4,), jnp.float32),
        "bn_var": jnp.ones((C4,), jnp.float32),
        "fpe_w": nrm((3, 3, 1, C4)), "fpe_b": nrm((C4,)),
        "dyw_w": nrm((C4, 4)), "dyw_b": nrm((4,)),
        "fdc_w": nrm((4, D, C4)), "fdc_b": nrm((4, 1, C4)),
        # channel attention + final conv
        "ca1_w": nrm((2 * D, D)), "ca1_b": nrm((D,)),
        "ca2_w": nrm((D, 2 * D)), "ca2_b": nrm((2 * D,)),
        "cac_w": nrm((2 * D, D)), "cac_b": nrm((D,)),
    }
    return p


def _block_diag(w):
    # (groups, cg, co) -> block-diagonal (groups*cg, groups*co)
    groups, cg, co = w.shape
    wbd = jnp.zeros((groups * cg, groups * co), w.dtype)
    for j in range(groups):
        wbd = wbd.at[j * cg:(j + 1) * cg, j * co:(j + 1) * co].set(w[j])
    return wbd


# -----------------------------------------------------------------------------
# Full LGPM forward
# -----------------------------------------------------------------------------
def lgpm_forward(params, x_nchw):
    p = params
    B, D, H, W = x_nchw.shape
    HW = H * W
    x = jnp.transpose(x_nchw, (0, 2, 3, 1)).astype(jnp.float32)   # -> NHWC
    R = B * HW
    xf = x.reshape(R, D)

    # ---- fused head: LGPM.conv_init (split) + global conv_init + GELU ----
    xl_flat, g = head_fused(xf, p["init_w"], p["init_b"],
                            p["g_init_w"], p["g_init_b"])
    xl_in = xl_flat.reshape(B, H, W, D)                           # local branch in
    x0 = g.reshape(B, HW, 2 * D)                                  # global residual
    gsp = g.reshape(B, H, W, 2 * D)

    # ---- local mixer: both depthwise 3x3 convs in one fused kernel ----
    w1 = jnp.concatenate([p["cd1_w"], jnp.zeros_like(p["cd1_w"])], axis=-1)
    w2 = jnp.concatenate([jnp.zeros_like(p["cd2_w"]), p["cd2_w"]], axis=-1)
    bL = jnp.concatenate([p["cd1_b"], p["cd2_b"]])
    x_local = local_dw(xl_in, w1, w2, bL)                         # (B,H,W,D)

    # ---- global mixer / FourierUnit ----
    # TODO(synk): torch.fft.rfft2 / irfft2 have no Pallas TPU primitive; FFTs
    # are computed with jnp.fft here.
    ffted = jnp.fft.rfft2(gsp, axes=(1, 2), norm="ortho")         # (B,H,Wr,2D) c64
    Wr = ffted.shape[2]
    Rf = B * H * Wr
    f = jnp.stack([jnp.real(ffted), jnp.imag(ffted)],
                  axis=-1).reshape(B, H, Wr, 4 * D)               # (c d) interleave

    # FourierUnit: BN (eval) + fpe depthwise 3x3 + residual, fused
    bn_scale = p["bn_gamma"] / jnp.sqrt(p["bn_var"] + 1e-5)
    bn_shift = p["bn_beta"] - p["bn_mean"] * bn_scale
    t = fpe_fused(f, p["fpe_w"], p["fpe_b"], bn_scale, bn_shift)  # (B,H,Wr,4D)
    tf = t.reshape(Rf, 4 * D)

    # dynamic softmax weights + grouped fdc conv + GELU, fused
    wbd = _block_diag(p["fdc_w"])                                 # (4D, 16D)
    bfull = p["fdc_b"].reshape(1, -1)                             # (1, 16D)
    spec = fdc_fused(tf, p["dyw_w"], p["dyw_b"], wbd, bfull, groups=4)  # (Rf,4D)

    spec = spec.reshape(B, H, Wr, 2 * D, 2)
    spec_c = lax.complex(spec[..., 0], spec[..., 1])
    g_fft = jnp.fft.irfft2(spec_c, s=(H, W), axes=(1, 2), norm="ortho")  # (B,H,W,2D)

    # ---- fused tail: conv_fina(+x0)+GELU, GELU, CA, ca_conv ----
    out = tail_fused(x_local.reshape(B, HW, D),
                     g_fft.reshape(B, HW, 2 * D), x0,
                     p["g_fina_w"], p["g_fina_b"],
                     p["ca1_w"], p["ca1_b"], p["ca2_w"], p["ca2_b"],
                     p["cac_w"], p["cac_b"])                      # (B, HW, D)
    out = out.reshape(B, H, W, D)
    return jnp.transpose(out, (0, 3, 1, 2))                       # -> NCHW


if __name__ == "__main__":
    key = jax.random.PRNGKey(0)
    dim = 8
    B, H, W = 2, 16, 16
    pkey, xkey = jax.random.split(key)
    params = init_params(pkey, dim)
    x = jax.random.normal(xkey, (B, dim, H, W), dtype=jnp.float32)

    out = jax.jit(lgpm_forward)(params, x)
    out = jax.block_until_ready(out)
    assert out.shape == (B, dim, H, W), out.shape
    assert out.dtype == jnp.float32
    assert bool(jnp.all(jnp.isfinite(out)))
    print("KERNEL_OK")
</pallas_src>

<mosaic_0001>
module attributes {stable_mosaic.version = 11 : i64} {
  func.func @_head_kernel(%arg0: i32, %arg1: memref<512x8xf32, #tpu.memory_space<vmem>>, %arg2: memref<8x8xf32, #tpu.memory_space<vmem>>, %arg3: memref<1x8xf32, #tpu.memory_space<vmem>>, %arg4: memref<8x8xf32, #tpu.memory_space<vmem>>, %arg5: memref<1x8xf32, #tpu.memory_space<vmem>>, %arg6: memref<8x16xf32, #tpu.memory_space<vmem>>, %arg7: memref<1x16xf32, #tpu.memory_space<vmem>>, %arg8: memref<512x8xf32, #tpu.memory_space<vmem>>, %arg9: memref<512x16xf32, #tpu.memory_space<vmem>>) attributes {dimension_semantics = [#tpu.dimension_semantics<parallel>], iteration_bounds = array<i64: 1>, scalar_prefetch = 0 : i64, scratch_operands = 0 : i64, tpu.core_type = #tpu.core_type<tc>, window_params = [{transform_indices = @transform_0, window_bounds = array<i64: 512, 8>}, {pipeline_mode = #tpu.pipeline_mode<synchronous>, transform_indices = @transform_1, window_bounds = array<i64: 8, 8>}, {pipeline_mode = #tpu.pipeline_mode<synchronous>, transform_indices = @transform_2, window_bounds = array<i64: 1, 8>}, {pipeline_mode = #tpu.pipeline_mode<synchronous>, transform_indices = @transform_3, window_bounds = array<i64: 8, 8>}, {pipeline_mode = #tpu.pipeline_mode<synchronous>, transform_indices = @transform_4, window_bounds = array<i64: 1, 8>}, {pipeline_mode = #tpu.pipeline_mode<synchronous>, transform_indices = @transform_5, window_bounds = array<i64: 8, 16>}, {pipeline_mode = #tpu.pipeline_mode<synchronous>, transform_indices = @transform_6, window_bounds = array<i64: 1, 16>}, {transform_indices = @transform_7, window_bounds = array<i64: 512, 8>}, {transform_indices = @transform_8, window_bounds = array<i64: 512, 16>}]} {
    %c0 = arith.constant 0 : index
    %c0_0 = arith.constant 0 : index
    %0 = vector.load %arg1[%c0, %c0_0] : memref<512x8xf32, #tpu.memory_space<vmem>>, vector<512x8xf32>
    %c0_1 = arith.constant 0 : index
    %c0_2 = arith.constant 0 : index
    %1 = vector.load %arg2[%c0_1, %c0_2] : memref<8x8xf32, #tpu.memory_space<vmem>>, vector<8x8xf32>
    %2 = arith.truncf %0 : vector<512x8xf32> to vector<512x8xbf16>
    %3 = arith.truncf %1 : vector<8x8xf32> to vector<8x8xbf16>
    %cst = arith.constant dense<0.000000e+00> : vector<512x8xf32>
    %4 = tpu.matmul %2, %3, %cst {dimension_numbers = #tpu.dot_dimension_numbers<[1], [0], [0], [1], [0, 0, 1, 1], [], []>} : vector<512x8xbf16>, vector<8x8xbf16>, vector<512x8xf32> -> vector<512x8xf32>
    %c0_3 = arith.constant 0 : index
    %c0_4 = arith.constant 0 : index
    %5 = vector.load %arg3[%c0_3, %c0_4] : memref<1x8xf32, #tpu.memory_space<vmem>>, vector<1x8xf32>
    %6 = vector.broadcast %5 : vector<1x8xf32> to vector<512x8xf32>
    %7 = arith.addf %4, %6 : vector<512x8xf32>
    %c0_5 = arith.constant 0 : index
    %c0_6 = arith.constant 0 : index
    %8 = vector.load %arg8[%c0_5, %c0_6] : memref<512x8xf32, #tpu.memory_space<vmem>>, vector<512x8xf32>
    tpu.vector_store %arg8[%c0_5, %c0_6], %7 {strides = array<i32>} : memref<512x8xf32, #tpu.memory_space<vmem>>, vector<512x8xf32>,
    %c0_7 = arith.constant 0 : index
    %c0_8 = arith.constant 0 : index
    %9 = vector.load %arg4[%c0_7, %c0_8] : memref<8x8xf32, #tpu.memory_space<vmem>>, vector<8x8xf32>
    %10 = arith.truncf %0 : vector<512x8xf32> to vector<512x8xbf16>
    %11 = arith.truncf %9 : vector<8x8xf32> to vector<8x8xbf16>
    %cst_9 = arith.constant dense<0.000000e+00> : vector<512x8xf32>
    %12 = tpu.matmul %10, %11, %cst_9 {dimension_numbers = #tpu.dot_dimension_numbers<[1], [0], [0], [1], [0, 0, 1, 1], [], []>} : vector<512x8xbf16>, vector<8x8xbf16>, vector<512x8xf32> -> vector<512x8xf32>
    %c0_10 = arith.constant 0 : index
    %c0_11 = arith.constant 0 : index
    %13 = vector.load %arg5[%c0_10, %c0_11] : memref<1x8xf32, #tpu.memory_space<vmem>>, vector<1x8xf32>
    %14 = vector.broadcast %13 : vector<1x8xf32> to vector<512x8xf32>
    %15 = arith.addf %12, %14 : vector<512x8xf32>
    %c0_12 = arith.constant 0 : index
    %c0_13 = arith.constant 0 : index
    %16 = vector.load %arg6[%c0_12, %c0_13] : memref<8x16xf32, #tpu.memory_space<vmem>>, vector<8x16xf32>
    %17 = arith.truncf %15 : vector<512x8xf32> to vector<512x8xbf16>
    %18 = arith.truncf %16 : vector<8x16xf32> to vector<8x16xbf16>
    %cst_14 = arith.constant dense<0.000000e+00> : vector<512x16xf32>
    %19 = tpu.matmul %17, %18, %cst_14 {dimension_numbers = #tpu.dot_dimension_numbers<[1], [0], [0], [1], [0, 0, 1, 1], [], []>} : vector<512x8xbf16>, vector<8x16xbf16>, vector<512x16xf32> -> vector<512x16xf32>
    %c0_15 = arith.constant 0 : index
    %c0_16 = arith.constant 0 : index
    %20 = vector.load %arg7[%c0_15, %c0_16] : memref<1x16xf32, #tpu.memory_space<vmem>>, vector<1x16xf32>
    %21 = vector.broadcast %20 : vector<1x16xf32> to vector<512x16xf32>
    %22 = arith.addf %19, %21 : vector<512x16xf32>
    %cst_17 = arith.constant 5.000000e-01 : f32
    %23 = vector.broadcast %cst_17 : f32 to vector<512x16xf32>
    %24 = arith.mulf %23, %22 : vector<512x16xf32>
    %cst_18 = arith.constant 0.707106769 : f32
    %25 = vector.broadcast %cst_18 : f32 to vector<512x16xf32>
    %26 = arith.mulf %22, %25 : vector<512x16xf32>
    %27 = math.erf %26 : vector<512x16xf32>
    %cst_19 = arith.constant 1.000000e+00 : f32
    %28 = vector.broadcast %cst_19 : f32 to vector<512x16xf32>
    %29 = arith.addf %28, %27 : vector<512x16xf32>
    %30 = arith.mulf %24, %29 : vector<512x16xf32>
    %c0_20 = arith.constant 0 : index
    %c0_21 = arith.constant 0 : index
    %31 = vector.load %arg9[%c0_20, %c0_21] : memref<512x16xf32, #tpu.memory_space<vmem>>, vector<512x16xf32>
    tpu.vector_store %arg9[%c0_20, %c0_21], %30 {strides = array<i32>} : memref<512x16xf32, #tpu.memory_space<vmem>>, vector<512x16xf32>,
    return
  }
  func.func @transform_0(%arg0: i32) -> (i32, i32) {
    %c0_i32 = arith.constant 0 : i32
    %c0_i32_0 = arith.constant 0 : i32
    return %arg0, %c0_i32 : i32, i32
  }
  func.func @transform_1(%arg0: i32) -> (i32, i32) {
    %c0_i32 = arith.constant 0 : i32
    %c0_i32_0 = arith.constant 0 : i32
    %c0_i32_1 = arith.constant 0 : i32
    return %c0_i32, %c0_i32_0 : i32, i32
  }
  func.func @transform_2(%arg0: i32) -> (i32, i32) {
    %c0_i32 = arith.constant 0 : i32
    %c0_i32_0 = arith.constant 0 : i32
    %c0_i32_1 = arith.constant 0 : i32
    return %c0_i32, %c0_i32_0 : i32, i32
  }
  func.func @transform_3(%arg0: i32) -> (i32, i32) {
    %c0_i32 = arith.constant 0 : i32
    %c0_i32_0 = arith.constant 0 : i32
    %c0_i32_1 = arith.constant 0 : i32
    return %c0_i32, %c0_i32_0 : i32, i32
  }
  func.func @transform_4(%arg0: i32) -> (i32, i32) {
    %c0_i32 = arith.constant 0 : i32
    %c0_i32_0 = arith.constant 0 : i32
    %c0_i32_1 = arith.constant 0 : i32
    return %c0_i32, %c0_i32_0 : i32, i32
  }
  func.func @transform_5(%arg0: i32) -> (i32, i32) {
    %c0_i32 = arith.constant 0 : i32
    %c0_i32_0 = arith.constant 0 : i32
    %c0_i32_1 = arith.constant 0 : i32
    return %c0_i32, %c0_i32_0 : i32, i32
  }
  func.func @transform_6(%arg0: i32) -> (i32, i32) {
    %c0_i32 = arith.constant 0 : i32
    %c0_i32_0 = arith.constant 0 : i32
    %c0_i32_1 = arith.constant 0 : i32
    return %c0_i32, %c0_i32_0 : i32, i32
  }
  func.func @transform_7(%arg0: i32) -> (i32, i32) {
    %c0_i32 = arith.constant 0 : i32
    %c0_i32_0 = arith.constant 0 : i32
    return %arg0, %c0_i32 : i32, i32
  }
  func.func @transform_8(%arg0: i32) -> (i32, i32) {
    %c0_i32 = arith.constant 0 : i32
    %c0_i32_0 = arith.constant 0 : i32
    return %arg0, %c0_i32 : i32, i32
  }
}

module attributes {stable_mosaic.version = 11 : i64} {
  func.func @_local_dw_kernel(%arg0: i32, %arg1: memref<1x20x20x8xf32, #tpu.memory_space<vmem>>, %arg2: memref<3x3x1x8xf32, #tpu.memory_space<vmem>>, %arg3: memref<3x3x1x8xf32, #tpu.memory_space<vmem>>, %arg4: memref<1x1x8xf32, #tpu.memory_space<vmem>>, %arg5: memref<1x16x16x8xf32, #tpu.memory_space<vmem>>) attributes {dimension_semantics = [#tpu.dimension_semantics<parallel>], iteration_bounds = array<i64: 2>, scalar_prefetch = 0 : i64, scratch_operands = 0 : i64, tpu.core_type = #tpu.core_type<tc>, window_params = [{transform_indices = @transform_0, window_bounds = array<i64: 1, 20, 20, 8>}, {pipeline_mode = #tpu.pipeline_mode<synchronous>, transform_indices = @transform_1, window_bounds = array<i64: 3, 3, 1, 8>}, {pipeline_mode = #tpu.pipeline_mode<synchronous>, transform_indices = @transform_2, window_bounds = array<i64: 3, 3, 1, 8>}, {pipeline_mode = #tpu.pipeline_mode<synchronous>, transform_indices = @transform_3, window_bounds = array<i64: 1, 1, 8>}, {transform_indices = @transform_4, window_bounds = array<i64: 1, 16, 16, 8>}]} {
    %c0 = arith.constant 0 : index
    %c0_0 = arith.constant 0 : index
    %c0_1 = arith.constant 0 : index
    %c0_2 = arith.constant 0 : index
    %0 = vector.load %arg1[%c0, %c0_0, %c0_1, %c0_2] : memref<1x20x20x8xf32, #tpu.memory_space<vmem>>, vector<1x20x20x8xf32>
    %1 = vector.shape_cast %0 : vector<1x20x20x8xf32> to vector<20x20x8xf32>
    %c0_3 = arith.constant 0 : index
    %c0_4 = arith.constant 0 : index
    %c0_5 = arith.constant 0 : index
    %c0_6 = arith.constant 0 : index
    %2 = vector.load %arg2[%c0_3, %c0_4, %c0_5, %c0_6] : memref<3x3x1x8xf32, #tpu.memory_space<vmem>>, vector<3x3x1x8xf32>
    %c0_7 = arith.constant 0 : index
    %c0_8 = arith.constant 0 : index
    %c0_9 = arith.constant 0 : index
    %c0_10 = arith.constant 0 : index
    %3 = vector.load %arg3[%c0_7, %c0_8, %c0_9, %c0_10] : memref<3x3x1x8xf32, #tpu.memory_space<vmem>>, vector<3x3x1x8xf32>
    %cst = arith.constant 0.000000e+00 : f32
    %4 = vector.broadcast %cst : f32 to vector<16x16x8xf32>
    %c0_11 = arith.constant 0 : index
    %c0_12 = arith.constant 0 : index
    %c0_13 = arith.constant 0 : index
    %5 = vector.load %arg4[%c0_11, %c0_12, %c0_13] : memref<1x1x8xf32, #tpu.memory_space<vmem>>, vector<1x1x8xf32>
    %6 = vector.broadcast %5 : vector<1x1x8xf32> to vector<16x16x8xf32>
    %7 = arith.addf %4, %6 : vector<16x16x8xf32>
    %8 = vector.extract_strided_slice %1 {offsets = [1, 1, 0], sizes = [16, 16, 8], strides = [1, 1, 1]} : vector<20x20x8xf32> to vector<16x16x8xf32>
    %9 = vector.extract_strided_slice %2 {offsets = [0, 0, 0, 0], sizes = [1, 1, 1, 8], strides = [1, 1, 1, 1]} : vector<3x3x1x8xf32> to vector<1x1x1x8xf32>
    %10 = vector.shape_cast %9 : vector<1x1x1x8xf32> to vector<1x8xf32>
    %11 = vector.shape_cast %10 : vector<1x8xf32> to vector<1x1x8xf32>
    %12 = vector.broadcast %11 : vector<1x1x8xf32> to vector<16x16x8xf32>
    %13 = arith.mulf %8, %12 : vector<16x16x8xf32>
    %14 = arith.addf %7, %13 : vector<16x16x8xf32>
    %15 = vector.extract_strided_slice %1 {offsets = [0, 0, 0], sizes = [16, 16, 8], strides = [1, 1, 1]} : vector<20x20x8xf32> to vector<16x16x8xf32>
    %16 = vector.extract_strided_slice %3 {offsets = [0, 0, 0, 0], sizes = [1, 1, 1, 8], strides = [1, 1, 1, 1]} : vector<3x3x1x8xf32> to vector<1x1x1x8xf32>
    %17 = vector.shape_cast %16 : vector<1x1x1x8xf32> to vector<1x8xf32>
    %18 = vector.shape_cast %17 : vector<1x8xf32> to vector<1x1x8xf32>
    %19 = vector.broadcast %18 : vector<1x1x8xf32> to vector<16x16x8xf32>
    %20 = arith.mulf %15, %19 : vector<16x16x8xf32>
    %21 = arith.addf %14, %20 : vector<16x16x8xf32>
    %22 = vector.extract_strided_slice %1 {offsets = [1, 2, 0], sizes = [16, 16, 8], strides = [1, 1, 1]} : vector<20x20x8xf32> to vector<16x16x8xf32>
    %23 = vector.extract_strided_slice %2 {offsets = [0, 1, 0, 0], sizes = [1, 1, 1, 8], strides = [1, 1, 1, 1]} : vector<3x3x1x8xf32> to vector<1x1x1x8xf32>
    %24 = vector.shape_cast %23 : vector<1x1x1x8xf32> to vector<1x8xf32>
    %25 = vector.shape_cast %24 : vector<1x8xf32> to vector<1x1x8xf32>
    %26 = vector.broadcast %25 : vector<1x1x8xf32> to vector<16x16x8xf32>
    %27 = arith.mulf %22, %26 : vector<16x16x8xf32>
    %28 = arith.addf %21, %27 : vector<16x16x8xf32>
    %29 = vector.extract_strided_slice %1 {offsets = [0, 2, 0], sizes = [16, 16, 8], strides = [1, 1, 1]} : vector<20x20x8xf32> to vector<16x16x8xf32>
    %30 = vector.extract_strided_slice %3 {offsets = [0, 1, 0, 0], sizes = [1, 1, 1, 8], strides = [1, 1, 1, 1]} : vector<3x3x1x8xf32> to vector<1x1x1x8xf32>
    %31 = vector.shape_cast %30 : vector<1x1x1x8xf32> to vector<1x8xf32>
    %32 = vector.shape_cast %31 : vector<1x8xf32> to vector<1x1x8xf32>
    %33 = vector.broadcast %32 : vector<1x1x8xf32> to vector<16x16x8xf32>
    %34 = arith.mulf %29, %33 : vector<16x16x8xf32>
    %35 = arith.addf %28, %34 : vector<16x16x8xf32>
    %36 = vector.extract_strided_slice %1 {offsets = [1, 3, 0], sizes = [16, 16, 8], strides = [1, 1, 1]} : vector<20x20x8xf32> to vector<16x16x8xf32>
    %37 = vector.extract_strided_slice %2 {offsets = [0, 2, 0, 0], sizes = [1, 1, 1, 8], strides = [1, 1, 1, 1]} : vector<3x3x1x8xf32> to vector<1x1x1x8xf32>
    %38 = vector.shape_cast %37 : vector<1x1x1x8xf32> to vector<1x8xf32>
    %39 = vector.shape_cast %38 : vector<1x8xf32> to vector<1x1x8xf32>
    %40 = vector.broadcast %39 : vector<1x1x8xf32> to vector<16x16x8xf32>
    %41 = arith.mulf %36, %40 : vector<16x16x8xf32>
    %42 = arith.addf %35, %41 : vector<16x16x8xf32>
    %43 = vector.extract_strided_slice %1 {offsets = [0, 4, 0], sizes = [16, 16, 8], strides = [1, 1, 1]} : vector<20x20x8xf32> to vector<16x16x8xf32>
    %44 = vector.extract_strided_slice %3 {offsets = [0, 2, 0, 0], sizes = [1, 1, 1, 8], strides = [1, 1, 1, 1]} : vector<3x3x1x8xf32> to vector<1x1x1x8xf32>
    %45 = vector.shape_cast %44 : vector<1x1x1x8xf32> to vector<1x8xf32>
    %46 = vector.shape_cast %45 : vector<1x8xf32> to vector<1x1x8xf32>
    %47 = vector.broadcast %46 : vector<1x1x8xf32> to vector<16x16x8xf32>
    %48 = arith.mulf %43, %47 : vector<16x16x8xf32>
    %49 = arith.addf %42, %48 : vector<16x16x8xf32>
    %50 = vector.extract_strided_slice %1 {offsets = [2, 1, 0], sizes = [16, 16, 8], strides = [1, 1, 1]} : vector<20x20x8xf32> to vector<16x16x8xf32>
    %51 = vector.extract_strided_slice %2 {offsets = [1, 0, 0, 0], sizes = [1, 1, 1, 8], strides = [1, 1, 1, 1]} : vector<3x3x1x8xf32> to vector<1x1x1x8xf32>
    %52 = vector.shape_cast %51 : vector<1x1x1x8xf32> to vector<1x8xf32>
    %53 = vector.shape_cast %52 : vector<1x8xf32> to vector<1x1x8xf32>
    %54 = vector.broadcast %53 : vector<1x1x8xf32> to vector<16x16x8xf32>
    %55 = arith.mulf %50, %54 : vector<16x16x8xf32>
    %56 = arith.addf %49, %55 : vector<16x16x8xf32>
    %57 = vector.extract_strided_slice %1 {offsets = [2, 0, 0], sizes = [16, 16, 8], strides = [1, 1, 1]} : vector<20x20x8xf32> to vector<16x16x8xf32>
    %58 = vector.extract_strided_slice %3 {offsets = [1, 0, 0, 0], sizes = [1, 1, 1, 8], strides = [1, 1, 1, 1]} : vector<3x3x1x8xf32> to vector<1x1x1x8xf32>
    %59 = vector.shape_cast %58 : vector<1x1x1x8xf32> to vector<1x8xf32>
    %60 = vector.shape_cast %59 : vector<1x8xf32> to vector<1x1x8xf32>
    %61 = vector.broadcast %60 : vector<1x1x8xf32> to vector<16x16x8xf32>
    %62 = arith.mulf %57, %61 : vector<16x16x8xf32>
    %63 = arith.addf %56, %62 : vector<16x16x8xf32>
    %64 = vector.extract_strided_slice %1 {offsets = [2, 2, 0], sizes = [16, 16, 8], strides = [1, 1, 1]} : vector<20x20x8xf32> to vector<16x16x8xf32>
    %65 = vector.extract_strided_slice %2 {offsets = [1, 1, 0, 0], sizes = [1, 1, 1, 8], strides = [1, 1, 1, 1]} : vector<3x3x1x8xf32> to vector<1x1x1x8xf32>
    %66 = vector.shape_cast %65 : vector<1x1x1x8xf32> to vector<1x8xf32>
    %67 = vector.shape_cast %66 : vector<1x8xf32> to vector<1x1x8xf32>
    %68 = vector.broadcast %67 : vector<1x1x8xf32> to vector<16x16x8xf32>
    %69 = arith.mulf %64, %68 : vector<16x16x8xf32>
    %70 = arith.addf %63, %69 : vector<16x16x8xf32>
    %71 = vector.extract_strided_slice %1 {offsets = [2, 2, 0], sizes = [16, 16, 8], strides = [1, 1, 1]} : vector<20x20x8xf32> to vector<16x16x8xf32>
    %72 = vector.extract_strided_slice %3 {offsets = [1, 1, 0, 0], sizes = [1, 1, 1, 8], strides = [1, 1, 1, 1]} : vector<3x3x1x8xf32> to vector<1x1x1x8xf32>
    %73 = vector.shape_cast %72 : vector<1x1x1x8xf32> to vector<1x8xf32>
    %74 = vector.shape_cast %73 : vector<1x8xf32> to vector<1x1x8xf32>
    %75 = vector.broadcast %74 : vector<1x1x8xf32> to vector<16x16x8xf32>
    %76 = arith.mulf %71, %75 : vector<16x16x8xf32>
    %77 = arith.addf %70, %76 : vector<16x16x8xf32>
    %78 = vector.extract_strided_slice %1 {offsets = [2, 3, 0], sizes = [16, 16, 8], strides = [1, 1, 1]} : vector<20x20x8xf32> to vector<16x16x8xf32>
    %79 = vector.extract_strided_slice %2 {offsets = [1, 2, 0, 0], sizes = [1, 1, 1, 8], strides = [1, 1, 1, 1]} : vector<3x3x1x8xf32> to vector<1x1x1x8xf32>
    %80 = vector.shape_cast %79 : vector<1x1x1x8xf32> to vector<1x8xf32>
    %81 = vector.shape_cast %80 : vector<1x8xf32> to vector<1x1x8xf32>
    %82 = vector.broadcast %81 : vector<1x1x8xf32> to vector<16x16x8xf32>
    %83 = arith.mulf %78, %82 : vector<16x16x8xf32>
    %84 = arith.addf %77, %83 : vector<16x16x8xf32>
    %85 = vector.extract_strided_slice %1 {offsets = [2, 4, 0], sizes = [16, 16, 8], strides = [1, 1, 1]} : vector<20x20x8xf32> to vector<16x16x8xf32>
    %86 = vector.extract_strided_slice %3 {offsets = [1, 2, 0, 0], sizes = [1, 1, 1, 8], strides = [1, 1, 1, 1]} : vector<3x3x1x8xf32> to vector<1x1x1x8xf32>
    %87 = vector.shape_cast %86 : vector<1x1x1x8xf32> to vector<1x8xf32>
    %88 = vector.shape_cast %87 : vector<1x8xf32> to vector<1x1x8xf32>
    %89 = vector.broadcast %88 : vector<1x1x8xf32> to vector<16x16x8xf32>
    %90 = arith.mulf %85, %89 : vector<16x16x8xf32>
    %91 = arith.addf %84, %90 : vector<16x16x8xf32>
    %92 = vector.extract_strided_slice %1 {offsets = [3, 1, 0], sizes = [16, 16, 8], strides = [1, 1, 1]} : vector<20x20x8xf32> to vector<16x16x8xf32>
    %93 = vector.extract_strided_slice %2 {offsets = [2, 0, 0, 0], sizes = [1, 1, 1, 8], strides = [1, 1, 1, 1]} : vector<3x3x1x8xf32> to vector<1x1x1x8xf32>
    %94 = vector.shape_cast %93 : vector<1x1x1x8xf32> to vector<1x8xf32>
    %95 = vector.shape_cast %94 : vector<1x8xf32> to vector<1x1x8xf32>
    %96 = vector.broadcast %95 : vector<1x1x8xf32> to vector<16x16x8xf32>
    %97 = arith.mulf %92, %96 : vector<16x16x8xf32>
    %98 = arith.addf %91, %97 : vector<16x16x8xf32>
    %99 = vector.extract_strided_slice %1 {offsets = [4, 0, 0], sizes = [16, 16, 8], strides = [1, 1, 1]} : vector<20x20x8xf32> to vector<16x16x8xf32>
    %100 = vector.extract_strided_slice %3 {offsets = [2, 0, 0, 0], sizes = [1, 1, 1, 8], strides = [1, 1, 1, 1]} : vector<3x3x1x8xf32> to vector<1x1x1x8xf32>
    %101 = vector.shape_cast %100 : vector<1x1x1x8xf32> to vector<1x8xf32>
    %102 = vector.shape_cast %101 : vector<1x8xf32> to vector<1x1x8xf32>
    %103 = vector.broadcast %102 : vector<1x1x8xf32> to vector<16x16x8xf32>
    %104 = arith.mulf %99, %103 : vector<16x16x8xf32>
    %105 = arith.addf %98, %104 : vector<16x16x8xf32>
    %106 = vector.extract_strided_slice %1 {offsets = [3, 2, 0], sizes = [16, 16, 8], strides = [1, 1, 1]} : vector<20x20x8xf32> to vector<16x16x8xf32>
    %107 = vector.extract_strided_slice %2 {offsets = [2, 1, 0, 0], sizes = [1, 1, 1, 8], strides = [1, 1, 1, 1]} : vector<3x3x1x8xf32> to vector<1x1x1x8xf32>
    %108 = vector.shape_cast %107 : vector<1x1x1x8xf32> to vector<1x8xf32>
    %109 = vector.shape_cast %108 : vector<1x8xf32> to vector<1x1x8xf32>
    %110 = vector.broadcast %109 : vector<1x1x8xf32> to vector<16x16x8xf32>
    %111 = arith.mulf %106, %110 : vector<16x16x8xf32>
    %112 = arith.addf %105, %111 : vector<16x16x8xf32>
    %113 = vector.extract_strided_slice %1 {offsets = [4, 2, 0], sizes = [16, 16, 8], strides = [1, 1, 1]} : vector<20x20x8xf32> to vector<16x16x8xf32>
    %114 = vector.extract_strided_slice %3 {offsets = [2, 1, 0, 0], sizes = [1, 1, 1, 8], strides = [1, 1, 1, 1]} : vector<3x3x1x8xf32> to vector<1x1x1x8xf32>
    %115 = vector.shape_cast %114 : vector<1x1x1x8xf32> to vector<1x8xf32>
    %116 = vector.shape_cast %115 : vector<1x8xf32> to vector<1x1x8xf32>
    %117 = vector.broadcast %116 : vector<1x1x8xf32> to vector<16x16x8xf32>
    %118 = arith.mulf %113, %117 : vector<16x16x8xf32>
    %119 = arith.addf %112, %118 : vector<16x16x8xf32>
    %120 = vector.extract_strided_slice %1 {offsets = [3, 3, 0], sizes = [16, 16, 8], strides = [1, 1, 1]} : vector<20x20x8xf32> to vector<16x16x8xf32>
    %121 = vector.extract_strided_slice %2 {offsets = [2, 2, 0, 0], sizes = [1, 1, 1, 8], strides = [1, 1, 1, 1]} : vector<3x3x1x8xf32> to vector<1x1x1x8xf32>
    %122 = vector.shape_cast %121 : vector<1x1x1x8xf32> to vector<1x8xf32>
    %123 = vector.shape_cast %122 : vector<1x8xf32> to vector<1x1x8xf32>
    %124 = vector.broadcast %123 : vector<1x1x8xf32> to vector<16x16x8xf32>
    %125 = arith.mulf %120, %124 : vector<16x16x8xf32>
    %126 = arith.addf %119, %125 : vector<16x16x8xf32>
    %127 = vector.extract_strided_slice %1 {offsets = [4, 4, 0], sizes = [16, 16, 8], strides = [1, 1, 1]} : vector<20x20x8xf32> to vector<16x16x8xf32>
    %128 = vector.extract_strided_slice %3 {offsets = [2, 2, 0, 0], sizes = [1, 1, 1, 8], strides = [1, 1, 1, 1]} : vector<3x3x1x8xf32> to vector<1x1x1x8xf32>
    %129 = vector.shape_cast %128 : vector<1x1x1x8xf32> to vector<1x8xf32>
    %130 = vector.shape_cast %129 : vector<1x8xf32> to vector<1x1x8xf32>
    %131 = vector.broadcast %130 : vector<1x1x8xf32> to vector<16x16x8xf32>
    %132 = arith.mulf %127, %131 : vector<16x16x8xf32>
    %133 = arith.addf %126, %132 : vector<16x16x8xf32>
    %c0_14 = arith.constant 0 : index
    %c0_15 = arith.constant 0 : index
    %c0_16 = arith.constant 0 : index
    %c0_17 = arith.constant 0 : index
    %134 = vector.load %arg5[%c0_14, %c0_15, %c0_16, %c0_17] : memref<1x16x16x8xf32, #tpu.memory_space<vmem>>, vector<1x16x16x8xf32>
    %135 = vector.shape_cast %134 : vector<1x16x16x8xf32> to vector<16x16x8xf32>
    %136 = vector.shape_cast %133 : vector<16x16x8xf32> to vector<1x16x16x8xf32>
    tpu.vector_store %arg5[%c0_14, %c0_15, %c0_16, %c0_17], %136 {strides = array<i32>} : memref<1x16x16x8xf32, #tpu.memory_space<vmem>>, vector<1x16x16x8xf32>,
    return
  }
  func.func @transform_0(%arg0: i32) -> (i32, i32, i32, i32) {
    %c0_i32 = arith.constant 0 : i32
    %c0_i32_0 = arith.constant 0 : i32
    %c0_i32_1 = arith.constant 0 : i32
    %c0_i32_2 = arith.constant 0 : i32
    return %arg0, %c0_i32, %c0_i32_0, %c0_i32_1 : i32, i32, i32, i32
  }
  func.func @transform_1(%arg0: i32) -> (i32, i32, i32, i32) {
    %c0_i32 = arith.constant 0 : i32
    %c0_i32_0 = arith.constant 0 : i32
    %c0_i32_1 = arith.constant 0 : i32
    %c0_i32_2 = arith.constant 0 : i32
    %c0_i32_3 = arith.constant 0 : i32
    return %c0_i32, %c0_i32_0, %c0_i32_1, %c0_i32_2 : i32, i32, i32, i32
  }
  func.func @transform_2(%arg0: i32) -> (i32, i32, i32, i32) {
    %c0_i32 = arith.constant 0 : i32
    %c0_i32_0 = arith.constant 0 : i32
    %c0_i32_1 = arith.constant 0 : i32
    %c0_i32_2 = arith.constant 0 : i32
    %c0_i32_3 = arith.constant 0 : i32
    return %c0_i32, %c0_i32_0, %c0_i32_1, %c0_i32_2 : i32, i32, i32, i32
  }
  func.func @transform_3(%arg0: i32) -> (i32, i32, i32) {
    %c0_i32 = arith.constant 0 : i32
    %c0_i32_0 = arith.constant 0 : i32
    %c0_i32_1 = arith.constant 0 : i32
    %c0_i32_2 = arith.constant 0 : i32
    return %c0_i32, %c0_i32_0, %c0_i32_1 : i32, i32, i32
  }
  func.func @transform_4(%arg0: i32) -> (i32, i32, i32, i32) {
    %c0_i32 = arith.constant 0 : i32
    %c0_i32_0 = arith.constant 0 : i32
    %c0_i32_1 = arith.constant 0 : i32
    %c0_i32_2 = arith.constant 0 : i32
    return %arg0, %c0_i32, %c0_i32_0, %c0_i32_1 : i32, i32, i32, i32
  }
}

module attributes {stable_mosaic.version = 11 : i64} {
  func.func @_fpe_kernel(%arg0: i32, %arg1: memref<1x18x11x32xf32, #tpu.memory_space<vmem>>, %arg2: memref<3x3x1x32xf32, #tpu.memory_space<vmem>>, %arg3: memref<1x1x32xf32, #tpu.memory_space<vmem>>, %arg4: memref<1x1x32xf32, #tpu.memory_space<vmem>>, %arg5: memref<1x1x32xf32, #tpu.memory_space<vmem>>, %arg6: memref<1x16x9x32xf32, #tpu.memory_space<vmem>>) attributes {dimension_semantics = [#tpu.dimension_semantics<parallel>], iteration_bounds = array<i64: 2>, scalar_prefetch = 0 : i64, scratch_operands = 0 : i64, tpu.core_type = #tpu.core_type<tc>, window_params = [{transform_indices = @transform_0, window_bounds = array<i64: 1, 18, 11, 32>}, {pipeline_mode = #tpu.pipeline_mode<synchronous>, transform_indices = @transform_1, window_bounds = array<i64: 3, 3, 1, 32>}, {pipeline_mode = #tpu.pipeline_mode<synchronous>, transform_indices = @transform_2, window_bounds = array<i64: 1, 1, 32>}, {pipeline_mode = #tpu.pipeline_mode<synchronous>, transform_indices = @transform_3, window_bounds = array<i64: 1, 1, 32>}, {pipeline_mode = #tpu.pipeline_mode<synchronous>, transform_indices = @transform_4, window_bounds = array<i64: 1, 1, 32>}, {transform_indices = @transform_5, window_bounds = array<i64: 1, 16, 9, 32>}]} {
    %c0 = arith.constant 0 : index
    %c0_0 = arith.constant 0 : index
    %c0_1 = arith.constant 0 : index
    %c0_2 = arith.constant 0 : index
    %0 = vector.load %arg1[%c0, %c0_0, %c0_1, %c0_2] : memref<1x18x11x32xf32, #tpu.memory_space<vmem>>, vector<1x18x11x32xf32>
    %1 = vector.shape_cast %0 : vector<1x18x11x32xf32> to vector<18x11x32xf32>
    %2 = tpu.iota {dimensions = array<i32: 0>} : vector<18x11x32xi32>
    %3 = tpu.iota {dimensions = array<i32: 1>} : vector<18x11x32xi32>
    %c1_i32 = arith.constant 1 : i32
    %4 = vector.broadcast %c1_i32 : i32 to vector<18x11x32xi32>
    %5 = arith.cmpi sge, %2, %4 : vector<18x11x32xi32>
    %c17_i32 = arith.constant 17 : i32
    %6 = vector.broadcast %c17_i32 : i32 to vector<18x11x32xi32>
    %7 = arith.cmpi slt, %2, %6 : vector<18x11x32xi32>
    %8 = arith.andi %5, %7 : vector<18x11x32xi1>
    %c1_i32_3 = arith.constant 1 : i32
    %9 = vector.broadcast %c1_i32_3 : i32 to vector<18x11x32xi32>
    %10 = arith.cmpi sge, %3, %9 : vector<18x11x32xi32>
    %11 = arith.andi %8, %10 : vector<18x11x32xi1>
    %c10_i32 = arith.constant 10 : i32
    %12 = vector.broadcast %c10_i32 : i32 to vector<18x11x32xi32>
    %13 = arith.cmpi slt, %3, %12 : vector<18x11x32xi32>
    %14 = arith.andi %11, %13 : vector<18x11x32xi1>
    %c0_4 = arith.constant 0 : index
    %c0_5 = arith.constant 0 : index
    %c0_6 = arith.constant 0 : index
    %15 = vector.load %arg4[%c0_4, %c0_5, %c0_6] : memref<1x1x32xf32, #tpu.memory_space<vmem>>, vector<1x1x32xf32>
    %16 = vector.broadcast %15 : vector<1x1x32xf32> to vector<18x11x32xf32>
    %17 = arith.mulf %1, %16 : vector<18x11x32xf32>
    %c0_7 = arith.constant 0 : index
    %c0_8 = arith.constant 0 : index
    %c0_9 = arith.constant 0 : index
    %18 = vector.load %arg5[%c0_7, %c0_8, %c0_9] : memref<1x1x32xf32, #tpu.memory_space<vmem>>, vector<1x1x32xf32>
    %19 = vector.broadcast %18 : vector<1x1x32xf32> to vector<18x11x32xf32>
    %20 = arith.addf %17, %19 : vector<18x11x32xf32>
    %cst = arith.constant 0.000000e+00 : f32
    %21 = vector.broadcast %cst : f32 to vector<18x11x32xf32>
    %22 = arith.select %14, %20, %21 : vector<18x11x32xi1>, vector<18x11x32xf32>
    %c0_10 = arith.constant 0 : index
    %c0_11 = arith.constant 0 : index
    %c0_12 = arith.constant 0 : index
    %c0_13 = arith.constant 0 : index
    %23 = vector.load %arg2[%c0_10, %c0_11, %c0_12, %c0_13] : memref<3x3x1x32xf32, #tpu.memory_space<vmem>>, vector<3x3x1x32xf32>
    %cst_14 = arith.constant 0.000000e+00 : f32
    %24 = vector.broadcast %cst_14 : f32 to vector<16x9x32xf32>
    %c0_15 = arith.constant 0 : index
    %c0_16 = arith.constant 0 : index
    %c0_17 = arith.constant 0 : index
    %25 = vector.load %arg3[%c0_15, %c0_16, %c0_17] : memref<1x1x32xf32, #tpu.memory_space<vmem>>, vector<1x1x32xf32>
    %26 = vector.broadcast %25 : vector<1x1x32xf32> to vector<16x9x32xf32>
    %27 = arith.addf %24, %26 : vector<16x9x32xf32>
    %28 = vector.extract_strided_slice %22 {offsets = [0, 0, 0], sizes = [16, 9, 32], strides = [1, 1, 1]} : vector<18x11x32xf32> to vector<16x9x32xf32>
    %29 = vector.extract_strided_slice %23 {offsets = [0, 0, 0, 0], sizes = [1, 1, 1, 32], strides = [1, 1, 1, 1]} : vector<3x3x1x32xf32> to vector<1x1x1x32xf32>
    %30 = vector.shape_cast %29 : vector<1x1x1x32xf32> to vector<1x32xf32>
    %31 = vector.shape_cast %30 : vector<1x32xf32> to vector<1x1x32xf32>
    %32 = vector.broadcast %31 : vector<1x1x32xf32> to vector<16x9x32xf32>
    %33 = arith.mulf %28, %32 : vector<16x9x32xf32>
    %34 = arith.addf %27, %33 : vector<16x9x32xf32>
    %35 = vector.extract_strided_slice %22 {offsets = [0, 1, 0], sizes = [16, 9, 32], strides = [1, 1, 1]} : vector<18x11x32xf32> to vector<16x9x32xf32>
    %36 = vector.extract_strided_slice %23 {offsets = [0, 1, 0, 0], sizes = [1, 1, 1, 32], strides = [1, 1, 1, 1]} : vector<3x3x1x32xf32> to vector<1x1x1x32xf32>
    %37 = vector.shape_cast %36 : vector<1x1x1x32xf32> to vector<1x32xf32>
    %38 = vector.shape_cast %37 : vector<1x32xf32> to vector<1x1x32xf32>
    %39 = vector.broadcast %38 : vector<1x1x32xf32> to vector<16x9x32xf32>
    %40 = arith.mulf %35, %39 : vector<16x9x32xf32>
    %41 = arith.addf %34, %40 : vector<16x9x32xf32>
    %42 = vector.extract_strided_slice %22 {offsets = [0, 2, 0], sizes = [16, 9, 32], strides = [1, 1, 1]} : vector<18x11x32xf32> to vector<16x9x32xf32>
    %43 = vector.extract_strided_slice %23 {offsets = [0, 2, 0, 0], sizes = [1, 1, 1, 32], strides = [1, 1, 1, 1]} : vector<3x3x1x32xf32> to vector<1x1x1x32xf32>
    %44 = vector.shape_cast %43 : vector<1x1x1x32xf32> to vector<1x32xf32>
    %45 = vector.shape_cast %44 : vector<1x32xf32> to vector<1x1x32xf32>
    %46 = vector.broadcast %45 : vector<1x1x32xf32> to vector<16x9x32xf32>
    %47 = arith.mulf %42, %46 : vector<16x9x32xf32>
    %48 = arith.addf %41, %47 : vector<16x9x32xf32>
    %49 = vector.extract_strided_slice %22 {offsets = [1, 0, 0], sizes = [16, 9, 32], strides = [1, 1, 1]} : vector<18x11x32xf32> to vector<16x9x32xf32>
    %50 = vector.extract_strided_slice %23 {offsets = [1, 0, 0, 0], sizes = [1, 1, 1, 32], strides = [1, 1, 1, 1]} : vector<3x3x1x32xf32> to vector<1x1x1x32xf32>
    %51 = vector.shape_cast %50 : vector<1x1x1x32xf32> to vector<1x32xf32>
    %52 = vector.shape_cast %51 : vector<1x32xf32> to vector<1x1x32xf32>
    %53 = vector.broadcast %52 : vector<1x1x32xf32> to vector<16x9x32xf32>
    %54 = arith.mulf %49, %53 : vector<16x9x32xf32>
    %55 = arith.addf %48, %54 : vector<16x9x32xf32>
    %56 = vector.extract_strided_slice %22 {offsets = [1, 1, 0], sizes = [16, 9, 32], strides = [1, 1, 1]} : vector<18x11x32xf32> to vector<16x9x32xf32>
    %57 = vector.extract_strided_slice %23 {offsets = [1, 1, 0, 0], sizes = [1, 1, 1, 32], strides = [1, 1, 1, 1]} : vector<3x3x1x32xf32> to vector<1x1x1x32xf32>
    %58 = vector.shape_cast %57 : vector<1x1x1x32xf32> to vector<1x32xf32>
    %59 = vector.shape_cast %58 : vector<1x32xf32> to vector<1x1x32xf32>
    %60 = vector.broadcast %59 : vector<1x1x32xf32> to vector<16x9x32xf32>
    %61 = arith.mulf %56, %60 : vector<16x9x32xf32>
    %62 = arith.addf %55, %61 : vector<16x9x32xf32>
    %63 = vector.extract_strided_slice %22 {offsets = [1, 2, 0], sizes = [16, 9, 32], strides = [1, 1, 1]} : vector<18x11x32xf32> to vector<16x9x32xf32>
    %64 = vector.extract_strided_slice %23 {offsets = [1, 2, 0, 0], sizes = [1, 1, 1, 32], strides = [1, 1, 1, 1]} : vector<3x3x1x32xf32> to vector<1x1x1x32xf32>
    %65 = vector.shape_cast %64 : vector<1x1x1x32xf32> to vector<1x32xf32>
    %66 = vector.shape_cast %65 : vector<1x32xf32> to vector<1x1x32xf32>
    %67 = vector.broadcast %66 : vector<1x1x32xf32> to vector<16x9x32xf32>
    %68 = arith.mulf %63, %67 : vector<16x9x32xf32>
    %69 = arith.addf %62, %68 : vector<16x9x32xf32>
    %70 = vector.extract_strided_slice %22 {offsets = [2, 0, 0], sizes = [16, 9, 32], strides = [1, 1, 1]} : vector<18x11x32xf32> to vector<16x9x32xf32>
    %71 = vector.extract_strided_slice %23 {offsets = [2, 0, 0, 0], sizes = [1, 1, 1, 32], strides = [1, 1, 1, 1]} : vector<3x3x1x32xf32> to vector<1x1x1x32xf32>
    %72 = vector.shape_cast %71 : vector<1x1x1x32xf32> to vector<1x32xf32>
    %73 = vector.shape_cast %72 : vector<1x32xf32> to vector<1x1x32xf32>
    %74 = vector.broadcast %73 : vector<1x1x32xf32> to vector<16x9x32xf32>
    %75 = arith.mulf %70, %74 : vector<16x9x32xf32>
    %76 = arith.addf %69, %75 : vector<16x9x32xf32>
    %77 = vector.extract_strided_slice %22 {offsets = [2, 1, 0], sizes = [16, 9, 32], strides = [1, 1, 1]} : vector<18x11x32xf32> to vector<16x9x32xf32>
    %78 = vector.extract_strided_slice %23 {offsets = [2, 1, 0, 0], sizes = [1, 1, 1, 32], strides = [1, 1, 1, 1]} : vector<3x3x1x32xf32> to vector<1x1x1x32xf32>
    %79 = vector.shape_cast %78 : vector<1x1x1x32xf32> to vector<1x32xf32>
    %80 = vector.shape_cast %79 : vector<1x32xf32> to vector<1x1x32xf32>
    %81 = vector.broadcast %80 : vector<1x1x32xf32> to vector<16x9x32xf32>
    %82 = arith.mulf %77, %81 : vector<16x9x32xf32>
    %83 = arith.addf %76, %82 : vector<16x9x32xf32>
    %84 = vector.extract_strided_slice %22 {offsets = [2, 2, 0], sizes = [16, 9, 32], strides = [1, 1, 1]} : vector<18x11x32xf32> to vector<16x9x32xf32>
    %85 = vector.extract_strided_slice %23 {offsets = [2, 2, 0, 0], sizes = [1, 1, 1, 32], strides = [1, 1, 1, 1]} : vector<3x3x1x32xf32> to vector<1x1x1x32xf32>
    %86 = vector.shape_cast %85 : vector<1x1x1x32xf32> to vector<1x32xf32>
    %87 = vector.shape_cast %86 : vector<1x32xf32> to vector<1x1x32xf32>
    %88 = vector.broadcast %87 : vector<1x1x32xf32> to vector<16x9x32xf32>
    %89 = arith.mulf %84, %88 : vector<16x9x32xf32>
    %90 = arith.addf %83, %89 : vector<16x9x32xf32>
    %91 = vector.extract_strided_slice %22 {offsets = [1, 1, 0], sizes = [16, 9, 32], strides = [1, 1, 1]} : vector<18x11x32xf32> to vector<16x9x32xf32>
    %92 = arith.addf %90, %91 : vector<16x9x32xf32>
    %c0_18 = arith.constant 0 : index
    %c0_19 = arith.constant 0 : index
    %c0_20 = arith.constant 0 : index
    %c0_21 = arith.constant 0 : index
    %93 = vector.load %arg6[%c0_18, %c0_19, %c0_20, %c0_21] : memref<1x16x9x32xf32, #tpu.memory_space<vmem>>, vector<1x16x9x32xf32>
    %94 = vector.shape_cast %93 : vector<1x16x9x32xf32> to vector<16x9x32xf32>
    %95 = vector.shape_cast %92 : vector<16x9x32xf32> to vector<1x16x9x32xf32>
    tpu.vector_store %arg6[%c0_18, %c0_19, %c0_20, %c0_21], %95 {strides = array<i32>} : memref<1x16x9x32xf32, #tpu.memory_space<vmem>>, vector<1x16x9x32xf32>,
    return
  }
  func.func @transform_0(%arg0: i32) -> (i32, i32, i32, i32) {
    %c0_i32 = arith.constant 0 : i32
    %c0_i32_0 = arith.constant 0 : i32
    %c0_i32_1 = arith.constant 0 : i32
    %c0_i32_2 = arith.constant 0 : i32
    return %arg0, %c0_i32, %c0_i32_0, %c0_i32_1 : i32, i32, i32, i32
  }
  func.func @transform_1(%arg0: i32) -> (i32, i32, i32, i32) {
    %c0_i32 = arith.constant 0 : i32
    %c0_i32_0 = arith.constant 0 : i32
    %c0_i32_1 = arith.constant 0 : i32
    %c0_i32_2 = arith.constant 0 : i32
    %c0_i32_3 = arith.constant 0 : i32
    return %c0_i32, %c0_i32_0, %c0_i32_1, %c0_i32_2 : i32, i32, i32, i32
  }
  func.func @transform_2(%arg0: i32) -> (i32, i32, i32) {
    %c0_i32 = arith.constant 0 : i32
    %c0_i32_0 = arith.constant 0 : i32
    %c0_i32_1 = arith.constant 0 : i32
    %c0_i32_2 = arith.constant 0 : i32
    return %c0_i32, %c0_i32_0, %c0_i32_1 : i32, i32, i32
  }
  func.func @transform_3(%arg0: i32) -> (i32, i32, i32) {
    %c0_i32 = arith.constant 0 : i32
    %c0_i32_0 = arith.constant 0 : i32
    %c0_i32_1 = arith.constant 0 : i32
    %c0_i32_2 = arith.constant 0 : i32
    return %c0_i32, %c0_i32_0, %c0_i32_1 : i32, i32, i32
  }
  func.func @transform_4(%arg0: i32) -> (i32, i32, i32) {
    %c0_i32 = arith.constant 0 : i32
    %c0_i32_0 = arith.constant 0 : i32
    %c0_i32_1 = arith.constant 0 : i32
    %c0_i32_2 = arith.constant 0 : i32
    return %c0_i32, %c0_i32_0, %c0_i32_1 : i32, i32, i32
  }
  func.func @transform_5(%arg0: i32) -> (i32, i32, i32, i32) {
    %c0_i32 = arith.constant 0 : i32
    %c0_i32_0 = arith.constant 0 : i32
    %c0_i32_1 = arith.constant 0 : i32
    %c0_i32_2 = arith.constant 0 : i32
    return %arg0, %c0_i32, %c0_i32_0, %c0_i32_1 : i32, i32, i32, i32
  }
}

module attributes {stable_mosaic.version = 11 : i64} {
  func.func @_fdc_kernel(%arg0: i32, %arg1: memref<288x32xf32, #tpu.memory_space<vmem>>, %arg2: memref<32x4xf32, #tpu.memory_space<vmem>>, %arg3: memref<1x4xf32, #tpu.memory_space<vmem>>, %arg4: memref<32x128xf32, #tpu.memory_space<vmem>>, %arg5: memref<1x128xf32, #tpu.memory_space<vmem>>, %arg6: memref<288x32xf32, #tpu.memory_space<vmem>>) attributes {dimension_semantics = [#tpu.dimension_semantics<parallel>], iteration_bounds = array<i64: 1>, scalar_prefetch = 0 : i64, scratch_operands = 0 : i64, tpu.core_type = #tpu.core_type<tc>, window_params = [{transform_indices = @transform_0, window_bounds = array<i64: 288, 32>}, {pipeline_mode = #tpu.pipeline_mode<synchronous>, transform_indices = @transform_1, window_bounds = array<i64: 32, 4>}, {pipeline_mode = #tpu.pipeline_mode<synchronous>, transform_indices = @transform_2, window_bounds = array<i64: 1, 4>}, {pipeline_mode = #tpu.pipeline_mode<synchronous>, transform_indices = @transform_3, window_bounds = array<i64: 32, 128>}, {pipeline_mode = #tpu.pipeline_mode<synchronous>, transform_indices = @transform_4, window_bounds = array<i64: 1, 128>}, {transform_indices = @transform_5, window_bounds = array<i64: 288, 32>}]} {
    %c0 = arith.constant 0 : index
    %c0_0 = arith.constant 0 : index
    %0 = vector.load %arg1[%c0, %c0_0] : memref<288x32xf32, #tpu.memory_space<vmem>>, vector<288x32xf32>
    %c0_1 = arith.constant 0 : index
    %c0_2 = arith.constant 0 : index
    %1 = vector.load %arg2[%c0_1, %c0_2] : memref<32x4xf32, #tpu.memory_space<vmem>>, vector<32x4xf32>
    %2 = arith.truncf %0 : vector<288x32xf32> to vector<288x32xbf16>
    %3 = arith.truncf %1 : vector<32x4xf32> to vector<32x4xbf16>
    %cst = arith.constant dense<0.000000e+00> : vector<288x4xf32>
    %4 = tpu.matmul %2, %3, %cst {dimension_numbers = #tpu.dot_dimension_numbers<[1], [0], [0], [1], [0, 0, 1, 1], [], []>} : vector<288x32xbf16>, vector<32x4xbf16>, vector<288x4xf32> -> vector<288x4xf32>
    %c0_3 = arith.constant 0 : index
    %c0_4 = arith.constant 0 : index
    %5 = vector.load %arg3[%c0_3, %c0_4] : memref<1x4xf32, #tpu.memory_space<vmem>>, vector<1x4xf32>
    %6 = vector.broadcast %5 : vector<1x4xf32> to vector<288x4xf32>
    %7 = arith.addf %4, %6 : vector<288x4xf32>
    %cst_5 = arith.constant dense<0xFF800000> : vector<288xf32>
    %8 = vector.multi_reduction <maximumf>, %7, %cst_5 [1] : vector<288x4xf32> to vector<288xf32>
    %9 = vector.shape_cast %8 : vector<288xf32> to vector<288x1xf32>
    %10 = vector.broadcast %9 : vector<288x1xf32> to vector<288x4xf32>
    %11 = arith.subf %7, %10 : vector<288x4xf32>
    %12 = math.exp %11 : vector<288x4xf32>
    %cst_6 = arith.constant dense<0.000000e+00> : vector<288xf32>
    %13 = vector.multi_reduction <add>, %12, %cst_6 [1] : vector<288x4xf32> to vector<288xf32>
    %14 = vector.shape_cast %13 : vector<288xf32> to vector<288x1xf32>
    %15 = vector.broadcast %14 : vector<288x1xf32> to vector<288x4xf32>
    %16 = arith.divf %12, %15 : vector<288x4xf32>
    %c0_7 = arith.constant 0 : index
    %c0_8 = arith.constant 0 : index
    %17 = vector.load %arg4[%c0_7, %c0_8] : memref<32x128xf32, #tpu.memory_space<vmem>>, vector<32x128xf32>
    %18 = arith.truncf %0 : vector<288x32xf32> to vector<288x32xbf16>
    %19 = arith.truncf %17 : vector<32x128xf32> to vector<32x128xbf16>
    %cst_9 = arith.constant dense<0.000000e+00> : vector<288x128xf32>
    %20 = tpu.matmul %18, %19, %cst_9 {dimension_numbers = #tpu.dot_dimension_numbers<[1], [0], [0], [1], [0, 0, 1, 1], [], []>} : vector<288x32xbf16>, vector<32x128xbf16>, vector<288x128xf32> -> vector<288x128xf32>
    %c0_10 = arith.constant 0 : index
    %c0_11 = arith.constant 0 : index
    %21 = vector.load %arg5[%c0_10, %c0_11] : memref<1x128xf32, #tpu.memory_space<vmem>>, vector<1x128xf32>
    %22 = vector.broadcast %21 : vector<1x128xf32> to vector<288x128xf32>
    %23 = arith.addf %20, %22 : vector<288x128xf32>
    %cst_12 = arith.constant 0.000000e+00 : f32
    %24 = vector.broadcast %cst_12 : f32 to vector<288x32xf32>
    %25 = vector.extract_strided_slice %16 {offsets = [0, 0], sizes = [288, 1], strides = [1, 1]} : vector<288x4xf32> to vector<288x1xf32>
    %26 = vector.extract_strided_slice %23 {offsets = [0, 0], sizes = [288, 32], strides = [1, 1]} : vector<288x128xf32> to vector<288x32xf32>
    %27 = vector.broadcast %25 : vector<288x1xf32> to vector<288x32xf32>
    %28 = arith.mulf %27, %26 : vector<288x32xf32>
    %29 = arith.addf %24, %28 : vector<288x32xf32>
    %30 = vector.extract_strided_slice %16 {offsets = [0, 1], sizes = [288, 1], strides = [1, 1]} : vector<288x4xf32> to vector<288x1xf32>
    %31 = vector.extract_strided_slice %23 {offsets = [0, 32], sizes = [288, 32], strides = [1, 1]} : vector<288x128xf32> to vector<288x32xf32>
    %32 = vector.broadcast %30 : vector<288x1xf32> to vector<288x32xf32>
    %33 = arith.mulf %32, %31 : vector<288x32xf32>
    %34 = arith.addf %29, %33 : vector<288x32xf32>
    %35 = vector.extract_strided_slice %16 {offsets = [0, 2], sizes = [288, 1], strides = [1, 1]} : vector<288x4xf32> to vector<288x1xf32>
    %36 = vector.extract_strided_slice %23 {offsets = [0, 64], sizes = [288, 32], strides = [1, 1]} : vector<288x128xf32> to vector<288x32xf32>
    %37 = vector.broadcast %35 : vector<288x1xf32> to vector<288x32xf32>
    %38 = arith.mulf %37, %36 : vector<288x32xf32>
    %39 = arith.addf %34, %38 : vector<288x32xf32>
    %40 = vector.extract_strided_slice %16 {offsets = [0, 3], sizes = [288, 1], strides = [1, 1]} : vector<288x4xf32> to vector<288x1xf32>
    %41 = vector.extract_strided_slice %23 {offsets = [0, 96], sizes = [288, 32], strides = [1, 1]} : vector<288x128xf32> to vector<288x32xf32>
    %42 = vector.broadcast %40 : vector<288x1xf32> to vector<288x32xf32>
    %43 = arith.mulf %42, %41 : vector<288x32xf32>
    %44 = arith.addf %39, %43 : vector<288x32xf32>
    %cst_13 = arith.constant 5.000000e-01 : f32
    %45 = vector.broadcast %cst_13 : f32 to vector<288x32xf32>
    %46 = arith.mulf %45, %44 : vector<288x32xf32>
    %cst_14 = arith.constant 0.707106769 : f32
    %47 = vector.broadcast %cst_14 : f32 to vector<288x32xf32>
    %48 = arith.mulf %44, %47 : vector<288x32xf32>
    %49 = math.erf %48 : vector<288x32xf32>
    %cst_15 = arith.constant 1.000000e+00 : f32
    %50 = vector.broadcast %cst_15 : f32 to vector<288x32xf32>
    %51 = arith.addf %50, %49 : vector<288x32xf32>
    %52 = arith.mulf %46, %51 : vector<288x32xf32>
    %c0_16 = arith.constant 0 : index
    %c0_17 = arith.constant 0 : index
    %53 = vector.load %arg6[%c0_16, %c0_17] : memref<288x32xf32, #tpu.memory_space<vmem>>, vector<288x32xf32>
    tpu.vector_store %arg6[%c0_16, %c0_17], %52 {strides = array<i32>} : memref<288x32xf32, #tpu.memory_space<vmem>>, vector<288x32xf32>,
    return
  }
  func.func @transform_0(%arg0: i32) -> (i32, i32) {
    %c0_i32 = arith.constant 0 : i32
    %c0_i32_0 = arith.constant 0 : i32
    return %arg0, %c0_i32 : i32, i32
  }
  func.func @transform_1(%arg0: i32) -> (i32, i32) {
    %c0_i32 = arith.constant 0 : i32
    %c0_i32_0 = arith.constant 0 : i32
    %c0_i32_1 = arith.constant 0 : i32
    return %c0_i32, %c0_i32_0 : i32, i32
  }
  func.func @transform_2(%arg0: i32) -> (i32, i32) {
    %c0_i32 = arith.constant 0 : i32
    %c0_i32_0 = arith.constant 0 : i32
    %c0_i32_1 = arith.constant 0 : i32
    return %c0_i32, %c0_i32_0 : i32, i32
  }
  func.func @transform_3(%arg0: i32) -> (i32, i32) {
    %c0_i32 = arith.constant 0 : i32
    %c0_i32_0 = arith.constant 0 : i32
    %c0_i32_1 = arith.constant 0 : i32
    return %c0_i32, %c0_i32_0 : i32, i32
  }
  func.func @transform_4(%arg0: i32) -> (i32, i32) {
    %c0_i32 = arith.constant 0 : i32
    %c0_i32_0 = arith.constant 0 : i32
    %c0_i32_1 = arith.constant 0 : i32
    return %c0_i32, %c0_i32_0 : i32, i32
  }
  func.func @transform_5(%arg0: i32) -> (i32, i32) {
    %c0_i32 = arith.constant 0 : i32
    %c0_i32_0 = arith.constant 0 : i32
    return %arg0, %c0_i32 : i32, i32
  }
}

module attributes {stable_mosaic.version = 11 : i64} {
  func.func @_tail_kernel(%arg0: i32, %arg1: memref<1x256x8xf32, #tpu.memory_space<vmem>>, %arg2: memref<1x256x16xf32, #tpu.memory_space<vmem>>, %arg3: memref<1x256x16xf32, #tpu.memory_space<vmem>>, %arg4: memref<16x8xf32, #tpu.memory_space<vmem>>, %arg5: memref<1x8xf32, #tpu.memory_space<vmem>>, %arg6: memref<16x8xf32, #tpu.memory_space<vmem>>, %arg7: memref<1x8xf32, #tpu.memory_space<vmem>>, %arg8: memref<8x16xf32, #tpu.memory_space<vmem>>, %arg9: memref<1x16xf32, #tpu.memory_space<vmem>>, %arg10: memref<16x8xf32, #tpu.memory_space<vmem>>, %arg11: memref<1x8xf32, #tpu.memory_space<vmem>>, %arg12: memref<1x256x8xf32, #tpu.memory_space<vmem>>) attributes {dimension_semantics = [#tpu.dimension_semantics<parallel>], iteration_bounds = array<i64: 2>, scalar_prefetch = 0 : i64, scratch_operands = 0 : i64, tpu.core_type = #tpu.core_type<tc>, window_params = [{transform_indices = @transform_0, window_bounds = array<i64: 1, 256, 8>}, {transform_indices = @transform_1, window_bounds = array<i64: 1, 256, 16>}, {transform_indices = @transform_2, window_bounds = array<i64: 1, 256, 16>}, {pipeline_mode = #tpu.pipeline_mode<synchronous>, transform_indices = @transform_3, window_bounds = array<i64: 16, 8>}, {pipeline_mode = #tpu.pipeline_mode<synchronous>, transform_indices = @transform_4, window_bounds = array<i64: 1, 8>}, {pipeline_mode = #tpu.pipeline_mode<synchronous>, transform_indices = @transform_5, window_bounds = array<i64: 16, 8>}, {pipeline_mode = #tpu.pipeline_mode<synchronous>, transform_indices = @transform_6, window_bounds = array<i64: 1, 8>}, {pipeline_mode = #tpu.pipeline_mode<synchronous>, transform_indices = @transform_7, window_bounds = array<i64: 8, 16>}, {pipeline_mode = #tpu.pipeline_mode<synchronous>, transform_indices = @transform_8, window_bounds = array<i64: 1, 16>}, {pipeline_mode = #tpu.pipeline_mode<synchronous>, transform_indices = @transform_9, window_bounds = array<i64: 16, 8>}, {pipeline_mode = #tpu.pipeline_mode<synchronous>, transform_indices = @transform_10, window_bounds = array<i64: 1, 8>}, {transform_indices = @transform_11, window_bounds = array<i64: 1, 256, 8>}]} {
    %c0 = arith.constant 0 : index
    %c0_0 = arith.constant 0 : index
    %c0_1 = arith.constant 0 : index
    %0 = vector.load %arg2[%c0, %c0_0, %c0_1] : memref<1x256x16xf32, #tpu.memory_space<vmem>>, vector<1x256x16xf32>
    %1 = vector.shape_cast %0 : vector<1x256x16xf32> to vector<256x16xf32>
    %c0_2 = arith.constant 0 : index
    %c0_3 = arith.constant 0 : index
    %c0_4 = arith.constant 0 : index
    %2 = vector.load %arg3[%c0_2, %c0_3, %c0_4] : memref<1x256x16xf32, #tpu.memory_space<vmem>>, vector<1x256x16xf32>
    %3 = vector.shape_cast %2 : vector<1x256x16xf32> to vector<256x16xf32>
    %4 = arith.addf %1, %3 : vector<256x16xf32>
    %c0_5 = arith.constant 0 : index
    %c0_6 = arith.constant 0 : index
    %5 = vector.load %arg4[%c0_5, %c0_6] : memref<16x8xf32, #tpu.memory_space<vmem>>, vector<16x8xf32>
    %6 = arith.truncf %4 : vector<256x16xf32> to vector<256x16xbf16>
    %7 = arith.truncf %5 : vector<16x8xf32> to vector<16x8xbf16>
    %cst = arith.constant dense<0.000000e+00> : vector<256x8xf32>
    %8 = tpu.matmul %6, %7, %cst {dimension_numbers = #tpu.dot_dimension_numbers<[1], [0], [0], [1], [0, 0, 1, 1], [], []>} : vector<256x16xbf16>, vector<16x8xbf16>, vector<256x8xf32> -> vector<256x8xf32>
    %c0_7 = arith.constant 0 : index
    %c0_8 = arith.constant 0 : index
    %9 = vector.load %arg5[%c0_7, %c0_8] : memref<1x8xf32, #tpu.memory_space<vmem>>, vector<1x8xf32>
    %10 = vector.broadcast %9 : vector<1x8xf32> to vector<256x8xf32>
    %11 = arith.addf %8, %10 : vector<256x8xf32>
    %cst_9 = arith.constant 5.000000e-01 : f32
    %12 = vector.broadcast %cst_9 : f32 to vector<256x8xf32>
    %13 = arith.mulf %12, %11 : vector<256x8xf32>
    %cst_10 = arith.constant 0.707106769 : f32
    %14 = vector.broadcast %cst_10 : f32 to vector<256x8xf32>
    %15 = arith.mulf %11, %14 : vector<256x8xf32>
    %16 = math.erf %15 : vector<256x8xf32>
    %cst_11 = arith.constant 1.000000e+00 : f32
    %17 = vector.broadcast %cst_11 : f32 to vector<256x8xf32>
    %18 = arith.addf %17, %16 : vector<256x8xf32>
    %19 = arith.mulf %13, %18 : vector<256x8xf32>
    %c0_12 = arith.constant 0 : index
    %c0_13 = arith.constant 0 : index
    %c0_14 = arith.constant 0 : index
    %20 = vector.load %arg1[%c0_12, %c0_13, %c0_14] : memref<1x256x8xf32, #tpu.memory_space<vmem>>, vector<1x256x8xf32>
    %21 = vector.shape_cast %20 : vector<1x256x8xf32> to vector<256x8xf32>
    %cst_15 = arith.constant 5.000000e-01 : f32
    %22 = vector.broadcast %cst_15 : f32 to vector<256x8xf32>
    %23 = arith.mulf %22, %21 : vector<256x8xf32>
    %cst_16 = arith.constant 0.707106769 : f32
    %24 = vector.broadcast %cst_16 : f32 to vector<256x8xf32>
    %25 = arith.mulf %21, %24 : vector<256x8xf32>
    %26 = math.erf %25 : vector<256x8xf32>
    %cst_17 = arith.constant 1.000000e+00 : f32
    %27 = vector.broadcast %cst_17 : f32 to vector<256x8xf32>
    %28 = arith.addf %27, %26 : vector<256x8xf32>
    %29 = arith.mulf %23, %28 : vector<256x8xf32>
    %cst_18 = arith.constant 5.000000e-01 : f32
    %30 = vector.broadcast %cst_18 : f32 to vector<256x8xf32>
    %31 = arith.mulf %30, %19 : vector<256x8xf32>
    %cst_19 = arith.constant 0.707106769 : f32
    %32 = vector.broadcast %cst_19 : f32 to vector<256x8xf32>
    %33 = arith.mulf %19, %32 : vector<256x8xf32>
    %34 = math.erf %33 : vector<256x8xf32>
    %cst_20 = arith.constant 1.000000e+00 : f32
    %35 = vector.broadcast %cst_20 : f32 to vector<256x8xf32>
    %36 = arith.addf %35, %34 : vector<256x8xf32>
    %37 = arith.mulf %31, %36 : vector<256x8xf32>
    %cst_21 = arith.constant dense<0.000000e+00> : vector<8xf32>
    %38 = vector.multi_reduction <add>, %29, %cst_21 [0] : vector<256x8xf32> to vector<8xf32>
    %39 = vector.shape_cast %38 : vector<8xf32> to vector<1x8xf32>
    %cst_22 = arith.constant 3.906250e-03 : f32
    %40 = vector.broadcast %cst_22 : f32 to vector<1x8xf32>
    %41 = arith.mulf %39, %40 : vector<1x8xf32>
    %cst_23 = arith.constant dense<0.000000e+00> : vector<8xf32>
    %42 = vector.multi_reduction <add>, %37, %cst_23 [0] : vector<256x8xf32> to vector<8xf32>
    %43 = vector.shape_cast %42 : vector<8xf32> to vector<1x8xf32>
    %cst_24 = arith.constant 3.906250e-03 : f32
    %44 = vector.broadcast %cst_24 : f32 to vector<1x8xf32>
    %45 = arith.mulf %43, %44 : vector<1x8xf32>
    %c0_25 = arith.constant 0 : index
    %c0_26 = arith.constant 0 : index
    %46 = vector.load %arg6[%c0_25, %c0_26] : memref<16x8xf32, #tpu.memory_space<vmem>>, vector<16x8xf32>
    %47 = vector.extract_strided_slice %46 {offsets = [0, 0], sizes = [8, 8], strides = [1, 1]} : vector<16x8xf32> to vector<8x8xf32>
    %cst_27 = arith.constant dense<0.000000e+00> : vector<1x8xf32>
    %48 = tpu.matmul %41, %47, %cst_27 {dimension_numbers = #tpu.dot_dimension_numbers<[1], [0], [0], [1], [0, 0, 1, 1], [], []>} : vector<1x8xf32>, vector<8x8xf32>, vector<1x8xf32> -> vector<1x8xf32>
    %49 = vector.extract_strided_slice %46 {offsets = [8, 0], sizes = [8, 8], strides = [1, 1]} : vector<16x8xf32> to vector<8x8xf32>
    %cst_28 = arith.constant dense<0.000000e+00> : vector<1x8xf32>
    %50 = tpu.matmul %45, %49, %cst_28 {dimension_numbers = #tpu.dot_dimension_numbers<[1], [0], [0], [1], [0, 0, 1, 1], [], []>} : vector<1x8xf32>, vector<8x8xf32>, vector<1x8xf32> -> vector<1x8xf32>
    %51 = arith.addf %48, %50 : vector<1x8xf32>
    %c0_29 = arith.constant 0 : index
    %c0_30 = arith.constant 0 : index
    %52 = vector.load %arg7[%c0_29, %c0_30] : memref<1x8xf32, #tpu.memory_space<vmem>>, vector<1x8xf32>
    %53 = arith.addf %51, %52 : vector<1x8xf32>
    %cst_31 = arith.constant 0.000000e+00 : f32
    %54 = vector.broadcast %cst_31 : f32 to vector<1x8xf32>
    %55 = arith.maximumf %53, %54 : vector<1x8xf32>
    %c0_32 = arith.constant 0 : index
    %c0_33 = arith.constant 0 : index
    %56 = vector.load %arg8[%c0_32, %c0_33] : memref<8x16xf32, #tpu.memory_space<vmem>>, vector<8x16xf32>
    %cst_34 = arith.constant dense<0.000000e+00> : vector<1x16xf32>
    %57 = tpu.matmul %55, %56, %cst_34 {dimension_numbers = #tpu.dot_dimension_numbers<[1], [0], [0], [1], [0, 0, 1, 1], [], []>} : vector<1x8xf32>, vector<8x16xf32>, vector<1x16xf32> -> vector<1x16xf32>
    %c0_35 = arith.constant 0 : index
    %c0_36 = arith.constant 0 : index
    %58 = vector.load %arg9[%c0_35, %c0_36] : memref<1x16xf32, #tpu.memory_space<vmem>>, vector<1x16xf32>
    %59 = arith.addf %57, %58 : vector<1x16xf32>
    %cst_37 = arith.constant 0.000000e+00 : f32
    %60 = vector.broadcast %cst_37 : f32 to vector<1x16xf32>
    %61 = arith.subf %60, %59 : vector<1x16xf32>
    %62 = math.exp %61 : vector<1x16xf32>
    %cst_38 = arith.constant 1.000000e+00 : f32
    %63 = vector.broadcast %cst_38 : f32 to vector<1x16xf32>
    %64 = arith.addf %63, %62 : vector<1x16xf32>
    %cst_39 = arith.constant 1.000000e+00 : f32
    %65 = vector.broadcast %cst_39 : f32 to vector<1x16xf32>
    %66 = arith.divf %65, %64 : vector<1x16xf32>
    %67 = vector.extract_strided_slice %66 {offsets = [0, 0], sizes = [1, 8], strides = [1, 1]} : vector<1x16xf32> to vector<1x8xf32>
    %68 = vector.extract_strided_slice %66 {offsets = [0, 8], sizes = [1, 8], strides = [1, 1]} : vector<1x16xf32> to vector<1x8xf32>
    %c0_40 = arith.constant 0 : index
    %c0_41 = arith.constant 0 : index
    %69 = vector.load %arg10[%c0_40, %c0_41] : memref<16x8xf32, #tpu.memory_space<vmem>>, vector<16x8xf32>
    %70 = vector.broadcast %67 : vector<1x8xf32> to vector<256x8xf32>
    %71 = arith.mulf %29, %70 : vector<256x8xf32>
    %72 = vector.extract_strided_slice %69 {offsets = [0, 0], sizes = [8, 8], strides = [1, 1]} : vector<16x8xf32> to vector<8x8xf32>
    %73 = arith.truncf %71 : vector<256x8xf32> to vector<256x8xbf16>
    %74 = arith.truncf %72 : vector<8x8xf32> to vector<8x8xbf16>
    %cst_42 = arith.constant dense<0.000000e+00> : vector<256x8xf32>
    %75 = tpu.matmul %73, %74, %cst_42 {dimension_numbers = #tpu.dot_dimension_numbers<[1], [0], [0], [1], [0, 0, 1, 1], [], []>} : vector<256x8xbf16>, vector<8x8xbf16>, vector<256x8xf32> -> vector<256x8xf32>
    %76 = vector.broadcast %68 : vector<1x8xf32> to vector<256x8xf32>
    %77 = arith.mulf %37, %76 : vector<256x8xf32>
    %78 = vector.extract_strided_slice %69 {offsets = [8, 0], sizes = [8, 8], strides = [1, 1]} : vector<16x8xf32> to vector<8x8xf32>
    %79 = arith.truncf %77 : vector<256x8xf32> to vector<256x8xbf16>
    %80 = arith.truncf %78 : vector<8x8xf32> to vector<8x8xbf16>
    %cst_43 = arith.constant dense<0.000000e+00> : vector<256x8xf32>
    %81 = tpu.matmul %79, %80, %cst_43 {dimension_numbers = #tpu.dot_dimension_numbers<[1], [0], [0], [1], [0, 0, 1, 1], [], []>} : vector<256x8xbf16>, vector<8x8xbf16>, vector<256x8xf32> -> vector<256x8xf32>
    %82 = arith.addf %75, %81 : vector<256x8xf32>
    %c0_44 = arith.constant 0 : index
    %c0_45 = arith.constant 0 : index
    %83 = vector.load %arg11[%c0_44, %c0_45] : memref<1x8xf32, #tpu.memory_space<vmem>>, vector<1x8xf32>
    %84 = vector.broadcast %83 : vector<1x8xf32> to vector<256x8xf32>
    %85 = arith.addf %82, %84 : vector<256x8xf32>
    %c0_46 = arith.constant 0 : index
    %c0_47 = arith.constant 0 : index
    %c0_48 = arith.constant 0 : index
    %86 = vector.load %arg12[%c0_46, %c0_47, %c0_48] : memref<1x256x8xf32, #tpu.memory_space<vmem>>, vector<1x256x8xf32>
    %87 = vector.shape_cast %86 : vector<1x256x8xf32> to vector<256x8xf32>
    %88 = vector.shape_cast %85 : vector<256x8xf32> to vector<1x256x8xf32>
    tpu.vector_store %arg12[%c0_46, %c0_47, %c0_48], %88 {strides = array<i32>} : memref<1x256x8xf32, #tpu.memory_space<vmem>>, vector<1x256x8xf32>,
    return
  }
  func.func @transform_0(%arg0: i32) -> (i32, i32, i32) {
    %c0_i32 = arith.constant 0 : i32
    %c0_i32_0 = arith.constant 0 : i32
    %c0_i32_1 = arith.constant 0 : i32
    return %arg0, %c0_i32, %c0_i32_0 : i32, i32, i32
  }
  func.func @transform_1(%arg0: i32) -> (i32, i32, i32) {
    %c0_i32 = arith.constant 0 : i32
    %c0_i32_0 = arith.constant 0 : i32
    %c0_i32_1 = arith.constant 0 : i32
    return %arg0, %c0_i32, %c0_i32_0 : i32, i32, i32
  }
  func.func @transform_2(%arg0: i32) -> (i32, i32, i32) {
    %c0_i32 = arith.constant 0 : i32
    %c0_i32_0 = arith.constant 0 : i32
    %c0_i32_1 = arith.constant 0 : i32
    return %arg0, %c0_i32, %c0_i32_0 : i32, i32, i32
  }
  func.func @transform_3(%arg0: i32) -> (i32, i32) {
    %c0_i32 = arith.constant 0 : i32
    %c0_i32_0 = arith.constant 0 : i32
    %c0_i32_1 = arith.constant 0 : i32
    return %c0_i32, %c0_i32_0 : i32, i32
  }
  func.func @transform_4(%arg0: i32) -> (i32, i32) {
    %c0_i32 = arith.constant 0 : i32
    %c0_i32_0 = arith.constant 0 : i32
    %c0_i32_1 = arith.constant 0 : i32
    return %c0_i32, %c0_i32_0 : i32, i32
  }
  func.func @transform_5(%arg0: i32) -> (i32, i32) {
    %c0_i32 = arith.constant 0 : i32
    %c0_i32_0 = arith.constant 0 : i32
    %c0_i32_1 = arith.constant 0 : i32
    return %c0_i32, %c0_i32_0 : i32, i32
  }
  func.func @transform_6(%arg0: i32) -> (i32, i32) {
    %c0_i32 = arith.constant 0 : i32
    %c0_i32_0 = arith.constant 0 : i32
    %c0_i32_1 = arith.constant 0 : i32
    return %c0_i32, %c0_i32_0 : i32, i32
  }
  func.func @transform_7(%arg0: i32) -> (i32, i32) {
    %c0_i32 = arith.constant 0 : i32
    %c0_i32_0 = arith.constant 0 : i32
    %c0_i32_1 = arith.constant 0 : i32
    return %c0_i32, %c0_i32_0 : i32, i32
  }
  func.func @transform_8(%arg0: i32) -> (i32, i32) {
    %c0_i32 = arith.constant 0 : i32
    %c0_i32_0 = arith.constant 0 : i32
    %c0_i32_1 = arith.constant 0 : i32
    return %c0_i32, %c0_i32_0 : i32, i32
  }
  func.func @transform_9(%arg0: i32) -> (i32, i32) {
    %c0_i32 = arith.constant 0 : i32
    %c0_i32_0 = arith.constant 0 : i32
    %c0_i32_1 = arith.constant 0 : i32
    return %c0_i32, %c0_i32_0 : i32, i32
  }
  func.func @transform_10(%arg0: i32) -> (i32, i32) {
    %c0_i32 = arith.constant 0 : i32
    %c0_i32_0 = arith.constant 0 : i32
    %c0_i32_1 = arith.constant 0 : i32
    return %c0_i32, %c0_i32_0 : i32, i32
  }
  func.func @transform_11(%arg0: i32) -> (i32, i32, i32) {
    %c0_i32 = arith.constant 0 : i32
    %c0_i32_0 = arith.constant 0 : i32
    %c0_i32_1 = arith.constant 0 : i32
    return %arg0, %c0_i32, %c0_i32_0 : i32, i32, i32
  }
}

</mosaic_0001>

<llo_original>
// kernel: lgpm_forward.5
$region0: #{lgpm_forward.5}
  #allocation0 [shape = 'u32[]', space=smem, size = 0x4, offset = 0x4, fixed_abs, tag = 'smem constant byte address 0x4 - core index']
  #allocation1 [shape = 'u32[144,128]{1,0:T(1,128)}', space=vmem, size = 0x12000, scoped, tag = 'internal scratch']
  %s0 = inlined_call_operand.vmem [shape: f32[512,8], index: 0, kind: input, shape index: {}]
  %s1 = inlined_call_operand.vmem [shape: f32[8,8], index: 1, kind: input, shape index: {}]
  %s2 = inlined_call_operand.vmem [shape: f32[1,8], index: 2, kind: input, shape index: {}]
  %s3 = inlined_call_operand.vmem [shape: f32[8,8], index: 3, kind: input, shape index: {}]
  %s4 = inlined_call_operand.vmem [shape: f32[1,8], index: 4, kind: input, shape index: {}]
  %s5 = inlined_call_operand.vmem [shape: f32[8,16], index: 5, kind: input, shape index: {}]
  %s6 = inlined_call_operand.vmem [shape: f32[1,16], index: 6, kind: input, shape index: {}]
  %s7 = inlined_call_operand.vmem [shape: f32[512,8], index: 7, kind: output, shape index: {0}]
  %s8 = inlined_call_operand.vmem [shape: f32[512,16], index: 8, kind: output, shape index: {1}]
  %9 = xla_tuple %s7, %s8
  %s10 = sld [smem:[#allocation0]]
  $region46: #{lgpm_forward.5} parent=0
    _
  %s12 = ssub.s32 1, %s10
  %s13 = scalar_select 0, %s12, %s10
  // Predicated region
  $region2: #{lgpm_forward.5} parent=0 // pred_check
    _
  $region3: #{lgpm_forward.5} parent=0 // pred_check_branch
    %15 = sbr.rel (0) target = $region5
  $region4: #{lgpm_forward.5} parent=0 // pred_region
    _
  $region5: #{lgpm_forward.5} parent=0 // pred_fallthru
    _
  // Predicated region
  $region6: #{lgpm_forward.5} parent=0 // pred_check
    _
  $region7: #{lgpm_forward.5} parent=0 // pred_check_branch
    %17 = sbr.rel (0) target = $region9
  $region8: #{lgpm_forward.5} parent=0 // pred_region
    _
  $region9: #{lgpm_forward.5} parent=0 // pred_fallthru
    _
  // Predicated region
  $region10: #{lgpm_forward.5} parent=0 // pred_check
    _
  $region11: #{lgpm_forward.5} parent=0 // pred_check_branch
    %19 = sbr.rel (0) target = $region13
  $region12: #{lgpm_forward.5} parent=0 // pred_region
    _
  $region13: #{lgpm_forward.5} parent=0 // pred_fallthru
    _
  // Predicated region
  $region14: #{lgpm_forward.5} parent=0 // pred_check
    _
  $region15: #{lgpm_forward.5} parent=0 // pred_check_branch
    %21 = sbr.rel (0) target = $region17
  $region16: #{lgpm_forward.5} parent=0 // pred_region
    _
  $region17: #{lgpm_forward.5} parent=0 // pred_fallthru
    _
  // Predicated region
  $region18: #{lgpm_forward.5} parent=0 // pred_check
    _
  $region19: #{lgpm_forward.5} parent=0 // pred_check_branch
    %23 = sbr.rel (0) target = $region21
  $region20: #{lgpm_forward.5} parent=0 // pred_region
    _
  $region21: #{lgpm_forward.5} parent=0 // pred_fallthru
    _
  // Predicated region
  $region22: #{lgpm_forward.5} parent=0 // pred_check
    _
  $region23: #{lgpm_forward.5} parent=0 // pred_check_branch
    %25 = sbr.rel (0) target = $region25
  $region24: #{lgpm_forward.5} parent=0 // pred_region
    _
  $region25: #{lgpm_forward.5} parent=0 // pred_fallthru
    _
  // Predicated region
  $region26: #{lgpm_forward.5} parent=0 // pred_check
    _
  $region27: #{lgpm_forward.5} parent=0 // pred_check_branch
    %27 = sbr.rel (0) target = $region29
  $region28: #{lgpm_forward.5} parent=0 // pred_region
    _
  $region29: #{lgpm_forward.5} parent=0 // pred_fallthru
    _
  %v29 = vld [vmem:[%s0] sm:$0xff]
  %v30 = vld [vmem:[%s0 + $0x8] sm:$0xff]
  %v31 = vld [vmem:[%s0 + $0x10] sm:$0xff]
  %v32 = vld [vmem:[%s0 + $0x18] sm:$0xff]
  %v33 = vld [vmem:[%s0 + $0x20] sm:$0xff]
  %v34 = vld [vmem:[%s0 + $0x28] sm:$0xff]
  %v35 = vld [vmem:[%s0 + $0x30] sm:$0xff]
  %v36 = vld [vmem:[%s0 + $0x38] sm:$0xff]
  %v37 = vld [vmem:[%s0 + $0x40] sm:$0xff]
  %v38 = vld [vmem:[%s0 + $0x48] sm:$0xff]
  %v39 = vld [vmem:[%s0 + $0x50] sm:$0xff]
  %v40 = vld [vmem:[%s0 + $0x58] sm:$0xff]
  %v41 = vld [vmem:[%s0 + $0x60] sm:$0xff]
  %v42 = vld [vmem:[%s0 + $0x68] sm:$0xff]
  %v43 = vld [vmem:[%s0 + $0x70] sm:$0xff]
  %v44 = vld [vmem:[%s0 + $0x78] sm:$0xff]
  %v45 = vld [vmem:[%s0 + $0x80] sm:$0xff]
  %v46 = vld [vmem:[%s0 + $0x88] sm:$0xff]
  %v47 = vld [vmem:[%s0 + $0x90] sm:$0xff]
  %v48 = vld [vmem:[%s0 + $0x98] sm:$0xff]
  %v49 = vld [vmem:[%s0 + $0xa0] sm:$0xff]
  %v50 = vld [vmem:[%s0 + $0xa8] sm:$0xff]
  %v51 = vld [vmem:[%s0 + $0xb0] sm:$0xff]
  %v52 = vld [vmem:[%s0 + $0xb8] sm:$0xff]
  %v53 = vld [vmem:[%s0 + $0xc0] sm:$0xff]
  %v54 = vld [vmem:[%s0 + $0xc8] sm:$0xff]
  %v55 = vld [vmem:[%s0 + $0xd0] sm:$0xff]
  %v56 = vld [vmem:[%s0 + $0xd8] sm:$0xff]
  %v57 = vld [vmem:[%s0 + $0xe0] sm:$0xff]
  %v58 = vld [vmem:[%s0 + $0xe8] sm:$0xff]
  %v59 = vld [vmem:[%s0 + $0xf0] sm:$0xff]
  %v60 = vld [vmem:[%s0 + $0xf8] sm:$0xff]
  %v61 = vld [vmem:[%s0 + $0x100] sm:$0xff]
  %v62 = vld [vmem:[%s0 + $0x108] sm:$0xff]
  %v63 = vld [vmem:[%s0 + $0x110] sm:$0xff]
  %v64 = vld [vmem:[%s0 + $0x118] sm:$0xff]
  %v65 = vld [vmem:[%s0 + $0x120] sm:$0xff]
  %v66 = vld [vmem:[%s0 + $0x128] sm:$0xff]
  %v67 = vld [vmem:[%s0 + $0x130] sm:$0xff]
  %v68 = vld [vmem:[%s0 + $0x138] sm:$0xff]
  %v69 = vld [vmem:[%s0 + $0x140] sm:$0xff]
  %v70 = vld [vmem:[%s0 + $0x148] sm:$0xff]
  %v71 = vld [vmem:[%s0 + $0x150] sm:$0xff]
  %v72 = vld [vmem:[%s0 + $0x158] sm:$0xff]
  %v73 = vld [vmem:[%s0 + $0x160] sm:$0xff]
  %v74 = vld [vmem:[%s0 + $0x168] sm:$0xff]
  %v75 = vld [vmem:[%s0 + $0x170] sm:$0xff]
  %v76 = vld [vmem:[%s0 + $0x178] sm:$0xff]
  %v77 = vld [vmem:[%s0 + $0x180] sm:$0xff]
  %v78 = vld [vmem:[%s0 + $0x188] sm:$0xff]
  %v79 = vld [vmem:[%s0 + $0x190] sm:$0xff]
  %v80 = vld [vmem:[%s0 + $0x198] sm:$0xff]
  %v81 = vld [vmem:[%s0 + $0x1a0] sm:$0xff]
  %v82 = vld [vmem:[%s0 + $0x1a8] sm:$0xff]
  %v83 = vld [vmem:[%s0 + $0x1b0] sm:$0xff]
  %v84 = vld [vmem:[%s0 + $0x1b8] sm:$0xff]
  %v85 = vld [vmem:[%s0 + $0x1c0] sm:$0xff]
  %v86 = vld [vmem:[%s0 + $0x1c8] sm:$0xff]
  %v87 = vld [vmem:[%s0 + $0x1d0] sm:$0xff]
  %v88 = vld [vmem:[%s0 + $0x1d8] sm:$0xff]
  %v89 = vld [vmem:[%s0 + $0x1e0] sm:$0xff]
  %v90 = vld [vmem:[%s0 + $0x1e8] sm:$0xff]
  %v91 = vld [vmem:[%s0 + $0x1f0] sm:$0xff]
  %v92 = vld [vmem:[%s0 + $0x1f8] sm:$0xff]
  %v93 = vld [vmem:[%s1] sm:$0xff]
  %v94 = vpack.c.bf16 %v30, %v29
  %v95 = vpack.c.bf16 %v32, %v31
  %v96 = vpack.c.bf16 %v34, %v33
  %v97 = vpack.c.bf16 %v36, %v35
  %v98 = vpack.c.bf16 %v38, %v37
  %v99 = vpack.c.bf16 %v40, %v39
  %v100 = vpack.c.bf16 %v42, %v41
  %v101 = vpack.c.bf16 %v44, %v43
  %v102 = vpack.c.bf16 %v46, %v45
  %v103 = vpack.c.bf16 %v48, %v47
  %v104 = vpack.c.bf16 %v50, %v49
  %v105 = vpack.c.bf16 %v52, %v51
  %v106 = vpack.c.bf16 %v54, %v53
  %v107 = vpack.c.bf16 %v56, %v55
  %v108 = vpack.c.bf16 %v58, %v57
  %v109 = vpack.c.bf16 %v60, %v59
  %v110 = vpack.c.bf16 %v62, %v61
  %v111 = vpack.c.bf16 %v64, %v63
  %v112 = vpack.c.bf16 %v66, %v65
  %v113 = vpack.c.bf16 %v68, %v67
  %v114 = vpack.c.bf16 %v70, %v69
  %v115 = vpack.c.bf16 %v72, %v71
  %v116 = vpack.c.bf16 %v74, %v73
  %v117 = vpack.c.bf16 %v76, %v75
  %v118 = vpack.c.bf16 %v78, %v77
  %v119 = vpack.c.bf16 %v80, %v79
  %v120 = vpack.c.bf16 %v82, %v81
  %v121 = vpack.c.bf16 %v84, %v83
  %v122 = vpack.c.bf16 %v86, %v85
  %v123 = vpack.c.bf16 %v88, %v87
  %v124 = vpack.c.bf16 %v90, %v89
  %v125 = vpack.c.bf16 %v92, %v91
  %v126 = vpack.c.bf16 %v93, %v93
  %v127 = vld [vmem:[%s2] sm:$0x1]
  %v129 = vlaneseq
  %v130 = vshrl.u32 %v129, 7
  %v131 = vsub.s32 0, %v130
  %v132 = vrot.slane %v127, %v131
  %vm134 = vcmask 64512
  %v136 = vsel %vm134, %v94, 0
  %v139 = vsel %vm134, %v95, 0
  %v142 = vsel %vm134, %v96, 0
  %v145 = vsel %vm134, %v97, 0
  %v148 = vsel %vm134, %v98, 0
  %v151 = vsel %vm134, %v99, 0
  %v154 = vsel %vm134, %v100, 0
  %v157 = vsel %vm134, %v101, 0
  %v160 = vsel %vm134, %v102, 0
  %v163 = vsel %vm134, %v103, 0
  %v166 = vsel %vm134, %v104, 0
  %v169 = vsel %vm134, %v105, 0
  %v172 = vsel %vm134, %v106, 0
  %v175 = vsel %vm134, %v107, 0
  %v178 = vsel %vm134, %v108, 0
  %v181 = vsel %vm134, %v109, 0
  %v184 = vsel %vm134, %v110, 0
  %v187 = vsel %vm134, %v111, 0
  %v190 = vsel %vm134, %v112, 0
  %v193 = vsel %vm134, %v113, 0
  %v196 = vsel %vm134, %v114, 0
  %v199 = vsel %vm134, %v115, 0
  %v202 = vsel %vm134, %v116, 0
  %v205 = vsel %vm134, %v117, 0
  %v208 = vsel %vm134, %v118, 0
  %v211 = vsel %vm134, %v119, 0
  %v214 = vsel %vm134, %v120, 0
  %v217 = vsel %vm134, %v121, 0
  %v220 = vsel %vm134, %v122, 0
  %v223 = vsel %vm134, %v123, 0
  %v226 = vsel %vm134, %v124, 0
  %v229 = vsel %vm134, %v125, 0
  %vm231 = vcmask 1043456
  %v233 = vsel %vm231, %v126, 0
  %235 = vmatprep.subr.bf16.mxu0 0
  %236 = vmatpush1.bf16.msra.mxu0 %v233
  %237 = vmatprep.subr.bf16.mxu0 0
  %238 = vmatpush1.bf16.msra.mxu0 0
  %239 = vmatprep.subr.bf16.mxu0 0
  %240 = vmatpush1.bf16.msra.mxu0 0
  %241 = vmatprep.subr.bf16.mxu0 0
  %242 = vmatpush1.bf16.msra.mxu0 0
  %243 = vmatprep.subr.bf16.mxu0 0
  %244 = vmatpush1.bf16.msra.mxu0 0
  %245 = vmatprep.subr.bf16.mxu0 0
  %246 = vmatpush1.bf16.msra.mxu0 0
  %247 = vmatprep.subr.bf16.mxu0 0
  %248 = vmatpush1.bf16.msra.mxu0 0
  %249 = vmatprep.subr.bf16.mxu0 0
  %250 = vmatpush1.bf16.msra.mxu0 0
  %251 = vmatprep.subr.bf16.mxu0 0
  %252 = vmatpush1.bf16.msra.mxu0 0
  %253 = vmatprep.subr.bf16.mxu0 0
  %254 = vmatpush1.bf16.msra.mxu0 0
  %255 = vmatprep.subr.bf16.mxu0 0
  %256 = vmatpush1.bf16.msra.mxu0 0
  %257 = vmatprep.subr.bf16.mxu0 0
  %258 = vmatpush1.bf16.msra.mxu0 0
  %259 = vmatprep.subr.bf16.mxu0 0
  %260 = vmatpush1.bf16.msra.mxu0 0
  %261 = vmatprep.subr.bf16.mxu0 0
  %262 = vmatpush1.bf16.msra.mxu0 0
  %263 = vmatprep.subr.bf16.mxu0 0
  %264 = vmatpush1.bf16.msra.mxu0 0
  %265 = vmatprep.subr.bf16.mxu0 0
  %266 = vmatpush1.bf16.msra.mxu0 0
  %267 = vmatprep.mubr.bf16.mxu0 0
  %268 = vmatmul.mubr.bf16.gmra.mrb[0].mxu0 %v136
  %v269 = vpop.f32.mrb[0].mxu0
  %v270 = vadd.f32 %v132, %v269
  %v271 = vpop.f32.mrb[0].mxu0
  %v272 = vpop.f32.mrb[0].mxu0
  %v273 = vadd.f32 %v132, %v272
  %v274 = vpop.f32.mrb[0].mxu0
  %275 = vmatprep.mubr.bf16.mxu0 0
  %276 = vmatmul.mubr.bf16.gmra.mrb[0].mxu0 %v139
  %v277 = vpop.f32.mrb[0].mxu0
  %v278 = vadd.f32 %v132, %v277
  %v279 = vpop.f32.mrb[0].mxu0
  %v280 = vpop.f32.mrb[0].mxu0
  %v281 = vadd.f32 %v132, %v280
  %v282 = vpop.f32.mrb[0].mxu0
  %283 = vmatprep.mubr.bf16.mxu0 0
  %284 = vmatmul.mubr.bf16.gmra.mrb[0].mxu0 %v142
  %v285 = vpop.f32.mrb[0].mxu0
  %v286 = vadd.f32 %v132, %v285
  %v287 = vpop.f32.mrb[0].mxu0
  %v288 = vpop.f32.mrb[0].mxu0
  %v289 = vadd.f32 %v132, %v288
  %v290 = vpop.f32.mrb[0].mxu0
  %291 = vmatprep.mubr.bf16.mxu0 0
  %292 = vmatmul.mubr.bf16.gmra.mrb[0].mxu0 %v145
  %v293 = vpop.f32.mrb[0].mxu0
  %v294 = vadd.f32 %v132, %v293
  %v295 = vpop.f32.mrb[0].mxu0
  %v296 = vpop.f32.mrb[0].mxu0
  %v297 = vadd.f32 %v132, %v296
  %v298 = vpop.f32.mrb[0].mxu0
  %299 = vmatprep.mubr.bf16.mxu0 0
  %300 = vmatmul.mubr.bf16.gmra.mrb[0].mxu0 %v148
  %v301 = vpop.f32.mrb[0].mxu0
  %v302 = vadd.f32 %v132, %v301
  %v303 = vpop.f32.mrb[0].mxu0
  %v304 = vpop.f32.mrb[0].mxu0
  %v305 = vadd.f32 %v132, %v304
  %v306 = vpop.f32.mrb[0].mxu0
  %307 = vmatprep.mubr.bf16.mxu0 0
  %308 = vmatmul.mubr.bf16.gmra.mrb[0].mxu0 %v151
  %v309 = vpop.f32.mrb[0].mxu0
  %v310 = vadd.f32 %v132, %v309
  %v311 = vpop.f32.mrb[0].mxu0
  %v312 = vpop.f32.mrb[0].mxu0
  %v313 = vadd.f32 %v132, %v312
  %v314 = vpop.f32.mrb[0].mxu0
  %315 = vmatprep.mubr.bf16.mxu0 0
  %316 = vmatmul.mubr.bf16.gmra.mrb[0].mxu0 %v154
  %v317 = vpop.f32.mrb[0].mxu0
  %v318 = vadd.f32 %v132, %v317
  %v319 = vpop.f32.mrb[0].mxu0
  %v320 = vpop.f32.mrb[0].mxu0
  %v321 = vadd.f32 %v132, %v320
  %v322 = vpop.f32.mrb[0].mxu0
  %323 = vmatprep.mubr.bf16.mxu0 0
  %324 = vmatmul.mubr.bf16.gmra.mrb[0].mxu0 %v157
  %v325 = vpop.f32.mrb[0].mxu0
  %v326 = vadd.f32 %v132, %v325
  %v327 = vpop.f32.mrb[0].mxu0
  %v328 = vpop.f32.mrb[0].mxu0
  %v329 = vadd.f32 %v132, %v328
  %v330 = vpop.f32.mrb[0].mxu0
  %331 = vmatprep.mubr.bf16.mxu0 0
  %332 = vmatmul.mubr.bf16.gmra.mrb[0].mxu0 %v160
  %v333 = vpop.f32.mrb[0].mxu0
  %v334 = vadd.f32 %v132, %v333
  %v335 = vpop.f32.mrb[0].mxu0
  %v336 = vpop.f32.mrb[0].mxu0
  %v337 = vadd.f32 %v132, %v336
  %v338 = vpop.f32.mrb[0].mxu0
  %339 = vmatprep.mubr.bf16.mxu0 0
  %340 = vmatmul.mubr.bf16.gmra.mrb[0].mxu0 %v163
  %v341 = vpop.f32.mrb[0].mxu0
  %v342 = vadd.f32 %v132, %v341
  %v343 = vpop.f32.mrb[0].mxu0
  %v344 = vpop.f32.mrb[0].mxu0
  %v345 = vadd.f32 %v132, %v344
  %v346 = vpop.f32.mrb[0].mxu0
  %347 = vmatprep.mubr.bf16.mxu0 0
  %348 = vmatmul.mubr.bf16.gmra.mrb[0].mxu0 %v166
  %v349 = vpop.f32.mrb[0].mxu0
  %v350 = vadd.f32 %v132, %v349
  %v351 = vpop.f32.mrb[0].mxu0
  %v352 = vpop.f32.mrb[0].mxu0
  %v353 = vadd.f32 %v132, %v352
  %v354 = vpop.f32.mrb[0].mxu0
  %355 = vmatprep.mubr.bf16.mxu0 0
  %356 = vmatmul.mubr.bf16.gmra.mrb[0].mxu0 %v169
  %v357 = vpop.f32.mrb[0].mxu0
  %v358 = vadd.f32 %v132, %v357
  %v359 = vpop.f32.mrb[0].mxu0
  %v360 = vpop.f32.mrb[0].mxu0
  %v361 = vadd.f32 %v132, %v360
  %v362 = vpop.f32.mrb[0].mxu0
  %363 = vmatprep.mubr.bf16.mxu0 0
  %364 = vmatmul.mubr.bf16.gmra.mrb[0].mxu0 %v172
  %v365 = vpop.f32.mrb[0].mxu0
  %v366 = vadd.f32 %v132, %v365
  %v367 = vpop.f32.mrb[0].mxu0
  %v368 = vpop.f32.mrb[0].mxu0
  %v369 = vadd.f32 %v132, %v368
  %v370 = vpop.f32.mrb[0].mxu0
  %371 = vmatprep.mubr.bf16.mxu0 0
  %372 = vmatmul.mubr.bf16.gmra.mrb[0].mxu0 %v175
  %v373 = vpop.f32.mrb[0].mxu0
  %v374 = vadd.f32 %v132, %v373
  %v375 = vpop.f32.mrb[0].mxu0
  %v376 = vpop.f32.mrb[0].mxu0
  %v377 = vadd.f32 %v132, %v376
  %v378 = vpop.f32.mrb[0].mxu0
  %379 = vmatprep.mubr.bf16.mxu0 0
  %380 = vmatmul.mubr.bf16.gmra.mrb[0].mxu0 %v178
  %v381 = vpop.f32.mrb[0].mxu0
  %v382 = vadd.f32 %v132, %v381
  %v383 = vpop.f32.mrb[0].mxu0
  %v384 = vpop.f32.mrb[0].mxu0
  %v385 = vadd.f32 %v132, %v384
  %v386 = vpop.f32.mrb[0].mxu0
  %387 = vmatprep.mubr.bf16.mxu0 0
  %388 = vmatmul.mubr.bf16.gmra.mrb[0].mxu0 %v181
  %v389 = vpop.f32.mrb[0].mxu0
  %v390 = vadd.f32 %v132, %v389
  %v391 = vpop.f32.mrb[0].mxu0
  %v392 = vpop.f32.mrb[0].mxu0
  %v393 = vadd.f32 %v132, %v392
  %v394 = vpop.f32.mrb[0].mxu0
  %395 = vmatprep.mubr.bf16.mxu0 0
  %396 = vmatmul.mubr.bf16.gmra.mrb[0].mxu0 %v184
  %v397 = vpop.f32.mrb[0].mxu0
  %v398 = vadd.f32 %v132, %v397
  %v399 = vpop.f32.mrb[0].mxu0
  %v400 = vpop.f32.mrb[0].mxu0
  %v401 = vadd.f32 %v132, %v400
  %v402 = vpop.f32.mrb[0].mxu0
  %403 = vmatprep.mubr.bf16.mxu0 0
  %404 = vmatmul.mubr.bf16.gmra.mrb[0].mxu0 %v187
  %v405 = vpop.f32.mrb[0].mxu0
  %v406 = vadd.f32 %v132, %v405
  %v407 = vpop.f32.mrb[0].mxu0
  %v408 = vpop.f32.mrb[0].mxu0
  %v409 = vadd.f32 %v132, %v408
  %v410 = vpop.f32.mrb[0].mxu0
  %411 = vmatprep.mubr.bf16.mxu0 0
  %412 = vmatmul.mubr.bf16.gmra.mrb[0].mxu0 %v190
  %v413 = vpop.f32.mrb[0].mxu0
  %v414 = vadd.f32 %v132, %v413
  %v415 = vpop.f32.mrb[0].mxu0
  %v416 = vpop.f32.mrb[0].mxu0
  %v417 = vadd.f32 %v132, %v416
  %v418 = vpop.f32.mrb[0].mxu0
  %419 = vmatprep.mubr.bf16.mxu0 0
  %420 = vmatmul.mubr.bf16.gmra.mrb[0].mxu0 %v193
  %v421 = vpop.f32.mrb[0].mxu0
  %v422 = vadd.f32 %v132, %v421
  %v423 = vpop.f32.mrb[0].mxu0
  %v424 = vpop.f32.mrb[0].mxu0
  %v425 = vadd.f32 %v132, %v424
  %v426 = vpop.f32.mrb[0].mxu0
  %427 = vmatprep.mubr.bf16.mxu0 0
  %428 = vmatmul.mubr.bf16.gmra.mrb[0].mxu0 %v196
  %v429 = vpop.f32.mrb[0].mxu0
  %v430 = vadd.f32 %v132, %v429
  %v431 = vpop.f32.mrb[0].mxu0
  %v432 = vpop.f32.mrb[0].mxu0
  %v433 = vadd.f32 %v132, %v432
  %v434 = vpop.f32.mrb[0].mxu0
  %435 = vmatprep.mubr.bf16.mxu0 0
  %436 = vmatmul.mubr.bf16.gmra.mrb[0].mxu0 %v199
  %v437 = vpop.f32.mrb[0].mxu0
  %v438 = vadd.f32 %v132, %v437
  %v439 = vpop.f32.mrb[0].mxu0
  %v440 = vpop.f32.mrb[0].mxu0
  %v441 = vadd.f32 %v132, %v440
  %v442 = vpop.f32.mrb[0].mxu0
  %443 = vmatprep.mubr.bf16.mxu0 0
  %444 = vmatmul.mubr.bf16.gmra.mrb[0].mxu0 %v202
  %v445 = vpop.f32.mrb[0].mxu0
  %v446 = vadd.f32 %v132, %v445
  %v447 = vpop.f32.mrb[0].mxu0
  %v448 = vpop.f32.mrb[0].mxu0
  %v449 = vadd.f32 %v132, %v448
  %v450 = vpop.f32.mrb[0].mxu0
  %451 = vmatprep.mubr.bf16.mxu0 0
  %452 = vmatmul.mubr.bf16.gmra.mrb[0].mxu0 %v205
  %v453 = vpop.f32.mrb[0].mxu0
  %v454 = vadd.f32 %v132, %v453
  %v455 = vpop.f32.mrb[0].mxu0
  %v456 = vpop.f32.mrb[0].mxu0
  %v457 = vadd.f32 %v132, %v456
  %v458 = vpop.f32.mrb[0].mxu0
  %459 = vmatprep.mubr.bf16.mxu0 0
  %460 = vmatmul.mubr.bf16.gmra.mrb[0].mxu0 %v208
  %v461 = vpop.f32.mrb[0].mxu0
  %v462 = vadd.f32 %v132, %v461
  %v463 = vpop.f32.mrb[0].mxu0
  %v464 = vpop.f32.mrb[0].mxu0
  %v465 = vadd.f32 %v132, %v464
  %v466 = vpop.f32.mrb[0].mxu0
  %467 = vmatprep.mubr.bf16.mxu0 0
  %468 = vmatmul.mubr.bf16.gmra.mrb[0].mxu0 %v211
  %v469 = vpop.f32.mrb[0].mxu0
  %v470 = vadd.f32 %v132, %v469
  %v471 = vpop.f32.mrb[0].mxu0
  %v472 = vpop.f32.mrb[0].mxu0
  %v473 = vadd.f32 %v132, %v472
  %v474 = vpop.f32.mrb[0].mxu0
  %475 = vmatprep.mubr.bf16.mxu0 0
  %476 = vmatmul.mubr.bf16.gmra.mrb[0].mxu0 %v214
  %v477 = vpop.f32.mrb[0].mxu0
  %v478 = vadd.f32 %v132, %v477
  %v479 = vpop.f32.mrb[0].mxu0
  %v480 = vpop.f32.mrb[0].mxu0
  %v481 = vadd.f32 %v132, %v480
  %v482 = vpop.f32.mrb[0].mxu0
  %483 = vmatprep.mubr.bf16.mxu0 0
  %484 = vmatmul.mubr.bf16.gmra.mrb[0].mxu0 %v217
  %v485 = vpop.f32.mrb[0].mxu0
  %v486 = vadd.f32 %v132, %v485
  %v487 = vpop.f32.mrb[0].mxu0
  %v488 = vpop.f32.mrb[0].mxu0
  %v489 = vadd.f32 %v132, %v488
  %v490 = vpop.f32.mrb[0].mxu0
  %491 = vmatprep.mubr.bf16.mxu0 0
  %492 = vmatmul.mubr.bf16.gmra.mrb[0].mxu0 %v220
  %v493 = vpop.f32.mrb[0].mxu0
  %v494 = vadd.f32 %v132, %v493
  %v495 = vpop.f32.mrb[0].mxu0
  %v496 = vpop.f32.mrb[0].mxu0
  %v497 = vadd.f32 %v132, %v496
  %v498 = vpop.f32.mrb[0].mxu0
  %499 = vmatprep.mubr.bf16.mxu0 0
  %500 = vmatmul.mubr.bf16.gmra.mrb[0].mxu0 %v223
  %v501 = vpop.f32.mrb[0].mxu0
  %v502 = vadd.f32 %v132, %v501
  %v503 = vpop.f32.mrb[0].mxu0
  %v504 = vpop.f32.mrb[0].mxu0
  %v505 = vadd.f32 %v132, %v504
  %v506 = vpop.f32.mrb[0].mxu0
  %507 = vmatprep.mubr.bf16.mxu0 0
  %508 = vmatmul.mubr.bf16.gmra.mrb[0].mxu0 %v226
  %v509 = vpop.f32.mrb[0].mxu0
  %v510 = vadd.f32 %v132, %v509
  %v511 = vpop.f32.mrb[0].mxu0
  %v512 = vpop.f32.mrb[0].mxu0
  %v513 = vadd.f32 %v132, %v512
  %v514 = vpop.f32.mrb[0].mxu0
  %515 = vmatprep.mubr.bf16.mxu0 0
  %516 = vmatmul.mubr.bf16.gmra.mrb[0].mxu0 %v229
  %v517 = vpop.f32.mrb[0].mxu0
  %v518 = vadd.f32 %v132, %v517
  %v519 = vpop.f32.mrb[0].mxu0
  %v520 = vpop.f32.mrb[0].mxu0
  %v521 = vadd.f32 %v132, %v520
  %v522 = vpop.f32.mrb[0].mxu0
  %523 = vdwg.mxu0
  %524 = vst.msk [vmem:[%s7] sm:$0xff] %vm134, %v270
  %525 = vst.msk [vmem:[%s7 + $0x8] sm:$0xff] %vm134, %v273
  %526 = vst.msk [vmem:[%s7 + $0x10] sm:$0xff] %vm134, %v278
  %527 = vst.msk [vmem:[%s7 + $0x18] sm:$0xff] %vm134, %v281
  %528 = vst.msk [vmem:[%s7 + $0x20] sm:$0xff] %vm134, %v286
  %529 = vst.msk [vmem:[%s7 + $0x28] sm:$0xff] %vm134, %v289
  %530 = vst.msk [vmem:[%s7 + $0x30] sm:$0xff] %vm134, %v294
  %531 = vst.msk [vmem:[%s7 + $0x38] sm:$0xff] %vm134, %v297
  %532 = vst.msk [vmem:[%s7 + $0x40] sm:$0xff] %vm134, %v302
  %533 = vst.msk [vmem:[%s7 + $0x48] sm:$0xff] %vm134, %v305
  %534 = vst.msk [vmem:[%s7 + $0x50] sm:$0xff] %vm134, %v310
  %535 = vst.msk [vmem:[%s7 + $0x58] sm:$0xff] %vm134, %v313
  %536 = vst.msk [vmem:[%s7 + $0x60] sm:$0xff] %vm134, %v318
  %537 = vst.msk [vmem:[%s7 + $0x68] sm:$0xff] %vm134, %v321
  %538 = vst.msk [vmem:[%s7 + $0x70] sm:$0xff] %vm134, %v326
  %539 = vst.msk [vmem:[%s7 + $0x78] sm:$0xff] %vm134, %v329
  %540 = vst.msk [vmem:[%s7 + $0x80] sm:$0xff] %vm134, %v334
  %541 = vst.msk [vmem:[%s7 + $0x88] sm:$0xff] %vm134, %v337
  %542 = vst.msk [vmem:[%s7 + $0x90] sm:$0xff] %vm134, %v342
  %543 = vst.msk [vmem:[%s7 + $0x98] sm:$0xff] %vm134, %v345
  %544 = vst.msk [vmem:[%s7 + $0xa0] sm:$0xff] %vm134, %v350
  %545 = vst.msk [vmem:[%s7 + $0xa8] sm:$0xff] %vm134, %v353
  %546 = vst.msk [vmem:[%s7 + $0xb0] sm:$0xff] %vm134, %v358
  %547 = vst.msk [vmem:[%s7 + $0xb8] sm:$0xff] %vm134, %v361
  %548 = vst.msk [vmem:[%s7 + $0xc0] sm:$0xff] %vm134, %v366
  %549 = vst.msk [vmem:[%s7 + $0xc8] sm:$0xff] %vm134, %v369
  %550 = vst.msk [vmem:[%s7 + $0xd0] sm:$0xff] %vm134, %v374
  %551 = vst.msk [vmem:[%s7 + $0xd8] sm:$0xff] %vm134, %v377
  %552 = vst.msk [vmem:[%s7 + $0xe0] sm:$0xff] %vm134, %v382
  %553 = vst.msk [vmem:[%s7 + $0xe8] sm:$0xff] %vm134, %v385
  %554 = vst.msk [vmem:[%s7 + $0xf0] sm:$0xff] %vm134, %v390
  %555 = vst.msk [vmem:[%s7 + $0xf8] sm:$0xff] %vm134, %v393
  %556 = vst.msk [vmem:[%s7 + $0x100] sm:$0xff] %vm134, %v398
  %557 = vst.msk [vmem:[%s7 + $0x108] sm:$0xff] %vm134, %v401
  %558 = vst.msk [vmem:[%s7 + $0x110] sm:$0xff] %vm134, %v406
  %559 = vst.msk [vmem:[%s7 + $0x118] sm:$0xff] %vm134, %v409
  %560 = vst.msk [vmem:[%s7 + $0x120] sm:$0xff] %vm134, %v414
  %561 = vst.msk [vmem:[%s7 + $0x128] sm:$0xff] %vm134, %v417
  %562 = vst.msk [vmem:[%s7 + $0x130] sm:$0xff] %vm134, %v422
  %563 = vst.msk [vmem:[%s7 + $0x138] sm:$0xff] %vm134, %v425
  %564 = vst.msk [vmem:[%s7 + $0x140] sm:$0xff] %vm134, %v430
  %565 = vst.msk [vmem:[%s7 + $0x148] sm:$0xff] %vm134, %v433
  %566 = vst.msk [vmem:[%s7 + $0x150] sm:$0xff] %vm134, %v438
  %567 = vst.msk [vmem:[%s7 + $0x158] sm:$0xff] %vm134, %v441
  %568 = vst.msk [vmem:[%s7 + $0x160] sm:$0xff] %vm134, %v446
  %569 = vst.msk [vmem:[%s7 + $0x168] sm:$0xff] %vm134, %v449
  %570 = vst.msk [vmem:[%s7 + $0x170] sm:$0xff] %vm134, %v454
  %571 = vst.msk [vmem:[%s7 + $0x178] sm:$0xff] %vm134, %v457
  %572 = vst.msk [vmem:[%s7 + $0x180] sm:$0xff] %vm134, %v462
  %573 = vst.msk [vmem:[%s7 + $0x188] sm:$0xff] %vm134, %v465
  %574 = vst.msk [vmem:[%s7 + $0x190] sm:$0xff] %vm134, %v470
  %575 = vst.msk [vmem:[%s7 + $0x198] sm:$0xff] %vm134, %v473
  %576 = vst.msk [vmem:[%s7 + $0x1a0] sm:$0xff] %vm134, %v478
  %577 = vst.msk [vmem:[%s7 + $0x1a8] sm:$0xff] %vm134, %v481
  %578 = vst.msk [vmem:[%s7 + $0x1b0] sm:$0xff] %vm134, %v486
  %579 = vst.msk [vmem:[%s7 + $0x1b8] sm:$0xff] %vm134, %v489
  %580 = vst.msk [vmem:[%s7 + $0x1c0] sm:$0xff] %vm134, %v494
  %581 = vst.msk [vmem:[%s7 + $0x1c8] sm:$0xff] %vm134, %v497
  %582 = vst.msk [vmem:[%s7 + $0x1d0] sm:$0xff] %vm134, %v502
  %583 = vst.msk [vmem:[%s7 + $0x1d8] sm:$0xff] %vm134, %v505
  %584 = vst.msk [vmem:[%s7 + $0x1e0] sm:$0xff] %vm134, %v510
  %585 = vst.msk [vmem:[%s7 + $0x1e8] sm:$0xff] %vm134, %v513
  %586 = vst.msk [vmem:[%s7 + $0x1f0] sm:$0xff] %vm134, %v518
  %587 = vst.msk [vmem:[%s7 + $0x1f8] sm:$0xff] %vm134, %v521
  %v588 = vld [vmem:[%s3] sm:$0xff]
  %v589 = vpack.c.bf16 %v588, %v588
  %v590 = vld [vmem:[%s4] sm:$0x1]
  %v592 = vlaneseq
  %v593 = vshrl.u32 %v592, 7
  %v594 = vsub.s32 0, %v593
  %v595 = vrot.slane %v590, %v594
  %v598 = vsel %vm231, %v589, 0
  %600 = vmatprep.subr.bf16.mxu0 0
  %601 = vmatpush1.bf16.msra.mxu0 %v598
  %602 = vmatprep.subr.bf16.mxu0 0
  %603 = vmatpush1.bf16.msra.mxu0 0
  %604 = vmatprep.subr.bf16.mxu0 0
  %605 = vmatpush1.bf16.msra.mxu0 0
  %606 = vmatprep.subr.bf16.mxu0 0
  %607 = vmatpush1.bf16.msra.mxu0 0
  %608 = vmatprep.subr.bf16.mxu0 0
  %609 = vmatpush1.bf16.msra.mxu0 0
  %610 = vmatprep.subr.bf16.mxu0 0
  %611 = vmatpush1.bf16.msra.mxu0 0
  %612 = vmatprep.subr.bf16.mxu0 0
  %613 = vmatpush1.bf16.msra.mxu0 0
  %614 = vmatprep.subr.bf16.mxu0 0
  %615 = vmatpush1.bf16.msra.mxu0 0
  %616 = vmatprep.subr.bf16.mxu0 0
  %617 = vmatpush1.bf16.msra.mxu0 0
  %618 = vmatprep.subr.bf16.mxu0 0
  %619 = vmatpush1.bf16.msra.mxu0 0
  %620 = vmatprep.subr.bf16.mxu0 0
  %621 = vmatpush1.bf16.msra.mxu0 0
  %622 = vmatprep.subr.bf16.mxu0 0
  %623 = vmatpush1.bf16.msra.mxu0 0
  %624 = vmatprep.subr.bf16.mxu0 0
  %625 = vmatpush1.bf16.msra.mxu0 0
  %626 = vmatprep.subr.bf16.mxu0 0
  %627 = vmatpush1.bf16.msra.mxu0 0
  %628 = vmatprep.subr.bf16.mxu0 0
  %629 = vmatpush1.bf16.msra.mxu0 0
  %630 = vmatprep.subr.bf16.mxu0 0
  %631 = vmatpush1.bf16.msra.mxu0 0
  %632 = vmatprep.mubr.bf16.mxu0 0
  %633 = vmatmul.mubr.bf16.gmra.mrb[0].mxu0 %v136
  %v634 = vpop.f32.mrb[0].mxu0
  %v635 = vadd.f32 %v595, %v634
  %v636 = vpop.f32.mrb[0].mxu0
  %v637 = vpop.f32.mrb[0].mxu0
  %v638 = vadd.f32 %v595, %v637
  %v639 = vpop.f32.mrb[0].mxu0
  %640 = vmatprep.mubr.bf16.mxu0 0
  %641 = vmatmul.mubr.bf16.gmra.mrb[0].mxu0 %v139
  %v642 = vpop.f32.mrb[0].mxu0
  %v643 = vadd.f32 %v595, %v642
  %v644 = vpop.f32.mrb[0].mxu0
  %v645 = vpop.f32.mrb[0].mxu0
  %v646 = vadd.f32 %v595, %v645
  %v647 = vpop.f32.mrb[0].mxu0
  %648 = vmatprep.mubr.bf16.mxu0 0
  %649 = vmatmul.mubr.bf16.gmra.mrb[0].mxu0 %v142
  %v650 = vpop.f32.mrb[0].mxu0
  %v651 = vadd.f32 %v595, %v650
  %v652 = vpop.f32.mrb[0].mxu0
  %v653 = vpop.f32.mrb[0].mxu0
  %v654 = vadd.f32 %v595, %v653
  %v655 = vpop.f32.mrb[0].mxu0
  %656 = vmatprep.mubr.bf16.mxu0 0
  %657 = vmatmul.mubr.bf16.gmra.mrb[0].mxu0 %v145
  %v658 = vpop.f32.mrb[0].mxu0
  %v659 = vadd.f32 %v595, %v658
  %v660 = vpop.f32.mrb[0].mxu0
  %v661 = vpop.f32.mrb[0].mxu0
  %v662 = vadd.f32 %v595, %v661
  %v663 = vpop.f32.mrb[0].mxu0
  %664 = vmatprep.mubr.bf16.mxu0 0
  %665 = vmatmul.mubr.bf16.gmra.mrb[0].mxu0 %v148
  %v666 = vpop.f32.mrb[0].mxu0
  %v667 = vadd.f32 %v595, %v666
  %v668 = vpop.f32.mrb[0].mxu0
  %v669 = vpop.f32.mrb[0].mxu0
  %v670 = vadd.f32 %v595, %v669
  %v671 = vpop.f32.mrb[0].mxu0
  %672 = vmatprep.mubr.bf16.mxu0 0
  %673 = vmatmul.mubr.bf16.gmra.mrb[0].mxu0 %v151
  %v674 = vpop.f32.mrb[0].mxu0
  %v675 = vadd.f32 %v595, %v674
  %v676 = vpop.f32.mrb[0].mxu0
  %v677 = vpop.f32.mrb[0].mxu0
  %v678 = vadd.f32 %v595, %v677
  %v679 = vpop.f32.mrb[0].mxu0
  %680 = vmatprep.mubr.bf16.mxu0 0
  %681 = vmatmul.mubr.bf16.gmra.mrb[0].mxu0 %v154
  %v682 = vpop.f32.mrb[0].mxu0
  %v683 = vadd.f32 %v595, %v682
  %v684 = vpop.f32.mrb[0].mxu0
  %v685 = vpop.f32.mrb[0].mxu0
  %v686 = vadd.f32 %v595, %v685
  %v687 = vpop.f32.mrb[0].mxu0
  %688 = vmatprep.mubr.bf16.mxu0 0
  %689 = vmatmul.mubr.bf16.gmra.mrb[0].mxu0 %v157
  %v690 = vpop.f32.mrb[0].mxu0
  %v691 = vadd.f32 %v595, %v690
  %v692 = vpop.f32.mrb[0].mxu0
  %v693 = vpop.f32.mrb[0].mxu0
  %v694 = vadd.f32 %v595, %v693
  %v695 = vpop.f32.mrb[0].mxu0
  %696 = vmatprep.mubr.bf16.mxu0 0
  %697 = vmatmul.mubr.bf16.gmra.mrb[0].mxu0 %v160
  %v698 = vpop.f32.mrb[0].mxu0
  %v699 = vadd.f32 %v595, %v698
  %v700 = vpop.f32.mrb[0].mxu0
  %v701 = vpop.f32.mrb[0].mxu0
  %v702 = vadd.f32 %v595, %v701
  %v703 = vpop.f32.mrb[0].mxu0
  %704 = vmatprep.mubr.bf16.mxu0 0
  %705 = vmatmul.mubr.bf16.gmra.mrb[0].mxu0 %v163
  %v706 = vpop.f32.mrb[0].mxu0
  %v707 = vadd.f32 %v595, %v706
  %v708 = vpop.f32.mrb[0].mxu0
  %v709 = vpop.f32.mrb[0].mxu0
  %v710 = vadd.f32 %v595, %v709
  %v711 = vpop.f32.mrb[0].mxu0
  %712 = vmatprep.mubr.bf16.mxu0 0
  %713 = vmatmul.mubr.bf16.gmra.mrb[0].mxu0 %v166
  %v714 = vpop.f32.mrb[0].mxu0
  %v715 = vadd.f32 %v595, %v714
  %v716 = vpop.f32.mrb[0].mxu0
  %v717 = vpop.f32.mrb[0].mxu0
  %v718 = vadd.f32 %v595, %v717
  %v719 = vpop.f32.mrb[0].mxu0
  %720 = vmatprep.mubr.bf16.mxu0 0
  %721 = vmatmul.mubr.bf16.gmra.mrb[0].mxu0 %v169
  %v722 = vpop.f32.mrb[0].mxu0
  %v723 = vadd.f32 %v595, %v722
  %v724 = vpop.f32.mrb[0].mxu0
  %v725 = vpop.f32.mrb[0].mxu0
  %v726 = vadd.f32 %v595, %v725
  %v727 = vpop.f32.mrb[0].mxu0
  %728 = vmatprep.mubr.bf16.mxu0 0
  %729 = vmatmul.mubr.bf16.gmra.mrb[0].mxu0 %v172
  %v730 = vpop.f32.mrb[0].mxu0
  %v731 = vadd.f32 %v595, %v730
  %v732 = vpop.f32.mrb[0].mxu0
  %v733 = vpop.f32.mrb[0].mxu0
  %v734 = vadd.f32 %v595, %v733
  %v735 = vpop.f32.mrb[0].mxu0
  %736 = vmatprep.mubr.bf16.mxu0 0
  %737 = vmatmul.mubr.bf16.gmra.mrb[0].mxu0 %v175
  %v738 = vpop.f32.mrb[0].mxu0
  %v739 = vadd.f32 %v595, %v738
  %v740 = vpop.f32.mrb[0].mxu0
  %v741 = vpop.f32.mrb[0].mxu0
  %v742 = vadd.f32 %v595, %v741
  %v743 = vpop.f32.mrb[0].mxu0
  %744 = vmatprep.mubr.bf16.mxu0 0
  %745 = vmatmul.mubr.bf16.gmra.mrb[0].mxu0 %v178
  %v746 = vpop.f32.mrb[0].mxu0
  %v747 = vadd.f32 %v595, %v746
  %v748 = vpop.f32.mrb[0].mxu0
  %v749 = vpop.f32.mrb[0].mxu0
  %v750 = vadd.f32 %v595, %v749
  %v751 = vpop.f32.mrb[0].mxu0
  %752 = vmatprep.mubr.bf16.mxu0 0
  %753 = vmatmul.mubr.bf16.gmra.mrb[0].mxu0 %v181
  %v754 = vpop.f32.mrb[0].mxu0
  %v755 = vadd.f32 %v595, %v754
  %v756 = vpop.f32.mrb[0].mxu0
  %v757 = vpop.f32.mrb[0].mxu0
  %v758 = vadd.f32 %v595, %v757
  %v759 = vpop.f32.mrb[0].mxu0
  %760 = vmatprep.mubr.bf16.mxu0 0
  %761 = vmatmul.mubr.bf16.gmra.mrb[0].mxu0 %v184
  %v762 = vpop.f32.mrb[0].mxu0
  %v763 = vadd.f32 %v595, %v762
  %v764 = vpop.f32.mrb[0].mxu0
  %v765 = vpop.f32.mrb[0].mxu0
  %v766 = vadd.f32 %v595, %v765
  %v767 = vpop.f32.mrb[0].mxu0
  %768 = vmatprep.mubr.bf16.mxu0 0
  %769 = vmatmul.mubr.bf16.gmra.mrb[0].mxu0 %v187
  %v770 = vpop.f32.mrb[0].mxu0
  %v771 = vadd.f32 %v595, %v770
  %v772 = vpop.f32.mrb[0].mxu0
  %v773 = vpop.f32.mrb[0].mxu0
  %v774 = vadd.f32 %v595, %v773
  %v775 = vpop.f32.mrb[0].mxu0
  %776 = vmatprep.mubr.bf16.mxu0 0
  %777 = vmatmul.mubr.bf16.gmra.mrb[0].mxu0 %v190
  %v778 = vpop.f32.mrb[0].mxu0
  %v779 = vadd.f32 %v595, %v778
  %v780 = vpop.f32.mrb[0].mxu0
  %v781 = vpop.f32.mrb[0].mxu0
  %v782 = vadd.f32 %v595, %v781
  %v783 = vpop.f32.mrb[0].mxu0
  %784 = vmatprep.mubr.bf16.mxu0 0
  %785 = vmatmul.mubr.bf16.gmra.mrb[0].mxu0 %v193
  %v786 = vpop.f32.mrb[0].mxu0
  %v787 = vadd.f32 %v595, %v786
  %v788 = vpop.f32.mrb[0].mxu0
  %v789 = vpop.f32.mrb[0].mxu0
  %v790 = vadd.f32 %v595, %v789
  %v791 = vpop.f32.mrb[0].mxu0
  %792 = vmatprep.mubr.bf16.mxu0 0
  %793 = vmatmul.mubr.bf16.gmra.mrb[0].mxu0 %v196
  %v794 = vpop.f32.mrb[0].mxu0
  %v795 = vadd.f32 %v595, %v794
  %v796 = vpop.f32.mrb[0].mxu0
  %v797 = vpop.f32.mrb[0].mxu0
  %v798 = vadd.f32 %v595, %v797
  %v799 = vpop.f32.mrb[0].mxu0
  %800 = vmatprep.mubr.bf16.mxu0 0
  %801 = vmatmul.mubr.bf16.gmra.mrb[0].mxu0 %v199
  %v802 = vpop.f32.mrb[0].mxu0
  %v803 = vadd.f32 %v595, %v802
  %v804 = vpop.f32.mrb[0].mxu0
  %v805 = vpop.f32.mrb[0].mxu0
  %v806 = vadd.f32 %v595, %v805
  %v807 = vpop.f32.mrb[0].mxu0
  %808 = vmatprep.mubr.bf16.mxu0 0
  %809 = vmatmul.mubr.bf16.gmra.mrb[0].mxu0 %v202
  %v810 = vpop.f32.mrb[0].mxu0
  %v811 = vadd.f32 %v595, %v810
  %v812 = vpop.f32.mrb[0].mxu0
  %v813 = vpop.f32.mrb[0].mxu0
  %v814 = vadd.f32 %v595, %v813
  %v815 = vpop.f32.mrb[0].mxu0
  %816 = vmatprep.mubr.bf16.mxu0 0
  %817 = vmatmul.mubr.bf16.gmra.mrb[0].mxu0 %v205
  %v818 = vpop.f32.mrb[0].mxu0
  %v819 = vadd.f32 %v595, %v818
  %v820 = vpop.f32.mrb[0].mxu0
  %v821 = vpop.f32.mrb[0].mxu0
  %v822 = vadd.f32 %v595, %v821
  %v823 = vpop.f32.mrb[0].mxu0
  %824 = vmatprep.mubr.bf16.mxu0 0
  %825 = vmatmul.mubr.bf16.gmra.mrb[0].mxu0 %v208
  %v826 = vpop.f32.mrb[0].mxu0
  %v827 = vadd.f32 %v595, %v826
  %v828 = vpop.f32.mrb[0].mxu0
  %v829 = vpop.f32.mrb[0].mxu0
  %v830 = vadd.f32 %v595, %v829
  %v831 = vpop.f32.mrb[0].mxu0
  %832 = vmatprep.mubr.bf16.mxu0 0
  %833 = vmatmul.mubr.bf16.gmra.mrb[0].mxu0 %v211
  %v834 = vpop.f32.mrb[0].mxu0
  %v835 = vadd.f32 %v595, %v834
  %v836 = vpop.f32.mrb[0].mxu0
  %v837 = vpop.f32.mrb[0].mxu0
  %v838 = vadd.f32 %v595, %v837
  %v839 = vpop.f32.mrb[0].mxu0
  %840 = vmatprep.mubr.bf16.mxu0 0
  %841 = vmatmul.mubr.bf16.gmra.mrb[0].mxu0 %v214
  %v842 = vpop.f32.mrb[0].mxu0
  %v843 = vadd.f32 %v595, %v842
  %v844 = vpop.f32.mrb[0].mxu0
  %v845 = vpop.f32.mrb[0].mxu0
  %v846 = vadd.f32 %v595, %v845
  %v847 = vpop.f32.mrb[0].mxu0
  %848 = vmatprep.mubr.bf16.mxu0 0
  %849 = vmatmul.mubr.bf16.gmra.mrb[0].mxu0 %v217
  %v850 = vpop.f32.mrb[0].mxu0
  %v851 = vadd.f32 %v595, %v850
  %v852 = vpop.f32.mrb[0].mxu0
  %v853 = vpop.f32.mrb[0].mxu0
  %v854 = vadd.f32 %v595, %v853
  %v855 = vpop.f32.mrb[0].mxu0
  %856 = vmatprep.mubr.bf16.mxu0 0
  %857 = vmatmul.mubr.bf16.gmra.mrb[0].mxu0 %v220
  %v858 = vpop.f32.mrb[0].mxu0
  %v859 = vadd.f32 %v595, %v858
  %v860 = vpop.f32.mrb[0].mxu0
  %v861 = vpop.f32.mrb[0].mxu0
  %v862 = vadd.f32 %v595, %v861
  %v863 = vpop.f32.mrb[0].mxu0
  %864 = vmatprep.mubr.bf16.mxu0 0
  %865 = vmatmul.mubr.bf16.gmra.mrb[0].mxu0 %v223
  %v866 = vpop.f32.mrb[0].mxu0
  %v867 = vadd.f32 %v595, %v866
  %v868 = vpop.f32.mrb[0].mxu0
  %v869 = vpop.f32.mrb[0].mxu0
  %v870 = vadd.f32 %v595, %v869
  %v871 = vpop.f32.mrb[0].mxu0
  %872 = vmatprep.mubr.bf16.mxu0 0
  %873 = vmatmul.mubr.bf16.gmra.mrb[0].mxu0 %v226
  %v874 = vpop.f32.mrb[0].mxu0
  %v875 = vadd.f32 %v595, %v874
  %v876 = vpop.f32.mrb[0].mxu0
  %v877 = vpop.f32.mrb[0].mxu0
  %v878 = vadd.f32 %v595, %v877
  %v879 = vpop.f32.mrb[0].mxu0
  %880 = vmatprep.mubr.bf16.mxu0 0
  %881 = vmatmul.mubr.bf16.gmra.mrb[0].mxu0 %v229
  %v882 = vpop.f32.mrb[0].mxu0
  %v883 = vadd.f32 %v595, %v882
  %v884 = vpop.f32.mrb[0].mxu0
  %v885 = vpop.f32.mrb[0].mxu0
  %v886 = vadd.f32 %v595, %v885
  %v887 = vpop.f32.mrb[0].mxu0
  %888 = vdwg.mxu0
  %v889 = vld [vmem:[%s5] sm:$0xff]
  %v890 = vpack.c.bf16 %v638, %v635
  %v891 = vpack.c.bf16 %v646, %v643
  %v892 = vpack.c.bf16 %v654, %v651
  %v893 = vpack.c.bf16 %v662, %v659
  %v894 = vpack.c.bf16 %v670, %v667
  %v895 = vpack.c.bf16 %v678, %v675
  %v896 = vpack.c.bf16 %v686, %v683
  %v897 = vpack.c.bf16 %v694, %v691
  %v898 = vpack.c.bf16 %v702, %v699
  %v899 = vpack.c.bf16 %v710, %v707
  %v900 = vpack.c.bf16 %v718, %v715
  %v901 = vpack.c.bf16 %v726, %v723
  %v902 = vpack.c.bf16 %v734, %v731
  %v903 = vpack.c.bf16 %v742, %v739
  %v904 = vpack.c.bf16 %v750, %v747
  %v905 = vpack.c.bf16 %v758, %v755
  %v906 = vpack.c.bf16 %v766, %v763
  %v907 = vpack.c.bf16 %v774, %v771
  %v908 = vpack.c.bf16 %v782, %v779
  %v909 = vpack.c.bf16 %v790, %v787
  %v910 = vpack.c.bf16 %v798, %v795
  %v911 = vpack.c.bf16 %v806, %v803
  %v912 = vpack.c.bf16 %v814, %v811
  %v913 = vpack.c.bf16 %v822, %v819
  %v914 = vpack.c.bf16 %v830, %v827
  %v915 = vpack.c.bf16 %v838, %v835
  %v916 = vpack.c.bf16 %v846, %v843
  %v917 = vpack.c.bf16 %v854, %v851
  %v918 = vpack.c.bf16 %v862, %v859
  %v919 = vpack.c.bf16 %v870, %v867
  %v920 = vpack.c.bf16 %v878, %v875
  %v921 = vpack.c.bf16 %v886, %v883
  %v922 = vpack.c.bf16 %v889, %v889
  %v923 = vld [vmem:[%s6] sm:$0x1]
  %v925 = vlaneseq
  %v926 = vshrl.u32 %v925, 7
  %v927 = vsub.s32 0, %v926
  %v928 = vrot.slane %v923, %v927
  %v931 = vsel %vm134, %v890, 0
  %v934 = vsel %vm134, %v891, 0
  %v937 = vsel %vm134, %v892, 0
  %v940 = vsel %vm134, %v893, 0
  %v943 = vsel %vm134, %v894, 0
  %v946 = vsel %vm134, %v895, 0
  %v949 = vsel %vm134, %v896, 0
  %v952 = vsel %vm134, %v897, 0
  %v955 = vsel %vm134, %v898, 0
  %v958 = vsel %vm134, %v899, 0
  %v961 = vsel %vm134, %v900, 0
  %v964 = vsel %vm134, %v901, 0
  %v967 = vsel %vm134, %v902, 0
  %v970 = vsel %vm134, %v903, 0
  %v973 = vsel %vm134, %v904, 0
  %v976 = vsel %vm134, %v905, 0
  %v979 = vsel %vm134, %v906, 0
  %v982 = vsel %vm134, %v907, 0
  %v985 = vsel %vm134, %v908, 0
  %v988 = vsel %vm134, %v909, 0
  %v991 = vsel %vm134, %v910, 0
  %v994 = vsel %vm134, %v911, 0
  %v997 = vsel %vm134, %v912, 0
  %v1000 = vsel %vm134, %v913, 0
  %v1003 = vsel %vm134, %v914, 0
  %v1006 = vsel %vm134, %v915, 0
  %v1009 = vsel %vm134, %v916, 0
  %v1012 = vsel %vm134, %v917, 0
  %v1015 = vsel %vm134, %v918, 0
  %v1018 = vsel %vm134, %v919, 0
  %v1021 = vsel %vm134, %v920, 0
  %v1024 = vsel %vm134, %v921, 0
  %v1027 = vsel %vm231, %v922, 0
  %1029 = vmatprep.subr.bf16.mxu0 0
  %1030 = vmatpush1.bf16.msra.mxu0 %v1027
  %1031 = vmatprep.subr.bf16.mxu0 0
  %1032 = vmatpush1.bf16.msra.mxu0 0
  %1033 = vmatprep.subr.bf16.mxu0 0
  %1034 = vmatpush1.bf16.msra.mxu0 0
  %1035 = vmatprep.subr.bf16.mxu0 0
  %1036 = vmatpush1.bf16.msra.mxu0 0
  %1037 = vmatprep.subr.bf16.mxu0 0
  %1038 = vmatpush1.bf16.msra.mxu0 0
  %1039 = vmatprep.subr.bf16.mxu0 0
  %1040 = vmatpush1.bf16.msra.mxu0 0
  %1041 = vmatprep.subr.bf16.mxu0 0
  %1042 = vmatpush1.bf16.msra.mxu0 0
  %1043 = vmatprep.subr.bf16.mxu0 0
  %1044 = vmatpush1.bf16.msra.mxu0 0
  %1045 = vmatprep.subr.bf16.mxu0 0
  %1046 = vmatpush1.bf16.msra.mxu0 0
  %1047 = vmatprep.subr.bf16.mxu0 0
  %1048 = vmatpush1.bf16.msra.mxu0 0
  %1049 = vmatprep.subr.bf16.mxu0 0
  %1050 = vmatpush1.bf16.msra.mxu0 0
  %1051 = vmatprep.subr.bf16.mxu0 0
  %1052 = vmatpush1.bf16.msra.mxu0 0
  %1053 = vmatprep.subr.bf16.mxu0 0
  %1054 = vmatpush1.bf16.msra.mxu0 0
  %1055 = vmatprep.subr.bf16.mxu0 0
  %1056 = vmatpush1.bf16.msra.mxu0 0
  %1057 = vmatprep.subr.bf16.mxu0 0
  %1058 = vmatpush1.bf16.msra.mxu0 0
  %1059 = vmatprep.subr.bf16.mxu0 0
  %1060 = vmatpush1.bf16.msra.mxu0 0
  %1061 = vmatprep.mubr.bf16.mxu0 0
  %1062 = vmatmul.mubr.bf16.gmra.mrb[0].mxu0 %v931
  %v1063 = vpop.f32.mrb[0].mxu0
  %v1064 = vadd.f32 %v928, %v1063
  %v1065 = vpop.f32.mrb[0].mxu0
  %v1066 = vpop.f32.mrb[0].mxu0
  %v1067 = vadd.f32 %v928, %v1066
  %v1068 = vpop.f32.mrb[0].mxu0
  %1069 = vmatprep.mubr.bf16.mxu0 0
  %1070 = vmatmul.mubr.bf16.gmra.mrb[0].mxu0 %v934
  %v1071 = vpop.f32.mrb[0].mxu0
  %v1072 = vadd.f32 %v928, %v1071
  %v1073 = vpop.f32.mrb[0].mxu0
  %v1074 = vpop.f32.mrb[0].mxu0
  %v1075 = vadd.f32 %v928, %v1074
  %v1076 = vpop.f32.mrb[0].mxu0
  %1077 = vmatprep.mubr.bf16.mxu0 0
  %1078 = vmatmul.mubr.bf16.gmra.mrb[0].mxu0 %v937
  %v1079 = vpop.f32.mrb[0].mxu0
  %v1080 = vadd.f32 %v928, %v1079
  %v1081 = vpop.f32.mrb[0].mxu0
  %v1082 = vpop.f32.mrb[0].mxu0
  %v1083 = vadd.f32 %v928, %v1082
  %v1084 = vpop.f32.mrb[0].mxu0
  %1085 = vmatprep.mubr.bf16.mxu0 0
  %1086 = vmatmul.mubr.bf16.gmra.mrb[0].mxu0 %v940
  %v1087 = vpop.f32.mrb[0].mxu0
  %v1088 = vadd.f32 %v928, %v1087
  %v1089 = vpop.f32.mrb[0].mxu0
  %v1090 = vpop.f32.mrb[0].mxu0
  %v1091 = vadd.f32 %v928, %v1090
  %v1092 = vpop.f32.mrb[0].mxu0
  %1093 = vmatprep.mubr.bf16.mxu0 0
  %1094 = vmatmul.mubr.bf16.gmra.mrb[0].mxu0 %v943
  %v1095 = vpop.f32.mrb[0].mxu0
  %v1096 = vadd.f32 %v928, %v1095
  %v1097 = vpop.f32.mrb[0].mxu0
  %v1098 = vpop.f32.mrb[0].mxu0
  %v1099 = vadd.f32 %v928, %v1098
  %v1100 = vpop.f32.mrb[0].mxu0
  %1101 = vmatprep.mubr.bf16.mxu0 0
  %1102 = vmatmul.mubr.bf16.gmra.mrb[0].mxu0 %v946
  %v1103 = vpop.f32.mrb[0].mxu0
  %v1104 = vadd.f32 %v928, %v1103
  %v1105 = vpop.f32.mrb[0].mxu0
  %v1106 = vpop.f32.mrb[0].mxu0
  %v1107 = vadd.f32 %v928, %v1106
  %v1108 = vpop.f32.mrb[0].mxu0
  %1109 = vmatprep.mubr.bf16.mxu0 0
  %1110 = vmatmul.mubr.bf16.gmra.mrb[0].mxu0 %v949
  %v1111 = vpop.f32.mrb[0].mxu0
  %v1112 = vadd.f32 %v928, %v1111
  %v1113 = vpop.f32.mrb[0].mxu0
  %v1114 = vpop.f32.mrb[0].mxu0
  %v1115 = vadd.f32 %v928, %v1114
  %v1116 = vpop.f32.mrb[0].mxu0
  %1117 = vmatprep.mubr.bf16.mxu0 0
  %1118 = vmatmul.mubr.bf16.gmra.mrb[0].mxu0 %v952
  %v1119 = vpop.f32.mrb[0].mxu0
  %v1120 = vadd.f32 %v928, %v1119
  %v1121 = vpop.f32.mrb[0].mxu0
  %v1122 = vpop.f32.mrb[0].mxu0
  %v1123 = vadd.f32 %v928, %v1122
  %v1124 = vpop.f32.mrb[0].mxu0
  %1125 = vmatprep.mubr.bf16.mxu0 0
  %1126 = vmatmul.mubr.bf16.gmra.mrb[0].mxu0 %v955
  %v1127 = vpop.f32.mrb[0].mxu0
  %v1128 = vadd.f32 %v928, %v1127
  %v1129 = vpop.f32.mrb[0].mxu0
  %v1130 = vpop.f32.mrb[0].mxu0
  %v1131 = vadd.f32 %v928, %v1130
  %v1132 = vpop.f32.mrb[0].mxu0
  %1133 = vmatprep.mubr.bf16.mxu0 0
  %1134 = vmatmul.mubr.bf16.gmra.mrb[0].mxu0 %v958
  %v1135 = vpop.f32.mrb[0].mxu0
  %v1136 = vadd.f32 %v928, %v1135
  %v1137 = vpop.f32.mrb[0].mxu0
  %v1138 = vpop.f32.mrb[0].mxu0
  %v1139 = vadd.f32 %v928, %v1138
  %v1140 = vpop.f32.mrb[0].mxu0
  %1141 = vmatprep.mubr.bf16.mxu0 0
  %1142 = vmatmul.mubr.bf16.gmra.mrb[0].mxu0 %v961
  %v1143 = vpop.f32.mrb[0].mxu0
  %v1144 = vadd.f32 %v928, %v1143
  %v1145 = vpop.f32.mrb[0].mxu0
  %v1146 = vpop.f32.mrb[0].mxu0
  %v1147 = vadd.f32 %v928, %v1146
  %v1148 = vpop.f32.mrb[0].mxu0
  %1149 = vmatprep.mubr.bf16.mxu0 0
  %1150 = vmatmul.mubr.bf16.gmra.mrb[0].mxu0 %v964
  %v1151 = vpop.f32.mrb[0].mxu0
  %v1152 = vadd.f32 %v928, %v1151
  %v1153 = vpop.f32.mrb[0].mxu0
  %v1154 = vpop.f32.mrb[0].mxu0
  %v1155 = vadd.f32 %v928, %v1154
  %v1156 = vpop.f32.mrb[0].mxu0
  %1157 = vmatprep.mubr.bf16.mxu0 0
  %1158 = vmatmul.mubr.bf16.gmra.mrb[0].mxu0 %v967
  %v1159 = vpop.f32.mrb[0].mxu0
  %v1160 = vadd.f32 %v928, %v1159
  %v1161 = vpop.f32.mrb[0].mxu0
  %v1162 = vpop.f32.mrb[0].mxu0
  %v1163 = vadd.f32 %v928, %v1162
  %v1164 = vpop.f32.mrb[0].mxu0
  %1165 = vmatprep.mubr.bf16.mxu0 0
  %1166 = vmatmul.mubr.bf16.gmra.mrb[0].mxu0 %v970
  %v1167 = vpop.f32.mrb[0].mxu0
  %v1168 = vadd.f32 %v928, %v1167
  %v1169 = vpop.f32.mrb[0].mxu0
  %v1170 = vpop.f32.mrb[0].mxu0
  %v1171 = vadd.f32 %v928, %v1170
  %v1172 = vpop.f32.mrb[0].mxu0
  %1173 = vmatprep.mubr.bf16.mxu0 0
  %1174 = vmatmul.mubr.bf16.gmra.mrb[0].mxu0 %v973
  %v1175 = vpop.f32.mrb[0].mxu0
  %v1176 = vadd.f32 %v928, %v1175
  %v1177 = vpop.f32.mrb[0].mxu0
  %v1178 = vpop.f32.mrb[0].mxu0
  %v1179 = vadd.f32 %v928, %v1178
  %v1180 = vpop.f32.mrb[0].mxu0
  %1181 = vmatprep.mubr.bf16.mxu0 0
  %1182 = vmatmul.mubr.bf16.gmra.mrb[0].mxu0 %v976
  %v1183 = vpop.f32.mrb[0].mxu0
  %v1184 = vadd.f32 %v928, %v1183
  %v1185 = vpop.f32.mrb[0].mxu0
  %v1186 = vpop.f32.mrb[0].mxu0
  %v1187 = vadd.f32 %v928, %v1186
  %v1188 = vpop.f32.mrb[0].mxu0
  %1189 = vmatprep.mubr.bf16.mxu0 0
  %1190 = vmatmul.mubr.bf16.gmra.mrb[0].mxu0 %v979
  %v1191 = vpop.f32.mrb[0].mxu0
  %v1192 = vadd.f32 %v928, %v1191
  %v1193 = vpop.f32.mrb[0].mxu0
  %v1194 = vpop.f32.mrb[0].mxu0
  %v1195 = vadd.f32 %v928, %v1194
  %v1196 = vpop.f32.mrb[0].mxu0
  %1197 = vmatprep.mubr.bf16.mxu0 0
  %1198 = vmatmul.mubr.bf16.gmra.mrb[0].mxu0 %v982
  %v1199 = vpop.f32.mrb[0].mxu0
  %v1200 = vadd.f32 %v928, %v1199
  %v1201 = vpop.f32.mrb[0].mxu0
  %v1202 = vpop.f32.mrb[0].mxu0
  %v1203 = vadd.f32 %v928, %v1202
  %v1204 = vpop.f32.mrb[0].mxu0
  %1205 = vmatprep.mubr.bf16.mxu0 0
  %1206 = vmatmul.mubr.bf16.gmra.mrb[0].mxu0 %v985
  %v1207 = vpop.f32.mrb[0].mxu0
  %v1208 = vadd.f32 %v928, %v1207
  %v1209 = vpop.f32.mrb[0].mxu0
  %v1210 = vpop.f32.mrb[0].mxu0
  %v1211 = vadd.f32 %v928, %v1210
  %v1212 = vpop.f32.mrb[0].mxu0
  %1213 = vmatprep.mubr.bf16.mxu0 0
  %1214 = vmatmul.mubr.bf16.gmra.mrb[0].mxu0 %v988
  %v1215 = vpop.f32.mrb[0].mxu0
  %v1216 = vadd.f32 %v928, %v1215
  %v1217 = vpop.f32.mrb[0].mxu0
  %v1218 = vpop.f32.mrb[0].mxu0
  %v1219 = vadd.f32 %v928, %v1218
  %v1220 = vpop.f32.mrb[0].mxu0
  %1221 = vmatprep.mubr.bf16.mxu0 0
  %1222 = vmatmul.mubr.bf16.gmra.mrb[0].mxu0 %v991
  %v1223 = vpop.f32.mrb[0].mxu0
  %v1224 = vadd.f32 %v928, %v1223
  %v1225 = vpop.f32.mrb[0].mxu0
  %v1226 = vpop.f32.mrb[0].mxu0
  %v1227 = vadd.f32 %v928, %v1226
  %v1228 = vpop.f32.mrb[0].mxu0
  %1229 = vmatprep.mubr.bf16.mxu0 0
  %1230 = vmatmul.mubr.bf16.gmra.mrb[0].mxu0 %v994
  %v1231 = vpop.f32.mrb[0].mxu0
  %v1232 = vadd.f32 %v928, %v1231
  %v1233 = vpop.f32.mrb[0].mxu0
  %v1234 = vpop.f32.mrb[0].mxu0
  %v1235 = vadd.f32 %v928, %v1234
  %v1236 = vpop.f32.mrb[0].mxu0
  %1237 = vmatprep.mubr.bf16.mxu0 0
  %1238 = vmatmul.mubr.bf16.gmra.mrb[0].mxu0 %v997
  %v1239 = vpop.f32.mrb[0].mxu0
  %v1240 = vadd.f32 %v928, %v1239
  %v1241 = vpop.f32.mrb[0].mxu0
  %v1242 = vpop.f32.mrb[0].mxu0
  %v1243 = vadd.f32 %v928, %v1242
  %v1244 = vpop.f32.mrb[0].mxu0
  %1245 = vmatprep.mubr.bf16.mxu0 0
  %1246 = vmatmul.mubr.bf16.gmra.mrb[0].mxu0 %v1000
  %v1247 = vpop.f32.mrb[0].mxu0
  %v1248 = vadd.f32 %v928, %v1247
  %v1249 = vpop.f32.mrb[0].mxu0
  %v1250 = vpop.f32.mrb[0].mxu0
  %v1251 = vadd.f32 %v928, %v1250
  %v1252 = vpop.f32.mrb[0].mxu0
  %1253 = vmatprep.mubr.bf16.mxu0 0
  %1254 = vmatmul.mubr.bf16.gmra.mrb[0].mxu0 %v1003
  %v1255 = vpop.f32.mrb[0].mxu0
  %v1256 = vadd.f32 %v928, %v1255
  %v1257 = vpop.f32.mrb[0].mxu0
  %v1258 = vpop.f32.mrb[0].mxu0
  %v1259 = vadd.f32 %v928, %v1258
  %v1260 = vpop.f32.mrb[0].mxu0
  %1261 = vmatprep.mubr.bf16.mxu0 0
  %1262 = vmatmul.mubr.bf16.gmra.mrb[0].mxu0 %v1006
  %v1263 = vpop.f32.mrb[0].mxu0
  %v1264 = vadd.f32 %v928, %v1263
  %v1265 = vpop.f32.mrb[0].mxu0
  %v1266 = vpop.f32.mrb[0].mxu0
  %v1267 = vadd.f32 %v928, %v1266
  %v1268 = vpop.f32.mrb[0].mxu0
  %1269 = vmatprep.mubr.bf16.mxu0 0
  %1270 = vmatmul.mubr.bf16.gmra.mrb[0].mxu0 %v1009
  %v1271 = vpop.f32.mrb[0].mxu0
  %v1272 = vadd.f32 %v928, %v1271
  %v1273 = vpop.f32.mrb[0].mxu0
  %v1274 = vpop.f32.mrb[0].mxu0
  %v1275 = vadd.f32 %v928, %v1274
  %v1276 = vpop.f32.mrb[0].mxu0
  %1277 = vmatprep.mubr.bf16.mxu0 0
  %1278 = vmatmul.mubr.bf16.gmra.mrb[0].mxu0 %v1012
  %v1279 = vpop.f32.mrb[0].mxu0
  %v1280 = vadd.f32 %v928, %v1279
  %v1281 = vpop.f32.mrb[0].mxu0
  %v1282 = vpop.f32.mrb[0].mxu0
  %v1283 = vadd.f32 %v928, %v1282
  %v1284 = vpop.f32.mrb[0].mxu0
  %1285 = vmatprep.mubr.bf16.mxu0 0
  %1286 = vmatmul.mubr.bf16.gmra.mrb[0].mxu0 %v1015
  %v1287 = vpop.f32.mrb[0].mxu0
  %v1288 = vadd.f32 %v928, %v1287
  %v1289 = vpop.f32.mrb[0].mxu0
  %v1290 = vpop.f32.mrb[0].mxu0
  %v1291 = vadd.f32 %v928, %v1290
  %v1292 = vpop.f32.mrb[0].mxu0
  %1293 = vmatprep.mubr.bf16.mxu0 0
  %1294 = vmatmul.mubr.bf16.gmra.mrb[0].mxu0 %v1018
  %v1295 = vpop.f32.mrb[0].mxu0
  %v1296 = vadd.f32 %v928, %v1295
  %v1297 = vpop.f32.mrb[0].mxu0
  %v1298 = vpop.f32.mrb[0].mxu0
  %v1299 = vadd.f32 %v928, %v1298
  %v1300 = vpop.f32.mrb[0].mxu0
  %1301 = vmatprep.mubr.bf16.mxu0 0
  %1302 = vmatmul.mubr.bf16.gmra.mrb[0].mxu0 %v1021
  %v1303 = vpop.f32.mrb[0].mxu0
  %v1304 = vadd.f32 %v928, %v1303
  %v1305 = vpop.f32.mrb[0].mxu0
  %v1306 = vpop.f32.mrb[0].mxu0
  %v1307 = vadd.f32 %v928, %v1306
  %v1308 = vpop.f32.mrb[0].mxu0
  %1309 = vmatprep.mubr.bf16.mxu0 0
  %1310 = vmatmul.mubr.bf16.gmra.mrb[0].mxu0 %v1024
  %v1311 = vpop.f32.mrb[0].mxu0
  %v1312 = vadd.f32 %v928, %v1311
  %v1313 = vpop.f32.mrb[0].mxu0
  %v1314 = vpop.f32.mrb[0].mxu0
  %v1315 = vadd.f32 %v928, %v1314
  %v1316 = vpop.f32.mrb[0].mxu0
  %1317 = vdwg.mxu0
  %v1318 = vmul.f32 %v1064, 0.5
  %v1319 = vmul.f32 %v1067, 0.5
  %v1320 = vmul.f32 %v1072, 0.5
  %v1321 = vmul.f32 %v1075, 0.5
  %v1322 = vmul.f32 %v1080, 0.5
  %v1323 = vmul.f32 %v1083, 0.5
  %v1324 = vmul.f32 %v1088, 0.5
  %v1325 = vmul.f32 %v1091, 0.5
  %v1326 = vmul.f32 %v1096, 0.5
  %v1327 = vmul.f32 %v1099, 0.5
  %v1328 = vmul.f32 %v1104, 0.5
  %v1329 = vmul.f32 %v1107, 0.5
  %v1330 = vmul.f32 %v1112, 0.5
  %v1331 = vmul.f32 %v1115, 0.5
  %v1332 = vmul.f32 %v1120, 0.5
  %v1333 = vmul.f32 %v1123, 0.5
  %v1334 = vmul.f32 %v1128, 0.5
  %v1335 = vmul.f32 %v1131, 0.5
  %v1336 = vmul.f32 %v1136, 0.5
  %v1337 = vmul.f32 %v1139, 0.5
  %v1338 = vmul.f32 %v1144, 0.5
  %v1339 = vmul.f32 %v1147, 0.5
  %v1340 = vmul.f32 %v1152, 0.5
  %v1341 = vmul.f32 %v1155, 0.5
  %v1342 = vmul.f32 %v1160, 0.5
  %v1343 = vmul.f32 %v1163, 0.5
  %v1344 = vmul.f32 %v1168, 0.5
  %v1345 = vmul.f32 %v1171, 0.5
  %v1346 = vmul.f32 %v1176, 0.5
  %v1347 = vmul.f32 %v1179, 0.5
  %v1348 = vmul.f32 %v1184, 0.5
  %v1349 = vmul.f32 %v1187, 0.5
  %v1350 = vmul.f32 %v1192, 0.5
  %v1351 = vmul.f32 %v1195, 0.5
  %v1352 = vmul.f32 %v1200, 0.5
  %v1353 = vmul.f32 %v1203, 0.5
  %v1354 = vmul.f32 %v1208, 0.5
  %v1355 = vmul.f32 %v1211, 0.5
  %v1356 = vmul.f32 %v1216, 0.5
  %v1357 = vmul.f32 %v1219, 0.5
  %v1358 = vmul.f32 %v1224, 0.5
  %v1359 = vmul.f32 %v1227, 0.5
  %v1360 = vmul.f32 %v1232, 0.5
  %v1361 = vmul.f32 %v1235, 0.5
  %v1362 = vmul.f32 %v1240, 0.5
  %v1363 = vmul.f32 %v1243, 0.5
  %v1364 = vmul.f32 %v1248, 0.5
  %v1365 = vmul.f32 %v1251, 0.5
  %v1366 = vmul.f32 %v1256, 0.5
  %v1367 = vmul.f32 %v1259, 0.5
  %v1368 = vmul.f32 %v1264, 0.5
  %v1369 = vmul.f32 %v1267, 0.5
  %v1370 = vmul.f32 %v1272, 0.5
  %v1371 = vmul.f32 %v1275, 0.5
  %v1372 = vmul.f32 %v1280, 0.5
  %v1373 = vmul.f32 %v1283, 0.5
  %v1374 = vmul.f32 %v1288, 0.5
  %v1375 = vmul.f32 %v1291, 0.5
  %v1376 = vmul.f32 %v1296, 0.5
  %v1377 = vmul.f32 %v1299, 0.5
  %v1378 = vmul.f32 %v1304, 0.5
  %v1379 = vmul.f32 %v1307, 0.5
  %v1380 = vmul.f32 %v1312, 0.5
  %v1381 = vmul.f32 %v1315, 0.5
  %v1382 = vmul.f32 %v1064, 0.70710677
  %v1383 = vmul.f32 %v1067, 0.70710677
  %v1384 = vmul.f32 %v1072, 0.70710677
  %v1385 = vmul.f32 %v1075, 0.70710677
  %v1386 = vmul.f32 %v1080, 0.70710677
  %v1387 = vmul.f32 %v1083, 0.70710677
  %v1388 = vmul.f32 %v1088, 0.70710677
  %v1389 = vmul.f32 %v1091, 0.70710677
  %v1390 = vmul.f32 %v1096, 0.70710677
  %v1391 = vmul.f32 %v1099, 0.70710677
  %v1392 = vmul.f32 %v1104, 0.70710677
  %v1393 = vmul.f32 %v1107, 0.70710677
  %v1394 = vmul.f32 %v1112, 0.70710677
  %v1395 = vmul.f32 %v1115, 0.70710677
  %v1396 = vmul.f32 %v1120, 0.70710677
  %v1397 = vmul.f32 %v1123, 0.70710677
  %v1398 = vmul.f32 %v1128, 0.70710677
  %v1399 = vmul.f32 %v1131, 0.70710677
  %v1400 = vmul.f32 %v1136, 0.70710677
  %v1401 = vmul.f32 %v1139, 0.70710677
  %v1402 = vmul.f32 %v1144, 0.70710677
  %v1403 = vmul.f32 %v1147, 0.70710677
  %v1404 = vmul.f32 %v1152, 0.70710677
  %v1405 = vmul.f32 %v1155, 0.70710677
  %v1406 = vmul.f32 %v1160, 0.70710677
  %v1407 = vmul.f32 %v1163, 0.70710677
  %v1408 = vmul.f32 %v1168, 0.70710677
  %v1409 = vmul.f32 %v1171, 0.70710677
  %v1410 = vmul.f32 %v1176, 0.70710677
  %v1411 = vmul.f32 %v1179, 0.70710677
  %v1412 = vmul.f32 %v1184, 0.70710677
  %v1413 = vmul.f32 %v1187, 0.70710677
  %v1414 = vmul.f32 %v1192, 0.70710677
  %v1415 = vmul.f32 %v1195, 0.70710677
  %v1416 = vmul.f32 %v1200, 0.70710677
  %v1417 = vmul.f32 %v1203, 0.70710677
  %v1418 = vmul.f32 %v1208, 0.70710677
  %v1419 = vmul.f32 %v1211, 0.70710677
  %v1420 = vmul.f32 %v1216, 0.70710677
  %v1421 = vmul.f32 %v1219, 0.70710677
  %v1422 = vmul.f32 %v1224, 0.70710677
  %v1423 = vmul.f32 %v1227, 0.70710677
  %v1424 = vmul.f32 %v1232, 0.70710677
  %v1425 = vmul.f32 %v1235, 0.70710677
  %v1426 = vmul.f32 %v1240, 0.70710677
  %v1427 = vmul.f32 %v1243, 0.70710677
  %v1428 = vmul.f32 %v1248, 0.70710677
  %v1429 = vmul.f32 %v1251, 0.70710677
  %v1430 = vmul.f32 %v1256, 0.70710677
  %v1431 = vmul.f32 %v1259, 0.70710677
  %v1432 = vmul.f32 %v1264, 0.70710677
  %v1433 = vmul.f32 %v1267, 0.70710677
  %v1434 = vmul.f32 %v1272, 0.70710677
  %v1435 = vmul.f32 %v1275, 0.70710677
  %v1436 = vmul.f32 %v1280, 0.70710677
  %v1437 = vmul.f32 %v1283, 0.70710677
  %v1438 = vmul.f32 %v1288, 0.70710677
  %v1439 = vmul.f32 %v1291, 0.70710677
  %v1440 = vmul.f32 %v1296, 0.70710677
  %v1441 = vmul.f32 %v1299, 0.70710677
  %v1442 = vmul.f32 %v1304, 0.70710677
  %v1443 = vmul.f32 %v1307, 0.70710677
  %v1444 = vmul.f32 %v1312, 0.70710677
  %v1445 = vmul.f32 %v1315, 0.70710677
  %v1446 = verf.f32.pop %v1382
  %v1447 = verf.f32.pop %v1383
  %v1448 = verf.f32.pop %v1384
  %v1449 = verf.f32.pop %v1385
  %v1450 = verf.f32.pop %v1386
  %v1451 = verf.f32.pop %v1387
  %v1452 = verf.f32.pop %v1388
  %v1453 = verf.f32.pop %v1389
  %v1454 = verf.f32.pop %v1390
  %v1455 = verf.f32.pop %v1391
  %v1456 = verf.f32.pop %v1392
  %v1457 = verf.f32.pop %v1393
  %v1458 = verf.f32.pop %v1394
  %v1459 = verf.f32.pop %v1395
  %v1460 = verf.f32.pop %v1396
  %v1461 = verf.f32.pop %v1397
  %v1462 = verf.f32.pop %v1398
  %v1463 = verf.f32.pop %v1399
  %v1464 = verf.f32.pop %v1400
  %v1465 = verf.f32.pop %v1401
  %v1466 = verf.f32.pop %v1402
  %v1467 = verf.f32.pop %v1403
  %v1468 = verf.f32.pop %v1404
  %v1469 = verf.f32.pop %v1405
  %v1470 = verf.f32.pop %v1406
  %v1471 = verf.f32.pop %v1407
  %v1472 = verf.f32.pop %v1408
  %v1473 = verf.f32.pop %v1409
  %v1474 = verf.f32.pop %v1410
  %v1475 = verf.f32.pop %v1411
  %v1476 = verf.f32.pop %v1412
  %v1477 = verf.f32.pop %v1413
  %v1478 = verf.f32.pop %v1414
  %v1479 = verf.f32.pop %v1415
  %v1480 = verf.f32.pop %v1416
  %v1481 = verf.f32.pop %v1417
  %v1482 = verf.f32.pop %v1418
  %v1483 = verf.f32.pop %v1419
  %v1484 = verf.f32.pop %v1420
  %v1485 = verf.f32.pop %v1421
  %v1486 = verf.f32.pop %v1422
  %v1487 = verf.f32.pop %v1423
  %v1488 = verf.f32.pop %v1424
  %v1489 = verf.f32.pop %v1425
  %v1490 = verf.f32.pop %v1426
  %v1491 = verf.f32.pop %v1427
  %v1492 = verf.f32.pop %v1428
  %v1493 = verf.f32.pop %v1429
  %v1494 = verf.f32.pop %v1430
  %v1495 = verf.f32.pop %v1431
  %v1496 = verf.f32.pop %v1432
  %v1497 = verf.f32.pop %v1433
  %v1498 = verf.f32.pop %v1434
  %v1499 = verf.f32.pop %v1435
  %v1500 = verf.f32.pop %v1436
  %v1501 = verf.f32.pop %v1437
  %v1502 = verf.f32.pop %v1438
  %v1503 = verf.f32.pop %v1439
  %v1504 = verf.f32.pop %v1440
  %v1505 = verf.f32.pop %v1441
  %v1506 = verf.f32.pop %v1442
  %v1507 = verf.f32.pop %v1443
  %v1508 = verf.f32.pop %v1444
  %v1509 = verf.f32.pop %v1445
  %v1510 = vadd.f32 %v1446, 1.0
  %v1511 = vadd.f32 %v1447, 1.0
  %v1512 = vadd.f32 %v1448, 1.0
  %v1513 = vadd.f32 %v1449, 1.0
  %v1514 = vadd.f32 %v1450, 1.0
  %v1515 = vadd.f32 %v1451, 1.0
  %v1516 = vadd.f32 %v1452, 1.0
  %v1517 = vadd.f32 %v1453, 1.0
  %v1518 = vadd.f32 %v1454, 1.0
  %v1519 = vadd.f32 %v1455, 1.0
  %v1520 = vadd.f32 %v1456, 1.0
  %v1521 = vadd.f32 %v1457, 1.0
  %v1522 = vadd.f32 %v1458, 1.0
  %v1523 = vadd.f32 %v1459, 1.0
  %v1524 = vadd.f32 %v1460, 1.0
  %v1525 = vadd.f32 %v1461, 1.0
  %v1526 = vadd.f32 %v1462, 1.0
  %v1527 = vadd.f32 %v1463, 1.0
  %v1528 = vadd.f32 %v1464, 1.0
  %v1529 = vadd.f32 %v1465, 1.0
  %v1530 = vadd.f32 %v1466, 1.0
  %v1531 = vadd.f32 %v1467, 1.0
  %v1532 = vadd.f32 %v1468, 1.0
  %v1533 = vadd.f32 %v1469, 1.0
  %v1534 = vadd.f32 %v1470, 1.0
  %v1535 = vadd.f32 %v1471, 1.0
  %v1536 = vadd.f32 %v1472, 1.0
  %v1537 = vadd.f32 %v1473, 1.0
  %v1538 = vadd.f32 %v1474, 1.0
  %v1539 = vadd.f32 %v1475, 1.0
  %v1540 = vadd.f32 %v1476, 1.0
  %v1541 = vadd.f32 %v1477, 1.0
  %v1542 = vadd.f32 %v1478, 1.0
  %v1543 = vadd.f32 %v1479, 1.0
  %v1544 = vadd.f32 %v1480, 1.0
  %v1545 = vadd.f32 %v1481, 1.0
  %v1546 = vadd.f32 %v1482, 1.0
  %v1547 = vadd.f32 %v1483, 1.0
  %v1548 = vadd.f32 %v1484, 1.0
  %v1549 = vadd.f32 %v1485, 1.0
  %v1550 = vadd.f32 %v1486, 1.0
  %v1551 = vadd.f32 %v1487, 1.0
  %v1552 = vadd.f32 %v1488, 1.0
  %v1553 = vadd.f32 %v1489, 1.0
  %v1554 = vadd.f32 %v1490, 1.0
  %v1555 = vadd.f32 %v1491, 1.0
  %v1556 = vadd.f32 %v1492, 1.0
  %v1557 = vadd.f32 %v1493, 1.0
  %v1558 = vadd.f32 %v1494, 1.0
  %v1559 = vadd.f32 %v1495, 1.0
  %v1560 = vadd.f32 %v1496, 1.0
  %v1561 = vadd.f32 %v1497, 1.0
  %v1562 = vadd.f32 %v1498, 1.0
  %v1563 = vadd.f32 %v1499, 1.0
  %v1564 = vadd.f32 %v1500, 1.0
  %v1565 = vadd.f32 %v1501, 1.0
  %v1566 = vadd.f32 %v1502, 1.0
  %v1567 = vadd.f32 %v1503, 1.0
  %v1568 = vadd.f32 %v1504, 1.0
  %v1569 = vadd.f32 %v1505, 1.0
  %v1570 = vadd.f32 %v1506, 1.0
  %v1571 = vadd.f32 %v1507, 1.0
  %v1572 = vadd.f32 %v1508, 1.0
  %v1573 = vadd.f32 %v1509, 1.0
  %v1574 = vmul.f32 %v1318, %v1510
  %v1575 = vmul.f32 %v1319, %v1511
  %v1576 = vmul.f32 %v1320, %v1512
  %v1577 = vmul.f32 %v1321, %v1513
  %v1578 = vmul.f32 %v1322, %v1514
  %v1579 = vmul.f32 %v1323, %v1515
  %v1580 = vmul.f32 %v1324, %v1516
  %v1581 = vmul.f32 %v1325, %v1517
  %v1582 = vmul.f32 %v1326, %v1518
  %v1583 = vmul.f32 %v1327, %v1519
  %v1584 = vmul.f32 %v1328, %v1520
  %v1585 = vmul.f32 %v1329, %v1521
  %v1586 = vmul.f32 %v1330, %v1522
  %v1587 = vmul.f32 %v1331, %v1523
  %v1588 = vmul.f32 %v1332, %v1524
  %v1589 = vmul.f32 %v1333, %v1525
  %v1590 = vmul.f32 %v1334, %v1526
  %v1591 = vmul.f32 %v1335, %v1527
  %v1592 = vmul.f32 %v1336, %v1528
  %v1593 = vmul.f32 %v1337, %v1529
  %v1594 = vmul.f32 %v1338, %v1530
  %v1595 = vmul.f32 %v1339, %v1531
  %v1596 = vmul.f32 %v1340, %v1532
  %v1597 = vmul.f32 %v1341, %v1533
  %v1598 = vmul.f32 %v1342, %v1534
  %v1599 = vmul.f32 %v1343, %v1535
  %v1600 = vmul.f32 %v1344, %v1536
  %v1601 = vmul.f32 %v1345, %v1537
  %v1602 = vmul.f32 %v1346, %v1538
  %v1603 = vmul.f32 %v1347, %v1539
  %v1604 = vmul.f32 %v1348, %v1540
  %v1605 = vmul.f32 %v1349, %v1541
  %v1606 = vmul.f32 %v1350, %v1542
  %v1607 = vmul.f32 %v1351, %v1543
  %v1608 = vmul.f32 %v1352, %v1544
  %v1609 = vmul.f32 %v1353, %v1545
  %v1610 = vmul.f32 %v1354, %v1546
  %v1611 = vmul.f32 %v1355, %v1547
  %v1612 = vmul.f32 %v1356, %v1548
  %v1613 = vmul.f32 %v1357, %v1549
  %v1614 = vmul.f32 %v1358, %v1550
  %v1615 = vmul.f32 %v1359, %v1551
  %v1616 = vmul.f32 %v1360, %v1552
  %v1617 = vmul.f32 %v1361, %v1553
  %v1618 = vmul.f32 %v1362, %v1554
  %v1619 = vmul.f32 %v1363, %v1555
  %v1620 = vmul.f32 %v1364, %v1556
  %v1621 = vmul.f32 %v1365, %v1557
  %v1622 = vmul.f32 %v1366, %v1558
  %v1623 = vmul.f32 %v1367, %v1559
  %v1624 = vmul.f32 %v1368, %v1560
  %v1625 = vmul.f32 %v1369, %v1561
  %v1626 = vmul.f32 %v1370, %v1562
  %v1627 = vmul.f32 %v1371, %v1563
  %v1628 = vmul.f32 %v1372, %v1564
  %v1629 = vmul.f32 %v1373, %v1565
  %v1630 = vmul.f32 %v1374, %v1566
  %v1631 = vmul.f32 %v1375, %v1567
  %v1632 = vmul.f32 %v1376, %v1568
  %v1633 = vmul.f32 %v1377, %v1569
  %v1634 = vmul.f32 %v1378, %v1570
  %v1635 = vmul.f32 %v1379, %v1571
  %v1636 = vmul.f32 %v1380, %v1572
  %v1637 = vmul.f32 %v1381, %v1573
  %vm1638 = vcmask 130048
  %1639 = vst.msk [vmem:[%s8] sm:$0xff] %vm1638, %v1574
  %1640 = vst.msk [vmem:[%s8 + $0x8] sm:$0xff] %vm1638, %v1575
  %1641 = vst.msk [vmem:[%s8 + $0x10] sm:$0xff] %vm1638, %v1576
  %1642 = vst.msk [vmem:[%s8 + $0x18] sm:$0xff] %vm1638, %v1577
  %1643 = vst.msk [vmem:[%s8 + $0x20] sm:$0xff] %vm1638, %v1578
  %1644 = vst.msk [vmem:[%s8 + $0x28] sm:$0xff] %vm1638, %v1579
  %1645 = vst.msk [vmem:[%s8 + $0x30] sm:$0xff] %vm1638, %v1580
  %1646 = vst.msk [vmem:[%s8 + $0x38] sm:$0xff] %vm1638, %v1581
  %1647 = vst.msk [vmem:[%s8 + $0x40] sm:$0xff] %vm1638, %v1582
  %1648 = vst.msk [vmem:[%s8 + $0x48] sm:$0xff] %vm1638, %v1583
  %1649 = vst.msk [vmem:[%s8 + $0x50] sm:$0xff] %vm1638, %v1584
  %1650 = vst.msk [vmem:[%s8 + $0x58] sm:$0xff] %vm1638, %v1585
  %1651 = vst.msk [vmem:[%s8 + $0x60] sm:$0xff] %vm1638, %v1586
  %1652 = vst.msk [vmem:[%s8 + $0x68] sm:$0xff] %vm1638, %v1587
  %1653 = vst.msk [vmem:[%s8 + $0x70] sm:$0xff] %vm1638, %v1588
  %1654 = vst.msk [vmem:[%s8 + $0x78] sm:$0xff] %vm1638, %v1589
  %1655 = vst.msk [vmem:[%s8 + $0x80] sm:$0xff] %vm1638, %v1590
  %1656 = vst.msk [vmem:[%s8 + $0x88] sm:$0xff] %vm1638, %v1591
  %1657 = vst.msk [vmem:[%s8 + $0x90] sm:$0xff] %vm1638, %v1592
  %1658 = vst.msk [vmem:[%s8 + $0x98] sm:$0xff] %vm1638, %v1593
  %1659 = vst.msk [vmem:[%s8 + $0xa0] sm:$0xff] %vm1638, %v1594
  %1660 = vst.msk [vmem:[%s8 + $0xa8] sm:$0xff] %vm1638, %v1595
  %1661 = vst.msk [vmem:[%s8 + $0xb0] sm:$0xff] %vm1638, %v1596
  %1662 = vst.msk [vmem:[%s8 + $0xb8] sm:$0xff] %vm1638, %v1597
  %1663 = vst.msk [vmem:[%s8 + $0xc0] sm:$0xff] %vm1638, %v1598
  %1664 = vst.msk [vmem:[%s8 + $0xc8] sm:$0xff] %vm1638, %v1599
  %1665 = vst.msk [vmem:[%s8 + $0xd0] sm:$0xff] %vm1638, %v1600
  %1666 = vst.msk [vmem:[%s8 + $0xd8] sm:$0xff] %vm1638, %v1601
  %1667 = vst.msk [vmem:[%s8 + $0xe0] sm:$0xff] %vm1638, %v1602
  %1668 = vst.msk [vmem:[%s8 + $0xe8] sm:$0xff] %vm1638, %v1603
  %1669 = vst.msk [vmem:[%s8 + $0xf0] sm:$0xff] %vm1638, %v1604
  %1670 = vst.msk [vmem:[%s8 + $0xf8] sm:$0xff] %vm1638, %v1605
  %1671 = vst.msk [vmem:[%s8 + $0x100] sm:$0xff] %vm1638, %v1606
  %1672 = vst.msk [vmem:[%s8 + $0x108] sm:$0xff] %vm1638, %v1607
  %1673 = vst.msk [vmem:[%s8 + $0x110] sm:$0xff] %vm1638, %v1608
  %1674 = vst.msk [vmem:[%s8 + $0x118] sm:$0xff] %vm1638, %v1609
  %1675 = vst.msk [vmem:[%s8 + $0x120] sm:$0xff] %vm1638, %v1610
  %1676 = vst.msk [vmem:[%s8 + $0x128] sm:$0xff] %vm1638, %v1611
  %1677 = vst.msk [vmem:[%s8 + $0x130] sm:$0xff] %vm1638, %v1612
  %1678 = vst.msk [vmem:[%s8 + $0x138] sm:$0xff] %vm1638, %v1613
  %1679 = vst.msk [vmem:[%s8 + $0x140] sm:$0xff] %vm1638, %v1614
  %1680 = vst.msk [vmem:[%s8 + $0x148] sm:$0xff] %vm1638, %v1615
  %1681 = vst.msk [vmem:[%s8 + $0x150] sm:$0xff] %vm1638, %v1616
  %1682 = vst.msk [vmem:[%s8 + $0x158] sm:$0xff] %vm1638, %v1617
  %1683 = vst.msk [vmem:[%s8 + $0x160] sm:$0xff] %vm1638, %v1618
  %1684 = vst.msk [vmem:[%s8 + $0x168] sm:$0xff] %vm1638, %v1619
  %1685 = vst.msk [vmem:[%s8 + $0x170] sm:$0xff] %vm1638, %v1620
  %1686 = vst.msk [vmem:[%s8 + $0x178] sm:$0xff] %vm1638, %v1621
  %1687 = vst.msk [vmem:[%s8 + $0x180] sm:$0xff] %vm1638, %v1622
  %1688 = vst.msk [vmem:[%s8 + $0x188] sm:$0xff] %vm1638, %v1623
  %1689 = vst.msk [vmem:[%s8 + $0x190] sm:$0xff] %vm1638, %v1624
  %1690 = vst.msk [vmem:[%s8 + $0x198] sm:$0xff] %vm1638, %v1625
  %1691 = vst.msk [vmem:[%s8 + $0x1a0] sm:$0xff] %vm1638, %v1626
  %1692 = vst.msk [vmem:[%s8 + $0x1a8] sm:$0xff] %vm1638, %v1627
  %1693 = vst.msk [vmem:[%s8 + $0x1b0] sm:$0xff] %vm1638, %v1628
  %1694 = vst.msk [vmem:[%s8 + $0x1b8] sm:$0xff] %vm1638, %v1629
  %1695 = vst.msk [vmem:[%s8 + $0x1c0] sm:$0xff] %vm1638, %v1630
  %1696 = vst.msk [vmem:[%s8 + $0x1c8] sm:$0xff] %vm1638, %v1631
  %1697 = vst.msk [vmem:[%s8 + $0x1d0] sm:$0xff] %vm1638, %v1632
  %1698 = vst.msk [vmem:[%s8 + $0x1d8] sm:$0xff] %vm1638, %v1633
  %1699 = vst.msk [vmem:[%s8 + $0x1e0] sm:$0xff] %vm1638, %v1634
  %1700 = vst.msk [vmem:[%s8 + $0x1e8] sm:$0xff] %vm1638, %v1635
  %1701 = vst.msk [vmem:[%s8 + $0x1f0] sm:$0xff] %vm1638, %v1636
  %1702 = vst.msk [vmem:[%s8 + $0x1f8] sm:$0xff] %vm1638, %v1637
  // Predicated region
  $region30: #{lgpm_forward.5} parent=0 // pred_check
    _
  $region31: #{lgpm_forward.5} parent=0 // pred_check_branch
    %1704 = sbr.rel (0) target = $region33
  $region32: #{lgpm_forward.5} parent=0 // pred_region
    _
  $region33: #{lgpm_forward.5} parent=0 // pred_fallthru
    _
  // Predicated region
  $region34: #{lgpm_forward.5} parent=0 // pred_check
    _
  $region35: #{lgpm_forward.5} parent=0 // pred_check_branch
    %1706 = sbr.rel (0) target = $region37
  $region36: #{lgpm_forward.5} parent=0 // pred_region
    _
  $region37: #{lgpm_forward.5} parent=0 // pred_fallthru
    _
  // Predicated region
  $region38: #{lgpm_forward.5} parent=0 // pred_check
    _
  $region39: #{lgpm_forward.5} parent=0 // pred_check_branch
    %1708 = sbr.rel (0) target = $region41
  $region40: #{lgpm_forward.5} parent=0 // pred_region
    _
  $region41: #{lgpm_forward.5} parent=0 // pred_fallthru
    _
  // Predicated region
  $region42: #{lgpm_forward.5} parent=0 // pred_check
    _
  $region43: #{lgpm_forward.5} parent=0 // pred_check_branch
    %1710 = sbr.rel (0) target = $region45
  $region44: #{lgpm_forward.5} parent=0 // pred_region
    _
  $region45: #{lgpm_forward.5} parent=0 // pred_fallthru
    _

// kernel: lgpm_forward.6
$region0: #{lgpm_forward.6}
  #allocation0 [shape = 'u32[]', space=smem, size = 0x4, offset = 0x4, fixed_abs, tag = 'smem constant byte address 0x4 - core index']
  #allocation1 [shape = 'u32[144,128]{1,0:T(1,128)}', space=vmem, size = 0x12000, scoped, tag = 'internal scratch']
  %s0 = inlined_call_operand.vmem [shape: f32[2,20,20,8], index: 0, kind: input, shape index: {}]
  %s1 = inlined_call_operand.vmem [shape: f32[3,3,1,8], index: 1, kind: input, shape index: {}]
  %s2 = inlined_call_operand.vmem [shape: f32[3,3,1,8], index: 2, kind: input, shape index: {}]
  %s3 = inlined_call_operand.vmem [shape: f32[1,1,8], index: 3, kind: input, shape index: {}]
  %s4 = inlined_call_operand.vmem [shape: f32[2,16,16,8], index: 4, kind: output, shape index: {}]
  %s5 = sld [smem:[#allocation0]]
  $region49: #{lgpm_forward.6} parent=0
    _
  %s7 = ssub.s32 1, %s5
  %s8 = scalar_select 0, %s7, %s5
  loop: start=0, step=1, limit=4
  $region2: #{lgpm_forward.6} parent=0 // loop_pre_header
    _
  $region3: #{lgpm_forward.6} parent=0 // loop_header
    %s10 = sphi 0, %s14
    %p11 = scmp.ge.s32.totalorder %s10, 4
    %s20 = sphi 0, %s22
    %s23 = sphi 0, %s20
    %s24 = sphi 0, %s23
    %s40 = sphi 0, %s24
    %s44 = sphi 0, %s44
    %s46 = sphi 0, %s44
    %s47 = sphi 0, %s46
    %s61 = sphi 0, %s47
    %s65 = sphi 0, %s65
    %s67 = sphi 0, %s65
    %s68 = sphi 0, %s67
    %s82 = sphi 0, %s68
    %s86 = sphi 0, %s86
    %s88 = sphi 0, %s86
    %s89 = sphi 0, %s88
    %s103 = sphi 0, %s89
    %s109 = sphi 0, %s111
    %s112 = sphi 0, %s109
    %s113 = sphi 0, %s112
    %s129 = sphi 0, %s113
  $region4: #{lgpm_forward.6} parent=0 // loop_header_branch
    %13 = sbr.rel (%p11) target = $region8
  $region5: #{lgpm_forward.6} parent=0 // loop_body
    %s15 = ssub.s32 %s10, 1
    %s16 = ssub.s32 %s10, 2
    %s17 = sadd.s32 %s10, 1
    %s18 = ssub.s32 %s10, %s17
    %p19 = scmp.eq.s32.totalorder %s18, 0
    %s21 = sadd.s32 %s20, 1
    %s22 = scalar_select %p19, %s20, %s21
    %p25 = pneg %p19
    %p26 = scmp.eq.s32.totalorder %s10, 1
    %p27 = por %p25, %p26
    %p28 = scmp.ne.s32.totalorder %s20, %s23
    %p29 = scmp.eq.s32.totalorder %s10, 0
    %p30 = por %p28, %p29
    %p31 = scmp.ne.s32.totalorder %s20, %s23
    %p32 = scmp.eq.s32.totalorder %s15, 1
    %p33 = por %p31, %p32
    %p34 = scmp.ne.s32.totalorder %s23, %s24
    %p35 = scmp.eq.s32.totalorder %s15, 0
    %p36 = por %p34, %p35
    %p37 = scmp.ne.s32.totalorder %s23, %s24
    %p38 = scmp.eq.s32.totalorder %s16, 1
    %p39 = por %p37, %p38
    %p41 = scmp.ne.s32.totalorder %s24, %s40
    %p42 = scmp.eq.s32.totalorder %s16, 0
    %p43 = por %p41, %p42
    %s45 = sadd.s32 %s44, 1
    %p48 = scmp.eq.s32.totalorder %s10, 1
    %p49 = scmp.ne.s32.totalorder %s44, %s46
    %p50 = scmp.eq.s32.totalorder %s10, 0
    %p51 = por %p49, %p50
    %p52 = scmp.ne.s32.totalorder %s44, %s46
    %p53 = scmp.eq.s32.totalorder %s15, 1
    %p54 = por %p52, %p53
    %p55 = scmp.ne.s32.totalorder %s46, %s47
    %p56 = scmp.eq.s32.totalorder %s15, 0
    %p57 = por %p55, %p56
    %p58 = scmp.ne.s32.totalorder %s46, %s47
    %p59 = scmp.eq.s32.totalorder %s16, 1
    %p60 = por %p58, %p59
    %p62 = scmp.ne.s32.totalorder %s47, %s61
    %p63 = scmp.eq.s32.totalorder %s16, 0
    %p64 = por %p62, %p63
    %s66 = sadd.s32 %s65, 1
    %p69 = scmp.eq.s32.totalorder %s10, 1
    %p70 = scmp.ne.s32.totalorder %s65, %s67
    %p71 = scmp.eq.s32.totalorder %s10, 0
    %p72 = por %p70, %p71
    %p73 = scmp.ne.s32.totalorder %s65, %s67
    %p74 = scmp.eq.s32.totalorder %s15, 1
    %p75 = por %p73, %p74
    %p76 = scmp.ne.s32.totalorder %s67, %s68
    %p77 = scmp.eq.s32.totalorder %s15, 0
    %p78 = por %p76, %p77
    %p79 = scmp.ne.s32.totalorder %s67, %s68
    %p80 = scmp.eq.s32.totalorder %s16, 1
    %p81 = por %p79, %p80
    %p83 = scmp.ne.s32.totalorder %s68, %s82
    %p84 = scmp.eq.s32.totalorder %s16, 0
    %p85 = por %p83, %p84
    %s87 = sadd.s32 %s86, 1
    %p90 = scmp.eq.s32.totalorder %s10, 1
    %p91 = scmp.ne.s32.totalorder %s86, %s88
    %p92 = scmp.eq.s32.totalorder %s10, 0
    %p93 = por %p91, %p92
    %p94 = scmp.ne.s32.totalorder %s86, %s88
    %p95 = scmp.eq.s32.totalorder %s15, 1
    %p96 = por %p94, %p95
    %p97 = scmp.ne.s32.totalorder %s88, %s89
    %p98 = scmp.eq.s32.totalorder %s15, 0
    %p99 = por %p97, %p98
    %p100 = scmp.ne.s32.totalorder %s88, %s89
    %p101 = scmp.eq.s32.totalorder %s16, 1
    %p102 = por %p100, %p101
    %p104 = scmp.ne.s32.totalorder %s89, %s103
    %p105 = scmp.eq.s32.totalorder %s16, 0
    %p106 = por %p104, %p105
    %s107 = ssub.s32 %s10, %s17
    %p108 = scmp.eq.s32.totalorder %s107, 0
    %s110 = sadd.s32 %s109, 1
    %s111 = scalar_select %p108, %s109, %s110
    %p114 = pneg %p108
    %p115 = scmp.eq.s32.totalorder %s10, 1
    %p116 = por %p114, %p115
    %p117 = scmp.ne.s32.totalorder %s109, %s112
    %p118 = scmp.eq.s32.totalorder %s10, 0
    %p119 = por %p117, %p118
    %p120 = scmp.ne.s32.totalorder %s109, %s112
    %p121 = scmp.eq.s32.totalorder %s15, 1
    %p122 = por %p120, %p121
    %p123 = scmp.ne.s32.totalorder %s112, %s113
    %p124 = scmp.eq.s32.totalorder %s15, 0
    %p125 = por %p123, %p124
    %p126 = scmp.ne.s32.totalorder %s112, %s113
    %p127 = scmp.eq.s32.totalorder %s16, 1
    %p128 = por %p126, %p127
    %p130 = scmp.ne.s32.totalorder %s113, %s129
    %p131 = scmp.eq.s32.totalorder %s16, 0
    %p132 = por %p130, %p131
    %p133 = scmp.le.s32.totalorder 1, %s10
    %p134 = scmp.lt.s32.totalorder %s10, 3
    %p135 = pnand %p133, %p134
    %p136 = pneg %p135
    // Predicated region
    $region9: #{lgpm_forward.6} parent=5 // pred_check
      _
    $region10: #{lgpm_forward.6} parent=5 // pred_check_branch
      %138 = sbr.rel (%p135) target = $region12
    $region11: #{lgpm_forward.6} parent=5 // pred_region
      %s139 = ssub.s32 %s10, 1
      // Predicated region
      $region13: #{lgpm_forward.6} parent=11 // pred_check
        %p140 = pneg %p57
      $region14: #{lgpm_forward.6} parent=11 // pred_check_branch
        %142 = sbr.rel (%p140) target = $region16
      $region15: #{lgpm_forward.6} parent=11 // pred_region
        _
      $region16: #{lgpm_forward.6} parent=11 // pred_fallthru
        _
      // Predicated region
      $region17: #{lgpm_forward.6} parent=11 // pred_check
        %p143 = pneg %p78
      $region18: #{lgpm_forward.6} parent=11 // pred_check_branch
        %145 = sbr.rel (%p143) target = $region20
      $region19: #{lgpm_forward.6} parent=11 // pred_region
        _
      $region20: #{lgpm_forward.6} parent=11 // pred_fallthru
        _
      // Predicated region
      $region21: #{lgpm_forward.6} parent=11 // pred_check
        %p146 = pneg %p99
      $region22: #{lgpm_forward.6} parent=11 // pred_check_branch
        %148 = sbr.rel (%p146) target = $region24
      $region23: #{lgpm_forward.6} parent=11 // pred_region
        _
      $region24: #{lgpm_forward.6} parent=11 // pred_fallthru
        _
    $region12: #{lgpm_forward.6} parent=5 // pred_fallthru
      _
    %p149 = scmp.lt.s32.totalorder %s10, 2
    // Predicated region
    $region25: #{lgpm_forward.6} parent=5 // pred_check
      %p150 = pneg %p149
    $region26: #{lgpm_forward.6} parent=5 // pred_check_branch
      %152 = sbr.rel (%p150) target = $region28
    $region27: #{lgpm_forward.6} parent=5 // pred_region
      // Predicated region
      $region29: #{lgpm_forward.6} parent=27 // pred_check
        %p153 = pneg %p30
      $region30: #{lgpm_forward.6} parent=27 // pred_check_branch
        %155 = sbr.rel (%p153) target = $region32
      $region31: #{lgpm_forward.6} parent=27 // pred_region
        %p156 = scmp.lt.s32.totalorder %s10, 1
        %s157 = scalar_select %p156, %s10, 1
        %s158 = smul.addr %s157, 60
        %s159 = smul.addr %s158, 8
        %s160 = scalar_lea.vmem %s0, %s159
      $region32: #{lgpm_forward.6} parent=27 // pred_fallthru
        _
    $region28: #{lgpm_forward.6} parent=5 // pred_fallthru
      _
    %p161 = scmp.le.s32.totalorder 1, %s10
    %p162 = scmp.lt.s32.totalorder %s10, 3
    %p163 = pnand %p161, %p162
    %p164 = pneg %p163
    // Predicated region
    $region33: #{lgpm_forward.6} parent=5 // pred_check
      _
    $region34: #{lgpm_forward.6} parent=5 // pred_check_branch
      %166 = sbr.rel (%p163) target = $region36
    $region35: #{lgpm_forward.6} parent=5 // pred_region
      %s167 = ssub.s32 %s10, 1
      %p168 = scmp.lt.s32.totalorder %s15, 1
      %s169 = scalar_select %p168, %s15, 1
      %s170 = smul.addr %s169, 60
      %s171 = smul.addr %s170, 8
      %s172 = scalar_lea.vmem %s0, %s171
      %p173 = pneg %p36
      %p174 = pneg %p33
      %p175 = pneg %p57
      %p176 = pneg %p54
      %p177 = pneg %p78
      %p178 = pneg %p75
      %p179 = pneg %p99
      %p180 = pneg %p96
      %p181 = pneg %p125
      %p182 = pneg %p122
      %p183 = scmp.lt.s32.totalorder %s15, 1
      %s184 = scalar_select %p183, %s15, 1
      %s185 = smul.addr %s184, 32
      %s186 = smul.addr %s185, 8
      %s187 = scalar_lea.vmem %s4, %s186
      %p188 = scmp.lt.s32.totalorder %s15, 1
      %s189 = scalar_select %p188, %s15, 1
      %s190 = smul.addr %s189, 60
      %s191 = smul.addr %s190, 8
      %s192 = scalar_lea.vmem %s0, %s191
      %p193 = scmp.lt.s32.totalorder %s15, 1
      %s194 = scalar_select %p193, %s15, 1
      %s195 = smul.addr %s194, 32
      %s196 = smul.addr %s195, 8
      %s197 = scalar_lea.vmem %s4, %s196
      %v198 = vld [vmem:[%s192] sm:$0xff]
      %v199 = vld [vmem:[%s192 + $0x8] sm:$0xff]
      %v200 = vld [vmem:[%s192 + $0x10] sm:$0xf]
      %v201 = vld [vmem:[%s192 + $0x18] sm:$0xff]
      %v202 = vld [vmem:[%s192 + $0x20] sm:$0xff]
      %v203 = vld [vmem:[%s192 + $0x28] sm:$0xf]
      %v204 = vld [vmem:[%s192 + $0x30] sm:$0xff]
      %v205 = vld [vmem:[%s192 + $0x38] sm:$0xff]
      %v206 = vld [vmem:[%s192 + $0x40] sm:$0xf]
      %v207 = vld [vmem:[%s192 + $0x48] sm:$0xff]
      %v208 = vld [vmem:[%s192 + $0x50] sm:$0xff]
      %v209 = vld [vmem:[%s192 + $0x58] sm:$0xf]
      %v210 = vld [vmem:[%s192 + $0x60] sm:$0xff]
      %v211 = vld [vmem:[%s192 + $0x68] sm:$0xff]
      %v212 = vld [vmem:[%s192 + $0x70] sm:$0xf]
      %v213 = vld [vmem:[%s192 + $0x78] sm:$0xff]
      %v214 = vld [vmem:[%s192 + $0x80] sm:$0xff]
      %v215 = vld [vmem:[%s192 + $0x88] sm:$0xf]
      %v216 = vld [vmem:[%s192 + $0x90] sm:$0xff]
      %v217 = vld [vmem:[%s192 + $0x98] sm:$0xff]
      %v218 = vld [vmem:[%s192 + $0xa0] sm:$0xf]
      %v219 = vld [vmem:[%s192 + $0xa8] sm:$0xff]
      %v220 = vld [vmem:[%s192 + $0xb0] sm:$0xff]
      %v221 = vld [vmem:[%s192 + $0xb8] sm:$0xf]
      %v222 = vld [vmem:[%s192 + $0xc0] sm:$0xff]
      %v223 = vld [vmem:[%s192 + $0xc8] sm:$0xff]
      %v224 = vld [vmem:[%s192 + $0xd0] sm:$0xf]
      %v225 = vld [vmem:[%s192 + $0xd8] sm:$0xff]
      %v226 = vld [vmem:[%s192 + $0xe0] sm:$0xff]
      %v227 = vld [vmem:[%s192 + $0xe8] sm:$0xf]
      %v228 = vld [vmem:[%s192 + $0xf0] sm:$0xff]
      %v229 = vld [vmem:[%s192 + $0xf8] sm:$0xff]
      %v230 = vld [vmem:[%s192 + $0x100] sm:$0xf]
      %v231 = vld [vmem:[%s192 + $0x108] sm:$0xff]
      %v232 = vld [vmem:[%s192 + $0x110] sm:$0xff]
      %v233 = vld [vmem:[%s192 + $0x118] sm:$0xf]
      %v234 = vld [vmem:[%s192 + $0x120] sm:$0xff]
      %v235 = vld [vmem:[%s192 + $0x128] sm:$0xff]
      %v236 = vld [vmem:[%s192 + $0x130] sm:$0xf]
      %v237 = vld [vmem:[%s192 + $0x138] sm:$0xff]
      %v238 = vld [vmem:[%s192 + $0x140] sm:$0xff]
      %v239 = vld [vmem:[%s192 + $0x148] sm:$0xf]
      %v240 = vld [vmem:[%s192 + $0x150] sm:$0xff]
      %v241 = vld [vmem:[%s192 + $0x158] sm:$0xff]
      %v242 = vld [vmem:[%s192 + $0x160] sm:$0xf]
      %v243 = vld [vmem:[%s192 + $0x168] sm:$0xff]
      %v244 = vld [vmem:[%s192 + $0x170] sm:$0xff]
      %v245 = vld [vmem:[%s192 + $0x178] sm:$0xf]
      %v246 = vld [vmem:[%s192 + $0x180] sm:$0xff]
      %v247 = vld [vmem:[%s192 + $0x188] sm:$0xff]
      %v248 = vld [vmem:[%s192 + $0x190] sm:$0xf]
      %v249 = vld [vmem:[%s192 + $0x198] sm:$0xff]
      %v250 = vld [vmem:[%s192 + $0x1a0] sm:$0xff]
      %v251 = vld [vmem:[%s192 + $0x1a8] sm:$0xf]
      %v252 = vld [vmem:[%s192 + $0x1b0] sm:$0xff]
      %v253 = vld [vmem:[%s192 + $0x1b8] sm:$0xff]
      %v254 = vld [vmem:[%s192 + $0x1c0] sm:$0xf]
      %v255 = vld [vmem:[%s192 + $0x1c8] sm:$0xff]
      %v256 = vld [vmem:[%s192 + $0x1d0] sm:$0xff]
      %v257 = vld [vmem:[%s192 + $0x1d8] sm:$0xf]
      %v258 = vld [vmem:[%s1] sm:$0x1]
      %v259 = vld [vmem:[%s1 + $0x1] sm:$0x1]
      %v260 = vld [vmem:[%s1 + $0x2] sm:$0x1]
      %v261 = vld [vmem:[%s1 + $0x3] sm:$0x1]
      %v262 = vld [vmem:[%s1 + $0x4] sm:$0x1]
      %v263 = vld [vmem:[%s1 + $0x5] sm:$0x1]
      %v264 = vld [vmem:[%s1 + $0x6] sm:$0x1]
      %v265 = vld [vmem:[%s1 + $0x7] sm:$0x1]
      %v266 = vld [vmem:[%s1 + $0x8] sm:$0x1]
      %v267 = vld [vmem:[%s2] sm:$0x1]
      %v268 = vld [vmem:[%s2 + $0x1] sm:$0x1]
      %v269 = vld [vmem:[%s2 + $0x2] sm:$0x1]
      %v270 = vld [vmem:[%s2 + $0x3] sm:$0x1]
      %v271 = vld [vmem:[%s2 + $0x4] sm:$0x1]
      %v272 = vld [vmem:[%s2 + $0x5] sm:$0x1]
      %v273 = vld [vmem:[%s2 + $0x6] sm:$0x1]
      %v274 = vld [vmem:[%s2 + $0x7] sm:$0x1]
      %v275 = vld [vmem:[%s2 + $0x8] sm:$0x1]
      %v276 = vld [vmem:[%s3] sm:$0x1]
      %v278 = vlaneseq
      %v279 = vshrl.u32 %v278, 7
      %v280 = vsub.s32 0, %v279
      %v281 = vrot.slane %v276, %v280
      %v283 = vadd.f32 %v281, 0.0
      %v285 = vlaneseq
      %v286 = vshrl.u32 %v285, 7
      %v287 = vsub.s32 0, %v286
      %v288 = vrot.slane %v258, %v287
      %v290 = vmul.f32 %v201, %v288
      %v291 = vmul.f32 %v202, %v288
      %v292 = vmul.f32 %v203, %v288
      %v293 = vmul.f32 %v204, %v288
      %v294 = vmul.f32 %v205, %v288
      %v295 = vmul.f32 %v206, %v288
      %v296 = vmul.f32 %v207, %v288
      %v297 = vmul.f32 %v208, %v288
      %v298 = vmul.f32 %v209, %v288
      %v299 = vmul.f32 %v210, %v288
      %v300 = vmul.f32 %v211, %v288
      %v301 = vmul.f32 %v212, %v288
      %v302 = vmul.f32 %v213, %v288
      %v303 = vmul.f32 %v214, %v288
      %v304 = vmul.f32 %v215, %v288
      %v305 = vmul.f32 %v216, %v288
      %v306 = vmul.f32 %v217, %v288
      %v307 = vmul.f32 %v218, %v288
      %v308 = vmul.f32 %v219, %v288
      %v309 = vmul.f32 %v220, %v288
      %v310 = vmul.f32 %v221, %v288
      %v311 = vmul.f32 %v222, %v288
      %v312 = vmul.f32 %v223, %v288
      %v313 = vmul.f32 %v224, %v288
      %v314 = vmul.f32 %v225, %v288
      %v315 = vmul.f32 %v226, %v288
      %v316 = vmul.f32 %v227, %v288
      %v317 = vmul.f32 %v228, %v288
      %v318 = vmul.f32 %v229, %v288
      %v319 = vmul.f32 %v230, %v288
      %v320 = vmul.f32 %v231, %v288
      %v321 = vmul.f32 %v232, %v288
      %v322 = vmul.f32 %v233, %v288
      %v323 = vmul.f32 %v234, %v288
      %v324 = vmul.f32 %v235, %v288
      %v325 = vmul.f32 %v236, %v288
      %v326 = vmul.f32 %v237, %v288
      %v327 = vmul.f32 %v238, %v288
      %v328 = vmul.f32 %v239, %v288
      %v329 = vmul.f32 %v240, %v288
      %v330 = vmul.f32 %v241, %v288
      %v331 = vmul.f32 %v242, %v288
      %v332 = vmul.f32 %v243, %v288
      %v333 = vmul.f32 %v244, %v288
      %v334 = vmul.f32 %v245, %v288
      %v335 = vmul.f32 %v246, %v288
      %v336 = vmul.f32 %v247, %v288
      %v337 = vmul.f32 %v248, %v288
      %v338 = vadd.f32 %v283, %v290
      %v339 = vadd.f32 %v283, %v291
      %v340 = vadd.f32 %v283, %v292
      %v341 = vadd.f32 %v283, %v293
      %v342 = vadd.f32 %v283, %v294
      %v343 = vadd.f32 %v283, %v295
      %v344 = vadd.f32 %v283, %v296
      %v345 = vadd.f32 %v283, %v297
      %v346 = vadd.f32 %v283, %v298
      %v347 = vadd.f32 %v283, %v299
      %v348 = vadd.f32 %v283, %v300
      %v349 = vadd.f32 %v283, %v301
      %v350 = vadd.f32 %v283, %v302
      %v351 = vadd.f32 %v283, %v303
      %v352 = vadd.f32 %v283, %v304
      %v353 = vadd.f32 %v283, %v305
      %v354 = vadd.f32 %v283, %v306
      %v355 = vadd.f32 %v283, %v307
      %v356 = vadd.f32 %v283, %v308
      %v357 = vadd.f32 %v283, %v309
      %v358 = vadd.f32 %v283, %v310
      %v359 = vadd.f32 %v283, %v311
      %v360 = vadd.f32 %v283, %v312
      %v361 = vadd.f32 %v283, %v313
      %v362 = vadd.f32 %v283, %v314
      %v363 = vadd.f32 %v283, %v315
      %v364 = vadd.f32 %v283, %v316
      %v365 = vadd.f32 %v283, %v317
      %v366 = vadd.f32 %v283, %v318
      %v367 = vadd.f32 %v283, %v319
      %v368 = vadd.f32 %v283, %v320
      %v369 = vadd.f32 %v283, %v321
      %v370 = vadd.f32 %v283, %v322
      %v371 = vadd.f32 %v283, %v323
      %v372 = vadd.f32 %v283, %v324
      %v373 = vadd.f32 %v283, %v325
      %v374 = vadd.f32 %v283, %v326
      %v375 = vadd.f32 %v283, %v327
      %v376 = vadd.f32 %v283, %v328
      %v377 = vadd.f32 %v283, %v329
      %v378 = vadd.f32 %v283, %v330
      %v379 = vadd.f32 %v283, %v331
      %v380 = vadd.f32 %v283, %v332
      %v381 = vadd.f32 %v283, %v333
      %v382 = vadd.f32 %v283, %v334
      %v383 = vadd.f32 %v283, %v335
      %v384 = vadd.f32 %v283, %v336
      %v385 = vadd.f32 %v283, %v337
      %v387 = vlaneseq
      %v388 = vshrl.u32 %v387, 7
      %v389 = vsub.s32 0, %v388
      %v390 = vrot.slane %v267, %v389
      %v392 = vmul.f32 %v198, %v390
      %v393 = vmul.f32 %v199, %v390
      %v394 = vmul.f32 %v201, %v390
      %v395 = vmul.f32 %v202, %v390
      %v396 = vmul.f32 %v204, %v390
      %v397 = vmul.f32 %v205, %v390
      %v398 = vmul.f32 %v207, %v390
      %v399 = vmul.f32 %v208, %v390
      %v400 = vmul.f32 %v210, %v390
      %v401 = vmul.f32 %v211, %v390
      %v402 = vmul.f32 %v213, %v390
      %v403 = vmul.f32 %v214, %v390
      %v404 = vmul.f32 %v216, %v390
      %v405 = vmul.f32 %v217, %v390
      %v406 = vmul.f32 %v219, %v390
      %v407 = vmul.f32 %v220, %v390
      %v408 = vmul.f32 %v222, %v390
      %v409 = vmul.f32 %v223, %v390
      %v410 = vmul.f32 %v225, %v390
      %v411 = vmul.f32 %v226, %v390
      %v412 = vmul.f32 %v228, %v390
      %v413 = vmul.f32 %v229, %v390
      %v414 = vmul.f32 %v231, %v390
      %v415 = vmul.f32 %v232, %v390
      %v416 = vmul.f32 %v234, %v390
      %v417 = vmul.f32 %v235, %v390
      %v418 = vmul.f32 %v237, %v390
      %v419 = vmul.f32 %v238, %v390
      %v420 = vmul.f32 %v240, %v390
      %v421 = vmul.f32 %v241, %v390
      %v422 = vmul.f32 %v243, %v390
      %v423 = vmul.f32 %v244, %v390
      %vm456 = vcmask 1040384
      %v457 = vrot.slane %v392, 7
      %v458 = vrot.slane %v393, 7
      %v459 = vsel %vm456, %v457, %v458
      %v460 = vrot.slane %v394, 7
      %v461 = vrot.slane %v395, 7
      %v462 = vsel %vm456, %v460, %v461
      %v463 = vrot.slane %v396, 7
      %v464 = vrot.slane %v397, 7
      %v465 = vsel %vm456, %v463, %v464
      %v466 = vrot.slane %v398, 7
      %v467 = vrot.slane %v399, 7
      %v468 = vsel %vm456, %v466, %v467
      %v469 = vrot.slane %v400, 7
      %v470 = vrot.slane %v401, 7
      %v471 = vsel %vm456, %v469, %v470
      %v472 = vrot.slane %v402, 7
      %v473 = vrot.slane %v403, 7
      %v474 = vsel %vm456, %v472, %v473
      %v475 = vrot.slane %v404, 7
      %v476 = vrot.slane %v405, 7
      %v477 = vsel %vm456, %v475, %v476
      %v478 = vrot.slane %v406, 7
      %v479 = vrot.slane %v407, 7
      %v480 = vsel %vm456, %v478, %v479
      %v481 = vrot.slane %v408, 7
      %v482 = vrot.slane %v409, 7
      %v483 = vsel %vm456, %v481, %v482
      %v484 = vrot.slane %v410, 7
      %v485 = vrot.slane %v411, 7
      %v486 = vsel %vm456, %v484, %v485
      %v487 = vrot.slane %v412, 7
      %v488 = vrot.slane %v413, 7
      %v489 = vsel %vm456, %v487, %v488
      %v490 = vrot.slane %v414, 7
      %v491 = vrot.slane %v415, 7
      %v492 = vsel %vm456, %v490, %v491
      %v493 = vrot.slane %v416, 7
      %v494 = vrot.slane %v417, 7
      %v495 = vsel %vm456, %v493, %v494
      %v496 = vrot.slane %v418, 7
      %v497 = vrot.slane %v419, 7
      %v498 = vsel %vm456, %v496, %v497
      %v499 = vrot.slane %v420, 7
      %v500 = vrot.slane %v421, 7
      %v501 = vsel %vm456, %v499, %v500
      %v502 = vrot.slane %v422, 7
      %v503 = vrot.slane %v423, 7
      %v504 = vsel %vm456, %v502, %v503
      %v553 = vadd.f32 %v338, %v457
      %v554 = vadd.f32 %v339, %v459
      %v555 = vadd.f32 %v340, %v458
      %v556 = vadd.f32 %v341, %v460
      %v557 = vadd.f32 %v342, %v462
      %v558 = vadd.f32 %v343, %v461
      %v559 = vadd.f32 %v344, %v463
      %v560 = vadd.f32 %v345, %v465
      %v561 = vadd.f32 %v346, %v464
      %v562 = vadd.f32 %v347, %v466
      %v563 = vadd.f32 %v348, %v468
      %v564 = vadd.f32 %v349, %v467
      %v565 = vadd.f32 %v350, %v469
      %v566 = vadd.f32 %v351, %v471
      %v567 = vadd.f32 %v352, %v470
      %v568 = vadd.f32 %v353, %v472
      %v569 = vadd.f32 %v354, %v474
      %v570 = vadd.f32 %v355, %v473
      %v571 = vadd.f32 %v356, %v475
      %v572 = vadd.f32 %v357, %v477
      %v573 = vadd.f32 %v358, %v476
      %v574 = vadd.f32 %v359, %v478
      %v575 = vadd.f32 %v360, %v480
      %v576 = vadd.f32 %v361, %v479
      %v577 = vadd.f32 %v362, %v481
      %v578 = vadd.f32 %v363, %v483
      %v579 = vadd.f32 %v364, %v482
      %v580 = vadd.f32 %v365, %v484
      %v581 = vadd.f32 %v366, %v486
      %v582 = vadd.f32 %v367, %v485
      %v583 = vadd.f32 %v368, %v487
      %v584 = vadd.f32 %v369, %v489
      %v585 = vadd.f32 %v370, %v488
      %v586 = vadd.f32 %v371, %v490
      %v587 = vadd.f32 %v372, %v492
      %v588 = vadd.f32 %v373, %v491
      %v589 = vadd.f32 %v374, %v493
      %v590 = vadd.f32 %v375, %v495
      %v591 = vadd.f32 %v376, %v494
      %v592 = vadd.f32 %v377, %v496
      %v593 = vadd.f32 %v378, %v498
      %v594 = vadd.f32 %v379, %v497
      %v595 = vadd.f32 %v380, %v499
      %v596 = vadd.f32 %v381, %v501
      %v597 = vadd.f32 %v382, %v500
      %v598 = vadd.f32 %v383, %v502
      %v599 = vadd.f32 %v384, %v504
      %v600 = vadd.f32 %v385, %v503
      %v602 = vlaneseq
      %v603 = vshrl.u32 %v602, 7
      %v604 = vsub.s32 0, %v603
      %v605 = vrot.slane %v259, %v604
      %v607 = vmul.f32 %v201, %v605
      %v608 = vmul.f32 %v202, %v605
      %v609 = vmul.f32 %v203, %v605
      %v610 = vmul.f32 %v204, %v605
      %v611 = vmul.f32 %v205, %v605
      %v612 = vmul.f32 %v206, %v605
      %v613 = vmul.f32 %v207, %v605
      %v614 = vmul.f32 %v208, %v605
      %v615 = vmul.f32 %v209, %v605
      %v616 = vmul.f32 %v210, %v605
      %v617 = vmul.f32 %v211, %v605
      %v618 = vmul.f32 %v212, %v605
      %v619 = vmul.f32 %v213, %v605
      %v620 = vmul.f32 %v214, %v605
      %v621 = vmul.f32 %v215, %v605
      %v622 = vmul.f32 %v216, %v605
      %v623 = vmul.f32 %v217, %v605
      %v624 = vmul.f32 %v218, %v605
      %v625 = vmul.f32 %v219, %v605
      %v626 = vmul.f32 %v220, %v605
      %v627 = vmul.f32 %v221, %v605
      %v628 = vmul.f32 %v222, %v605
      %v629 = vmul.f32 %v223, %v605
      %v630 = vmul.f32 %v224, %v605
      %v631 = vmul.f32 %v225, %v605
      %v632 = vmul.f32 %v226, %v605
      %v633 = vmul.f32 %v227, %v605
      %v634 = vmul.f32 %v228, %v605
      %v635 = vmul.f32 %v229, %v605
      %v636 = vmul.f32 %v230, %v605
      %v637 = vmul.f32 %v231, %v605
      %v638 = vmul.f32 %v232, %v605
      %v639 = vmul.f32 %v233, %v605
      %v640 = vmul.f32 %v234, %v605
      %v641 = vmul.f32 %v235, %v605
      %v642 = vmul.f32 %v236, %v605
      %v643 = vmul.f32 %v237, %v605
      %v644 = vmul.f32 %v238, %v605
      %v645 = vmul.f32 %v239, %v605
      %v646 = vmul.f32 %v240, %v605
      %v647 = vmul.f32 %v241, %v605
      %v648 = vmul.f32 %v242, %v605
      %v649 = vmul.f32 %v243, %v605
      %v650 = vmul.f32 %v244, %v605
      %v651 = vmul.f32 %v245, %v605
      %v652 = vmul.f32 %v246, %v605
      %v653 = vmul.f32 %v247, %v605
      %v654 = vmul.f32 %v248, %v605
      %vm703 = vcmask 1046528
      %v704 = vrot.slane %v607, 1
      %v705 = vrot.slane %v608, 1
      %v706 = vsel %vm703, %v704, %v705
      %v707 = vrot.slane %v609, 1
      %v708 = vsel %vm703, %v705, %v707
      %v709 = vrot.slane %v610, 1
      %v710 = vrot.slane %v611, 1
      %v711 = vsel %vm703, %v709, %v710
      %v712 = vrot.slane %v612, 1
      %v713 = vsel %vm703, %v710, %v712
      %v714 = vrot.slane %v613, 1
      %v715 = vrot.slane %v614, 1
      %v716 = vsel %vm703, %v714, %v715
      %v717 = vrot.slane %v615, 1
      %v718 = vsel %vm703, %v715, %v717
      %v719 = vrot.slane %v616, 1
      %v720 = vrot.slane %v617, 1
      %v721 = vsel %vm703, %v719, %v720
      %v722 = vrot.slane %v618, 1
      %v723 = vsel %vm703, %v720, %v722
      %v724 = vrot.slane %v619, 1
      %v725 = vrot.slane %v620, 1
      %v726 = vsel %vm703, %v724, %v725
      %v727 = vrot.slane %v621, 1
      %v728 = vsel %vm703, %v725, %v727
      %v729 = vrot.slane %v622, 1
      %v730 = vrot.slane %v623, 1
      %v731 = vsel %vm703, %v729, %v730
      %v732 = vrot.slane %v624, 1
      %v733 = vsel %vm703, %v730, %v732
      %v734 = vrot.slane %v625, 1
      %v735 = vrot.slane %v626, 1
      %v736 = vsel %vm703, %v734, %v735
      %v737 = vrot.slane %v627, 1
      %v738 = vsel %vm703, %v735, %v737
      %v739 = vrot.slane %v628, 1
      %v740 = vrot.slane %v629, 1
      %v741 = vsel %vm703, %v739, %v740
      %v742 = vrot.slane %v630, 1
      %v743 = vsel %vm703, %v740, %v742
      %v744 = vrot.slane %v631, 1
      %v745 = vrot.slane %v632, 1
      %v746 = vsel %vm703, %v744, %v745
      %v747 = vrot.slane %v633, 1
      %v748 = vsel %vm703, %v745, %v747
      %v749 = vrot.slane %v634, 1
      %v750 = vrot.slane %v635, 1
      %v751 = vsel %vm703, %v749, %v750
      %v752 = vrot.slane %v636, 1
      %v753 = vsel %vm703, %v750, %v752
      %v754 = vrot.slane %v637, 1
      %v755 = vrot.slane %v638, 1
      %v756 = vsel %vm703, %v754, %v755
      %v757 = vrot.slane %v639, 1
      %v758 = vsel %vm703, %v755, %v757
      %v759 = vrot.slane %v640, 1
      %v760 = vrot.slane %v641, 1
      %v761 = vsel %vm703, %v759, %v760
      %v762 = vrot.slane %v642, 1
      %v763 = vsel %vm703, %v760, %v762
      %v764 = vrot.slane %v643, 1
      %v765 = vrot.slane %v644, 1
      %v766 = vsel %vm703, %v764, %v765
      %v767 = vrot.slane %v645, 1
      %v768 = vsel %vm703, %v765, %v767
      %v769 = vrot.slane %v646, 1
      %v770 = vrot.slane %v647, 1
      %v771 = vsel %vm703, %v769, %v770
      %v772 = vrot.slane %v648, 1
      %v773 = vsel %vm703, %v770, %v772
      %v774 = vrot.slane %v649, 1
      %v775 = vrot.slane %v650, 1
      %v776 = vsel %vm703, %v774, %v775
      %v777 = vrot.slane %v651, 1
      %v778 = vsel %vm703, %v775, %v777
      %v779 = vrot.slane %v652, 1
      %v780 = vrot.slane %v653, 1
      %v781 = vsel %vm703, %v779, %v780
      %v782 = vrot.slane %v654, 1
      %v783 = vsel %vm703, %v780, %v782
      %v832 = vadd.f32 %v553, %v706
      %v833 = vadd.f32 %v554, %v708
      %v834 = vadd.f32 %v555, %v707
      %v835 = vadd.f32 %v556, %v711
      %v836 = vadd.f32 %v557, %v713
      %v837 = vadd.f32 %v558, %v712
      %v838 = vadd.f32 %v559, %v716
      %v839 = vadd.f32 %v560, %v718
      %v840 = vadd.f32 %v561, %v717
      %v841 = vadd.f32 %v562, %v721
      %v842 = vadd.f32 %v563, %v723
      %v843 = vadd.f32 %v564, %v722
      %v844 = vadd.f32 %v565, %v726
      %v845 = vadd.f32 %v566, %v728
      %v846 = vadd.f32 %v567, %v727
      %v847 = vadd.f32 %v568, %v731
      %v848 = vadd.f32 %v569, %v733
      %v849 = vadd.f32 %v570, %v732
      %v850 = vadd.f32 %v571, %v736
      %v851 = vadd.f32 %v572, %v738
      %v852 = vadd.f32 %v573, %v737
      %v853 = vadd.f32 %v574, %v741
      %v854 = vadd.f32 %v575, %v743
      %v855 = vadd.f32 %v576, %v742
      %v856 = vadd.f32 %v577, %v746
      %v857 = vadd.f32 %v578, %v748
      %v858 = vadd.f32 %v579, %v747
      %v859 = vadd.f32 %v580, %v751
      %v860 = vadd.f32 %v581, %v753
      %v861 = vadd.f32 %v582, %v752
      %v862 = vadd.f32 %v583, %v756
      %v863 = vadd.f32 %v584, %v758
      %v864 = vadd.f32 %v585, %v757
      %v865 = vadd.f32 %v586, %v761
      %v866 = vadd.f32 %v587, %v763
      %v867 = vadd.f32 %v588, %v762
      %v868 = vadd.f32 %v589, %v766
      %v869 = vadd.f32 %v590, %v768
      %v870 = vadd.f32 %v591, %v767
      %v871 = vadd.f32 %v592, %v771
      %v872 = vadd.f32 %v593, %v773
      %v873 = vadd.f32 %v594, %v772
      %v874 = vadd.f32 %v595, %v776
      %v875 = vadd.f32 %v596, %v778
      %v876 = vadd.f32 %v597, %v777
      %v877 = vadd.f32 %v598, %v781
      %v878 = vadd.f32 %v599, %v783
      %v879 = vadd.f32 %v600, %v782
      %v881 = vlaneseq
      %v882 = vshrl.u32 %v881, 7
      %v883 = vsub.s32 0, %v882
      %v884 = vrot.slane %v268, %v883
      %v886 = vmul.f32 %v198, %v884
      %v887 = vmul.f32 %v199, %v884
      %v888 = vmul.f32 %v200, %v884
      %v889 = vmul.f32 %v201, %v884
      %v890 = vmul.f32 %v202, %v884
      %v891 = vmul.f32 %v203, %v884
      %v892 = vmul.f32 %v204, %v884
      %v893 = vmul.f32 %v205, %v884
      %v894 = vmul.f32 %v206, %v884
      %v895 = vmul.f32 %v207, %v884
      %v896 = vmul.f32 %v208, %v884
      %v897 = vmul.f32 %v209, %v884
      %v898 = vmul.f32 %v210, %v884
      %v899 = vmul.f32 %v211, %v884
      %v900 = vmul.f32 %v212, %v884
      %v901 = vmul.f32 %v213, %v884
      %v902 = vmul.f32 %v214, %v884
      %v903 = vmul.f32 %v215, %v884
      %v904 = vmul.f32 %v216, %v884
      %v905 = vmul.f32 %v217, %v884
      %v906 = vmul.f32 %v218, %v884
      %v907 = vmul.f32 %v219, %v884
      %v908 = vmul.f32 %v220, %v884
      %v909 = vmul.f32 %v221, %v884
      %v910 = vmul.f32 %v222, %v884
      %v911 = vmul.f32 %v223, %v884
      %v912 = vmul.f32 %v224, %v884
      %v913 = vmul.f32 %v225, %v884
      %v914 = vmul.f32 %v226, %v884
      %v915 = vmul.f32 %v227, %v884
      %v916 = vmul.f32 %v228, %v884
      %v917 = vmul.f32 %v229, %v884
      %v918 = vmul.f32 %v230, %v884
      %v919 = vmul.f32 %v231, %v884
      %v920 = vmul.f32 %v232, %v884
      %v921 = vmul.f32 %v233, %v884
      %v922 = vmul.f32 %v234, %v884
      %v923 = vmul.f32 %v235, %v884
      %v924 = vmul.f32 %v236, %v884
      %v925 = vmul.f32 %v237, %v884
      %v926 = vmul.f32 %v238, %v884
      %v927 = vmul.f32 %v239, %v884
      %v928 = vmul.f32 %v240, %v884
      %v929 = vmul.f32 %v241, %v884
      %v930 = vmul.f32 %v242, %v884
      %v931 = vmul.f32 %v243, %v884
      %v932 = vmul.f32 %v244, %v884
      %v933 = vmul.f32 %v245, %v884
      %v982 = vrot.slane %v886, 1
      %v983 = vrot.slane %v887, 1
      %v984 = vsel %vm703, %v982, %v983
      %v985 = vrot.slane %v888, 1
      %v986 = vsel %vm703, %v983, %v985
      %v987 = vrot.slane %v889, 1
      %v988 = vrot.slane %v890, 1
      %v989 = vsel %vm703, %v987, %v988
      %v990 = vrot.slane %v891, 1
      %v991 = vsel %vm703, %v988, %v990
      %v992 = vrot.slane %v892, 1
      %v993 = vrot.slane %v893, 1
      %v994 = vsel %vm703, %v992, %v993
      %v995 = vrot.slane %v894, 1
      %v996 = vsel %vm703, %v993, %v995
      %v997 = vrot.slane %v895, 1
      %v998 = vrot.slane %v896, 1
      %v999 = vsel %vm703, %v997, %v998
      %v1000 = vrot.slane %v897, 1
      %v1001 = vsel %vm703, %v998, %v1000
      %v1002 = vrot.slane %v898, 1
      %v1003 = vrot.slane %v899, 1
      %v1004 = vsel %vm703, %v1002, %v1003
      %v1005 = vrot.slane %v900, 1
      %v1006 = vsel %vm703, %v1003, %v1005
      %v1007 = vrot.slane %v901, 1
      %v1008 = vrot.slane %v902, 1
      %v1009 = vsel %vm703, %v1007, %v1008
      %v1010 = vrot.slane %v903, 1
      %v1011 = vsel %vm703, %v1008, %v1010
      %v1012 = vrot.slane %v904, 1
      %v1013 = vrot.slane %v905, 1
      %v1014 = vsel %vm703, %v1012, %v1013
      %v1015 = vrot.slane %v906, 1
      %v1016 = vsel %vm703, %v1013, %v1015
      %v1017 = vrot.slane %v907, 1
      %v1018 = vrot.slane %v908, 1
      %v1019 = vsel %vm703, %v1017, %v1018
      %v1020 = vrot.slane %v909, 1
      %v1021 = vsel %vm703, %v1018, %v1020
      %v1022 = vrot.slane %v910, 1
      %v1023 = vrot.slane %v911, 1
      %v1024 = vsel %vm703, %v1022, %v1023
      %v1025 = vrot.slane %v912, 1
      %v1026 = vsel %vm703, %v1023, %v1025
      %v1027 = vrot.slane %v913, 1
      %v1028 = vrot.slane %v914, 1
      %v1029 = vsel %vm703, %v1027, %v1028
      %v1030 = vrot.slane %v915, 1
      %v1031 = vsel %vm703, %v1028, %v1030
      %v1032 = vrot.slane %v916, 1
      %v1033 = vrot.slane %v917, 1
      %v1034 = vsel %vm703, %v1032, %v1033
      %v1035 = vrot.slane %v918, 1
      %v1036 = vsel %vm703, %v1033, %v1035
      %v1037 = vrot.slane %v919, 1
      %v1038 = vrot.slane %v920, 1
      %v1039 = vsel %vm703, %v1037, %v1038
      %v1040 = vrot.slane %v921, 1
      %v1041 = vsel %vm703, %v1038, %v1040
      %v1042 = vrot.slane %v922, 1
      %v1043 = vrot.slane %v923, 1
      %v1044 = vsel %vm703, %v1042, %v1043
      %v1045 = vrot.slane %v924, 1
      %v1046 = vsel %vm703, %v1043, %v1045
      %v1047 = vrot.slane %v925, 1
      %v1048 = vrot.slane %v926, 1
      %v1049 = vsel %vm703, %v1047, %v1048
      %v1050 = vrot.slane %v927, 1
      %v1051 = vsel %vm703, %v1048, %v1050
      %v1052 = vrot.slane %v928, 1
      %v1053 = vrot.slane %v929, 1
      %v1054 = vsel %vm703, %v1052, %v1053
      %v1055 = vrot.slane %v930, 1
      %v1056 = vsel %vm703, %v1053, %v1055
      %v1057 = vrot.slane %v931, 1
      %v1058 = vrot.slane %v932, 1
      %v1059 = vsel %vm703, %v1057, %v1058
      %v1060 = vrot.slane %v933, 1
      %v1061 = vsel %vm703, %v1058, %v1060
      %v1110 = vadd.f32 %v832, %v984
      %v1111 = vadd.f32 %v833, %v986
      %v1112 = vadd.f32 %v834, %v985
      %v1113 = vadd.f32 %v835, %v989
      %v1114 = vadd.f32 %v836, %v991
      %v1115 = vadd.f32 %v837, %v990
      %v1116 = vadd.f32 %v838, %v994
      %v1117 = vadd.f32 %v839, %v996
      %v1118 = vadd.f32 %v840, %v995
      %v1119 = vadd.f32 %v841, %v999
      %v1120 = vadd.f32 %v842, %v1001
      %v1121 = vadd.f32 %v843, %v1000
      %v1122 = vadd.f32 %v844, %v1004
      %v1123 = vadd.f32 %v845, %v1006
      %v1124 = vadd.f32 %v846, %v1005
      %v1125 = vadd.f32 %v847, %v1009
      %v1126 = vadd.f32 %v848, %v1011
      %v1127 = vadd.f32 %v849, %v1010
      %v1128 = vadd.f32 %v850, %v1014
      %v1129 = vadd.f32 %v851, %v1016
      %v1130 = vadd.f32 %v852, %v1015
      %v1131 = vadd.f32 %v853, %v1019
      %v1132 = vadd.f32 %v854, %v1021
      %v1133 = vadd.f32 %v855, %v1020
      %v1134 = vadd.f32 %v856, %v1024
      %v1135 = vadd.f32 %v857, %v1026
      %v1136 = vadd.f32 %v858, %v1025
      %v1137 = vadd.f32 %v859, %v1029
      %v1138 = vadd.f32 %v860, %v1031
      %v1139 = vadd.f32 %v861, %v1030
      %v1140 = vadd.f32 %v862, %v1034
      %v1141 = vadd.f32 %v863, %v1036
      %v1142 = vadd.f32 %v864, %v1035
      %v1143 = vadd.f32 %v865, %v1039
      %v1144 = vadd.f32 %v866, %v1041
      %v1145 = vadd.f32 %v867, %v1040
      %v1146 = vadd.f32 %v868, %v1044
      %v1147 = vadd.f32 %v869, %v1046
      %v1148 = vadd.f32 %v870, %v1045
      %v1149 = vadd.f32 %v871, %v1049
      %v1150 = vadd.f32 %v872, %v1051
      %v1151 = vadd.f32 %v873, %v1050
      %v1152 = vadd.f32 %v874, %v1054
      %v1153 = vadd.f32 %v875, %v1056
      %v1154 = vadd.f32 %v876, %v1055
      %v1155 = vadd.f32 %v877, %v1059
      %v1156 = vadd.f32 %v878, %v1061
      %v1157 = vadd.f32 %v879, %v1060
      %v1159 = vlaneseq
      %v1160 = vshrl.u32 %v1159, 7
      %v1161 = vsub.s32 0, %v1160
      %v1162 = vrot.slane %v260, %v1161
      %v1164 = vmul.f32 %v201, %v1162
      %v1165 = vmul.f32 %v202, %v1162
      %v1166 = vmul.f32 %v203, %v1162
      %v1167 = vmul.f32 %v204, %v1162
      %v1168 = vmul.f32 %v205, %v1162
      %v1169 = vmul.f32 %v206, %v1162
      %v1170 = vmul.f32 %v207, %v1162
      %v1171 = vmul.f32 %v208, %v1162
      %v1172 = vmul.f32 %v209, %v1162
      %v1173 = vmul.f32 %v210, %v1162
      %v1174 = vmul.f32 %v211, %v1162
      %v1175 = vmul.f32 %v212, %v1162
      %v1176 = vmul.f32 %v213, %v1162
      %v1177 = vmul.f32 %v214, %v1162
      %v1178 = vmul.f32 %v215, %v1162
      %v1179 = vmul.f32 %v216, %v1162
      %v1180 = vmul.f32 %v217, %v1162
      %v1181 = vmul.f32 %v218, %v1162
      %v1182 = vmul.f32 %v219, %v1162
      %v1183 = vmul.f32 %v220, %v1162
      %v1184 = vmul.f32 %v221, %v1162
      %v1185 = vmul.f32 %v222, %v1162
      %v1186 = vmul.f32 %v223, %v1162
      %v1187 = vmul.f32 %v224, %v1162
      %v1188 = vmul.f32 %v225, %v1162
      %v1189 = vmul.f32 %v226, %v1162
      %v1190 = vmul.f32 %v227, %v1162
      %v1191 = vmul.f32 %v228, %v1162
      %v1192 = vmul.f32 %v229, %v1162
      %v1193 = vmul.f32 %v230, %v1162
      %v1194 = vmul.f32 %v231, %v1162
      %v1195 = vmul.f32 %v232, %v1162
      %v1196 = vmul.f32 %v233, %v1162
      %v1197 = vmul.f32 %v234, %v1162
      %v1198 = vmul.f32 %v235, %v1162
      %v1199 = vmul.f32 %v236, %v1162
      %v1200 = vmul.f32 %v237, %v1162
      %v1201 = vmul.f32 %v238, %v1162
      %v1202 = vmul.f32 %v239, %v1162
      %v1203 = vmul.f32 %v240, %v1162
      %v1204 = vmul.f32 %v241, %v1162
      %v1205 = vmul.f32 %v242, %v1162
      %v1206 = vmul.f32 %v243, %v1162
      %v1207 = vmul.f32 %v244, %v1162
      %v1208 = vmul.f32 %v245, %v1162
      %v1209 = vmul.f32 %v246, %v1162
      %v1210 = vmul.f32 %v247, %v1162
      %v1211 = vmul.f32 %v248, %v1162
      %vm1260 = vcmask 1045504
      %v1261 = vrot.slane %v1164, 2
      %v1262 = vrot.slane %v1165, 2
      %v1263 = vsel %vm1260, %v1261, %v1262
      %v1264 = vrot.slane %v1166, 2
      %v1265 = vsel %vm1260, %v1262, %v1264
      %v1266 = vrot.slane %v1167, 2
      %v1267 = vrot.slane %v1168, 2
      %v1268 = vsel %vm1260, %v1266, %v1267
      %v1269 = vrot.slane %v1169, 2
      %v1270 = vsel %vm1260, %v1267, %v1269
      %v1271 = vrot.slane %v1170, 2
      %v1272 = vrot.slane %v1171, 2
      %v1273 = vsel %vm1260, %v1271, %v1272
      %v1274 = vrot.slane %v1172, 2
      %v1275 = vsel %vm1260, %v1272, %v1274
      %v1276 = vrot.slane %v1173, 2
      %v1277 = vrot.slane %v1174, 2
      %v1278 = vsel %vm1260, %v1276, %v1277
      %v1279 = vrot.slane %v1175, 2
      %v1280 = vsel %vm1260, %v1277, %v1279
      %v1281 = vrot.slane %v1176, 2
      %v1282 = vrot.slane %v1177, 2
      %v1283 = vsel %vm1260, %v1281, %v1282
      %v1284 = vrot.slane %v1178, 2
      %v1285 = vsel %vm1260, %v1282, %v1284
      %v1286 = vrot.slane %v1179, 2
      %v1287 = vrot.slane %v1180, 2
      %v1288 = vsel %vm1260, %v1286, %v1287
      %v1289 = vrot.slane %v1181, 2
      %v1290 = vsel %vm1260, %v1287, %v1289
      %v1291 = vrot.slane %v1182, 2
      %v1292 = vrot.slane %v1183, 2
      %v1293 = vsel %vm1260, %v1291, %v1292
      %v1294 = vrot.slane %v1184, 2
      %v1295 = vsel %vm1260, %v1292, %v1294
      %v1296 = vrot.slane %v1185, 2
      %v1297 = vrot.slane %v1186, 2
      %v1298 = vsel %vm1260, %v1296, %v1297
      %v1299 = vrot.slane %v1187, 2
      %v1300 = vsel %vm1260, %v1297, %v1299
      %v1301 = vrot.slane %v1188, 2
      %v1302 = vrot.slane %v1189, 2
      %v1303 = vsel %vm1260, %v1301, %v1302
      %v1304 = vrot.slane %v1190, 2
      %v1305 = vsel %vm1260, %v1302, %v1304
      %v1306 = vrot.slane %v1191, 2
      %v1307 = vrot.slane %v1192, 2
      %v1308 = vsel %vm1260, %v1306, %v1307
      %v1309 = vrot.slane %v1193, 2
      %v1310 = vsel %vm1260, %v1307, %v1309
      %v1311 = vrot.slane %v1194, 2
      %v1312 = vrot.slane %v1195, 2
      %v1313 = vsel %vm1260, %v1311, %v1312
      %v1314 = vrot.slane %v1196, 2
      %v1315 = vsel %vm1260, %v1312, %v1314
      %v1316 = vrot.slane %v1197, 2
      %v1317 = vrot.slane %v1198, 2
      %v1318 = vsel %vm1260, %v1316, %v1317
      %v1319 = vrot.slane %v1199, 2
      %v1320 = vsel %vm1260, %v1317, %v1319
      %v1321 = vrot.slane %v1200, 2
      %v1322 = vrot.slane %v1201, 2
      %v1323 = vsel %vm1260, %v1321, %v1322
      %v1324 = vrot.slane %v1202, 2
      %v1325 = vsel %vm1260, %v1322, %v1324
      %v1326 = vrot.slane %v1203, 2
      %v1327 = vrot.slane %v1204, 2
      %v1328 = vsel %vm1260, %v1326, %v1327
      %v1329 = vrot.slane %v1205, 2
      %v1330 = vsel %vm1260, %v1327, %v1329
      %v1331 = vrot.slane %v1206, 2
      %v1332 = vrot.slane %v1207, 2
      %v1333 = vsel %vm1260, %v1331, %v1332
      %v1334 = vrot.slane %v1208, 2
      %v1335 = vsel %vm1260, %v1332, %v1334
      %v1336 = vrot.slane %v1209, 2
      %v1337 = vrot.slane %v1210, 2
      %v1338 = vsel %vm1260, %v1336, %v1337
      %v1339 = vrot.slane %v1211, 2
      %v1340 = vsel %vm1260, %v1337, %v1339
      %v1389 = vadd.f32 %v1110, %v1263
      %v1390 = vadd.f32 %v1111, %v1265
      %v1391 = vadd.f32 %v1112, %v1264
      %v1392 = vadd.f32 %v1113, %v1268
      %v1393 = vadd.f32 %v1114, %v1270
      %v1394 = vadd.f32 %v1115, %v1269
      %v1395 = vadd.f32 %v1116, %v1273
      %v1396 = vadd.f32 %v1117, %v1275
      %v1397 = vadd.f32 %v1118, %v1274
      %v1398 = vadd.f32 %v1119, %v1278
      %v1399 = vadd.f32 %v1120, %v1280
      %v1400 = vadd.f32 %v1121, %v1279
      %v1401 = vadd.f32 %v1122, %v1283
      %v1402 = vadd.f32 %v1123, %v1285
      %v1403 = vadd.f32 %v1124, %v1284
      %v1404 = vadd.f32 %v1125, %v1288
      %v1405 = vadd.f32 %v1126, %v1290
      %v1406 = vadd.f32 %v1127, %v1289
      %v1407 = vadd.f32 %v1128, %v1293
      %v1408 = vadd.f32 %v1129, %v1295
      %v1409 = vadd.f32 %v1130, %v1294
      %v1410 = vadd.f32 %v1131, %v1298
      %v1411 = vadd.f32 %v1132, %v1300
      %v1412 = vadd.f32 %v1133, %v1299
      %v1413 = vadd.f32 %v1134, %v1303
      %v1414 = vadd.f32 %v1135, %v1305
      %v1415 = vadd.f32 %v1136, %v1304
      %v1416 = vadd.f32 %v1137, %v1308
      %v1417 = vadd.f32 %v1138, %v1310
      %v1418 = vadd.f32 %v1139, %v1309
      %v1419 = vadd.f32 %v1140, %v1313
      %v1420 = vadd.f32 %v1141, %v1315
      %v1421 = vadd.f32 %v1142, %v1314
      %v1422 = vadd.f32 %v1143, %v1318
      %v1423 = vadd.f32 %v1144, %v1320
      %v1424 = vadd.f32 %v1145, %v1319
      %v1425 = vadd.f32 %v1146, %v1323
      %v1426 = vadd.f32 %v1147, %v1325
      %v1427 = vadd.f32 %v1148, %v1324
      %v1428 = vadd.f32 %v1149, %v1328
      %v1429 = vadd.f32 %v1150, %v1330
      %v1430 = vadd.f32 %v1151, %v1329
      %v1431 = vadd.f32 %v1152, %v1333
      %v1432 = vadd.f32 %v1153, %v1335
      %v1433 = vadd.f32 %v1154, %v1334
      %v1434 = vadd.f32 %v1155, %v1338
      %v1435 = vadd.f32 %v1156, %v1340
      %v1436 = vadd.f32 %v1157, %v1339
      %v1438 = vlaneseq
      %v1439 = vshrl.u32 %v1438, 7
      %v1440 = vsub.s32 0, %v1439
      %v1441 = vrot.slane %v269, %v1440
      %v1443 = vmul.f32 %v198, %v1441
      %v1444 = vmul.f32 %v199, %v1441
      %v1445 = vmul.f32 %v200, %v1441
      %v1446 = vmul.f32 %v201, %v1441
      %v1447 = vmul.f32 %v202, %v1441
      %v1448 = vmul.f32 %v203, %v1441
      %v1449 = vmul.f32 %v204, %v1441
      %v1450 = vmul.f32 %v205, %v1441
      %v1451 = vmul.f32 %v206, %v1441
      %v1452 = vmul.f32 %v207, %v1441
      %v1453 = vmul.f32 %v208, %v1441
      %v1454 = vmul.f32 %v209, %v1441
      %v1455 = vmul.f32 %v210, %v1441
      %v1456 = vmul.f32 %v211, %v1441
      %v1457 = vmul.f32 %v212, %v1441
      %v1458 = vmul.f32 %v213, %v1441
      %v1459 = vmul.f32 %v214, %v1441
      %v1460 = vmul.f32 %v215, %v1441
      %v1461 = vmul.f32 %v216, %v1441
      %v1462 = vmul.f32 %v217, %v1441
      %v1463 = vmul.f32 %v218, %v1441
      %v1464 = vmul.f32 %v219, %v1441
      %v1465 = vmul.f32 %v220, %v1441
      %v1466 = vmul.f32 %v221, %v1441
      %v1467 = vmul.f32 %v222, %v1441
      %v1468 = vmul.f32 %v223, %v1441
      %v1469 = vmul.f32 %v224, %v1441
      %v1470 = vmul.f32 %v225, %v1441
      %v1471 = vmul.f32 %v226, %v1441
      %v1472 = vmul.f32 %v227, %v1441
      %v1473 = vmul.f32 %v228, %v1441
      %v1474 = vmul.f32 %v229, %v1441
      %v1475 = vmul.f32 %v230, %v1441
      %v1476 = vmul.f32 %v231, %v1441
      %v1477 = vmul.f32 %v232, %v1441
      %v1478 = vmul.f32 %v233, %v1441
      %v1479 = vmul.f32 %v234, %v1441
      %v1480 = vmul.f32 %v235, %v1441
      %v1481 = vmul.f32 %v236, %v1441
      %v1482 = vmul.f32 %v237, %v1441
      %v1483 = vmul.f32 %v238, %v1441
      %v1484 = vmul.f32 %v239, %v1441
      %v1485 = vmul.f32 %v240, %v1441
      %v1486 = vmul.f32 %v241, %v1441
      %v1487 = vmul.f32 %v242, %v1441
      %v1488 = vmul.f32 %v243, %v1441
      %v1489 = vmul.f32 %v244, %v1441
      %v1490 = vmul.f32 %v245, %v1441
      %vm1539 = vcmask 1044480
      %v1540 = vrot.slane %v1443, 3
      %v1541 = vrot.slane %v1444, 3
      %v1542 = vsel %vm1539, %v1540, %v1541
      %v1543 = vrot.slane %v1445, 3
      %v1544 = vsel %vm1539, %v1541, %v1543
      %v1545 = vrot.slane %v1446, 3
      %v1546 = vrot.slane %v1447, 3
      %v1547 = vsel %vm1539, %v1545, %v1546
      %v1548 = vrot.slane %v1448, 3
      %v1549 = vsel %vm1539, %v1546, %v1548
      %v1550 = vrot.slane %v1449, 3
      %v1551 = vrot.slane %v1450, 3
      %v1552 = vsel %vm1539, %v1550, %v1551
      %v1553 = vrot.slane %v1451, 3
      %v1554 = vsel %vm1539, %v1551, %v1553
      %v1555 = vrot.slane %v1452, 3
      %v1556 = vrot.slane %v1453, 3
      %v1557 = vsel %vm1539, %v1555, %v1556
      %v1558 = vrot.slane %v1454, 3
      %v1559 = vsel %vm1539, %v1556, %v1558
      %v1560 = vrot.slane %v1455, 3
      %v1561 = vrot.slane %v1456, 3
      %v1562 = vsel %vm1539, %v1560, %v1561
      %v1563 = vrot.slane %v1457, 3
      %v1564 = vsel %vm1539, %v1561, %v1563
      %v1565 = vrot.slane %v1458, 3
      %v1566 = vrot.slane %v1459, 3
      %v1567 = vsel %vm1539, %v1565, %v1566
      %v1568 = vrot.slane %v1460, 3
      %v1569 = vsel %vm1539, %v1566, %v1568
      %v1570 = vrot.slane %v1461, 3
      %v1571 = vrot.slane %v1462, 3
      %v1572 = vsel %vm1539, %v1570, %v1571
      %v1573 = vrot.slane %v1463, 3
      %v1574 = vsel %vm1539, %v1571, %v1573
      %v1575 = vrot.slane %v1464, 3
      %v1576 = vrot.slane %v1465, 3
      %v1577 = vsel %vm1539, %v1575, %v1576
      %v1578 = vrot.slane %v1466, 3
      %v1579 = vsel %vm1539, %v1576, %v1578
      %v1580 = vrot.slane %v1467, 3
      %v1581 = vrot.slane %v1468, 3
      %v1582 = vsel %vm1539, %v1580, %v1581
      %v1583 = vrot.slane %v1469, 3
      %v1584 = vsel %vm1539, %v1581, %v1583
      %v1585 = vrot.slane %v1470, 3
      %v1586 = vrot.slane %v1471, 3
      %v1587 = vsel %vm1539, %v1585, %v1586
      %v1588 = vrot.slane %v1472, 3
      %v1589 = vsel %vm1539, %v1586, %v1588
      %v1590 = vrot.slane %v1473, 3
      %v1591 = vrot.slane %v1474, 3
      %v1592 = vsel %vm1539, %v1590, %v1591
      %v1593 = vrot.slane %v1475, 3
      %v1594 = vsel %vm1539, %v1591, %v1593
      %v1595 = vrot.slane %v1476, 3
      %v1596 = vrot.slane %v1477, 3
      %v1597 = vsel %vm1539, %v1595, %v1596
      %v1598 = vrot.slane %v1478, 3
      %v1599 = vsel %vm1539, %v1596, %v1598
      %v1600 = vrot.slane %v1479, 3
      %v1601 = vrot.slane %v1480, 3
      %v1602 = vsel %vm1539, %v1600, %v1601
      %v1603 = vrot.slane %v1481, 3
      %v1604 = vsel %vm1539, %v1601, %v1603
      %v1605 = vrot.slane %v1482, 3
      %v1606 = vrot.slane %v1483, 3
      %v1607 = vsel %vm1539, %v1605, %v1606
      %v1608 = vrot.slane %v1484, 3
      %v1609 = vsel %vm1539, %v1606, %v1608
      %v1610 = vrot.slane %v1485, 3
      %v1611 = vrot.slane %v1486, 3
      %v1612 = vsel %vm1539, %v1610, %v1611
      %v1613 = vrot.slane %v1487, 3
      %v1614 = vsel %vm1539, %v1611, %v1613
      %v1615 = vrot.slane %v1488, 3
      %v1616 = vrot.slane %v1489, 3
      %v1617 = vsel %vm1539, %v1615, %v1616
      %v1618 = vrot.slane %v1490, 3
      %v1619 = vsel %vm1539, %v1616, %v1618
      %v1668 = vadd.f32 %v1389, %v1542
      %v1669 = vadd.f32 %v1390, %v1544
      %v1670 = vadd.f32 %v1391, %v1543
      %v1671 = vadd.f32 %v1392, %v1547
      %v1672 = vadd.f32 %v1393, %v1549
      %v1673 = vadd.f32 %v1394, %v1548
      %v1674 = vadd.f32 %v1395, %v1552
      %v1675 = vadd.f32 %v1396, %v1554
      %v1676 = vadd.f32 %v1397, %v1553
      %v1677 = vadd.f32 %v1398, %v1557
      %v1678 = vadd.f32 %v1399, %v1559
      %v1679 = vadd.f32 %v1400, %v1558
      %v1680 = vadd.f32 %v1401, %v1562
      %v1681 = vadd.f32 %v1402, %v1564
      %v1682 = vadd.f32 %v1403, %v1563
      %v1683 = vadd.f32 %v1404, %v1567
      %v1684 = vadd.f32 %v1405, %v1569
      %v1685 = vadd.f32 %v1406, %v1568
      %v1686 = vadd.f32 %v1407, %v1572
      %v1687 = vadd.f32 %v1408, %v1574
      %v1688 = vadd.f32 %v1409, %v1573
      %v1689 = vadd.f32 %v1410, %v1577
      %v1690 = vadd.f32 %v1411, %v1579
      %v1691 = vadd.f32 %v1412, %v1578
      %v1692 = vadd.f32 %v1413, %v1582
      %v1693 = vadd.f32 %v1414, %v1584
      %v1694 = vadd.f32 %v1415, %v1583
      %v1695 = vadd.f32 %v1416, %v1587
      %v1696 = vadd.f32 %v1417, %v1589
      %v1697 = vadd.f32 %v1418, %v1588
      %v1698 = vadd.f32 %v1419, %v1592
      %v1699 = vadd.f32 %v1420, %v1594
      %v1700 = vadd.f32 %v1421, %v1593
      %v1701 = vadd.f32 %v1422, %v1597
      %v1702 = vadd.f32 %v1423, %v1599
      %v1703 = vadd.f32 %v1424, %v1598
      %v1704 = vadd.f32 %v1425, %v1602
      %v1705 = vadd.f32 %v1426, %v1604
      %v1706 = vadd.f32 %v1427, %v1603
      %v1707 = vadd.f32 %v1428, %v1607
      %v1708 = vadd.f32 %v1429, %v1609
      %v1709 = vadd.f32 %v1430, %v1608
      %v1710 = vadd.f32 %v1431, %v1612
      %v1711 = vadd.f32 %v1432, %v1614
      %v1712 = vadd.f32 %v1433, %v1613
      %v1713 = vadd.f32 %v1434, %v1617
      %v1714 = vadd.f32 %v1435, %v1619
      %v1715 = vadd.f32 %v1436, %v1618
      %v1717 = vlaneseq
      %v1718 = vshrl.u32 %v1717, 7
      %v1719 = vsub.s32 0, %v1718
      %v1720 = vrot.slane %v261, %v1719
      %v1722 = vmul.f32 %v204, %v1720
      %v1723 = vmul.f32 %v205, %v1720
      %v1724 = vmul.f32 %v206, %v1720
      %v1725 = vmul.f32 %v207, %v1720
      %v1726 = vmul.f32 %v208, %v1720
      %v1727 = vmul.f32 %v209, %v1720
      %v1728 = vmul.f32 %v210, %v1720
      %v1729 = vmul.f32 %v211, %v1720
      %v1730 = vmul.f32 %v212, %v1720
      %v1731 = vmul.f32 %v213, %v1720
      %v1732 = vmul.f32 %v214, %v1720
      %v1733 = vmul.f32 %v215, %v1720
      %v1734 = vmul.f32 %v216, %v1720
      %v1735 = vmul.f32 %v217, %v1720
      %v1736 = vmul.f32 %v218, %v1720
      %v1737 = vmul.f32 %v219, %v1720
      %v1738 = vmul.f32 %v220, %v1720
      %v1739 = vmul.f32 %v221, %v1720
      %v1740 = vmul.f32 %v222, %v1720
      %v1741 = vmul.f32 %v223, %v1720
      %v1742 = vmul.f32 %v224, %v1720
      %v1743 = vmul.f32 %v225, %v1720
      %v1744 = vmul.f32 %v226, %v1720
      %v1745 = vmul.f32 %v227, %v1720
      %v1746 = vmul.f32 %v228, %v1720
      %v1747 = vmul.f32 %v229, %v1720
      %v1748 = vmul.f32 %v230, %v1720
      %v1749 = vmul.f32 %v231, %v1720
      %v1750 = vmul.f32 %v232, %v1720
      %v1751 = vmul.f32 %v233, %v1720
      %v1752 = vmul.f32 %v234, %v1720
      %v1753 = vmul.f32 %v235, %v1720
      %v1754 = vmul.f32 %v236, %v1720
      %v1755 = vmul.f32 %v237, %v1720
      %v1756 = vmul.f32 %v238, %v1720
      %v1757 = vmul.f32 %v239, %v1720
      %v1758 = vmul.f32 %v240, %v1720
      %v1759 = vmul.f32 %v241, %v1720
      %v1760 = vmul.f32 %v242, %v1720
      %v1761 = vmul.f32 %v243, %v1720
      %v1762 = vmul.f32 %v244, %v1720
      %v1763 = vmul.f32 %v245, %v1720
      %v1764 = vmul.f32 %v246, %v1720
      %v1765 = vmul.f32 %v247, %v1720
      %v1766 = vmul.f32 %v248, %v1720
      %v1767 = vmul.f32 %v249, %v1720
      %v1768 = vmul.f32 %v250, %v1720
      %v1769 = vmul.f32 %v251, %v1720
      %v1770 = vadd.f32 %v1668, %v1722
      %v1771 = vadd.f32 %v1669, %v1723
      %v1772 = vadd.f32 %v1670, %v1724
      %v1773 = vadd.f32 %v1671, %v1725
      %v1774 = vadd.f32 %v1672, %v1726
      %v1775 = vadd.f32 %v1673, %v1727
      %v1776 = vadd.f32 %v1674, %v1728
      %v1777 = vadd.f32 %v1675, %v1729
      %v1778 = vadd.f32 %v1676, %v1730
      %v1779 = vadd.f32 %v1677, %v1731
      %v1780 = vadd.f32 %v1678, %v1732
      %v1781 = vadd.f32 %v1679, %v1733
      %v1782 = vadd.f32 %v1680, %v1734
      %v1783 = vadd.f32 %v1681, %v1735
      %v1784 = vadd.f32 %v1682, %v1736
      %v1785 = vadd.f32 %v1683, %v1737
      %v1786 = vadd.f32 %v1684, %v1738
      %v1787 = vadd.f32 %v1685, %v1739
      %v1788 = vadd.f32 %v1686, %v1740
      %v1789 = vadd.f32 %v1687, %v1741
      %v1790 = vadd.f32 %v1688, %v1742
      %v1791 = vadd.f32 %v1689, %v1743
      %v1792 = vadd.f32 %v1690, %v1744
      %v1793 = vadd.f32 %v1691, %v1745
      %v1794 = vadd.f32 %v1692, %v1746
      %v1795 = vadd.f32 %v1693, %v1747
      %v1796 = vadd.f32 %v1694, %v1748
      %v1797 = vadd.f32 %v1695, %v1749
      %v1798 = vadd.f32 %v1696, %v1750
      %v1799 = vadd.f32 %v1697, %v1751
      %v1800 = vadd.f32 %v1698, %v1752
      %v1801 = vadd.f32 %v1699, %v1753
      %v1802 = vadd.f32 %v1700, %v1754
      %v1803 = vadd.f32 %v1701, %v1755
      %v1804 = vadd.f32 %v1702, %v1756
      %v1805 = vadd.f32 %v1703, %v1757
      %v1806 = vadd.f32 %v1704, %v1758
      %v1807 = vadd.f32 %v1705, %v1759
      %v1808 = vadd.f32 %v1706, %v1760
      %v1809 = vadd.f32 %v1707, %v1761
      %v1810 = vadd.f32 %v1708, %v1762
      %v1811 = vadd.f32 %v1709, %v1763
      %v1812 = vadd.f32 %v1710, %v1764
      %v1813 = vadd.f32 %v1711, %v1765
      %v1814 = vadd.f32 %v1712, %v1766
      %v1815 = vadd.f32 %v1713, %v1767
      %v1816 = vadd.f32 %v1714, %v1768
      %v1817 = vadd.f32 %v1715, %v1769
      %v1819 = vlaneseq
      %v1820 = vshrl.u32 %v1819, 7
      %v1821 = vsub.s32 0, %v1820
      %v1822 = vrot.slane %v270, %v1821
      %v1824 = vmul.f32 %v204, %v1822
      %v1825 = vmul.f32 %v205, %v1822
      %v1826 = vmul.f32 %v207, %v1822
      %v1827 = vmul.f32 %v208, %v1822
      %v1828 = vmul.f32 %v210, %v1822
      %v1829 = vmul.f32 %v211, %v1822
      %v1830 = vmul.f32 %v213, %v1822
      %v1831 = vmul.f32 %v214, %v1822
      %v1832 = vmul.f32 %v216, %v1822
      %v1833 = vmul.f32 %v217, %v1822
      %v1834 = vmul.f32 %v219, %v1822
      %v1835 = vmul.f32 %v220, %v1822
      %v1836 = vmul.f32 %v222, %v1822
      %v1837 = vmul.f32 %v223, %v1822
      %v1838 = vmul.f32 %v225, %v1822
      %v1839 = vmul.f32 %v226, %v1822
      %v1840 = vmul.f32 %v228, %v1822
      %v1841 = vmul.f32 %v229, %v1822
      %v1842 = vmul.f32 %v231, %v1822
      %v1843 = vmul.f32 %v232, %v1822
      %v1844 = vmul.f32 %v234, %v1822
      %v1845 = vmul.f32 %v235, %v1822
      %v1846 = vmul.f32 %v237, %v1822
      %v1847 = vmul.f32 %v238, %v1822
      %v1848 = vmul.f32 %v240, %v1822
      %v1849 = vmul.f32 %v241, %v1822
      %v1850 = vmul.f32 %v243, %v1822
      %v1851 = vmul.f32 %v244, %v1822
      %v1852 = vmul.f32 %v246, %v1822
      %v1853 = vmul.f32 %v247, %v1822
      %v1854 = vmul.f32 %v249, %v1822
      %v1855 = vmul.f32 %v250, %v1822
      %v1888 = vrot.slane %v1824, 7
      %v1889 = vrot.slane %v1825, 7
      %v1890 = vsel %vm456, %v1888, %v1889
      %v1891 = vrot.slane %v1826, 7
      %v1892 = vrot.slane %v1827, 7
      %v1893 = vsel %vm456, %v1891, %v1892
      %v1894 = vrot.slane %v1828, 7
      %v1895 = vrot.slane %v1829, 7
      %v1896 = vsel %vm456, %v1894, %v1895
      %v1897 = vrot.slane %v1830, 7
      %v1898 = vrot.slane %v1831, 7
      %v1899 = vsel %vm456, %v1897, %v1898
      %v1900 = vrot.slane %v1832, 7
      %v1901 = vrot.slane %v1833, 7
      %v1902 = vsel %vm456, %v1900, %v1901
      %v1903 = vrot.slane %v1834, 7
      %v1904 = vrot.slane %v1835, 7
      %v1905 = vsel %vm456, %v1903, %v1904
      %v1906 = vrot.slane %v1836, 7
      %v1907 = vrot.slane %v1837, 7
      %v1908 = vsel %vm456, %v1906, %v1907
      %v1909 = vrot.slane %v1838, 7
      %v1910 = vrot.slane %v1839, 7
      %v1911 = vsel %vm456, %v1909, %v1910
      %v1912 = vrot.slane %v1840, 7
      %v1913 = vrot.slane %v1841, 7
      %v1914 = vsel %vm456, %v1912, %v1913
      %v1915 = vrot.slane %v1842, 7
      %v1916 = vrot.slane %v1843, 7
      %v1917 = vsel %vm456, %v1915, %v1916
      %v1918 = vrot.slane %v1844, 7
      %v1919 = vrot.slane %v1845, 7
      %v1920 = vsel %vm456, %v1918, %v1919
      %v1921 = vrot.slane %v1846, 7
      %v1922 = vrot.slane %v1847, 7
      %v1923 = vsel %vm456, %v1921, %v1922
      %v1924 = vrot.slane %v1848, 7
      %v1925 = vrot.slane %v1849, 7
      %v1926 = vsel %vm456, %v1924, %v1925
      %v1927 = vrot.slane %v1850, 7
      %v1928 = vrot.slane %v1851, 7
      %v1929 = vsel %vm456, %v1927, %v1928
      %v1930 = vrot.slane %v1852, 7
      %v1931 = vrot.slane %v1853, 7
      %v1932 = vsel %vm456, %v1930, %v1931
      %v1933 = vrot.slane %v1854, 7
      %v1934 = vrot.slane %v1855, 7
      %v1935 = vsel %vm456, %v1933, %v1934
      %v1984 = vadd.f32 %v1770, %v1888
      %v1985 = vadd.f32 %v1771, %v1890
      %v1986 = vadd.f32 %v1772, %v1889
      %v1987 = vadd.f32 %v1773, %v1891
      %v1988 = vadd.f32 %v1774, %v1893
      %v1989 = vadd.f32 %v1775, %v1892
      %v1990 = vadd.f32 %v1776, %v1894
      %v1991 = vadd.f32 %v1777, %v1896
      %v1992 = vadd.f32 %v1778, %v1895
      %v1993 = vadd.f32 %v1779, %v1897
      %v1994 = vadd.f32 %v1780, %v1899
      %v1995 = vadd.f32 %v1781, %v1898
      %v1996 = vadd.f32 %v1782, %v1900
      %v1997 = vadd.f32 %v1783, %v1902
      %v1998 = vadd.f32 %v1784, %v1901
      %v1999 = vadd.f32 %v1785, %v1903
      %v2000 = vadd.f32 %v1786, %v1905
      %v2001 = vadd.f32 %v1787, %v1904
      %v2002 = vadd.f32 %v1788, %v1906
      %v2003 = vadd.f32 %v1789, %v1908
      %v2004 = vadd.f32 %v1790, %v1907
      %v2005 = vadd.f32 %v1791, %v1909
      %v2006 = vadd.f32 %v1792, %v1911
      %v2007 = vadd.f32 %v1793, %v1910
      %v2008 = vadd.f32 %v1794, %v1912
      %v2009 = vadd.f32 %v1795, %v1914
      %v2010 = vadd.f32 %v1796, %v1913
      %v2011 = vadd.f32 %v1797, %v1915
      %v2012 = vadd.f32 %v1798, %v1917
      %v2013 = vadd.f32 %v1799, %v1916
      %v2014 = vadd.f32 %v1800, %v1918
      %v2015 = vadd.f32 %v1801, %v1920
      %v2016 = vadd.f32 %v1802, %v1919
      %v2017 = vadd.f32 %v1803, %v1921
      %v2018 = vadd.f32 %v1804, %v1923
      %v2019 = vadd.f32 %v1805, %v1922
      %v2020 = vadd.f32 %v1806, %v1924
      %v2021 = vadd.f32 %v1807, %v1926
      %v2022 = vadd.f32 %v1808, %v1925
      %v2023 = vadd.f32 %v1809, %v1927
      %v2024 = vadd.f32 %v1810, %v1929
      %v2025 = vadd.f32 %v1811, %v1928
      %v2026 = vadd.f32 %v1812, %v1930
      %v2027 = vadd.f32 %v1813, %v1932
      %v2028 = vadd.f32 %v1814, %v1931
      %v2029 = vadd.f32 %v1815, %v1933
      %v2030 = vadd.f32 %v1816, %v1935
      %v2031 = vadd.f32 %v1817, %v1934
      %v2033 = vlaneseq
      %v2034 = vshrl.u32 %v2033, 7
      %v2035 = vsub.s32 0, %v2034
      %v2036 = vrot.slane %v262, %v2035
      %v2038 = vmul.f32 %v204, %v2036
      %v2039 = vmul.f32 %v205, %v2036
      %v2040 = vmul.f32 %v206, %v2036
      %v2041 = vmul.f32 %v207, %v2036
      %v2042 = vmul.f32 %v208, %v2036
      %v2043 = vmul.f32 %v209, %v2036
      %v2044 = vmul.f32 %v210, %v2036
      %v2045 = vmul.f32 %v211, %v2036
      %v2046 = vmul.f32 %v212, %v2036
      %v2047 = vmul.f32 %v213, %v2036
      %v2048 = vmul.f32 %v214, %v2036
      %v2049 = vmul.f32 %v215, %v2036
      %v2050 = vmul.f32 %v216, %v2036
      %v2051 = vmul.f32 %v217, %v2036
      %v2052 = vmul.f32 %v218, %v2036
      %v2053 = vmul.f32 %v219, %v2036
      %v2054 = vmul.f32 %v220, %v2036
      %v2055 = vmul.f32 %v221, %v2036
      %v2056 = vmul.f32 %v222, %v2036
      %v2057 = vmul.f32 %v223, %v2036
      %v2058 = vmul.f32 %v224, %v2036
      %v2059 = vmul.f32 %v225, %v2036
      %v2060 = vmul.f32 %v226, %v2036
      %v2061 = vmul.f32 %v227, %v2036
      %v2062 = vmul.f32 %v228, %v2036
      %v2063 = vmul.f32 %v229, %v2036
      %v2064 = vmul.f32 %v230, %v2036
      %v2065 = vmul.f32 %v231, %v2036
      %v2066 = vmul.f32 %v232, %v2036
      %v2067 = vmul.f32 %v233, %v2036
      %v2068 = vmul.f32 %v234, %v2036
      %v2069 = vmul.f32 %v235, %v2036
      %v2070 = vmul.f32 %v236, %v2036
      %v2071 = vmul.f32 %v237, %v2036
      %v2072 = vmul.f32 %v238, %v2036
      %v2073 = vmul.f32 %v239, %v2036
      %v2074 = vmul.f32 %v240, %v2036
      %v2075 = vmul.f32 %v241, %v2036
      %v2076 = vmul.f32 %v242, %v2036
      %v2077 = vmul.f32 %v243, %v2036
      %v2078 = vmul.f32 %v244, %v2036
      %v2079 = vmul.f32 %v245, %v2036
      %v2080 = vmul.f32 %v246, %v2036
      %v2081 = vmul.f32 %v247, %v2036
      %v2082 = vmul.f32 %v248, %v2036
      %v2083 = vmul.f32 %v249, %v2036
      %v2084 = vmul.f32 %v250, %v2036
      %v2085 = vmul.f32 %v251, %v2036
      %v2134 = vrot.slane %v2038, 1
      %v2135 = vrot.slane %v2039, 1
      %v2136 = vsel %vm703, %v2134, %v2135
      %v2137 = vrot.slane %v2040, 1
      %v2138 = vsel %vm703, %v2135, %v2137
      %v2139 = vrot.slane %v2041, 1
      %v2140 = vrot.slane %v2042, 1
      %v2141 = vsel %vm703, %v2139, %v2140
      %v2142 = vrot.slane %v2043, 1
      %v2143 = vsel %vm703, %v2140, %v2142
      %v2144 = vrot.slane %v2044, 1
      %v2145 = vrot.slane %v2045, 1
      %v2146 = vsel %vm703, %v2144, %v2145
      %v2147 = vrot.slane %v2046, 1
      %v2148 = vsel %vm703, %v2145, %v2147
      %v2149 = vrot.slane %v2047, 1
      %v2150 = vrot.slane %v2048, 1
      %v2151 = vsel %vm703, %v2149, %v2150
      %v2152 = vrot.slane %v2049, 1
      %v2153 = vsel %vm703, %v2150, %v2152
      %v2154 = vrot.slane %v2050, 1
      %v2155 = vrot.slane %v2051, 1
      %v2156 = vsel %vm703, %v2154, %v2155
      %v2157 = vrot.slane %v2052, 1
      %v2158 = vsel %vm703, %v2155, %v2157
      %v2159 = vrot.slane %v2053, 1
      %v2160 = vrot.slane %v2054, 1
      %v2161 = vsel %vm703, %v2159, %v2160
      %v2162 = vrot.slane %v2055, 1
      %v2163 = vsel %vm703, %v2160, %v2162
      %v2164 = vrot.slane %v2056, 1
      %v2165 = vrot.slane %v2057, 1
      %v2166 = vsel %vm703, %v2164, %v2165
      %v2167 = vrot.slane %v2058, 1
      %v2168 = vsel %vm703, %v2165, %v2167
      %v2169 = vrot.slane %v2059, 1
      %v2170 = vrot.slane %v2060, 1
      %v2171 = vsel %vm703, %v2169, %v2170
      %v2172 = vrot.slane %v2061, 1
      %v2173 = vsel %vm703, %v2170, %v2172
      %v2174 = vrot.slane %v2062, 1
      %v2175 = vrot.slane %v2063, 1
      %v2176 = vsel %vm703, %v2174, %v2175
      %v2177 = vrot.slane %v2064, 1
      %v2178 = vsel %vm703, %v2175, %v2177
      %v2179 = vrot.slane %v2065, 1
      %v2180 = vrot.slane %v2066, 1
      %v2181 = vsel %vm703, %v2179, %v2180
      %v2182 = vrot.slane %v2067, 1
      %v2183 = vsel %vm703, %v2180, %v2182
      %v2184 = vrot.slane %v2068, 1
      %v2185 = vrot.slane %v2069, 1
      %v2186 = vsel %vm703, %v2184, %v2185
      %v2187 = vrot.slane %v2070, 1
      %v2188 = vsel %vm703, %v2185, %v2187
      %v2189 = vrot.slane %v2071, 1
      %v2190 = vrot.slane %v2072, 1
      %v2191 = vsel %vm703, %v2189, %v2190
      %v2192 = vrot.slane %v2073, 1
      %v2193 = vsel %vm703, %v2190, %v2192
      %v2194 = vrot.slane %v2074, 1
      %v2195 = vrot.slane %v2075, 1
      %v2196 = vsel %vm703, %v2194, %v2195
      %v2197 = vrot.slane %v2076, 1
      %v2198 = vsel %vm703, %v2195, %v2197
      %v2199 = vrot.slane %v2077, 1
      %v2200 = vrot.slane %v2078, 1
      %v2201 = vsel %vm703, %v2199, %v2200
      %v2202 = vrot.slane %v2079, 1
      %v2203 = vsel %vm703, %v2200, %v2202
      %v2204 = vrot.slane %v2080, 1
      %v2205 = vrot.slane %v2081, 1
      %v2206 = vsel %vm703, %v2204, %v2205
      %v2207 = vrot.slane %v2082, 1
      %v2208 = vsel %vm703, %v2205, %v2207
      %v2209 = vrot.slane %v2083, 1
      %v2210 = vrot.slane %v2084, 1
      %v2211 = vsel %vm703, %v2209, %v2210
      %v2212 = vrot.slane %v2085, 1
      %v2213 = vsel %vm703, %v2210, %v2212
      %v2262 = vadd.f32 %v1984, %v2136
      %v2263 = vadd.f32 %v1985, %v2138
      %v2264 = vadd.f32 %v1986, %v2137
      %v2265 = vadd.f32 %v1987, %v2141
      %v2266 = vadd.f32 %v1988, %v2143
      %v2267 = vadd.f32 %v1989, %v2142
      %v2268 = vadd.f32 %v1990, %v2146
      %v2269 = vadd.f32 %v1991, %v2148
      %v2270 = vadd.f32 %v1992, %v2147
      %v2271 = vadd.f32 %v1993, %v2151
      %v2272 = vadd.f32 %v1994, %v2153
      %v2273 = vadd.f32 %v1995, %v2152
      %v2274 = vadd.f32 %v1996, %v2156
      %v2275 = vadd.f32 %v1997, %v2158
      %v2276 = vadd.f32 %v1998, %v2157
      %v2277 = vadd.f32 %v1999, %v2161
      %v2278 = vadd.f32 %v2000, %v2163
      %v2279 = vadd.f32 %v2001, %v2162
      %v2280 = vadd.f32 %v2002, %v2166
      %v2281 = vadd.f32 %v2003, %v2168
      %v2282 = vadd.f32 %v2004, %v2167
      %v2283 = vadd.f32 %v2005, %v2171
      %v2284 = vadd.f32 %v2006, %v2173
      %v2285 = vadd.f32 %v2007, %v2172
      %v2286 = vadd.f32 %v2008, %v2176
      %v2287 = vadd.f32 %v2009, %v2178
      %v2288 = vadd.f32 %v2010, %v2177
      %v2289 = vadd.f32 %v2011, %v2181
      %v2290 = vadd.f32 %v2012, %v2183
      %v2291 = vadd.f32 %v2013, %v2182
      %v2292 = vadd.f32 %v2014, %v2186
      %v2293 = vadd.f32 %v2015, %v2188
      %v2294 = vadd.f32 %v2016, %v2187
      %v2295 = vadd.f32 %v2017, %v2191
      %v2296 = vadd.f32 %v2018, %v2193
      %v2297 = vadd.f32 %v2019, %v2192
      %v2298 = vadd.f32 %v2020, %v2196
      %v2299 = vadd.f32 %v2021, %v2198
      %v2300 = vadd.f32 %v2022, %v2197
      %v2301 = vadd.f32 %v2023, %v2201
      %v2302 = vadd.f32 %v2024, %v2203
      %v2303 = vadd.f32 %v2025, %v2202
      %v2304 = vadd.f32 %v2026, %v2206
      %v2305 = vadd.f32 %v2027, %v2208
      %v2306 = vadd.f32 %v2028, %v2207
      %v2307 = vadd.f32 %v2029, %v2211
      %v2308 = vadd.f32 %v2030, %v2213
      %v2309 = vadd.f32 %v2031, %v2212
      %v2311 = vlaneseq
      %v2312 = vshrl.u32 %v2311, 7
      %v2313 = vsub.s32 0, %v2312
      %v2314 = vrot.slane %v271, %v2313
      %v2316 = vmul.f32 %v204, %v2314
      %v2317 = vmul.f32 %v205, %v2314
      %v2318 = vmul.f32 %v206, %v2314
      %v2319 = vmul.f32 %v207, %v2314
      %v2320 = vmul.f32 %v208, %v2314
      %v2321 = vmul.f32 %v209, %v2314
      %v2322 = vmul.f32 %v210, %v2314
      %v2323 = vmul.f32 %v211, %v2314
      %v2324 = vmul.f32 %v212, %v2314
      %v2325 = vmul.f32 %v213, %v2314
      %v2326 = vmul.f32 %v214, %v2314
      %v2327 = vmul.f32 %v215, %v2314
      %v2328 = vmul.f32 %v216, %v2314
      %v2329 = vmul.f32 %v217, %v2314
      %v2330 = vmul.f32 %v218, %v2314
      %v2331 = vmul.f32 %v219, %v2314
      %v2332 = vmul.f32 %v220, %v2314
      %v2333 = vmul.f32 %v221, %v2314
      %v2334 = vmul.f32 %v222, %v2314
      %v2335 = vmul.f32 %v223, %v2314
      %v2336 = vmul.f32 %v224, %v2314
      %v2337 = vmul.f32 %v225, %v2314
      %v2338 = vmul.f32 %v226, %v2314
      %v2339 = vmul.f32 %v227, %v2314
      %v2340 = vmul.f32 %v228, %v2314
      %v2341 = vmul.f32 %v229, %v2314
      %v2342 = vmul.f32 %v230, %v2314
      %v2343 = vmul.f32 %v231, %v2314
      %v2344 = vmul.f32 %v232, %v2314
      %v2345 = vmul.f32 %v233, %v2314
      %v2346 = vmul.f32 %v234, %v2314
      %v2347 = vmul.f32 %v235, %v2314
      %v2348 = vmul.f32 %v236, %v2314
      %v2349 = vmul.f32 %v237, %v2314
      %v2350 = vmul.f32 %v238, %v2314
      %v2351 = vmul.f32 %v239, %v2314
      %v2352 = vmul.f32 %v240, %v2314
      %v2353 = vmul.f32 %v241, %v2314
      %v2354 = vmul.f32 %v242, %v2314
      %v2355 = vmul.f32 %v243, %v2314
      %v2356 = vmul.f32 %v244, %v2314
      %v2357 = vmul.f32 %v245, %v2314
      %v2358 = vmul.f32 %v246, %v2314
      %v2359 = vmul.f32 %v247, %v2314
      %v2360 = vmul.f32 %v248, %v2314
      %v2361 = vmul.f32 %v249, %v2314
      %v2362 = vmul.f32 %v250, %v2314
      %v2363 = vmul.f32 %v251, %v2314
      %v2412 = vrot.slane %v2316, 1
      %v2413 = vrot.slane %v2317, 1
      %v2414 = vsel %vm703, %v2412, %v2413
      %v2415 = vrot.slane %v2318, 1
      %v2416 = vsel %vm703, %v2413, %v2415
      %v2417 = vrot.slane %v2319, 1
      %v2418 = vrot.slane %v2320, 1
      %v2419 = vsel %vm703, %v2417, %v2418
      %v2420 = vrot.slane %v2321, 1
      %v2421 = vsel %vm703, %v2418, %v2420
      %v2422 = vrot.slane %v2322, 1
      %v2423 = vrot.slane %v2323, 1
      %v2424 = vsel %vm703, %v2422, %v2423
      %v2425 = vrot.slane %v2324, 1
      %v2426 = vsel %vm703, %v2423, %v2425
      %v2427 = vrot.slane %v2325, 1
      %v2428 = vrot.slane %v2326, 1
      %v2429 = vsel %vm703, %v2427, %v2428
      %v2430 = vrot.slane %v2327, 1
      %v2431 = vsel %vm703, %v2428, %v2430
      %v2432 = vrot.slane %v2328, 1
      %v2433 = vrot.slane %v2329, 1
      %v2434 = vsel %vm703, %v2432, %v2433
      %v2435 = vrot.slane %v2330, 1
      %v2436 = vsel %vm703, %v2433, %v2435
      %v2437 = vrot.slane %v2331, 1
      %v2438 = vrot.slane %v2332, 1
      %v2439 = vsel %vm703, %v2437, %v2438
      %v2440 = vrot.slane %v2333, 1
      %v2441 = vsel %vm703, %v2438, %v2440
      %v2442 = vrot.slane %v2334, 1
      %v2443 = vrot.slane %v2335, 1
      %v2444 = vsel %vm703, %v2442, %v2443
      %v2445 = vrot.slane %v2336, 1
      %v2446 = vsel %vm703, %v2443, %v2445
      %v2447 = vrot.slane %v2337, 1
      %v2448 = vrot.slane %v2338, 1
      %v2449 = vsel %vm703, %v2447, %v2448
      %v2450 = vrot.slane %v2339, 1
      %v2451 = vsel %vm703, %v2448, %v2450
      %v2452 = vrot.slane %v2340, 1
      %v2453 = vrot.slane %v2341, 1
      %v2454 = vsel %vm703, %v2452, %v2453
      %v2455 = vrot.slane %v2342, 1
      %v2456 = vsel %vm703, %v2453, %v2455
      %v2457 = vrot.slane %v2343, 1
      %v2458 = vrot.slane %v2344, 1
      %v2459 = vsel %vm703, %v2457, %v2458
      %v2460 = vrot.slane %v2345, 1
      %v2461 = vsel %vm703, %v2458, %v2460
      %v2462 = vrot.slane %v2346, 1
      %v2463 = vrot.slane %v2347, 1
      %v2464 = vsel %vm703, %v2462, %v2463
      %v2465 = vrot.slane %v2348, 1
      %v2466 = vsel %vm703, %v2463, %v2465
      %v2467 = vrot.slane %v2349, 1
      %v2468 = vrot.slane %v2350, 1
      %v2469 = vsel %vm703, %v2467, %v2468
      %v2470 = vrot.slane %v2351, 1
      %v2471 = vsel %vm703, %v2468, %v2470
      %v2472 = vrot.slane %v2352, 1
      %v2473 = vrot.slane %v2353, 1
      %v2474 = vsel %vm703, %v2472, %v2473
      %v2475 = vrot.slane %v2354, 1
      %v2476 = vsel %vm703, %v2473, %v2475
      %v2477 = vrot.slane %v2355, 1
      %v2478 = vrot.slane %v2356, 1
      %v2479 = vsel %vm703, %v2477, %v2478
      %v2480 = vrot.slane %v2357, 1
      %v2481 = vsel %vm703, %v2478, %v2480
      %v2482 = vrot.slane %v2358, 1
      %v2483 = vrot.slane %v2359, 1
      %v2484 = vsel %vm703, %v2482, %v2483
      %v2485 = vrot.slane %v2360, 1
      %v2486 = vsel %vm703, %v2483, %v2485
      %v2487 = vrot.slane %v2361, 1
      %v2488 = vrot.slane %v2362, 1
      %v2489 = vsel %vm703, %v2487, %v2488
      %v2490 = vrot.slane %v2363, 1
      %v2491 = vsel %vm703, %v2488, %v2490
      %v2540 = vadd.f32 %v2262, %v2414
      %v2541 = vadd.f32 %v2263, %v2416
      %v2542 = vadd.f32 %v2264, %v2415
      %v2543 = vadd.f32 %v2265, %v2419
      %v2544 = vadd.f32 %v2266, %v2421
      %v2545 = vadd.f32 %v2267, %v2420
      %v2546 = vadd.f32 %v2268, %v2424
      %v2547 = vadd.f32 %v2269, %v2426
      %v2548 = vadd.f32 %v2270, %v2425
      %v2549 = vadd.f32 %v2271, %v2429
      %v2550 = vadd.f32 %v2272, %v2431
      %v2551 = vadd.f32 %v2273, %v2430
      %v2552 = vadd.f32 %v2274, %v2434
      %v2553 = vadd.f32 %v2275, %v2436
      %v2554 = vadd.f32 %v2276, %v2435
      %v2555 = vadd.f32 %v2277, %v2439
      %v2556 = vadd.f32 %v2278, %v2441
      %v2557 = vadd.f32 %v2279, %v2440
      %v2558 = vadd.f32 %v2280, %v2444
      %v2559 = vadd.f32 %v2281, %v2446
      %v2560 = vadd.f32 %v2282, %v2445
      %v2561 = vadd.f32 %v2283, %v2449
      %v2562 = vadd.f32 %v2284, %v2451
      %v2563 = vadd.f32 %v2285, %v2450
      %v2564 = vadd.f32 %v2286, %v2454
      %v2565 = vadd.f32 %v2287, %v2456
      %v2566 = vadd.f32 %v2288, %v2455
      %v2567 = vadd.f32 %v2289, %v2459
      %v2568 = vadd.f32 %v2290, %v2461
      %v2569 = vadd.f32 %v2291, %v2460
      %v2570 = vadd.f32 %v2292, %v2464
      %v2571 = vadd.f32 %v2293, %v2466
      %v2572 = vadd.f32 %v2294, %v2465
      %v2573 = vadd.f32 %v2295, %v2469
      %v2574 = vadd.f32 %v2296, %v2471
      %v2575 = vadd.f32 %v2297, %v2470
      %v2576 = vadd.f32 %v2298, %v2474
      %v2577 = vadd.f32 %v2299, %v2476
      %v2578 = vadd.f32 %v2300, %v2475
      %v2579 = vadd.f32 %v2301, %v2479
      %v2580 = vadd.f32 %v2302, %v2481
      %v2581 = vadd.f32 %v2303, %v2480
      %v2582 = vadd.f32 %v2304, %v2484
      %v2583 = vadd.f32 %v2305, %v2486
      %v2584 = vadd.f32 %v2306, %v2485
      %v2585 = vadd.f32 %v2307, %v2489
      %v2586 = vadd.f32 %v2308, %v2491
      %v2587 = vadd.f32 %v2309, %v2490
      %v2589 = vlaneseq
      %v2590 = vshrl.u32 %v2589, 7
      %v2591 = vsub.s32 0, %v2590
      %v2592 = vrot.slane %v263, %v2591
      %v2594 = vmul.f32 %v204, %v2592
      %v2595 = vmul.f32 %v205, %v2592
      %v2596 = vmul.f32 %v206, %v2592
      %v2597 = vmul.f32 %v207, %v2592
      %v2598 = vmul.f32 %v208, %v2592
      %v2599 = vmul.f32 %v209, %v2592
      %v2600 = vmul.f32 %v210, %v2592
      %v2601 = vmul.f32 %v211, %v2592
      %v2602 = vmul.f32 %v212, %v2592
      %v2603 = vmul.f32 %v213, %v2592
      %v2604 = vmul.f32 %v214, %v2592
      %v2605 = vmul.f32 %v215, %v2592
      %v2606 = vmul.f32 %v216, %v2592
      %v2607 = vmul.f32 %v217, %v2592
      %v2608 = vmul.f32 %v218, %v2592
      %v2609 = vmul.f32 %v219, %v2592
      %v2610 = vmul.f32 %v220, %v2592
      %v2611 = vmul.f32 %v221, %v2592
      %v2612 = vmul.f32 %v222, %v2592
      %v2613 = vmul.f32 %v223, %v2592
      %v2614 = vmul.f32 %v224, %v2592
      %v2615 = vmul.f32 %v225, %v2592
      %v2616 = vmul.f32 %v226, %v2592
      %v2617 = vmul.f32 %v227, %v2592
      %v2618 = vmul.f32 %v228, %v2592
      %v2619 = vmul.f32 %v229, %v2592
      %v2620 = vmul.f32 %v230, %v2592
      %v2621 = vmul.f32 %v231, %v2592
      %v2622 = vmul.f32 %v232, %v2592
      %v2623 = vmul.f32 %v233, %v2592
      %v2624 = vmul.f32 %v234, %v2592
      %v2625 = vmul.f32 %v235, %v2592
      %v2626 = vmul.f32 %v236, %v2592
      %v2627 = vmul.f32 %v237, %v2592
      %v2628 = vmul.f32 %v238, %v2592
      %v2629 = vmul.f32 %v239, %v2592
      %v2630 = vmul.f32 %v240, %v2592
      %v2631 = vmul.f32 %v241, %v2592
      %v2632 = vmul.f32 %v242, %v2592
      %v2633 = vmul.f32 %v243, %v2592
      %v2634 = vmul.f32 %v244, %v2592
      %v2635 = vmul.f32 %v245, %v2592
      %v2636 = vmul.f32 %v246, %v2592
      %v2637 = vmul.f32 %v247, %v2592
      %v2638 = vmul.f32 %v248, %v2592
      %v2639 = vmul.f32 %v249, %v2592
      %v2640 = vmul.f32 %v250, %v2592
      %v2641 = vmul.f32 %v251, %v2592
      %v2690 = vrot.slane %v2594, 2
      %v2691 = vrot.slane %v2595, 2
      %v2692 = vsel %vm1260, %v2690, %v2691
      %v2693 = vrot.slane %v2596, 2
      %v2694 = vsel %vm1260, %v2691, %v2693
      %v2695 = vrot.slane %v2597, 2
      %v2696 = vrot.slane %v2598, 2
      %v2697 = vsel %vm1260, %v2695, %v2696
      %v2698 = vrot.slane %v2599, 2
      %v2699 = vsel %vm1260, %v2696, %v2698
      %v2700 = vrot.slane %v2600, 2
      %v2701 = vrot.slane %v2601, 2
      %v2702 = vsel %vm1260, %v2700, %v2701
      %v2703 = vrot.slane %v2602, 2
      %v2704 = vsel %vm1260, %v2701, %v2703
      %v2705 = vrot.slane %v2603, 2
      %v2706 = vrot.slane %v2604, 2
      %v2707 = vsel %vm1260, %v2705, %v2706
      %v2708 = vrot.slane %v2605, 2
      %v2709 = vsel %vm1260, %v2706, %v2708
      %v2710 = vrot.slane %v2606, 2
      %v2711 = vrot.slane %v2607, 2
      %v2712 = vsel %vm1260, %v2710, %v2711
      %v2713 = vrot.slane %v2608, 2
      %v2714 = vsel %vm1260, %v2711, %v2713
      %v2715 = vrot.slane %v2609, 2
      %v2716 = vrot.slane %v2610, 2
      %v2717 = vsel %vm1260, %v2715, %v2716
      %v2718 = vrot.slane %v2611, 2
      %v2719 = vsel %vm1260, %v2716, %v2718
      %v2720 = vrot.slane %v2612, 2
      %v2721 = vrot.slane %v2613, 2
      %v2722 = vsel %vm1260, %v2720, %v2721
      %v2723 = vrot.slane %v2614, 2
      %v2724 = vsel %vm1260, %v2721, %v2723
      %v2725 = vrot.slane %v2615, 2
      %v2726 = vrot.slane %v2616, 2
      %v2727 = vsel %vm1260, %v2725, %v2726
      %v2728 = vrot.slane %v2617, 2
      %v2729 = vsel %vm1260, %v2726, %v2728
      %v2730 = vrot.slane %v2618, 2
      %v2731 = vrot.slane %v2619, 2
      %v2732 = vsel %vm1260, %v2730, %v2731
      %v2733 = vrot.slane %v2620, 2
      %v2734 = vsel %vm1260, %v2731, %v2733
      %v2735 = vrot.slane %v2621, 2
      %v2736 = vrot.slane %v2622, 2
      %v2737 = vsel %vm1260, %v2735, %v2736
      %v2738 = vrot.slane %v2623, 2
      %v2739 = vsel %vm1260, %v2736, %v2738
      %v2740 = vrot.slane %v2624, 2
      %v2741 = vrot.slane %v2625, 2
      %v2742 = vsel %vm1260, %v2740, %v2741
      %v2743 = vrot.slane %v2626, 2
      %v2744 = vsel %vm1260, %v2741, %v2743
      %v2745 = vrot.slane %v2627, 2
      %v2746 = vrot.slane %v2628, 2
      %v2747 = vsel %vm1260, %v2745, %v2746
      %v2748 = vrot.slane %v2629, 2
      %v2749 = vsel %vm1260, %v2746, %v2748
      %v2750 = vrot.slane %v2630, 2
      %v2751 = vrot.slane %v2631, 2
      %v2752 = vsel %vm1260, %v2750, %v2751
      %v2753 = vrot.slane %v2632, 2
      %v2754 = vsel %vm1260, %v2751, %v2753
      %v2755 = vrot.slane %v2633, 2
      %v2756 = vrot.slane %v2634, 2
      %v2757 = vsel %vm1260, %v2755, %v2756
      %v2758 = vrot.slane %v2635, 2
      %v2759 = vsel %vm1260, %v2756, %v2758
      %v2760 = vrot.slane %v2636, 2
      %v2761 = vrot.slane %v2637, 2
      %v2762 = vsel %vm1260, %v2760, %v2761
      %v2763 = vrot.slane %v2638, 2
      %v2764 = vsel %vm1260, %v2761, %v2763
      %v2765 = vrot.slane %v2639, 2
      %v2766 = vrot.slane %v2640, 2
      %v2767 = vsel %vm1260, %v2765, %v2766
      %v2768 = vrot.slane %v2641, 2
      %v2769 = vsel %vm1260, %v2766, %v2768
      %v2818 = vadd.f32 %v2540, %v2692
      %v2819 = vadd.f32 %v2541, %v2694
      %v2820 = vadd.f32 %v2542, %v2693
      %v2821 = vadd.f32 %v2543, %v2697
      %v2822 = vadd.f32 %v2544, %v2699
      %v2823 = vadd.f32 %v2545, %v2698
      %v2824 = vadd.f32 %v2546, %v2702
      %v2825 = vadd.f32 %v2547, %v2704
      %v2826 = vadd.f32 %v2548, %v2703
      %v2827 = vadd.f32 %v2549, %v2707
      %v2828 = vadd.f32 %v2550, %v2709
      %v2829 = vadd.f32 %v2551, %v2708
      %v2830 = vadd.f32 %v2552, %v2712
      %v2831 = vadd.f32 %v2553, %v2714
      %v2832 = vadd.f32 %v2554, %v2713
      %v2833 = vadd.f32 %v2555, %v2717
      %v2834 = vadd.f32 %v2556, %v2719
      %v2835 = vadd.f32 %v2557, %v2718
      %v2836 = vadd.f32 %v2558, %v2722
      %v2837 = vadd.f32 %v2559, %v2724
      %v2838 = vadd.f32 %v2560, %v2723
      %v2839 = vadd.f32 %v2561, %v2727
      %v2840 = vadd.f32 %v2562, %v2729
      %v2841 = vadd.f32 %v2563, %v2728
      %v2842 = vadd.f32 %v2564, %v2732
      %v2843 = vadd.f32 %v2565, %v2734
      %v2844 = vadd.f32 %v2566, %v2733
      %v2845 = vadd.f32 %v2567, %v2737
      %v2846 = vadd.f32 %v2568, %v2739
      %v2847 = vadd.f32 %v2569, %v2738
      %v2848 = vadd.f32 %v2570, %v2742
      %v2849 = vadd.f32 %v2571, %v2744
      %v2850 = vadd.f32 %v2572, %v2743
      %v2851 = vadd.f32 %v2573, %v2747
      %v2852 = vadd.f32 %v2574, %v2749
      %v2853 = vadd.f32 %v2575, %v2748
      %v2854 = vadd.f32 %v2576, %v2752
      %v2855 = vadd.f32 %v2577, %v2754
      %v2856 = vadd.f32 %v2578, %v2753
      %v2857 = vadd.f32 %v2579, %v2757
      %v2858 = vadd.f32 %v2580, %v2759
      %v2859 = vadd.f32 %v2581, %v2758
      %v2860 = vadd.f32 %v2582, %v2762
      %v2861 = vadd.f32 %v2583, %v2764
      %v2862 = vadd.f32 %v2584, %v2763
      %v2863 = vadd.f32 %v2585, %v2767
      %v2864 = vadd.f32 %v2586, %v2769
      %v2865 = vadd.f32 %v2587, %v2768
      %v2867 = vlaneseq
      %v2868 = vshrl.u32 %v2867, 7
      %v2869 = vsub.s32 0, %v2868
      %v2870 = vrot.slane %v272, %v2869
      %v2872 = vmul.f32 %v204, %v2870
      %v2873 = vmul.f32 %v205, %v2870
      %v2874 = vmul.f32 %v206, %v2870
      %v2875 = vmul.f32 %v207, %v2870
      %v2876 = vmul.f32 %v208, %v2870
      %v2877 = vmul.f32 %v209, %v2870
      %v2878 = vmul.f32 %v210, %v2870
      %v2879 = vmul.f32 %v211, %v2870
      %v2880 = vmul.f32 %v212, %v2870
      %v2881 = vmul.f32 %v213, %v2870
      %v2882 = vmul.f32 %v214, %v2870
      %v2883 = vmul.f32 %v215, %v2870
      %v2884 = vmul.f32 %v216, %v2870
      %v2885 = vmul.f32 %v217, %v2870
      %v2886 = vmul.f32 %v218, %v2870
      %v2887 = vmul.f32 %v219, %v2870
      %v2888 = vmul.f32 %v220, %v2870
      %v2889 = vmul.f32 %v221, %v2870
      %v2890 = vmul.f32 %v222, %v2870
      %v2891 = vmul.f32 %v223, %v2870
      %v2892 = vmul.f32 %v224, %v2870
      %v2893 = vmul.f32 %v225, %v2870
      %v2894 = vmul.f32 %v226, %v2870
      %v2895 = vmul.f32 %v227, %v2870
      %v2896 = vmul.f32 %v228, %v2870
      %v2897 = vmul.f32 %v229, %v2870
      %v2898 = vmul.f32 %v230, %v2870
      %v2899 = vmul.f32 %v231, %v2870
      %v2900 = vmul.f32 %v232, %v2870
      %v2901 = vmul.f32 %v233, %v2870
      %v2902 = vmul.f32 %v234, %v2870
      %v2903 = vmul.f32 %v235, %v2870
      %v2904 = vmul.f32 %v236, %v2870
      %v2905 = vmul.f32 %v237, %v2870
      %v2906 = vmul.f32 %v238, %v2870
      %v2907 = vmul.f32 %v239, %v2870
      %v2908 = vmul.f32 %v240, %v2870
      %v2909 = vmul.f32 %v241, %v2870
      %v2910 = vmul.f32 %v242, %v2870
      %v2911 = vmul.f32 %v243, %v2870
      %v2912 = vmul.f32 %v244, %v2870
      %v2913 = vmul.f32 %v245, %v2870
      %v2914 = vmul.f32 %v246, %v2870
      %v2915 = vmul.f32 %v247, %v2870
      %v2916 = vmul.f32 %v248, %v2870
      %v2917 = vmul.f32 %v249, %v2870
      %v2918 = vmul.f32 %v250, %v2870
      %v2919 = vmul.f32 %v251, %v2870
      %v2968 = vrot.slane %v2872, 3
      %v2969 = vrot.slane %v2873, 3
      %v2970 = vsel %vm1539, %v2968, %v2969
      %v2971 = vrot.slane %v2874, 3
      %v2972 = vsel %vm1539, %v2969, %v2971
      %v2973 = vrot.slane %v2875, 3
      %v2974 = vrot.slane %v2876, 3
      %v2975 = vsel %vm1539, %v2973, %v2974
      %v2976 = vrot.slane %v2877, 3
      %v2977 = vsel %vm1539, %v2974, %v2976
      %v2978 = vrot.slane %v2878, 3
      %v2979 = vrot.slane %v2879, 3
      %v2980 = vsel %vm1539, %v2978, %v2979
      %v2981 = vrot.slane %v2880, 3
      %v2982 = vsel %vm1539, %v2979, %v2981
      %v2983 = vrot.slane %v2881, 3
      %v2984 = vrot.slane %v2882, 3
      %v2985 = vsel %vm1539, %v2983, %v2984
      %v2986 = vrot.slane %v2883, 3
      %v2987 = vsel %vm1539, %v2984, %v2986
      %v2988 = vrot.slane %v2884, 3
      %v2989 = vrot.slane %v2885, 3
      %v2990 = vsel %vm1539, %v2988, %v2989
      %v2991 = vrot.slane %v2886, 3
      %v2992 = vsel %vm1539, %v2989, %v2991
      %v2993 = vrot.slane %v2887, 3
      %v2994 = vrot.slane %v2888, 3
      %v2995 = vsel %vm1539, %v2993, %v2994
      %v2996 = vrot.slane %v2889, 3
      %v2997 = vsel %vm1539, %v2994, %v2996
      %v2998 = vrot.slane %v2890, 3
      %v2999 = vrot.slane %v2891, 3
      %v3000 = vsel %vm1539, %v2998, %v2999
      %v3001 = vrot.slane %v2892, 3
      %v3002 = vsel %vm1539, %v2999, %v3001
      %v3003 = vrot.slane %v2893, 3
      %v3004 = vrot.slane %v2894, 3
      %v3005 = vsel %vm1539, %v3003, %v3004
      %v3006 = vrot.slane %v2895, 3
      %v3007 = vsel %vm1539, %v3004, %v3006
      %v3008 = vrot.slane %v2896, 3
      %v3009 = vrot.slane %v2897, 3
      %v3010 = vsel %vm1539, %v3008, %v3009
      %v3011 = vrot.slane %v2898, 3
      %v3012 = vsel %vm1539, %v3009, %v3011
      %v3013 = vrot.slane %v2899, 3
      %v3014 = vrot.slane %v2900, 3
      %v3015 = vsel %vm1539, %v3013, %v3014
      %v3016 = vrot.slane %v2901, 3
      %v3017 = vsel %vm1539, %v3014, %v3016
      %v3018 = vrot.slane %v2902, 3
      %v3019 = vrot.slane %v2903, 3
      %v3020 = vsel %vm1539, %v3018, %v3019
      %v3021 = vrot.slane %v2904, 3
      %v3022 = vsel %vm1539, %v3019, %v3021
      %v3023 = vrot.slane %v2905, 3
      %v3024 = vrot.slane %v2906, 3
      %v3025 = vsel %vm1539, %v3023, %v3024
      %v3026 = vrot.slane %v2907, 3
      %v3027 = vsel %vm1539, %v3024, %v3026
      %v3028 = vrot.slane %v2908, 3
      %v3029 = vrot.slane %v2909, 3
      %v3030 = vsel %vm1539, %v3028, %v3029
      %v3031 = vrot.slane %v2910, 3
      %v3032 = vsel %vm1539, %v3029, %v3031
      %v3033 = vrot.slane %v2911, 3
      %v3034 = vrot.slane %v2912, 3
      %v3035 = vsel %vm1539, %v3033, %v3034
      %v3036 = vrot.slane %v2913, 3
      %v3037 = vsel %vm1539, %v3034, %v3036
      %v3038 = vrot.slane %v2914, 3
      %v3039 = vrot.slane %v2915, 3
      %v3040 = vsel %vm1539, %v3038, %v3039
      %v3041 = vrot.slane %v2916, 3
      %v3042 = vsel %vm1539, %v3039, %v3041
      %v3043 = vrot.slane %v2917, 3
      %v3044 = vrot.slane %v2918, 3
      %v3045 = vsel %vm1539, %v3043, %v3044
      %v3046 = vrot.slane %v2919, 3
      %v3047 = vsel %vm1539, %v3044, %v3046
      %v3096 = vadd.f32 %v2818, %v2970
      %v3097 = vadd.f32 %v2819, %v2972
      %v3098 = vadd.f32 %v2820, %v2971
      %v3099 = vadd.f32 %v2821, %v2975
      %v3100 = vadd.f32 %v2822, %v2977
      %v3101 = vadd.f32 %v2823, %v2976
      %v3102 = vadd.f32 %v2824, %v2980
      %v3103 = vadd.f32 %v2825, %v2982
      %v3104 = vadd.f32 %v2826, %v2981
      %v3105 = vadd.f32 %v2827, %v2985
      %v3106 = vadd.f32 %v2828, %v2987
      %v3107 = vadd.f32 %v2829, %v2986
      %v3108 = vadd.f32 %v2830, %v2990
      %v3109 = vadd.f32 %v2831, %v2992
      %v3110 = vadd.f32 %v2832, %v2991
      %v3111 = vadd.f32 %v2833, %v2995
      %v3112 = vadd.f32 %v2834, %v2997
      %v3113 = vadd.f32 %v2835, %v2996
      %v3114 = vadd.f32 %v2836, %v3000
      %v3115 = vadd.f32 %v2837, %v3002
      %v3116 = vadd.f32 %v2838, %v3001
      %v3117 = vadd.f32 %v2839, %v3005
      %v3118 = vadd.f32 %v2840, %v3007
      %v3119 = vadd.f32 %v2841, %v3006
      %v3120 = vadd.f32 %v2842, %v3010
      %v3121 = vadd.f32 %v2843, %v3012
      %v3122 = vadd.f32 %v2844, %v3011
      %v3123 = vadd.f32 %v2845, %v3015
      %v3124 = vadd.f32 %v2846, %v3017
      %v3125 = vadd.f32 %v2847, %v3016
      %v3126 = vadd.f32 %v2848, %v3020
      %v3127 = vadd.f32 %v2849, %v3022
      %v3128 = vadd.f32 %v2850, %v3021
      %v3129 = vadd.f32 %v2851, %v3025
      %v3130 = vadd.f32 %v2852, %v3027
      %v3131 = vadd.f32 %v2853, %v3026
      %v3132 = vadd.f32 %v2854, %v3030
      %v3133 = vadd.f32 %v2855, %v3032
      %v3134 = vadd.f32 %v2856, %v3031
      %v3135 = vadd.f32 %v2857, %v3035
      %v3136 = vadd.f32 %v2858, %v3037
      %v3137 = vadd.f32 %v2859, %v3036
      %v3138 = vadd.f32 %v2860, %v3040
      %v3139 = vadd.f32 %v2861, %v3042
      %v3140 = vadd.f32 %v2862, %v3041
      %v3141 = vadd.f32 %v2863, %v3045
      %v3142 = vadd.f32 %v2864, %v3047
      %v3143 = vadd.f32 %v2865, %v3046
      %v3145 = vlaneseq
      %v3146 = vshrl.u32 %v3145, 7
      %v3147 = vsub.s32 0, %v3146
      %v3148 = vrot.slane %v264, %v3147
      %v3150 = vmul.f32 %v207, %v3148
      %v3151 = vmul.f32 %v208, %v3148
      %v3152 = vmul.f32 %v209, %v3148
      %v3153 = vmul.f32 %v210, %v3148
      %v3154 = vmul.f32 %v211, %v3148
      %v3155 = vmul.f32 %v212, %v3148
      %v3156 = vmul.f32 %v213, %v3148
      %v3157 = vmul.f32 %v214, %v3148
      %v3158 = vmul.f32 %v215, %v3148
      %v3159 = vmul.f32 %v216, %v3148
      %v3160 = vmul.f32 %v217, %v3148
      %v3161 = vmul.f32 %v218, %v3148
      %v3162 = vmul.f32 %v219, %v3148
      %v3163 = vmul.f32 %v220, %v3148
      %v3164 = vmul.f32 %v221, %v3148
      %v3165 = vmul.f32 %v222, %v3148
      %v3166 = vmul.f32 %v223, %v3148
      %v3167 = vmul.f32 %v224, %v3148
      %v3168 = vmul.f32 %v225, %v3148
      %v3169 = vmul.f32 %v226, %v3148
      %v3170 = vmul.f32 %v227, %v3148
      %v3171 = vmul.f32 %v228, %v3148
      %v3172 = vmul.f32 %v229, %v3148
      %v3173 = vmul.f32 %v230, %v3148
      %v3174 = vmul.f32 %v231, %v3148
      %v3175 = vmul.f32 %v232, %v3148
      %v3176 = vmul.f32 %v233, %v3148
      %v3177 = vmul.f32 %v234, %v3148
      %v3178 = vmul.f32 %v235, %v3148
      %v3179 = vmul.f32 %v236, %v3148
      %v3180 = vmul.f32 %v237, %v3148
      %v3181 = vmul.f32 %v238, %v3148
      %v3182 = vmul.f32 %v239, %v3148
      %v3183 = vmul.f32 %v240, %v3148
      %v3184 = vmul.f32 %v241, %v3148
      %v3185 = vmul.f32 %v242, %v3148
      %v3186 = vmul.f32 %v243, %v3148
      %v3187 = vmul.f32 %v244, %v3148
      %v3188 = vmul.f32 %v245, %v3148
      %v3189 = vmul.f32 %v246, %v3148
      %v3190 = vmul.f32 %v247, %v3148
      %v3191 = vmul.f32 %v248, %v3148
      %v3192 = vmul.f32 %v249, %v3148
      %v3193 = vmul.f32 %v250, %v3148
      %v3194 = vmul.f32 %v251, %v3148
      %v3195 = vmul.f32 %v252, %v3148
      %v3196 = vmul.f32 %v253, %v3148
      %v3197 = vmul.f32 %v254, %v3148
      %v3198 = vadd.f32 %v3096, %v3150
      %v3199 = vadd.f32 %v3097, %v3151
      %v3200 = vadd.f32 %v3098, %v3152
      %v3201 = vadd.f32 %v3099, %v3153
      %v3202 = vadd.f32 %v3100, %v3154
      %v3203 = vadd.f32 %v3101, %v3155
      %v3204 = vadd.f32 %v3102, %v3156
      %v3205 = vadd.f32 %v3103, %v3157
      %v3206 = vadd.f32 %v3104, %v3158
      %v3207 = vadd.f32 %v3105, %v3159
      %v3208 = vadd.f32 %v3106, %v3160
      %v3209 = vadd.f32 %v3107, %v3161
      %v3210 = vadd.f32 %v3108, %v3162
      %v3211 = vadd.f32 %v3109, %v3163
      %v3212 = vadd.f32 %v3110, %v3164
      %v3213 = vadd.f32 %v3111, %v3165
      %v3214 = vadd.f32 %v3112, %v3166
      %v3215 = vadd.f32 %v3113, %v3167
      %v3216 = vadd.f32 %v3114, %v3168
      %v3217 = vadd.f32 %v3115, %v3169
      %v3218 = vadd.f32 %v3116, %v3170
      %v3219 = vadd.f32 %v3117, %v3171
      %v3220 = vadd.f32 %v3118, %v3172
      %v3221 = vadd.f32 %v3119, %v3173
      %v3222 = vadd.f32 %v3120, %v3174
      %v3223 = vadd.f32 %v3121, %v3175
      %v3224 = vadd.f32 %v3122, %v3176
      %v3225 = vadd.f32 %v3123, %v3177
      %v3226 = vadd.f32 %v3124, %v3178
      %v3227 = vadd.f32 %v3125, %v3179
      %v3228 = vadd.f32 %v3126, %v3180
      %v3229 = vadd.f32 %v3127, %v3181
      %v3230 = vadd.f32 %v3128, %v3182
      %v3231 = vadd.f32 %v3129, %v3183
      %v3232 = vadd.f32 %v3130, %v3184
      %v3233 = vadd.f32 %v3131, %v3185
      %v3234 = vadd.f32 %v3132, %v3186
      %v3235 = vadd.f32 %v3133, %v3187
      %v3236 = vadd.f32 %v3134, %v3188
      %v3237 = vadd.f32 %v3135, %v3189
      %v3238 = vadd.f32 %v3136, %v3190
      %v3239 = vadd.f32 %v3137, %v3191
      %v3240 = vadd.f32 %v3138, %v3192
      %v3241 = vadd.f32 %v3139, %v3193
      %v3242 = vadd.f32 %v3140, %v3194
      %v3243 = vadd.f32 %v3141, %v3195
      %v3244 = vadd.f32 %v3142, %v3196
      %v3245 = vadd.f32 %v3143, %v3197
      %v3247 = vlaneseq
      %v3248 = vshrl.u32 %v3247, 7
      %v3249 = vsub.s32 0, %v3248
      %v3250 = vrot.slane %v273, %v3249
      %v3252 = vmul.f32 %v210, %v3250
      %v3253 = vmul.f32 %v211, %v3250
      %v3254 = vmul.f32 %v213, %v3250
      %v3255 = vmul.f32 %v214, %v3250
      %v3256 = vmul.f32 %v216, %v3250
      %v3257 = vmul.f32 %v217, %v3250
      %v3258 = vmul.f32 %v219, %v3250
      %v3259 = vmul.f32 %v220, %v3250
      %v3260 = vmul.f32 %v222, %v3250
      %v3261 = vmul.f32 %v223, %v3250
      %v3262 = vmul.f32 %v225, %v3250
      %v3263 = vmul.f32 %v226, %v3250
      %v3264 = vmul.f32 %v228, %v3250
      %v3265 = vmul.f32 %v229, %v3250
      %v3266 = vmul.f32 %v231, %v3250
      %v3267 = vmul.f32 %v232, %v3250
      %v3268 = vmul.f32 %v234, %v3250
      %v3269 = vmul.f32 %v235, %v3250
      %v3270 = vmul.f32 %v237, %v3250
      %v3271 = vmul.f32 %v238, %v3250
      %v3272 = vmul.f32 %v240, %v3250
      %v3273 = vmul.f32 %v241, %v3250
      %v3274 = vmul.f32 %v243, %v3250
      %v3275 = vmul.f32 %v244, %v3250
      %v3276 = vmul.f32 %v246, %v3250
      %v3277 = vmul.f32 %v247, %v3250
      %v3278 = vmul.f32 %v249, %v3250
      %v3279 = vmul.f32 %v250, %v3250
      %v3280 = vmul.f32 %v252, %v3250
      %v3281 = vmul.f32 %v253, %v3250
      %v3282 = vmul.f32 %v255, %v3250
      %v3283 = vmul.f32 %v256, %v3250
      %v3316 = vrot.slane %v3252, 7
      %v3317 = vrot.slane %v3253, 7
      %v3318 = vsel %vm456, %v3316, %v3317
      %v3319 = vrot.slane %v3254, 7
      %v3320 = vrot.slane %v3255, 7
      %v3321 = vsel %vm456, %v3319, %v3320
      %v3322 = vrot.slane %v3256, 7
      %v3323 = vrot.slane %v3257, 7
      %v3324 = vsel %vm456, %v3322, %v3323
      %v3325 = vrot.slane %v3258, 7
      %v3326 = vrot.slane %v3259, 7
      %v3327 = vsel %vm456, %v3325, %v3326
      %v3328 = vrot.slane %v3260, 7
      %v3329 = vrot.slane %v3261, 7
      %v3330 = vsel %vm456, %v3328, %v3329
      %v3331 = vrot.slane %v3262, 7
      %v3332 = vrot.slane %v3263, 7
      %v3333 = vsel %vm456, %v3331, %v3332
      %v3334 = vrot.slane %v3264, 7
      %v3335 = vrot.slane %v3265, 7
      %v3336 = vsel %vm456, %v3334, %v3335
      %v3337 = vrot.slane %v3266, 7
      %v3338 = vrot.slane %v3267, 7
      %v3339 = vsel %vm456, %v3337, %v3338
      %v3340 = vrot.slane %v3268, 7
      %v3341 = vrot.slane %v3269, 7
      %v3342 = vsel %vm456, %v3340, %v3341
      %v3343 = vrot.slane %v3270, 7
      %v3344 = vrot.slane %v3271, 7
      %v3345 = vsel %vm456, %v3343, %v3344
      %v3346 = vrot.slane %v3272, 7
      %v3347 = vrot.slane %v3273, 7
      %v3348 = vsel %vm456, %v3346, %v3347
      %v3349 = vrot.slane %v3274, 7
      %v3350 = vrot.slane %v3275, 7
      %v3351 = vsel %vm456, %v3349, %v3350
      %v3352 = vrot.slane %v3276, 7
      %v3353 = vrot.slane %v3277, 7
      %v3354 = vsel %vm456, %v3352, %v3353
      %v3355 = vrot.slane %v3278, 7
      %v3356 = vrot.slane %v3279, 7
      %v3357 = vsel %vm456, %v3355, %v3356
      %v3358 = vrot.slane %v3280, 7
      %v3359 = vrot.slane %v3281, 7
      %v3360 = vsel %vm456, %v3358, %v3359
      %v3361 = vrot.slane %v3282, 7
      %v3362 = vrot.slane %v3283, 7
      %v3363 = vsel %vm456, %v3361, %v3362
      %v3412 = vadd.f32 %v3198, %v3316
      %v3413 = vadd.f32 %v3199, %v3318
      %v3414 = vadd.f32 %v3200, %v3317
      %v3415 = vadd.f32 %v3201, %v3319
      %v3416 = vadd.f32 %v3202, %v3321
      %v3417 = vadd.f32 %v3203, %v3320
      %v3418 = vadd.f32 %v3204, %v3322
      %v3419 = vadd.f32 %v3205, %v3324
      %v3420 = vadd.f32 %v3206, %v3323
      %v3421 = vadd.f32 %v3207, %v3325
      %v3422 = vadd.f32 %v3208, %v3327
      %v3423 = vadd.f32 %v3209, %v3326
      %v3424 = vadd.f32 %v3210, %v3328
      %v3425 = vadd.f32 %v3211, %v3330
      %v3426 = vadd.f32 %v3212, %v3329
      %v3427 = vadd.f32 %v3213, %v3331
      %v3428 = vadd.f32 %v3214, %v3333
      %v3429 = vadd.f32 %v3215, %v3332
      %v3430 = vadd.f32 %v3216, %v3334
      %v3431 = vadd.f32 %v3217, %v3336
      %v3432 = vadd.f32 %v3218, %v3335
      %v3433 = vadd.f32 %v3219, %v3337
      %v3434 = vadd.f32 %v3220, %v3339
      %v3435 = vadd.f32 %v3221, %v3338
      %v3436 = vadd.f32 %v3222, %v3340
      %v3437 = vadd.f32 %v3223, %v3342
      %v3438 = vadd.f32 %v3224, %v3341
      %v3439 = vadd.f32 %v3225, %v3343
      %v3440 = vadd.f32 %v3226, %v3345
      %v3441 = vadd.f32 %v3227, %v3344
      %v3442 = vadd.f32 %v3228, %v3346
      %v3443 = vadd.f32 %v3229, %v3348
      %v3444 = vadd.f32 %v3230, %v3347
      %v3445 = vadd.f32 %v3231, %v3349
      %v3446 = vadd.f32 %v3232, %v3351
      %v3447 = vadd.f32 %v3233, %v3350
      %v3448 = vadd.f32 %v3234, %v3352
      %v3449 = vadd.f32 %v3235, %v3354
      %v3450 = vadd.f32 %v3236, %v3353
      %v3451 = vadd.f32 %v3237, %v3355
      %v3452 = vadd.f32 %v3238, %v3357
      %v3453 = vadd.f32 %v3239, %v3356
      %v3454 = vadd.f32 %v3240, %v3358
      %v3455 = vadd.f32 %v3241, %v3360
      %v3456 = vadd.f32 %v3242, %v3359
      %v3457 = vadd.f32 %v3243, %v3361
      %v3458 = vadd.f32 %v3244, %v3363
      %v3459 = vadd.f32 %v3245, %v3362
      %v3461 = vlaneseq
      %v3462 = vshrl.u32 %v3461, 7
      %v3463 = vsub.s32 0, %v3462
      %v3464 = vrot.slane %v265, %v3463
      %v3466 = vmul.f32 %v207, %v3464
      %v3467 = vmul.f32 %v208, %v3464
      %v3468 = vmul.f32 %v209, %v3464
      %v3469 = vmul.f32 %v210, %v3464
      %v3470 = vmul.f32 %v211, %v3464
      %v3471 = vmul.f32 %v212, %v3464
      %v3472 = vmul.f32 %v213, %v3464
      %v3473 = vmul.f32 %v214, %v3464
      %v3474 = vmul.f32 %v215, %v3464
      %v3475 = vmul.f32 %v216, %v3464
      %v3476 = vmul.f32 %v217, %v3464
      %v3477 = vmul.f32 %v218, %v3464
      %v3478 = vmul.f32 %v219, %v3464
      %v3479 = vmul.f32 %v220, %v3464
      %v3480 = vmul.f32 %v221, %v3464
      %v3481 = vmul.f32 %v222, %v3464
      %v3482 = vmul.f32 %v223, %v3464
      %v3483 = vmul.f32 %v224, %v3464
      %v3484 = vmul.f32 %v225, %v3464
      %v3485 = vmul.f32 %v226, %v3464
      %v3486 = vmul.f32 %v227, %v3464
      %v3487 = vmul.f32 %v228, %v3464
      %v3488 = vmul.f32 %v229, %v3464
      %v3489 = vmul.f32 %v230, %v3464
      %v3490 = vmul.f32 %v231, %v3464
      %v3491 = vmul.f32 %v232, %v3464
      %v3492 = vmul.f32 %v233, %v3464
      %v3493 = vmul.f32 %v234, %v3464
      %v3494 = vmul.f32 %v235, %v3464
      %v3495 = vmul.f32 %v236, %v3464
      %v3496 = vmul.f32 %v237, %v3464
      %v3497 = vmul.f32 %v238, %v3464
      %v3498 = vmul.f32 %v239, %v3464
      %v3499 = vmul.f32 %v240, %v3464
      %v3500 = vmul.f32 %v241, %v3464
      %v3501 = vmul.f32 %v242, %v3464
      %v3502 = vmul.f32 %v243, %v3464
      %v3503 = vmul.f32 %v244, %v3464
      %v3504 = vmul.f32 %v245, %v3464
      %v3505 = vmul.f32 %v246, %v3464
      %v3506 = vmul.f32 %v247, %v3464
      %v3507 = vmul.f32 %v248, %v3464
      %v3508 = vmul.f32 %v249, %v3464
      %v3509 = vmul.f32 %v250, %v3464
      %v3510 = vmul.f32 %v251, %v3464
      %v3511 = vmul.f32 %v252, %v3464
      %v3512 = vmul.f32 %v253, %v3464
      %v3513 = vmul.f32 %v254, %v3464
      %v3562 = vrot.slane %v3466, 1
      %v3563 = vrot.slane %v3467, 1
      %v3564 = vsel %vm703, %v3562, %v3563
      %v3565 = vrot.slane %v3468, 1
      %v3566 = vsel %vm703, %v3563, %v3565
      %v3567 = vrot.slane %v3469, 1
      %v3568 = vrot.slane %v3470, 1
      %v3569 = vsel %vm703, %v3567, %v3568
      %v3570 = vrot.slane %v3471, 1
      %v3571 = vsel %vm703, %v3568, %v3570
      %v3572 = vrot.slane %v3472, 1
      %v3573 = vrot.slane %v3473, 1
      %v3574 = vsel %vm703, %v3572, %v3573
      %v3575 = vrot.slane %v3474, 1
      %v3576 = vsel %vm703, %v3573, %v3575
      %v3577 = vrot.slane %v3475, 1
      %v3578 = vrot.slane %v3476, 1
      %v3579 = vsel %vm703, %v3577, %v3578
      %v3580 = vrot.slane %v3477, 1
      %v3581 = vsel %vm703, %v3578, %v3580
      %v3582 = vrot.slane %v3478, 1
      %v3583 = vrot.slane %v3479, 1
      %v3584 = vsel %vm703, %v3582, %v3583
      %v3585 = vrot.slane %v3480, 1
      %v3586 = vsel %vm703, %v3583, %v3585
      %v3587 = vrot.slane %v3481, 1
      %v3588 = vrot.slane %v3482, 1
      %v3589 = vsel %vm703, %v3587, %v3588
      %v3590 = vrot.slane %v3483, 1
      %v3591 = vsel %vm703, %v3588, %v3590
      %v3592 = vrot.slane %v3484, 1
      %v3593 = vrot.slane %v3485, 1
      %v3594 = vsel %vm703, %v3592, %v3593
      %v3595 = vrot.slane %v3486, 1
      %v3596 = vsel %vm703, %v3593, %v3595
      %v3597 = vrot.slane %v3487, 1
      %v3598 = vrot.slane %v3488, 1
      %v3599 = vsel %vm703, %v3597, %v3598
      %v3600 = vrot.slane %v3489, 1
      %v3601 = vsel %vm703, %v3598, %v3600
      %v3602 = vrot.slane %v3490, 1
      %v3603 = vrot.slane %v3491, 1
      %v3604 = vsel %vm703, %v3602, %v3603
      %v3605 = vrot.slane %v3492, 1
      %v3606 = vsel %vm703, %v3603, %v3605
      %v3607 = vrot.slane %v3493, 1
      %v3608 = vrot.slane %v3494, 1
      %v3609 = vsel %vm703, %v3607, %v3608
      %v3610 = vrot.slane %v3495, 1
      %v3611 = vsel %vm703, %v3608, %v3610
      %v3612 = vrot.slane %v3496, 1
      %v3613 = vrot.slane %v3497, 1
      %v3614 = vsel %vm703, %v3612, %v3613
      %v3615 = vrot.slane %v3498, 1
      %v3616 = vsel %vm703, %v3613, %v3615
      %v3617 = vrot.slane %v3499, 1
      %v3618 = vrot.slane %v3500, 1
      %v3619 = vsel %vm703, %v3617, %v3618
      %v3620 = vrot.slane %v3501, 1
      %v3621 = vsel %vm703, %v3618, %v3620
      %v3622 = vrot.slane %v3502, 1
      %v3623 = vrot.slane %v3503, 1
      %v3624 = vsel %vm703, %v3622, %v3623
      %v3625 = vrot.slane %v3504, 1
      %v3626 = vsel %vm703, %v3623, %v3625
      %v3627 = vrot.slane %v3505, 1
      %v3628 = vrot.slane %v3506, 1
      %v3629 = vsel %vm703, %v3627, %v3628
      %v3630 = vrot.slane %v3507, 1
      %v3631 = vsel %vm703, %v3628, %v3630
      %v3632 = vrot.slane %v3508, 1
      %v3633 = vrot.slane %v3509, 1
      %v3634 = vsel %vm703, %v3632, %v3633
      %v3635 = vrot.slane %v3510, 1
      %v3636 = vsel %vm703, %v3633, %v3635
      %v3637 = vrot.slane %v3511, 1
      %v3638 = vrot.slane %v3512, 1
      %v3639 = vsel %vm703, %v3637, %v3638
      %v3640 = vrot.slane %v3513, 1
      %v3641 = vsel %vm703, %v3638, %v3640
      %v3690 = vadd.f32 %v3412, %v3564
      %v3691 = vadd.f32 %v3413, %v3566
      %v3692 = vadd.f32 %v3414, %v3565
      %v3693 = vadd.f32 %v3415, %v3569
      %v3694 = vadd.f32 %v3416, %v3571
      %v3695 = vadd.f32 %v3417, %v3570
      %v3696 = vadd.f32 %v3418, %v3574
      %v3697 = vadd.f32 %v3419, %v3576
      %v3698 = vadd.f32 %v3420, %v3575
      %v3699 = vadd.f32 %v3421, %v3579
      %v3700 = vadd.f32 %v3422, %v3581
      %v3701 = vadd.f32 %v3423, %v3580
      %v3702 = vadd.f32 %v3424, %v3584
      %v3703 = vadd.f32 %v3425, %v3586
      %v3704 = vadd.f32 %v3426, %v3585
      %v3705 = vadd.f32 %v3427, %v3589
      %v3706 = vadd.f32 %v3428, %v3591
      %v3707 = vadd.f32 %v3429, %v3590
      %v3708 = vadd.f32 %v3430, %v3594
      %v3709 = vadd.f32 %v3431, %v3596
      %v3710 = vadd.f32 %v3432, %v3595
      %v3711 = vadd.f32 %v3433, %v3599
      %v3712 = vadd.f32 %v3434, %v3601
      %v3713 = vadd.f32 %v3435, %v3600
      %v3714 = vadd.f32 %v3436, %v3604
      %v3715 = vadd.f32 %v3437, %v3606
      %v3716 = vadd.f32 %v3438, %v3605
      %v3717 = vadd.f32 %v3439, %v3609
      %v3718 = vadd.f32 %v3440, %v3611
      %v3719 = vadd.f32 %v3441, %v3610
      %v3720 = vadd.f32 %v3442, %v3614
      %v3721 = vadd.f32 %v3443, %v3616
      %v3722 = vadd.f32 %v3444, %v3615
      %v3723 = vadd.f32 %v3445, %v3619
      %v3724 = vadd.f32 %v3446, %v3621
      %v3725 = vadd.f32 %v3447, %v3620
      %v3726 = vadd.f32 %v3448, %v3624
      %v3727 = vadd.f32 %v3449, %v3626
      %v3728 = vadd.f32 %v3450, %v3625
      %v3729 = vadd.f32 %v3451, %v3629
      %v3730 = vadd.f32 %v3452, %v3631
      %v3731 = vadd.f32 %v3453, %v3630
      %v3732 = vadd.f32 %v3454, %v3634
      %v3733 = vadd.f32 %v3455, %v3636
      %v3734 = vadd.f32 %v3456, %v3635
      %v3735 = vadd.f32 %v3457, %v3639
      %v3736 = vadd.f32 %v3458, %v3641
      %v3737 = vadd.f32 %v3459, %v3640
      %v3739 = vlaneseq
      %v3740 = vshrl.u32 %v3739, 7
      %v3741 = vsub.s32 0, %v3740
      %v3742 = vrot.slane %v274, %v3741
      %v3744 = vmul.f32 %v210, %v3742
      %v3745 = vmul.f32 %v211, %v3742
      %v3746 = vmul.f32 %v212, %v3742
      %v3747 = vmul.f32 %v213, %v3742
      %v3748 = vmul.f32 %v214, %v3742
      %v3749 = vmul.f32 %v215, %v3742
      %v3750 = vmul.f32 %v216, %v3742
      %v3751 = vmul.f32 %v217, %v3742
      %v3752 = vmul.f32 %v218, %v3742
      %v3753 = vmul.f32 %v219, %v3742
      %v3754 = vmul.f32 %v220, %v3742
      %v3755 = vmul.f32 %v221, %v3742
      %v3756 = vmul.f32 %v222, %v3742
      %v3757 = vmul.f32 %v223, %v3742
      %v3758 = vmul.f32 %v224, %v3742
      %v3759 = vmul.f32 %v225, %v3742
      %v3760 = vmul.f32 %v226, %v3742
      %v3761 = vmul.f32 %v227, %v3742
      %v3762 = vmul.f32 %v228, %v3742
      %v3763 = vmul.f32 %v229, %v3742
      %v3764 = vmul.f32 %v230, %v3742
      %v3765 = vmul.f32 %v231, %v3742
      %v3766 = vmul.f32 %v232, %v3742
      %v3767 = vmul.f32 %v233, %v3742
      %v3768 = vmul.f32 %v234, %v3742
      %v3769 = vmul.f32 %v235, %v3742
      %v3770 = vmul.f32 %v236, %v3742
      %v3771 = vmul.f32 %v237, %v3742
      %v3772 = vmul.f32 %v238, %v3742
      %v3773 = vmul.f32 %v239, %v3742
      %v3774 = vmul.f32 %v240, %v3742
      %v3775 = vmul.f32 %v241, %v3742
      %v3776 = vmul.f32 %v242, %v3742
      %v3777 = vmul.f32 %v243, %v3742
      %v3778 = vmul.f32 %v244, %v3742
      %v3779 = vmul.f32 %v245, %v3742
      %v3780 = vmul.f32 %v246, %v3742
      %v3781 = vmul.f32 %v247, %v3742
      %v3782 = vmul.f32 %v248, %v3742
      %v3783 = vmul.f32 %v249, %v3742
      %v3784 = vmul.f32 %v250, %v3742
      %v3785 = vmul.f32 %v251, %v3742
      %v3786 = vmul.f32 %v252, %v3742
      %v3787 = vmul.f32 %v253, %v3742
      %v3788 = vmul.f32 %v254, %v3742
      %v3789 = vmul.f32 %v255, %v3742
      %v3790 = vmul.f32 %v256, %v3742
      %v3791 = vmul.f32 %v257, %v3742
      %v3840 = vrot.slane %v3744, 1
      %v3841 = vrot.slane %v3745, 1
      %v3842 = vsel %vm703, %v3840, %v3841
      %v3843 = vrot.slane %v3746, 1
      %v3844 = vsel %vm703, %v3841, %v3843
      %v3845 = vrot.slane %v3747, 1
      %v3846 = vrot.slane %v3748, 1
      %v3847 = vsel %vm703, %v3845, %v3846
      %v3848 = vrot.slane %v3749, 1
      %v3849 = vsel %vm703, %v3846, %v3848
      %v3850 = vrot.slane %v3750, 1
      %v3851 = vrot.slane %v3751, 1
      %v3852 = vsel %vm703, %v3850, %v3851
      %v3853 = vrot.slane %v3752, 1
      %v3854 = vsel %vm703, %v3851, %v3853
      %v3855 = vrot.slane %v3753, 1
      %v3856 = vrot.slane %v3754, 1
      %v3857 = vsel %vm703, %v3855, %v3856
      %v3858 = vrot.slane %v3755, 1
      %v3859 = vsel %vm703, %v3856, %v3858
      %v3860 = vrot.slane %v3756, 1
      %v3861 = vrot.slane %v3757, 1
      %v3862 = vsel %vm703, %v3860, %v3861
      %v3863 = vrot.slane %v3758, 1
      %v3864 = vsel %vm703, %v3861, %v3863
      %v3865 = vrot.slane %v3759, 1
      %v3866 = vrot.slane %v3760, 1
      %v3867 = vsel %vm703, %v3865, %v3866
      %v3868 = vrot.slane %v3761, 1
      %v3869 = vsel %vm703, %v3866, %v3868
      %v3870 = vrot.slane %v3762, 1
      %v3871 = vrot.slane %v3763, 1
      %v3872 = vsel %vm703, %v3870, %v3871
      %v3873 = vrot.slane %v3764, 1
      %v3874 = vsel %vm703, %v3871, %v3873
      %v3875 = vrot.slane %v3765, 1
      %v3876 = vrot.slane %v3766, 1
      %v3877 = vsel %vm703, %v3875, %v3876
      %v3878 = vrot.slane %v3767, 1
      %v3879 = vsel %vm703, %v3876, %v3878
      %v3880 = vrot.slane %v3768, 1
      %v3881 = vrot.slane %v3769, 1
      %v3882 = vsel %vm703, %v3880, %v3881
      %v3883 = vrot.slane %v3770, 1
      %v3884 = vsel %vm703, %v3881, %v3883
      %v3885 = vrot.slane %v3771, 1
      %v3886 = vrot.slane %v3772, 1
      %v3887 = vsel %vm703, %v3885, %v3886
      %v3888 = vrot.slane %v3773, 1
      %v3889 = vsel %vm703, %v3886, %v3888
      %v3890 = vrot.slane %v3774, 1
      %v3891 = vrot.slane %v3775, 1
      %v3892 = vsel %vm703, %v3890, %v3891
      %v3893 = vrot.slane %v3776, 1
      %v3894 = vsel %vm703, %v3891, %v3893
      %v3895 = vrot.slane %v3777, 1
      %v3896 = vrot.slane %v3778, 1
      %v3897 = vsel %vm703, %v3895, %v3896
      %v3898 = vrot.slane %v3779, 1
      %v3899 = vsel %vm703, %v3896, %v3898
      %v3900 = vrot.slane %v3780, 1
      %v3901 = vrot.slane %v3781, 1
      %v3902 = vsel %vm703, %v3900, %v3901
      %v3903 = vrot.slane %v3782, 1
      %v3904 = vsel %vm703, %v3901, %v3903
      %v3905 = vrot.slane %v3783, 1
      %v3906 = vrot.slane %v3784, 1
      %v3907 = vsel %vm703, %v3905, %v3906
      %v3908 = vrot.slane %v3785, 1
      %v3909 = vsel %vm703, %v3906, %v3908
      %v3910 = vrot.slane %v3786, 1
      %v3911 = vrot.slane %v3787, 1
      %v3912 = vsel %vm703, %v3910, %v3911
      %v3913 = vrot.slane %v3788, 1
      %v3914 = vsel %vm703, %v3911, %v3913
      %v3915 = vrot.slane %v3789, 1
      %v3916 = vrot.slane %v3790, 1
      %v3917 = vsel %vm703, %v3915, %v3916
      %v3918 = vrot.slane %v3791, 1
      %v3919 = vsel %vm703, %v3916, %v3918
      %v3968 = vadd.f32 %v3690, %v3842
      %v3969 = vadd.f32 %v3691, %v3844
      %v3970 = vadd.f32 %v3692, %v3843
      %v3971 = vadd.f32 %v3693, %v3847
      %v3972 = vadd.f32 %v3694, %v3849
      %v3973 = vadd.f32 %v3695, %v3848
      %v3974 = vadd.f32 %v3696, %v3852
      %v3975 = vadd.f32 %v3697, %v3854
      %v3976 = vadd.f32 %v3698, %v3853
      %v3977 = vadd.f32 %v3699, %v3857
      %v3978 = vadd.f32 %v3700, %v3859
      %v3979 = vadd.f32 %v3701, %v3858
      %v3980 = vadd.f32 %v3702, %v3862
      %v3981 = vadd.f32 %v3703, %v3864
      %v3982 = vadd.f32 %v3704, %v3863
      %v3983 = vadd.f32 %v3705, %v3867
      %v3984 = vadd.f32 %v3706, %v3869
      %v3985 = vadd.f32 %v3707, %v3868
      %v3986 = vadd.f32 %v3708, %v3872
      %v3987 = vadd.f32 %v3709, %v3874
      %v3988 = vadd.f32 %v3710, %v3873
      %v3989 = vadd.f32 %v3711, %v3877
      %v3990 = vadd.f32 %v3712, %v3879
      %v3991 = vadd.f32 %v3713, %v3878
      %v3992 = vadd.f32 %v3714, %v3882
      %v3993 = vadd.f32 %v3715, %v3884
      %v3994 = vadd.f32 %v3716, %v3883
      %v3995 = vadd.f32 %v3717, %v3887
      %v3996 = vadd.f32 %v3718, %v3889
      %v3997 = vadd.f32 %v3719, %v3888
      %v3998 = vadd.f32 %v3720, %v3892
      %v3999 = vadd.f32 %v3721, %v3894
      %v4000 = vadd.f32 %v3722, %v3893
      %v4001 = vadd.f32 %v3723, %v3897
      %v4002 = vadd.f32 %v3724, %v3899
      %v4003 = vadd.f32 %v3725, %v3898
      %v4004 = vadd.f32 %v3726, %v3902
      %v4005 = vadd.f32 %v3727, %v3904
      %v4006 = vadd.f32 %v3728, %v3903
      %v4007 = vadd.f32 %v3729, %v3907
      %v4008 = vadd.f32 %v3730, %v3909
      %v4009 = vadd.f32 %v3731, %v3908
      %v4010 = vadd.f32 %v3732, %v3912
      %v4011 = vadd.f32 %v3733, %v3914
      %v4012 = vadd.f32 %v3734, %v3913
      %v4013 = vadd.f32 %v3735, %v3917
      %v4014 = vadd.f32 %v3736, %v3919
      %v4015 = vadd.f32 %v3737, %v3918
      %v4017 = vlaneseq
      %v4018 = vshrl.u32 %v4017, 7
      %v4019 = vsub.s32 0, %v4018
      %v4020 = vrot.slane %v266, %v4019
      %v4022 = vmul.f32 %v207, %v4020
      %v4023 = vmul.f32 %v208, %v4020
      %v4024 = vmul.f32 %v209, %v4020
      %v4025 = vmul.f32 %v210, %v4020
      %v4026 = vmul.f32 %v211, %v4020
      %v4027 = vmul.f32 %v212, %v4020
      %v4028 = vmul.f32 %v213, %v4020
      %v4029 = vmul.f32 %v214, %v4020
      %v4030 = vmul.f32 %v215, %v4020
      %v4031 = vmul.f32 %v216, %v4020
      %v4032 = vmul.f32 %v217, %v4020
      %v4033 = vmul.f32 %v218, %v4020
      %v4034 = vmul.f32 %v219, %v4020
      %v4035 = vmul.f32 %v220, %v4020
      %v4036 = vmul.f32 %v221, %v4020
      %v4037 = vmul.f32 %v222, %v4020
      %v4038 = vmul.f32 %v223, %v4020
      %v4039 = vmul.f32 %v224, %v4020
      %v4040 = vmul.f32 %v225, %v4020
      %v4041 = vmul.f32 %v226, %v4020
      %v4042 = vmul.f32 %v227, %v4020
      %v4043 = vmul.f32 %v228, %v4020
      %v4044 = vmul.f32 %v229, %v4020
      %v4045 = vmul.f32 %v230, %v4020
      %v4046 = vmul.f32 %v231, %v4020
      %v4047 = vmul.f32 %v232, %v4020
      %v4048 = vmul.f32 %v233, %v4020
      %v4049 = vmul.f32 %v234, %v4020
      %v4050 = vmul.f32 %v235, %v4020
      %v4051 = vmul.f32 %v236, %v4020
      %v4052 = vmul.f32 %v237, %v4020
      %v4053 = vmul.f32 %v238, %v4020
      %v4054 = vmul.f32 %v239, %v4020
      %v4055 = vmul.f32 %v240, %v4020
      %v4056 = vmul.f32 %v241, %v4020
      %v4057 = vmul.f32 %v242, %v4020
      %v4058 = vmul.f32 %v243, %v4020
      %v4059 = vmul.f32 %v244, %v4020
      %v4060 = vmul.f32 %v245, %v4020
      %v4061 = vmul.f32 %v246, %v4020
      %v4062 = vmul.f32 %v247, %v4020
      %v4063 = vmul.f32 %v248, %v4020
      %v4064 = vmul.f32 %v249, %v4020
      %v4065 = vmul.f32 %v250, %v4020
      %v4066 = vmul.f32 %v251, %v4020
      %v4067 = vmul.f32 %v252, %v4020
      %v4068 = vmul.f32 %v253, %v4020
      %v4069 = vmul.f32 %v254, %v4020
      %v4118 = vrot.slane %v4022, 2
      %v4119 = vrot.slane %v4023, 2
      %v4120 = vsel %vm1260, %v4118, %v4119
      %v4121 = vrot.slane %v4024, 2
      %v4122 = vsel %vm1260, %v4119, %v4121
      %v4123 = vrot.slane %v4025, 2
      %v4124 = vrot.slane %v4026, 2
      %v4125 = vsel %vm1260, %v4123, %v4124
      %v4126 = vrot.slane %v4027, 2
      %v4127 = vsel %vm1260, %v4124, %v4126
      %v4128 = vrot.slane %v4028, 2
      %v4129 = vrot.slane %v4029, 2
      %v4130 = vsel %vm1260, %v4128, %v4129
      %v4131 = vrot.slane %v4030, 2
      %v4132 = vsel %vm1260, %v4129, %v4131
      %v4133 = vrot.slane %v4031, 2
      %v4134 = vrot.slane %v4032, 2
      %v4135 = vsel %vm1260, %v4133, %v4134
      %v4136 = vrot.slane %v4033, 2
      %v4137 = vsel %vm1260, %v4134, %v4136
      %v4138 = vrot.slane %v4034, 2
      %v4139 = vrot.slane %v4035, 2
      %v4140 = vsel %vm1260, %v4138, %v4139
      %v4141 = vrot.slane %v4036, 2
      %v4142 = vsel %vm1260, %v4139, %v4141
      %v4143 = vrot.slane %v4037, 2
      %v4144 = vrot.slane %v4038, 2
      %v4145 = vsel %vm1260, %v4143, %v4144
      %v4146 = vrot.slane %v4039, 2
      %v4147 = vsel %vm1260, %v4144, %v4146
      %v4148 = vrot.slane %v4040, 2
      %v4149 = vrot.slane %v4041, 2
      %v4150 = vsel %vm1260, %v4148, %v4149
      %v4151 = vrot.slane %v4042, 2
      %v4152 = vsel %vm1260, %v4149, %v4151
      %v4153 = vrot.slane %v4043, 2
      %v4154 = vrot.slane %v4044, 2
      %v4155 = vsel %vm1260, %v4153, %v4154
      %v4156 = vrot.slane %v4045, 2
      %v4157 = vsel %vm1260, %v4154, %v4156
      %v4158 = vrot.slane %v4046, 2
      %v4159 = vrot.slane %v4047, 2
      %v4160 = vsel %vm1260, %v4158, %v4159
      %v4161 = vrot.slane %v4048, 2
      %v4162 = vsel %vm1260, %v4159, %v4161
      %v4163 = vrot.slane %v4049, 2
      %v4164 = vrot.slane %v4050, 2
      %v4165 = vsel %vm1260, %v4163, %v4164
      %v4166 = vrot.slane %v4051, 2
      %v4167 = vsel %vm1260, %v4164, %v4166
      %v4168 = vrot.slane %v4052, 2
      %v4169 = vrot.slane %v4053, 2
      %v4170 = vsel %vm1260, %v4168, %v4169
      %v4171 = vrot.slane %v4054, 2
      %v4172 = vsel %vm1260, %v4169, %v4171
      %v4173 = vrot.slane %v4055, 2
      %v4174 = vrot.slane %v4056, 2
      %v4175 = vsel %vm1260, %v4173, %v4174
      %v4176 = vrot.slane %v4057, 2
      %v4177 = vsel %vm1260, %v4174, %v4176
      %v4178 = vrot.slane %v4058, 2
      %v4179 = vrot.slane %v4059, 2
      %v4180 = vsel %vm1260, %v4178, %v4179
      %v4181 = vrot.slane %v4060, 2
      %v4182 = vsel %vm1260, %v4179, %v4181
      %v4183 = vrot.slane %v4061, 2
      %v4184 = vrot.slane %v4062, 2
      %v4185 = vsel %vm1260, %v4183, %v4184
      %v4186 = vrot.slane %v4063, 2
      %v4187 = vsel %vm1260, %v4184, %v4186
      %v4188 = vrot.slane %v4064, 2
      %v4189 = vrot.slane %v4065, 2
      %v4190 = vsel %vm1260, %v4188, %v4189
      %v4191 = vrot.slane %v4066, 2
      %v4192 = vsel %vm1260, %v4189, %v4191
      %v4193 = vrot.slane %v4067, 2
      %v4194 = vrot.slane %v4068, 2
      %v4195 = vsel %vm1260, %v4193, %v4194
      %v4196 = vrot.slane %v4069, 2
      %v4197 = vsel %vm1260, %v4194, %v4196
      %v4246 = vadd.f32 %v3968, %v4120
      %v4247 = vadd.f32 %v3969, %v4122
      %v4248 = vadd.f32 %v3970, %v4121
      %v4249 = vadd.f32 %v3971, %v4125
      %v4250 = vadd.f32 %v3972, %v4127
      %v4251 = vadd.f32 %v3973, %v4126
      %v4252 = vadd.f32 %v3974, %v4130
      %v4253 = vadd.f32 %v3975, %v4132
      %v4254 = vadd.f32 %v3976, %v4131
      %v4255 = vadd.f32 %v3977, %v4135
      %v4256 = vadd.f32 %v3978, %v4137
      %v4257 = vadd.f32 %v3979, %v4136
      %v4258 = vadd.f32 %v3980, %v4140
      %v4259 = vadd.f32 %v3981, %v4142
      %v4260 = vadd.f32 %v3982, %v4141
      %v4261 = vadd.f32 %v3983, %v4145
      %v4262 = vadd.f32 %v3984, %v4147
      %v4263 = vadd.f32 %v3985, %v4146
      %v4264 = vadd.f32 %v3986, %v4150
      %v4265 = vadd.f32 %v3987, %v4152
      %v4266 = vadd.f32 %v3988, %v4151
      %v4267 = vadd.f32 %v3989, %v4155
      %v4268 = vadd.f32 %v3990, %v4157
      %v4269 = vadd.f32 %v3991, %v4156
      %v4270 = vadd.f32 %v3992, %v4160
      %v4271 = vadd.f32 %v3993, %v4162
      %v4272 = vadd.f32 %v3994, %v4161
      %v4273 = vadd.f32 %v3995, %v4165
      %v4274 = vadd.f32 %v3996, %v4167
      %v4275 = vadd.f32 %v3997, %v4166
      %v4276 = vadd.f32 %v3998, %v4170
      %v4277 = vadd.f32 %v3999, %v4172
      %v4278 = vadd.f32 %v4000, %v4171
      %v4279 = vadd.f32 %v4001, %v4175
      %v4280 = vadd.f32 %v4002, %v4177
      %v4281 = vadd.f32 %v4003, %v4176
      %v4282 = vadd.f32 %v4004, %v4180
      %v4283 = vadd.f32 %v4005, %v4182
      %v4284 = vadd.f32 %v4006, %v4181
      %v4285 = vadd.f32 %v4007, %v4185
      %v4286 = vadd.f32 %v4008, %v4187
      %v4287 = vadd.f32 %v4009, %v4186
      %v4288 = vadd.f32 %v4010, %v4190
      %v4289 = vadd.f32 %v4011, %v4192
      %v4290 = vadd.f32 %v4012, %v4191
      %v4291 = vadd.f32 %v4013, %v4195
      %v4292 = vadd.f32 %v4014, %v4197
      %v4293 = vadd.f32 %v4015, %v4196
      %v4295 = vlaneseq
      %v4296 = vshrl.u32 %v4295, 7
      %v4297 = vsub.s32 0, %v4296
      %v4298 = vrot.slane %v275, %v4297
      %v4300 = vmul.f32 %v210, %v4298
      %v4301 = vmul.f32 %v211, %v4298
      %v4302 = vmul.f32 %v212, %v4298
      %v4303 = vmul.f32 %v213, %v4298
      %v4304 = vmul.f32 %v214, %v4298
      %v4305 = vmul.f32 %v215, %v4298
      %v4306 = vmul.f32 %v216, %v4298
      %v4307 = vmul.f32 %v217, %v4298
      %v4308 = vmul.f32 %v218, %v4298
      %v4309 = vmul.f32 %v219, %v4298
      %v4310 = vmul.f32 %v220, %v4298
      %v4311 = vmul.f32 %v221, %v4298
      %v4312 = vmul.f32 %v222, %v4298
      %v4313 = vmul.f32 %v223, %v4298
      %v4314 = vmul.f32 %v224, %v4298
      %v4315 = vmul.f32 %v225, %v4298
      %v4316 = vmul.f32 %v226, %v4298
      %v4317 = vmul.f32 %v227, %v4298
      %v4318 = vmul.f32 %v228, %v4298
      %v4319 = vmul.f32 %v229, %v4298
      %v4320 = vmul.f32 %v230, %v4298
      %v4321 = vmul.f32 %v231, %v4298
      %v4322 = vmul.f32 %v232, %v4298
      %v4323 = vmul.f32 %v233, %v4298
      %v4324 = vmul.f32 %v234, %v4298
      %v4325 = vmul.f32 %v235, %v4298
      %v4326 = vmul.f32 %v236, %v4298
      %v4327 = vmul.f32 %v237, %v4298
      %v4328 = vmul.f32 %v238, %v4298
      %v4329 = vmul.f32 %v239, %v4298
      %v4330 = vmul.f32 %v240, %v4298
      %v4331 = vmul.f32 %v241, %v4298
      %v4332 = vmul.f32 %v242, %v4298
      %v4333 = vmul.f32 %v243, %v4298
      %v4334 = vmul.f32 %v244, %v4298
      %v4335 = vmul.f32 %v245, %v4298
      %v4336 = vmul.f32 %v246, %v4298
      %v4337 = vmul.f32 %v247, %v4298
      %v4338 = vmul.f32 %v248, %v4298
      %v4339 = vmul.f32 %v249, %v4298
      %v4340 = vmul.f32 %v250, %v4298
      %v4341 = vmul.f32 %v251, %v4298
      %v4342 = vmul.f32 %v252, %v4298
      %v4343 = vmul.f32 %v253, %v4298
      %v4344 = vmul.f32 %v254, %v4298
      %v4345 = vmul.f32 %v255, %v4298
      %v4346 = vmul.f32 %v256, %v4298
      %v4347 = vmul.f32 %v257, %v4298
      %v4396 = vrot.slane %v4300, 3
      %v4397 = vrot.slane %v4301, 3
      %v4398 = vsel %vm1539, %v4396, %v4397
      %v4399 = vrot.slane %v4302, 3
      %v4400 = vsel %vm1539, %v4397, %v4399
      %v4401 = vrot.slane %v4303, 3
      %v4402 = vrot.slane %v4304, 3
      %v4403 = vsel %vm1539, %v4401, %v4402
      %v4404 = vrot.slane %v4305, 3
      %v4405 = vsel %vm1539, %v4402, %v4404
      %v4406 = vrot.slane %v4306, 3
      %v4407 = vrot.slane %v4307, 3
      %v4408 = vsel %vm1539, %v4406, %v4407
      %v4409 = vrot.slane %v4308, 3
      %v4410 = vsel %vm1539, %v4407, %v4409
      %v4411 = vrot.slane %v4309, 3
      %v4412 = vrot.slane %v4310, 3
      %v4413 = vsel %vm1539, %v4411, %v4412
      %v4414 = vrot.slane %v4311, 3
      %v4415 = vsel %vm1539, %v4412, %v4414
      %v4416 = vrot.slane %v4312, 3
      %v4417 = vrot.slane %v4313, 3
      %v4418 = vsel %vm1539, %v4416, %v4417
      %v4419 = vrot.slane %v4314, 3
      %v4420 = vsel %vm1539, %v4417, %v4419
      %v4421 = vrot.slane %v4315, 3
      %v4422 = vrot.slane %v4316, 3
      %v4423 = vsel %vm1539, %v4421, %v4422
      %v4424 = vrot.slane %v4317, 3
      %v4425 = vsel %vm1539, %v4422, %v4424
      %v4426 = vrot.slane %v4318, 3
      %v4427 = vrot.slane %v4319, 3
      %v4428 = vsel %vm1539, %v4426, %v4427
      %v4429 = vrot.slane %v4320, 3
      %v4430 = vsel %vm1539, %v4427, %v4429
      %v4431 = vrot.slane %v4321, 3
      %v4432 = vrot.slane %v4322, 3
      %v4433 = vsel %vm1539, %v4431, %v4432
      %v4434 = vrot.slane %v4323, 3
      %v4435 = vsel %vm1539, %v4432, %v4434
      %v4436 = vrot.slane %v4324, 3
      %v4437 = vrot.slane %v4325, 3
      %v4438 = vsel %vm1539, %v4436, %v4437
      %v4439 = vrot.slane %v4326, 3
      %v4440 = vsel %vm1539, %v4437, %v4439
      %v4441 = vrot.slane %v4327, 3
      %v4442 = vrot.slane %v4328, 3
      %v4443 = vsel %vm1539, %v4441, %v4442
      %v4444 = vrot.slane %v4329, 3
      %v4445 = vsel %vm1539, %v4442, %v4444
      %v4446 = vrot.slane %v4330, 3
      %v4447 = vrot.slane %v4331, 3
      %v4448 = vsel %vm1539, %v4446, %v4447
      %v4449 = vrot.slane %v4332, 3
      %v4450 = vsel %vm1539, %v4447, %v4449
      %v4451 = vrot.slane %v4333, 3
      %v4452 = vrot.slane %v4334, 3
      %v4453 = vsel %vm1539, %v4451, %v4452
      %v4454 = vrot.slane %v4335, 3
      %v4455 = vsel %vm1539, %v4452, %v4454
      %v4456 = vrot.slane %v4336, 3
      %v4457 = vrot.slane %v4337, 3
      %v4458 = vsel %vm1539, %v4456, %v4457
      %v4459 = vrot.slane %v4338, 3
      %v4460 = vsel %vm1539, %v4457, %v4459
      %v4461 = vrot.slane %v4339, 3
      %v4462 = vrot.slane %v4340, 3
      %v4463 = vsel %vm1539, %v4461, %v4462
      %v4464 = vrot.slane %v4341, 3
      %v4465 = vsel %vm1539, %v4462, %v4464
      %v4466 = vrot.slane %v4342, 3
      %v4467 = vrot.slane %v4343, 3
      %v4468 = vsel %vm1539, %v4466, %v4467
      %v4469 = vrot.slane %v4344, 3
      %v4470 = vsel %vm1539, %v4467, %v4469
      %v4471 = vrot.slane %v4345, 3
      %v4472 = vrot.slane %v4346, 3
      %v4473 = vsel %vm1539, %v4471, %v4472
      %v4474 = vrot.slane %v4347, 3
      %v4475 = vsel %vm1539, %v4472, %v4474
      %v4524 = vadd.f32 %v4246, %v4398
      %v4525 = vadd.f32 %v4247, %v4400
      %v4526 = vadd.f32 %v4248, %v4399
      %v4527 = vadd.f32 %v4249, %v4403
      %v4528 = vadd.f32 %v4250, %v4405
      %v4529 = vadd.f32 %v4251, %v4404
      %v4530 = vadd.f32 %v4252, %v4408
      %v4531 = vadd.f32 %v4253, %v4410
      %v4532 = vadd.f32 %v4254, %v4409
      %v4533 = vadd.f32 %v4255, %v4413
      %v4534 = vadd.f32 %v4256, %v4415
      %v4535 = vadd.f32 %v4257, %v4414
      %v4536 = vadd.f32 %v4258, %v4418
      %v4537 = vadd.f32 %v4259, %v4420
      %v4538 = vadd.f32 %v4260, %v4419
      %v4539 = vadd.f32 %v4261, %v4423
      %v4540 = vadd.f32 %v4262, %v4425
      %v4541 = vadd.f32 %v4263, %v4424
      %v4542 = vadd.f32 %v4264, %v4428
      %v4543 = vadd.f32 %v4265, %v4430
      %v4544 = vadd.f32 %v4266, %v4429
      %v4545 = vadd.f32 %v4267, %v4433
      %v4546 = vadd.f32 %v4268, %v4435
      %v4547 = vadd.f32 %v4269, %v4434
      %v4548 = vadd.f32 %v4270, %v4438
      %v4549 = vadd.f32 %v4271, %v4440
      %v4550 = vadd.f32 %v4272, %v4439
      %v4551 = vadd.f32 %v4273, %v4443
      %v4552 = vadd.f32 %v4274, %v4445
      %v4553 = vadd.f32 %v4275, %v4444
      %v4554 = vadd.f32 %v4276, %v4448
      %v4555 = vadd.f32 %v4277, %v4450
      %v4556 = vadd.f32 %v4278, %v4449
      %v4557 = vadd.f32 %v4279, %v4453
      %v4558 = vadd.f32 %v4280, %v4455
      %v4559 = vadd.f32 %v4281, %v4454
      %v4560 = vadd.f32 %v4282, %v4458
      %v4561 = vadd.f32 %v4283, %v4460
      %v4562 = vadd.f32 %v4284, %v4459
      %v4563 = vadd.f32 %v4285, %v4463
      %v4564 = vadd.f32 %v4286, %v4465
      %v4565 = vadd.f32 %v4287, %v4464
      %v4566 = vadd.f32 %v4288, %v4468
      %v4567 = vadd.f32 %v4289, %v4470
      %v4568 = vadd.f32 %v4290, %v4469
      %v4569 = vadd.f32 %v4291, %v4473
      %v4570 = vadd.f32 %v4292, %v4475
      %v4571 = vadd.f32 %v4293, %v4474
      %vm4572 = vcmask 64513
      %4573 = vst.msk [vmem:[%s197 - $0x1] sm:$0xfe] %vm4572, %v4524
      %vm4574 = vcmask 64512
      %4575 = vst.msk [vmem:[%s197 + $0x7] sm:$0xff] %vm4574, %v4525
      %vm4576 = vcmask 57344
      %4577 = vst.msk [vmem:[%s197 + $0xf] sm:$0x1] %vm4576, %v4526
      %4578 = vst.msk [vmem:[%s197 + $0xf] sm:$0xfe] %vm4572, %v4527
      %4579 = vst.msk [vmem:[%s197 + $0x17] sm:$0xff] %vm4574, %v4528
      %4580 = vst.msk [vmem:[%s197 + $0x1f] sm:$0x1] %vm4576, %v4529
      %4581 = vst.msk [vmem:[%s197 + $0x1f] sm:$0xfe] %vm4572, %v4530
      %4582 = vst.msk [vmem:[%s197 + $0x27] sm:$0xff] %vm4574, %v4531
      %4583 = vst.msk [vmem:[%s197 + $0x2f] sm:$0x1] %vm4576, %v4532
      %4584 = vst.msk [vmem:[%s197 + $0x2f] sm:$0xfe] %vm4572, %v4533
      %4585 = vst.msk [vmem:[%s197 + $0x37] sm:$0xff] %vm4574, %v4534
      %4586 = vst.msk [vmem:[%s197 + $0x3f] sm:$0x1] %vm4576, %v4535
      %4587 = vst.msk [vmem:[%s197 + $0x3f] sm:$0xfe] %vm4572, %v4536
      %4588 = vst.msk [vmem:[%s197 + $0x47] sm:$0xff] %vm4574, %v4537
      %4589 = vst.msk [vmem:[%s197 + $0x4f] sm:$0x1] %vm4576, %v4538
      %4590 = vst.msk [vmem:[%s197 + $0x4f] sm:$0xfe] %vm4572, %v4539
      %4591 = vst.msk [vmem:[%s197 + $0x57] sm:$0xff] %vm4574, %v4540
      %4592 = vst.msk [vmem:[%s197 + $0x5f] sm:$0x1] %vm4576, %v4541
      %4593 = vst.msk [vmem:[%s197 + $0x5f] sm:$0xfe] %vm4572, %v4542
      %4594 = vst.msk [vmem:[%s197 + $0x67] sm:$0xff] %vm4574, %v4543
      %4595 = vst.msk [vmem:[%s197 + $0x6f] sm:$0x1] %vm4576, %v4544
      %4596 = vst.msk [vmem:[%s197 + $0x6f] sm:$0xfe] %vm4572, %v4545
      %4597 = vst.msk [vmem:[%s197 + $0x77] sm:$0xff] %vm4574, %v4546
      %4598 = vst.msk [vmem:[%s197 + $0x7f] sm:$0x1] %vm4576, %v4547
      %4599 = vst.msk [vmem:[%s197 + $0x7f] sm:$0xfe] %vm4572, %v4548
      %4600 = vst.msk [vmem:[%s197 + $0x87] sm:$0xff] %vm4574, %v4549
      %4601 = vst.msk [vmem:[%s197 + $0x8f] sm:$0x1] %vm4576, %v4550
      %4602 = vst.msk [vmem:[%s197 + $0x8f] sm:$0xfe] %vm4572, %v4551
      %4603 = vst.msk [vmem:[%s197 + $0x97] sm:$0xff] %vm4574, %v4552
      %4604 = vst.msk [vmem:[%s197 + $0x9f] sm:$0x1] %vm4576, %v4553
      %4605 = vst.msk [vmem:[%s197 + $0x9f] sm:$0xfe] %vm4572, %v4554
      %4606 = vst.msk [vmem:[%s197 + $0xa7] sm:$0xff] %vm4574, %v4555
      %4607 = vst.msk [vmem:[%s197 + $0xaf] sm:$0x1] %vm4576, %v4556
      %4608 = vst.msk [vmem:[%s197 + $0xaf] sm:$0xfe] %vm4572, %v4557
      %4609 = vst.msk [vmem:[%s197 + $0xb7] sm:$0xff] %vm4574, %v4558
      %4610 = vst.msk [vmem:[%s197 + $0xbf] sm:$0x1] %vm4576, %v4559
      %4611 = vst.msk [vmem:[%s197 + $0xbf] sm:$0xfe] %vm4572, %v4560
      %4612 = vst.msk [vmem:[%s197 + $0xc7] sm:$0xff] %vm4574, %v4561
      %4613 = vst.msk [vmem:[%s197 + $0xcf] sm:$0x1] %vm4576, %v4562
      %4614 = vst.msk [vmem:[%s197 + $0xcf] sm:$0xfe] %vm4572, %v4563
      %4615 = vst.msk [vmem:[%s197 + $0xd7] sm:$0xff] %vm4574, %v4564
      %4616 = vst.msk [vmem:[%s197 + $0xdf] sm:$0x1] %vm4576, %v4565
      %4617 = vst.msk [vmem:[%s197 + $0xdf] sm:$0xfe] %vm4572, %v4566
      %4618 = vst.msk [vmem:[%s197 + $0xe7] sm:$0xff] %vm4574, %v4567
      %4619 = vst.msk [vmem:[%s197 + $0xef] sm:$0x1] %vm4576, %v4568
      %4620 = vst.msk [vmem:[%s197 + $0xef] sm:$0xfe] %vm4572, %v4569
      %4621 = vst.msk [vmem:[%s197 + $0xf7] sm:$0xff] %vm4574, %v4570
      %4622 = vst.msk [vmem:[%s197 + $0xff] sm:$0x1] %vm4576, %v4571
      %p4623 = scmp.lt.s32.totalorder %s15, 1
      %s4624 = scalar_select %p4623, %s15, 1
      %s4625 = smul.addr %s4624, 32
      %s4626 = smul.addr %s4625, 8
      %s4627 = scalar_lea.vmem %s4, %s4626
      // Predicated region
      $region37: #{lgpm_forward.6} parent=35 // pred_check
        %p4628 = pneg %p122
      $region38: #{lgpm_forward.6} parent=35 // pred_check_branch
        %4630 = sbr.rel (%p4628) target = $region40
      $region39: #{lgpm_forward.6} parent=35 // pred_region
        _
      $region40: #{lgpm_forward.6} parent=35 // pred_fallthru
        _
    $region36: #{lgpm_forward.6} parent=5 // pred_fallthru
      _
    %p4631 = scmp.le.s32.totalorder 2, %s10
    // Predicated region
    $region41: #{lgpm_forward.6} parent=5 // pred_check
      %p4632 = pneg %p4631
    $region42: #{lgpm_forward.6} parent=5 // pred_check_branch
      %4634 = sbr.rel (%p4632) target = $region44
    $region43: #{lgpm_forward.6} parent=5 // pred_region
      %s4635 = ssub.s32 %s10, 2
      // Predicated region
      $region45: #{lgpm_forward.6} parent=43 // pred_check
        %p4636 = pneg %p128
      $region46: #{lgpm_forward.6} parent=43 // pred_check_branch
        %4638 = sbr.rel (%p4636) target = $region48
      $region47: #{lgpm_forward.6} parent=43 // pred_region
        %p4639 = scmp.lt.s32.totalorder %s16, 1
        %s4640 = scalar_select %p4639, %s16, 1
        %s4641 = smul.addr %s4640, 32
        %s4642 = smul.addr %s4641, 8
        %s4643 = scalar_lea.vmem %s4, %s4642
      $region48: #{lgpm_forward.6} parent=43 // pred_fallthru
        _
    $region44: #{lgpm_forward.6} parent=5 // pred_fallthru
      _
  $region6: #{lgpm_forward.6} parent=0 // loop_footer
    %s14 = sadd.s32 1, %s10
  $region7: #{lgpm_forward.6} parent=0 // loop_footer_branch
    %9 = sbr.rel target = $region3
  $region8: #{lgpm_forward.6} parent=0 // loop_exit
    _

// kernel: lgpm_forward.7
$region0: #{lgpm_forward.7}
  #allocation0 [shape = 'u32[]', space=smem, size = 0x4, offset = 0x4, fixed_abs, tag = 'smem constant byte address 0x4 - core index']
  #allocation1 [shape = 'u32[144,128]{1,0:T(1,128)}', space=vmem, size = 0x12000, scoped, tag = 'internal scratch']
  %s0 = inlined_call_operand.vmem [shape: f32[2,18,11,32], index: 0, kind: input, shape index: {}]
  %s1 = inlined_call_operand.vmem [shape: f32[3,3,1,32], index: 1, kind: input, shape index: {}]
  %s2 = inlined_call_operand.vmem [shape: f32[1,1,32], index: 2, kind: input, shape index: {}]
  %s3 = inlined_call_operand.vmem [shape: f32[1,1,32], index: 3, kind: input, shape index: {}]
  %s4 = inlined_call_operand.vmem [shape: f32[1,1,32], index: 4, kind: input, shape index: {}]
  %s5 = inlined_call_operand.vmem [shape: f32[2,16,9,32], index: 5, kind: output, shape index: {}]
  %s6 = sld [smem:[#allocation0]]
  $region53: #{lgpm_forward.7} parent=0
    _
  %s8 = ssub.s32 1, %s6
  %s9 = scalar_select 0, %s8, %s6
  loop: start=0, step=1, limit=4
  $region2: #{lgpm_forward.7} parent=0 // loop_pre_header
    _
  $region3: #{lgpm_forward.7} parent=0 // loop_header
    %s11 = sphi 0, %s15
    %p12 = scmp.ge.s32.totalorder %s11, 4
    %s21 = sphi 0, %s23
    %s24 = sphi 0, %s21
    %s25 = sphi 0, %s24
    %s41 = sphi 0, %s25
    %s45 = sphi 0, %s45
    %s47 = sphi 0, %s45
    %s48 = sphi 0, %s47
    %s62 = sphi 0, %s48
    %s66 = sphi 0, %s66
    %s68 = sphi 0, %s66
    %s69 = sphi 0, %s68
    %s83 = sphi 0, %s69
    %s87 = sphi 0, %s87
    %s89 = sphi 0, %s87
    %s90 = sphi 0, %s89
    %s104 = sphi 0, %s90
    %s108 = sphi 0, %s108
    %s110 = sphi 0, %s108
    %s111 = sphi 0, %s110
    %s125 = sphi 0, %s111
    %s131 = sphi 0, %s133
    %s134 = sphi 0, %s131
    %s135 = sphi 0, %s134
    %s151 = sphi 0, %s135
  $region4: #{lgpm_forward.7} parent=0 // loop_header_branch
    %14 = sbr.rel (%p12) target = $region8
  $region5: #{lgpm_forward.7} parent=0 // loop_body
    %s16 = ssub.s32 %s11, 1
    %s17 = ssub.s32 %s11, 2
    %s18 = sadd.s32 %s11, 1
    %s19 = ssub.s32 %s11, %s18
    %p20 = scmp.eq.s32.totalorder %s19, 0
    %s22 = sadd.s32 %s21, 1
    %s23 = scalar_select %p20, %s21, %s22
    %p26 = pneg %p20
    %p27 = scmp.eq.s32.totalorder %s11, 1
    %p28 = por %p26, %p27
    %p29 = scmp.ne.s32.totalorder %s21, %s24
    %p30 = scmp.eq.s32.totalorder %s11, 0
    %p31 = por %p29, %p30
    %p32 = scmp.ne.s32.totalorder %s21, %s24
    %p33 = scmp.eq.s32.totalorder %s16, 1
    %p34 = por %p32, %p33
    %p35 = scmp.ne.s32.totalorder %s24, %s25
    %p36 = scmp.eq.s32.totalorder %s16, 0
    %p37 = por %p35, %p36
    %p38 = scmp.ne.s32.totalorder %s24, %s25
    %p39 = scmp.eq.s32.totalorder %s17, 1
    %p40 = por %p38, %p39
    %p42 = scmp.ne.s32.totalorder %s25, %s41
    %p43 = scmp.eq.s32.totalorder %s17, 0
    %p44 = por %p42, %p43
    %s46 = sadd.s32 %s45, 1
    %p49 = scmp.eq.s32.totalorder %s11, 1
    %p50 = scmp.ne.s32.totalorder %s45, %s47
    %p51 = scmp.eq.s32.totalorder %s11, 0
    %p52 = por %p50, %p51
    %p53 = scmp.ne.s32.totalorder %s45, %s47
    %p54 = scmp.eq.s32.totalorder %s16, 1
    %p55 = por %p53, %p54
    %p56 = scmp.ne.s32.totalorder %s47, %s48
    %p57 = scmp.eq.s32.totalorder %s16, 0
    %p58 = por %p56, %p57
    %p59 = scmp.ne.s32.totalorder %s47, %s48
    %p60 = scmp.eq.s32.totalorder %s17, 1
    %p61 = por %p59, %p60
    %p63 = scmp.ne.s32.totalorder %s48, %s62
    %p64 = scmp.eq.s32.totalorder %s17, 0
    %p65 = por %p63, %p64
    %s67 = sadd.s32 %s66, 1
    %p70 = scmp.eq.s32.totalorder %s11, 1
    %p71 = scmp.ne.s32.totalorder %s66, %s68
    %p72 = scmp.eq.s32.totalorder %s11, 0
    %p73 = por %p71, %p72
    %p74 = scmp.ne.s32.totalorder %s66, %s68
    %p75 = scmp.eq.s32.totalorder %s16, 1
    %p76 = por %p74, %p75
    %p77 = scmp.ne.s32.totalorder %s68, %s69
    %p78 = scmp.eq.s32.totalorder %s16, 0
    %p79 = por %p77, %p78
    %p80 = scmp.ne.s32.totalorder %s68, %s69
    %p81 = scmp.eq.s32.totalorder %s17, 1
    %p82 = por %p80, %p81
    %p84 = scmp.ne.s32.totalorder %s69, %s83
    %p85 = scmp.eq.s32.totalorder %s17, 0
    %p86 = por %p84, %p85
    %s88 = sadd.s32 %s87, 1
    %p91 = scmp.eq.s32.totalorder %s11, 1
    %p92 = scmp.ne.s32.totalorder %s87, %s89
    %p93 = scmp.eq.s32.totalorder %s11, 0
    %p94 = por %p92, %p93
    %p95 = scmp.ne.s32.totalorder %s87, %s89
    %p96 = scmp.eq.s32.totalorder %s16, 1
    %p97 = por %p95, %p96
    %p98 = scmp.ne.s32.totalorder %s89, %s90
    %p99 = scmp.eq.s32.totalorder %s16, 0
    %p100 = por %p98, %p99
    %p101 = scmp.ne.s32.totalorder %s89, %s90
    %p102 = scmp.eq.s32.totalorder %s17, 1
    %p103 = por %p101, %p102
    %p105 = scmp.ne.s32.totalorder %s90, %s104
    %p106 = scmp.eq.s32.totalorder %s17, 0
    %p107 = por %p105, %p106
    %s109 = sadd.s32 %s108, 1
    %p112 = scmp.eq.s32.totalorder %s11, 1
    %p113 = scmp.ne.s32.totalorder %s108, %s110
    %p114 = scmp.eq.s32.totalorder %s11, 0
    %p115 = por %p113, %p114
    %p116 = scmp.ne.s32.totalorder %s108, %s110
    %p117 = scmp.eq.s32.totalorder %s16, 1
    %p118 = por %p116, %p117
    %p119 = scmp.ne.s32.totalorder %s110, %s111
    %p120 = scmp.eq.s32.totalorder %s16, 0
    %p121 = por %p119, %p120
    %p122 = scmp.ne.s32.totalorder %s110, %s111
    %p123 = scmp.eq.s32.totalorder %s17, 1
    %p124 = por %p122, %p123
    %p126 = scmp.ne.s32.totalorder %s111, %s125
    %p127 = scmp.eq.s32.totalorder %s17, 0
    %p128 = por %p126, %p127
    %s129 = ssub.s32 %s11, %s18
    %p130 = scmp.eq.s32.totalorder %s129, 0
    %s132 = sadd.s32 %s131, 1
    %s133 = scalar_select %p130, %s131, %s132
    %p136 = pneg %p130
    %p137 = scmp.eq.s32.totalorder %s11, 1
    %p138 = por %p136, %p137
    %p139 = scmp.ne.s32.totalorder %s131, %s134
    %p140 = scmp.eq.s32.totalorder %s11, 0
    %p141 = por %p139, %p140
    %p142 = scmp.ne.s32.totalorder %s131, %s134
    %p143 = scmp.eq.s32.totalorder %s16, 1
    %p144 = por %p142, %p143
    %p145 = scmp.ne.s32.totalorder %s134, %s135
    %p146 = scmp.eq.s32.totalorder %s16, 0
    %p147 = por %p145, %p146
    %p148 = scmp.ne.s32.totalorder %s134, %s135
    %p149 = scmp.eq.s32.totalorder %s17, 1
    %p150 = por %p148, %p149
    %p152 = scmp.ne.s32.totalorder %s135, %s151
    %p153 = scmp.eq.s32.totalorder %s17, 0
    %p154 = por %p152, %p153
    %p155 = scmp.le.s32.totalorder 1, %s11
    %p156 = scmp.lt.s32.totalorder %s11, 3
    %p157 = pnand %p155, %p156
    %p158 = pneg %p157
    // Predicated region
    $region9: #{lgpm_forward.7} parent=5 // pred_check
      _
    $region10: #{lgpm_forward.7} parent=5 // pred_check_branch
      %160 = sbr.rel (%p157) target = $region12
    $region11: #{lgpm_forward.7} parent=5 // pred_region
      %s161 = ssub.s32 %s11, 1
      // Predicated region
      $region13: #{lgpm_forward.7} parent=11 // pred_check
        %p162 = pneg %p58
      $region14: #{lgpm_forward.7} parent=11 // pred_check_branch
        %164 = sbr.rel (%p162) target = $region16
      $region15: #{lgpm_forward.7} parent=11 // pred_region
        _
      $region16: #{lgpm_forward.7} parent=11 // pred_fallthru
        _
      // Predicated region
      $region17: #{lgpm_forward.7} parent=11 // pred_check
        %p165 = pneg %p79
      $region18: #{lgpm_forward.7} parent=11 // pred_check_branch
        %167 = sbr.rel (%p165) target = $region20
      $region19: #{lgpm_forward.7} parent=11 // pred_region
        _
      $region20: #{lgpm_forward.7} parent=11 // pred_fallthru
        _
      // Predicated region
      $region21: #{lgpm_forward.7} parent=11 // pred_check
        %p168 = pneg %p100
      $region22: #{lgpm_forward.7} parent=11 // pred_check_branch
        %170 = sbr.rel (%p168) target = $region24
      $region23: #{lgpm_forward.7} parent=11 // pred_region
        _
      $region24: #{lgpm_forward.7} parent=11 // pred_fallthru
        _
      // Predicated region
      $region25: #{lgpm_forward.7} parent=11 // pred_check
        %p171 = pneg %p121
      $region26: #{lgpm_forward.7} parent=11 // pred_check_branch
        %173 = sbr.rel (%p171) target = $region28
      $region27: #{lgpm_forward.7} parent=11 // pred_region
        _
      $region28: #{lgpm_forward.7} parent=11 // pred_fallthru
        _
    $region12: #{lgpm_forward.7} parent=5 // pred_fallthru
      _
    %p174 = scmp.lt.s32.totalorder %s11, 2
    // Predicated region
    $region29: #{lgpm_forward.7} parent=5 // pred_check
      %p175 = pneg %p174
    $region30: #{lgpm_forward.7} parent=5 // pred_check_branch
      %177 = sbr.rel (%p175) target = $region32
    $region31: #{lgpm_forward.7} parent=5 // pred_region
      // Predicated region
      $region33: #{lgpm_forward.7} parent=31 // pred_check
        %p178 = pneg %p31
      $region34: #{lgpm_forward.7} parent=31 // pred_check_branch
        %180 = sbr.rel (%p178) target = $region36
      $region35: #{lgpm_forward.7} parent=31 // pred_region
        %p181 = scmp.lt.s32.totalorder %s11, 1
        %s182 = scalar_select %p181, %s11, 1
        %s183 = smul.addr %s182, 36
        %s184 = smul.addr %s183, 8
        %s185 = scalar_lea.vmem %s0, %s184
      $region36: #{lgpm_forward.7} parent=31 // pred_fallthru
        _
    $region32: #{lgpm_forward.7} parent=5 // pred_fallthru
      _
    %p186 = scmp.le.s32.totalorder 1, %s11
    %p187 = scmp.lt.s32.totalorder %s11, 3
    %p188 = pnand %p186, %p187
    %p189 = pneg %p188
    // Predicated region
    $region37: #{lgpm_forward.7} parent=5 // pred_check
      _
    $region38: #{lgpm_forward.7} parent=5 // pred_check_branch
      %191 = sbr.rel (%p188) target = $region40
    $region39: #{lgpm_forward.7} parent=5 // pred_region
      %s192 = ssub.s32 %s11, 1
      %p193 = scmp.lt.s32.totalorder %s16, 1
      %s194 = scalar_select %p193, %s16, 1
      %s195 = smul.addr %s194, 36
      %s196 = smul.addr %s195, 8
      %s197 = scalar_lea.vmem %s0, %s196
      %p198 = pneg %p37
      %p199 = pneg %p34
      %p200 = pneg %p58
      %p201 = pneg %p55
      %p202 = pneg %p79
      %p203 = pneg %p76
      %p204 = pneg %p100
      %p205 = pneg %p97
      %p206 = pneg %p121
      %p207 = pneg %p118
      %p208 = pneg %p147
      %p209 = pneg %p144
      %p210 = scmp.lt.s32.totalorder %s16, 1
      %s211 = scalar_select %p210, %s16, 1
      %s212 = smul.addr %s211, 32
      %s213 = smul.addr %s212, 8
      %s214 = scalar_lea.vmem %s5, %s213
      %p215 = scmp.lt.s32.totalorder %s16, 1
      %s216 = scalar_select %p215, %s16, 1
      %s217 = smul.addr %s216, 36
      %s218 = smul.addr %s217, 8
      %s219 = scalar_lea.vmem %s0, %s218
      %p220 = scmp.lt.s32.totalorder %s16, 1
      %s221 = scalar_select %p220, %s16, 1
      %s222 = smul.addr %s221, 32
      %s223 = smul.addr %s222, 8
      %s224 = scalar_lea.vmem %s5, %s223
      %v225 = vld [vmem:[%s219] sm:$0xff]
      %v226 = vld [vmem:[%s219 + $0x8] sm:$0x7]
      %v227 = vld [vmem:[%s219 + $0x10] sm:$0xff]
      %v228 = vld [vmem:[%s219 + $0x18] sm:$0x7]
      %v229 = vld [vmem:[%s219 + $0x20] sm:$0xff]
      %v230 = vld [vmem:[%s219 + $0x28] sm:$0x7]
      %v231 = vld [vmem:[%s219 + $0x30] sm:$0xff]
      %v232 = vld [vmem:[%s219 + $0x38] sm:$0x7]
      %v233 = vld [vmem:[%s219 + $0x40] sm:$0xff]
      %v234 = vld [vmem:[%s219 + $0x48] sm:$0x7]
      %v235 = vld [vmem:[%s219 + $0x50] sm:$0xff]
      %v236 = vld [vmem:[%s219 + $0x58] sm:$0x7]
      %v237 = vld [vmem:[%s219 + $0x60] sm:$0xff]
      %v238 = vld [vmem:[%s219 + $0x68] sm:$0x7]
      %v239 = vld [vmem:[%s219 + $0x70] sm:$0xff]
      %v240 = vld [vmem:[%s219 + $0x78] sm:$0x7]
      %v241 = vld [vmem:[%s219 + $0x80] sm:$0xff]
      %v242 = vld [vmem:[%s219 + $0x88] sm:$0x7]
      %v243 = vld [vmem:[%s219 + $0x90] sm:$0xff]
      %v244 = vld [vmem:[%s219 + $0x98] sm:$0x7]
      %v245 = vld [vmem:[%s219 + $0xa0] sm:$0xff]
      %v246 = vld [vmem:[%s219 + $0xa8] sm:$0x7]
      %v247 = vld [vmem:[%s219 + $0xb0] sm:$0xff]
      %v248 = vld [vmem:[%s219 + $0xb8] sm:$0x7]
      %v249 = vld [vmem:[%s219 + $0xc0] sm:$0xff]
      %v250 = vld [vmem:[%s219 + $0xc8] sm:$0x7]
      %v251 = vld [vmem:[%s219 + $0xd0] sm:$0xff]
      %v252 = vld [vmem:[%s219 + $0xd8] sm:$0x7]
      %v253 = vld [vmem:[%s219 + $0xe0] sm:$0xff]
      %v254 = vld [vmem:[%s219 + $0xe8] sm:$0x7]
      %v255 = vld [vmem:[%s219 + $0xf0] sm:$0xff]
      %v256 = vld [vmem:[%s219 + $0xf8] sm:$0x7]
      %v257 = vld [vmem:[%s219 + $0x100] sm:$0xff]
      %v258 = vld [vmem:[%s219 + $0x108] sm:$0x7]
      %v259 = vld [vmem:[%s219 + $0x110] sm:$0xff]
      %v260 = vld [vmem:[%s219 + $0x118] sm:$0x7]
      %v261 = vlaneseq
      %v262 = vshrl.u32 %v261, 7
      %v263 = vadd.s32 %v262, 8
      %vm264 = vcmp.ge.s32.totalorder %v262, 1
      %vm265 = vcmp.ge.s32.totalorder %v263, 1
      %vm266 = vmand 0, %vm264
      %vm267 = vmand 0, %vm265
      %vm268 = vmand 1, %vm264
      %vm269 = vmand 1, %vm265
      %vm270 = vcmp.lt.s32.totalorder %v262, 10
      %vm271 = vcmp.lt.s32.totalorder %v263, 10
      %vm272 = vmand %vm266, %vm270
      %vm273 = vmand %vm267, %vm271
      %vm274 = vmand %vm268, %vm270
      %vm275 = vmand %vm269, %vm271
      %v276 = vld [vmem:[%s3] sm:$0x1]
      %v278 = vlaneseq
      %v279 = vshrl.u32 %v278, 7
      %v280 = vsub.s32 0, %v279
      %v281 = vrot.slane %v276, %v280
      %v283 = vmul.f32 %v225, %v281
      %v284 = vmul.f32 %v226, %v281
      %v285 = vmul.f32 %v227, %v281
      %v286 = vmul.f32 %v228, %v281
      %v287 = vmul.f32 %v229, %v281
      %v288 = vmul.f32 %v230, %v281
      %v289 = vmul.f32 %v231, %v281
      %v290 = vmul.f32 %v232, %v281
      %v291 = vmul.f32 %v233, %v281
      %v292 = vmul.f32 %v234, %v281
      %v293 = vmul.f32 %v235, %v281
      %v294 = vmul.f32 %v236, %v281
      %v295 = vmul.f32 %v237, %v281
      %v296 = vmul.f32 %v238, %v281
      %v297 = vmul.f32 %v239, %v281
      %v298 = vmul.f32 %v240, %v281
      %v299 = vmul.f32 %v241, %v281
      %v300 = vmul.f32 %v242, %v281
      %v301 = vmul.f32 %v243, %v281
      %v302 = vmul.f32 %v244, %v281
      %v303 = vmul.f32 %v245, %v281
      %v304 = vmul.f32 %v246, %v281
      %v305 = vmul.f32 %v247, %v281
      %v306 = vmul.f32 %v248, %v281
      %v307 = vmul.f32 %v249, %v281
      %v308 = vmul.f32 %v250, %v281
      %v309 = vmul.f32 %v251, %v281
      %v310 = vmul.f32 %v252, %v281
      %v311 = vmul.f32 %v253, %v281
      %v312 = vmul.f32 %v254, %v281
      %v313 = vmul.f32 %v255, %v281
      %v314 = vmul.f32 %v256, %v281
      %v315 = vmul.f32 %v257, %v281
      %v316 = vmul.f32 %v258, %v281
      %v317 = vmul.f32 %v259, %v281
      %v318 = vmul.f32 %v260, %v281
      %v319 = vld [vmem:[%s4] sm:$0x1]
      %v321 = vlaneseq
      %v322 = vshrl.u32 %v321, 7
      %v323 = vsub.s32 0, %v322
      %v324 = vrot.slane %v319, %v323
      %v326 = vadd.f32 %v283, %v324
      %v327 = vadd.f32 %v284, %v324
      %v328 = vadd.f32 %v285, %v324
      %v329 = vadd.f32 %v286, %v324
      %v330 = vadd.f32 %v287, %v324
      %v331 = vadd.f32 %v288, %v324
      %v332 = vadd.f32 %v289, %v324
      %v333 = vadd.f32 %v290, %v324
      %v334 = vadd.f32 %v291, %v324
      %v335 = vadd.f32 %v292, %v324
      %v336 = vadd.f32 %v293, %v324
      %v337 = vadd.f32 %v294, %v324
      %v338 = vadd.f32 %v295, %v324
      %v339 = vadd.f32 %v296, %v324
      %v340 = vadd.f32 %v297, %v324
      %v341 = vadd.f32 %v298, %v324
      %v342 = vadd.f32 %v299, %v324
      %v343 = vadd.f32 %v300, %v324
      %v344 = vadd.f32 %v301, %v324
      %v345 = vadd.f32 %v302, %v324
      %v346 = vadd.f32 %v303, %v324
      %v347 = vadd.f32 %v304, %v324
      %v348 = vadd.f32 %v305, %v324
      %v349 = vadd.f32 %v306, %v324
      %v350 = vadd.f32 %v307, %v324
      %v351 = vadd.f32 %v308, %v324
      %v352 = vadd.f32 %v309, %v324
      %v353 = vadd.f32 %v310, %v324
      %v354 = vadd.f32 %v311, %v324
      %v355 = vadd.f32 %v312, %v324
      %v356 = vadd.f32 %v313, %v324
      %v357 = vadd.f32 %v314, %v324
      %v358 = vadd.f32 %v315, %v324
      %v359 = vadd.f32 %v316, %v324
      %v360 = vadd.f32 %v317, %v324
      %v361 = vadd.f32 %v318, %v324
      %v362 = vsel %vm272, %v326, 0.0
      %v363 = vsel %vm273, %v327, 0.0
      %v364 = vsel %vm274, %v328, 0.0
      %v365 = vsel %vm275, %v329, 0.0
      %v366 = vsel %vm274, %v330, 0.0
      %v367 = vsel %vm275, %v331, 0.0
      %v368 = vsel %vm274, %v332, 0.0
      %v369 = vsel %vm275, %v333, 0.0
      %v370 = vsel %vm274, %v334, 0.0
      %v371 = vsel %vm275, %v335, 0.0
      %v372 = vsel %vm274, %v336, 0.0
      %v373 = vsel %vm275, %v337, 0.0
      %v374 = vsel %vm274, %v338, 0.0
      %v375 = vsel %vm275, %v339, 0.0
      %v376 = vsel %vm274, %v340, 0.0
      %v377 = vsel %vm275, %v341, 0.0
      %v378 = vsel %vm274, %v342, 0.0
      %v379 = vsel %vm275, %v343, 0.0
      %v380 = vsel %vm274, %v344, 0.0
      %v381 = vsel %vm275, %v345, 0.0
      %v382 = vsel %vm274, %v346, 0.0
      %v383 = vsel %vm275, %v347, 0.0
      %v384 = vsel %vm274, %v348, 0.0
      %v385 = vsel %vm275, %v349, 0.0
      %v386 = vsel %vm274, %v350, 0.0
      %v387 = vsel %vm275, %v351, 0.0
      %v388 = vsel %vm274, %v352, 0.0
      %v389 = vsel %vm275, %v353, 0.0
      %v390 = vsel %vm274, %v354, 0.0
      %v391 = vsel %vm275, %v355, 0.0
      %v392 = vsel %vm274, %v356, 0.0
      %v393 = vsel %vm275, %v357, 0.0
      %v394 = vsel %vm274, %v358, 0.0
      %v395 = vsel %vm275, %v359, 0.0
      %v396 = vsel %vm272, %v360, 0.0
      %v397 = vsel %vm273, %v361, 0.0
      %v398 = vld [vmem:[%s1] sm:$0x1]
      %v399 = vld [vmem:[%s1 + $0x1] sm:$0x1]
      %v400 = vld [vmem:[%s1 + $0x2] sm:$0x1]
      %v401 = vld [vmem:[%s1 + $0x3] sm:$0x1]
      %v402 = vld [vmem:[%s1 + $0x4] sm:$0x1]
      %v403 = vld [vmem:[%s1 + $0x5] sm:$0x1]
      %v404 = vld [vmem:[%s1 + $0x6] sm:$0x1]
      %v405 = vld [vmem:[%s1 + $0x7] sm:$0x1]
      %v406 = vld [vmem:[%s1 + $0x8] sm:$0x1]
      %v407 = vld [vmem:[%s2] sm:$0x1]
      %v409 = vlaneseq
      %v410 = vshrl.u32 %v409, 7
      %v411 = vsub.s32 0, %v410
      %v412 = vrot.slane %v407, %v411
      %v414 = vadd.f32 %v412, 0.0
      %v416 = vlaneseq
      %v417 = vshrl.u32 %v416, 7
      %v418 = vsub.s32 0, %v417
      %v419 = vrot.slane %v398, %v418
      %v421 = vmul.f32 %v362, %v419
      %v422 = vmul.f32 %v363, %v419
      %v423 = vmul.f32 %v364, %v419
      %v424 = vmul.f32 %v365, %v419
      %v425 = vmul.f32 %v366, %v419
      %v426 = vmul.f32 %v367, %v419
      %v427 = vmul.f32 %v368, %v419
      %v428 = vmul.f32 %v369, %v419
      %v429 = vmul.f32 %v370, %v419
      %v430 = vmul.f32 %v371, %v419
      %v431 = vmul.f32 %v372, %v419
      %v432 = vmul.f32 %v373, %v419
      %v433 = vmul.f32 %v374, %v419
      %v434 = vmul.f32 %v375, %v419
      %v435 = vmul.f32 %v376, %v419
      %v436 = vmul.f32 %v377, %v419
      %v437 = vmul.f32 %v378, %v419
      %v438 = vmul.f32 %v379, %v419
      %v439 = vmul.f32 %v380, %v419
      %v440 = vmul.f32 %v381, %v419
      %v441 = vmul.f32 %v382, %v419
      %v442 = vmul.f32 %v383, %v419
      %v443 = vmul.f32 %v384, %v419
      %v444 = vmul.f32 %v385, %v419
      %v445 = vmul.f32 %v386, %v419
      %v446 = vmul.f32 %v387, %v419
      %v447 = vmul.f32 %v388, %v419
      %v448 = vmul.f32 %v389, %v419
      %v449 = vmul.f32 %v390, %v419
      %v450 = vmul.f32 %v391, %v419
      %v451 = vmul.f32 %v392, %v419
      %v452 = vmul.f32 %v393, %v419
      %v453 = vadd.f32 %v414, %v421
      %v454 = vadd.f32 %v414, %v422
      %v455 = vadd.f32 %v414, %v423
      %v456 = vadd.f32 %v414, %v424
      %v457 = vadd.f32 %v414, %v425
      %v458 = vadd.f32 %v414, %v426
      %v459 = vadd.f32 %v414, %v427
      %v460 = vadd.f32 %v414, %v428
      %v461 = vadd.f32 %v414, %v429
      %v462 = vadd.f32 %v414, %v430
      %v463 = vadd.f32 %v414, %v431
      %v464 = vadd.f32 %v414, %v432
      %v465 = vadd.f32 %v414, %v433
      %v466 = vadd.f32 %v414, %v434
      %v467 = vadd.f32 %v414, %v435
      %v468 = vadd.f32 %v414, %v436
      %v469 = vadd.f32 %v414, %v437
      %v470 = vadd.f32 %v414, %v438
      %v471 = vadd.f32 %v414, %v439
      %v472 = vadd.f32 %v414, %v440
      %v473 = vadd.f32 %v414, %v441
      %v474 = vadd.f32 %v414, %v442
      %v475 = vadd.f32 %v414, %v443
      %v476 = vadd.f32 %v414, %v444
      %v477 = vadd.f32 %v414, %v445
      %v478 = vadd.f32 %v414, %v446
      %v479 = vadd.f32 %v414, %v447
      %v480 = vadd.f32 %v414, %v448
      %v481 = vadd.f32 %v414, %v449
      %v482 = vadd.f32 %v414, %v450
      %v483 = vadd.f32 %v414, %v451
      %v484 = vadd.f32 %v414, %v452
      %v486 = vlaneseq
      %v487 = vshrl.u32 %v486, 7
      %v488 = vsub.s32 0, %v487
      %v489 = vrot.slane %v399, %v488
      %v491 = vmul.f32 %v362, %v489
      %v492 = vmul.f32 %v363, %v489
      %v493 = vmul.f32 %v364, %v489
      %v494 = vmul.f32 %v365, %v489
      %v495 = vmul.f32 %v366, %v489
      %v496 = vmul.f32 %v367, %v489
      %v497 = vmul.f32 %v368, %v489
      %v498 = vmul.f32 %v369, %v489
      %v499 = vmul.f32 %v370, %v489
      %v500 = vmul.f32 %v371, %v489
      %v501 = vmul.f32 %v372, %v489
      %v502 = vmul.f32 %v373, %v489
      %v503 = vmul.f32 %v374, %v489
      %v504 = vmul.f32 %v375, %v489
      %v505 = vmul.f32 %v376, %v489
      %v506 = vmul.f32 %v377, %v489
      %v507 = vmul.f32 %v378, %v489
      %v508 = vmul.f32 %v379, %v489
      %v509 = vmul.f32 %v380, %v489
      %v510 = vmul.f32 %v381, %v489
      %v511 = vmul.f32 %v382, %v489
      %v512 = vmul.f32 %v383, %v489
      %v513 = vmul.f32 %v384, %v489
      %v514 = vmul.f32 %v385, %v489
      %v515 = vmul.f32 %v386, %v489
      %v516 = vmul.f32 %v387, %v489
      %v517 = vmul.f32 %v388, %v489
      %v518 = vmul.f32 %v389, %v489
      %v519 = vmul.f32 %v390, %v489
      %v520 = vmul.f32 %v391, %v489
      %v521 = vmul.f32 %v392, %v489
      %v522 = vmul.f32 %v393, %v489
      %vm555 = vcmask 1046528
      %v556 = vrot.slane %v491, 1
      %v557 = vrot.slane %v492, 1
      %v558 = vsel %vm555, %v556, %v557
      %v559 = vrot.slane %v493, 1
      %v560 = vrot.slane %v494, 1
      %v561 = vsel %vm555, %v559, %v560
      %v562 = vrot.slane %v495, 1
      %v563 = vrot.slane %v496, 1
      %v564 = vsel %vm555, %v562, %v563
      %v565 = vrot.slane %v497, 1
      %v566 = vrot.slane %v498, 1
      %v567 = vsel %vm555, %v565, %v566
      %v568 = vrot.slane %v499, 1
      %v569 = vrot.slane %v500, 1
      %v570 = vsel %vm555, %v568, %v569
      %v571 = vrot.slane %v501, 1
      %v572 = vrot.slane %v502, 1
      %v573 = vsel %vm555, %v571, %v572
      %v574 = vrot.slane %v503, 1
      %v575 = vrot.slane %v504, 1
      %v576 = vsel %vm555, %v574, %v575
      %v577 = vrot.slane %v505, 1
      %v578 = vrot.slane %v506, 1
      %v579 = vsel %vm555, %v577, %v578
      %v580 = vrot.slane %v507, 1
      %v581 = vrot.slane %v508, 1
      %v582 = vsel %vm555, %v580, %v581
      %v583 = vrot.slane %v509, 1
      %v584 = vrot.slane %v510, 1
      %v585 = vsel %vm555, %v583, %v584
      %v586 = vrot.slane %v511, 1
      %v587 = vrot.slane %v512, 1
      %v588 = vsel %vm555, %v586, %v587
      %v589 = vrot.slane %v513, 1
      %v590 = vrot.slane %v514, 1
      %v591 = vsel %vm555, %v589, %v590
      %v592 = vrot.slane %v515, 1
      %v593 = vrot.slane %v516, 1
      %v594 = vsel %vm555, %v592, %v593
      %v595 = vrot.slane %v517, 1
      %v596 = vrot.slane %v518, 1
      %v597 = vsel %vm555, %v595, %v596
      %v598 = vrot.slane %v519, 1
      %v599 = vrot.slane %v520, 1
      %v600 = vsel %vm555, %v598, %v599
      %v601 = vrot.slane %v521, 1
      %v602 = vrot.slane %v522, 1
      %v603 = vsel %vm555, %v601, %v602
      %v636 = vadd.f32 %v453, %v558
      %v637 = vadd.f32 %v454, %v557
      %v638 = vadd.f32 %v455, %v561
      %v639 = vadd.f32 %v456, %v560
      %v640 = vadd.f32 %v457, %v564
      %v641 = vadd.f32 %v458, %v563
      %v642 = vadd.f32 %v459, %v567
      %v643 = vadd.f32 %v460, %v566
      %v644 = vadd.f32 %v461, %v570
      %v645 = vadd.f32 %v462, %v569
      %v646 = vadd.f32 %v463, %v573
      %v647 = vadd.f32 %v464, %v572
      %v648 = vadd.f32 %v465, %v576
      %v649 = vadd.f32 %v466, %v575
      %v650 = vadd.f32 %v467, %v579
      %v651 = vadd.f32 %v468, %v578
      %v652 = vadd.f32 %v469, %v582
      %v653 = vadd.f32 %v470, %v581
      %v654 = vadd.f32 %v471, %v585
      %v655 = vadd.f32 %v472, %v584
      %v656 = vadd.f32 %v473, %v588
      %v657 = vadd.f32 %v474, %v587
      %v658 = vadd.f32 %v475, %v591
      %v659 = vadd.f32 %v476, %v590
      %v660 = vadd.f32 %v477, %v594
      %v661 = vadd.f32 %v478, %v593
      %v662 = vadd.f32 %v479, %v597
      %v663 = vadd.f32 %v480, %v596
      %v664 = vadd.f32 %v481, %v600
      %v665 = vadd.f32 %v482, %v599
      %v666 = vadd.f32 %v483, %v603
      %v667 = vadd.f32 %v484, %v602
      %v669 = vlaneseq
      %v670 = vshrl.u32 %v669, 7
      %v671 = vsub.s32 0, %v670
      %v672 = vrot.slane %v400, %v671
      %v674 = vmul.f32 %v362, %v672
      %v675 = vmul.f32 %v363, %v672
      %v676 = vmul.f32 %v364, %v672
      %v677 = vmul.f32 %v365, %v672
      %v678 = vmul.f32 %v366, %v672
      %v679 = vmul.f32 %v367, %v672
      %v680 = vmul.f32 %v368, %v672
      %v681 = vmul.f32 %v369, %v672
      %v682 = vmul.f32 %v370, %v672
      %v683 = vmul.f32 %v371, %v672
      %v684 = vmul.f32 %v372, %v672
      %v685 = vmul.f32 %v373, %v672
      %v686 = vmul.f32 %v374, %v672
      %v687 = vmul.f32 %v375, %v672
      %v688 = vmul.f32 %v376, %v672
      %v689 = vmul.f32 %v377, %v672
      %v690 = vmul.f32 %v378, %v672
      %v691 = vmul.f32 %v379, %v672
      %v692 = vmul.f32 %v380, %v672
      %v693 = vmul.f32 %v381, %v672
      %v694 = vmul.f32 %v382, %v672
      %v695 = vmul.f32 %v383, %v672
      %v696 = vmul.f32 %v384, %v672
      %v697 = vmul.f32 %v385, %v672
      %v698 = vmul.f32 %v386, %v672
      %v699 = vmul.f32 %v387, %v672
      %v700 = vmul.f32 %v388, %v672
      %v701 = vmul.f32 %v389, %v672
      %v702 = vmul.f32 %v390, %v672
      %v703 = vmul.f32 %v391, %v672
      %v704 = vmul.f32 %v392, %v672
      %v705 = vmul.f32 %v393, %v672
      %vm738 = vcmask 1045504
      %v739 = vrot.slane %v674, 2
      %v740 = vrot.slane %v675, 2
      %v741 = vsel %vm738, %v739, %v740
      %v742 = vrot.slane %v676, 2
      %v743 = vrot.slane %v677, 2
      %v744 = vsel %vm738, %v742, %v743
      %v745 = vrot.slane %v678, 2
      %v746 = vrot.slane %v679, 2
      %v747 = vsel %vm738, %v745, %v746
      %v748 = vrot.slane %v680, 2
      %v749 = vrot.slane %v681, 2
      %v750 = vsel %vm738, %v748, %v749
      %v751 = vrot.slane %v682, 2
      %v752 = vrot.slane %v683, 2
      %v753 = vsel %vm738, %v751, %v752
      %v754 = vrot.slane %v684, 2
      %v755 = vrot.slane %v685, 2
      %v756 = vsel %vm738, %v754, %v755
      %v757 = vrot.slane %v686, 2
      %v758 = vrot.slane %v687, 2
      %v759 = vsel %vm738, %v757, %v758
      %v760 = vrot.slane %v688, 2
      %v761 = vrot.slane %v689, 2
      %v762 = vsel %vm738, %v760, %v761
      %v763 = vrot.slane %v690, 2
      %v764 = vrot.slane %v691, 2
      %v765 = vsel %vm738, %v763, %v764
      %v766 = vrot.slane %v692, 2
      %v767 = vrot.slane %v693, 2
      %v768 = vsel %vm738, %v766, %v767
      %v769 = vrot.slane %v694, 2
      %v770 = vrot.slane %v695, 2
      %v771 = vsel %vm738, %v769, %v770
      %v772 = vrot.slane %v696, 2
      %v773 = vrot.slane %v697, 2
      %v774 = vsel %vm738, %v772, %v773
      %v775 = vrot.slane %v698, 2
      %v776 = vrot.slane %v699, 2
      %v777 = vsel %vm738, %v775, %v776
      %v778 = vrot.slane %v700, 2
      %v779 = vrot.slane %v701, 2
      %v780 = vsel %vm738, %v778, %v779
      %v781 = vrot.slane %v702, 2
      %v782 = vrot.slane %v703, 2
      %v783 = vsel %vm738, %v781, %v782
      %v784 = vrot.slane %v704, 2
      %v785 = vrot.slane %v705, 2
      %v786 = vsel %vm738, %v784, %v785
      %v819 = vadd.f32 %v636, %v741
      %v820 = vadd.f32 %v637, %v740
      %v821 = vadd.f32 %v638, %v744
      %v822 = vadd.f32 %v639, %v743
      %v823 = vadd.f32 %v640, %v747
      %v824 = vadd.f32 %v641, %v746
      %v825 = vadd.f32 %v642, %v750
      %v826 = vadd.f32 %v643, %v749
      %v827 = vadd.f32 %v644, %v753
      %v828 = vadd.f32 %v645, %v752
      %v829 = vadd.f32 %v646, %v756
      %v830 = vadd.f32 %v647, %v755
      %v831 = vadd.f32 %v648, %v759
      %v832 = vadd.f32 %v649, %v758
      %v833 = vadd.f32 %v650, %v762
      %v834 = vadd.f32 %v651, %v761
      %v835 = vadd.f32 %v652, %v765
      %v836 = vadd.f32 %v653, %v764
      %v837 = vadd.f32 %v654, %v768
      %v838 = vadd.f32 %v655, %v767
      %v839 = vadd.f32 %v656, %v771
      %v840 = vadd.f32 %v657, %v770
      %v841 = vadd.f32 %v658, %v774
      %v842 = vadd.f32 %v659, %v773
      %v843 = vadd.f32 %v660, %v777
      %v844 = vadd.f32 %v661, %v776
      %v845 = vadd.f32 %v662, %v780
      %v846 = vadd.f32 %v663, %v779
      %v847 = vadd.f32 %v664, %v783
      %v848 = vadd.f32 %v665, %v782
      %v849 = vadd.f32 %v666, %v786
      %v850 = vadd.f32 %v667, %v785
      %v852 = vlaneseq
      %v853 = vshrl.u32 %v852, 7
      %v854 = vsub.s32 0, %v853
      %v855 = vrot.slane %v401, %v854
      %v857 = vmul.f32 %v364, %v855
      %v858 = vmul.f32 %v365, %v855
      %v859 = vmul.f32 %v366, %v855
      %v860 = vmul.f32 %v367, %v855
      %v861 = vmul.f32 %v368, %v855
      %v862 = vmul.f32 %v369, %v855
      %v863 = vmul.f32 %v370, %v855
      %v864 = vmul.f32 %v371, %v855
      %v865 = vmul.f32 %v372, %v855
      %v866 = vmul.f32 %v373, %v855
      %v867 = vmul.f32 %v374, %v855
      %v868 = vmul.f32 %v375, %v855
      %v869 = vmul.f32 %v376, %v855
      %v870 = vmul.f32 %v377, %v855
      %v871 = vmul.f32 %v378, %v855
      %v872 = vmul.f32 %v379, %v855
      %v873 = vmul.f32 %v380, %v855
      %v874 = vmul.f32 %v381, %v855
      %v875 = vmul.f32 %v382, %v855
      %v876 = vmul.f32 %v383, %v855
      %v877 = vmul.f32 %v384, %v855
      %v878 = vmul.f32 %v385, %v855
      %v879 = vmul.f32 %v386, %v855
      %v880 = vmul.f32 %v387, %v855
      %v881 = vmul.f32 %v388, %v855
      %v882 = vmul.f32 %v389, %v855
      %v883 = vmul.f32 %v390, %v855
      %v884 = vmul.f32 %v391, %v855
      %v885 = vmul.f32 %v392, %v855
      %v886 = vmul.f32 %v393, %v855
      %v887 = vmul.f32 %v394, %v855
      %v888 = vmul.f32 %v395, %v855
      %v889 = vadd.f32 %v819, %v857
      %v890 = vadd.f32 %v820, %v858
      %v891 = vadd.f32 %v821, %v859
      %v892 = vadd.f32 %v822, %v860
      %v893 = vadd.f32 %v823, %v861
      %v894 = vadd.f32 %v824, %v862
      %v895 = vadd.f32 %v825, %v863
      %v896 = vadd.f32 %v826, %v864
      %v897 = vadd.f32 %v827, %v865
      %v898 = vadd.f32 %v828, %v866
      %v899 = vadd.f32 %v829, %v867
      %v900 = vadd.f32 %v830, %v868
      %v901 = vadd.f32 %v831, %v869
      %v902 = vadd.f32 %v832, %v870
      %v903 = vadd.f32 %v833, %v871
      %v904 = vadd.f32 %v834, %v872
      %v905 = vadd.f32 %v835, %v873
      %v906 = vadd.f32 %v836, %v874
      %v907 = vadd.f32 %v837, %v875
      %v908 = vadd.f32 %v838, %v876
      %v909 = vadd.f32 %v839, %v877
      %v910 = vadd.f32 %v840, %v878
      %v911 = vadd.f32 %v841, %v879
      %v912 = vadd.f32 %v842, %v880
      %v913 = vadd.f32 %v843, %v881
      %v914 = vadd.f32 %v844, %v882
      %v915 = vadd.f32 %v845, %v883
      %v916 = vadd.f32 %v846, %v884
      %v917 = vadd.f32 %v847, %v885
      %v918 = vadd.f32 %v848, %v886
      %v919 = vadd.f32 %v849, %v887
      %v920 = vadd.f32 %v850, %v888
      %v922 = vlaneseq
      %v923 = vshrl.u32 %v922, 7
      %v924 = vsub.s32 0, %v923
      %v925 = vrot.slane %v402, %v924
      %v927 = vmul.f32 %v364, %v925
      %v928 = vmul.f32 %v365, %v925
      %v929 = vmul.f32 %v366, %v925
      %v930 = vmul.f32 %v367, %v925
      %v931 = vmul.f32 %v368, %v925
      %v932 = vmul.f32 %v369, %v925
      %v933 = vmul.f32 %v370, %v925
      %v934 = vmul.f32 %v371, %v925
      %v935 = vmul.f32 %v372, %v925
      %v936 = vmul.f32 %v373, %v925
      %v937 = vmul.f32 %v374, %v925
      %v938 = vmul.f32 %v375, %v925
      %v939 = vmul.f32 %v376, %v925
      %v940 = vmul.f32 %v377, %v925
      %v941 = vmul.f32 %v378, %v925
      %v942 = vmul.f32 %v379, %v925
      %v943 = vmul.f32 %v380, %v925
      %v944 = vmul.f32 %v381, %v925
      %v945 = vmul.f32 %v382, %v925
      %v946 = vmul.f32 %v383, %v925
      %v947 = vmul.f32 %v384, %v925
      %v948 = vmul.f32 %v385, %v925
      %v949 = vmul.f32 %v386, %v925
      %v950 = vmul.f32 %v387, %v925
      %v951 = vmul.f32 %v388, %v925
      %v952 = vmul.f32 %v389, %v925
      %v953 = vmul.f32 %v390, %v925
      %v954 = vmul.f32 %v391, %v925
      %v955 = vmul.f32 %v392, %v925
      %v956 = vmul.f32 %v393, %v925
      %v957 = vmul.f32 %v394, %v925
      %v958 = vmul.f32 %v395, %v925
      %v991 = vrot.slane %v927, 1
      %v992 = vrot.slane %v928, 1
      %v993 = vsel %vm555, %v991, %v992
      %v994 = vrot.slane %v929, 1
      %v995 = vrot.slane %v930, 1
      %v996 = vsel %vm555, %v994, %v995
      %v997 = vrot.slane %v931, 1
      %v998 = vrot.slane %v932, 1
      %v999 = vsel %vm555, %v997, %v998
      %v1000 = vrot.slane %v933, 1
      %v1001 = vrot.slane %v934, 1
      %v1002 = vsel %vm555, %v1000, %v1001
      %v1003 = vrot.slane %v935, 1
      %v1004 = vrot.slane %v936, 1
      %v1005 = vsel %vm555, %v1003, %v1004
      %v1006 = vrot.slane %v937, 1
      %v1007 = vrot.slane %v938, 1
      %v1008 = vsel %vm555, %v1006, %v1007
      %v1009 = vrot.slane %v939, 1
      %v1010 = vrot.slane %v940, 1
      %v1011 = vsel %vm555, %v1009, %v1010
      %v1012 = vrot.slane %v941, 1
      %v1013 = vrot.slane %v942, 1
      %v1014 = vsel %vm555, %v1012, %v1013
      %v1015 = vrot.slane %v943, 1
      %v1016 = vrot.slane %v944, 1
      %v1017 = vsel %vm555, %v1015, %v1016
      %v1018 = vrot.slane %v945, 1
      %v1019 = vrot.slane %v946, 1
      %v1020 = vsel %vm555, %v1018, %v1019
      %v1021 = vrot.slane %v947, 1
      %v1022 = vrot.slane %v948, 1
      %v1023 = vsel %vm555, %v1021, %v1022
      %v1024 = vrot.slane %v949, 1
      %v1025 = vrot.slane %v950, 1
      %v1026 = vsel %vm555, %v1024, %v1025
      %v1027 = vrot.slane %v951, 1
      %v1028 = vrot.slane %v952, 1
      %v1029 = vsel %vm555, %v1027, %v1028
      %v1030 = vrot.slane %v953, 1
      %v1031 = vrot.slane %v954, 1
      %v1032 = vsel %vm555, %v1030, %v1031
      %v1033 = vrot.slane %v955, 1
      %v1034 = vrot.slane %v956, 1
      %v1035 = vsel %vm555, %v1033, %v1034
      %v1036 = vrot.slane %v957, 1
      %v1037 = vrot.slane %v958, 1
      %v1038 = vsel %vm555, %v1036, %v1037
      %v1071 = vadd.f32 %v889, %v993
      %v1072 = vadd.f32 %v890, %v992
      %v1073 = vadd.f32 %v891, %v996
      %v1074 = vadd.f32 %v892, %v995
      %v1075 = vadd.f32 %v893, %v999
      %v1076 = vadd.f32 %v894, %v998
      %v1077 = vadd.f32 %v895, %v1002
      %v1078 = vadd.f32 %v896, %v1001
      %v1079 = vadd.f32 %v897, %v1005
      %v1080 = vadd.f32 %v898, %v1004
      %v1081 = vadd.f32 %v899, %v1008
      %v1082 = vadd.f32 %v900, %v1007
      %v1083 = vadd.f32 %v901, %v1011
      %v1084 = vadd.f32 %v902, %v1010
      %v1085 = vadd.f32 %v903, %v1014
      %v1086 = vadd.f32 %v904, %v1013
      %v1087 = vadd.f32 %v905, %v1017
      %v1088 = vadd.f32 %v906, %v1016
      %v1089 = vadd.f32 %v907, %v1020
      %v1090 = vadd.f32 %v908, %v1019
      %v1091 = vadd.f32 %v909, %v1023
      %v1092 = vadd.f32 %v910, %v1022
      %v1093 = vadd.f32 %v911, %v1026
      %v1094 = vadd.f32 %v912, %v1025
      %v1095 = vadd.f32 %v913, %v1029
      %v1096 = vadd.f32 %v914, %v1028
      %v1097 = vadd.f32 %v915, %v1032
      %v1098 = vadd.f32 %v916, %v1031
      %v1099 = vadd.f32 %v917, %v1035
      %v1100 = vadd.f32 %v918, %v1034
      %v1101 = vadd.f32 %v919, %v1038
      %v1102 = vadd.f32 %v920, %v1037
      %v1104 = vlaneseq
      %v1105 = vshrl.u32 %v1104, 7
      %v1106 = vsub.s32 0, %v1105
      %v1107 = vrot.slane %v403, %v1106
      %v1109 = vmul.f32 %v364, %v1107
      %v1110 = vmul.f32 %v365, %v1107
      %v1111 = vmul.f32 %v366, %v1107
      %v1112 = vmul.f32 %v367, %v1107
      %v1113 = vmul.f32 %v368, %v1107
      %v1114 = vmul.f32 %v369, %v1107
      %v1115 = vmul.f32 %v370, %v1107
      %v1116 = vmul.f32 %v371, %v1107
      %v1117 = vmul.f32 %v372, %v1107
      %v1118 = vmul.f32 %v373, %v1107
      %v1119 = vmul.f32 %v374, %v1107
      %v1120 = vmul.f32 %v375, %v1107
      %v1121 = vmul.f32 %v376, %v1107
      %v1122 = vmul.f32 %v377, %v1107
      %v1123 = vmul.f32 %v378, %v1107
      %v1124 = vmul.f32 %v379, %v1107
      %v1125 = vmul.f32 %v380, %v1107
      %v1126 = vmul.f32 %v381, %v1107
      %v1127 = vmul.f32 %v382, %v1107
      %v1128 = vmul.f32 %v383, %v1107
      %v1129 = vmul.f32 %v384, %v1107
      %v1130 = vmul.f32 %v385, %v1107
      %v1131 = vmul.f32 %v386, %v1107
      %v1132 = vmul.f32 %v387, %v1107
      %v1133 = vmul.f32 %v388, %v1107
      %v1134 = vmul.f32 %v389, %v1107
      %v1135 = vmul.f32 %v390, %v1107
      %v1136 = vmul.f32 %v391, %v1107
      %v1137 = vmul.f32 %v392, %v1107
      %v1138 = vmul.f32 %v393, %v1107
      %v1139 = vmul.f32 %v394, %v1107
      %v1140 = vmul.f32 %v395, %v1107
      %v1173 = vrot.slane %v1109, 2
      %v1174 = vrot.slane %v1110, 2
      %v1175 = vsel %vm738, %v1173, %v1174
      %v1176 = vrot.slane %v1111, 2
      %v1177 = vrot.slane %v1112, 2
      %v1178 = vsel %vm738, %v1176, %v1177
      %v1179 = vrot.slane %v1113, 2
      %v1180 = vrot.slane %v1114, 2
      %v1181 = vsel %vm738, %v1179, %v1180
      %v1182 = vrot.slane %v1115, 2
      %v1183 = vrot.slane %v1116, 2
      %v1184 = vsel %vm738, %v1182, %v1183
      %v1185 = vrot.slane %v1117, 2
      %v1186 = vrot.slane %v1118, 2
      %v1187 = vsel %vm738, %v1185, %v1186
      %v1188 = vrot.slane %v1119, 2
      %v1189 = vrot.slane %v1120, 2
      %v1190 = vsel %vm738, %v1188, %v1189
      %v1191 = vrot.slane %v1121, 2
      %v1192 = vrot.slane %v1122, 2
      %v1193 = vsel %vm738, %v1191, %v1192
      %v1194 = vrot.slane %v1123, 2
      %v1195 = vrot.slane %v1124, 2
      %v1196 = vsel %vm738, %v1194, %v1195
      %v1197 = vrot.slane %v1125, 2
      %v1198 = vrot.slane %v1126, 2
      %v1199 = vsel %vm738, %v1197, %v1198
      %v1200 = vrot.slane %v1127, 2
      %v1201 = vrot.slane %v1128, 2
      %v1202 = vsel %vm738, %v1200, %v1201
      %v1203 = vrot.slane %v1129, 2
      %v1204 = vrot.slane %v1130, 2
      %v1205 = vsel %vm738, %v1203, %v1204
      %v1206 = vrot.slane %v1131, 2
      %v1207 = vrot.slane %v1132, 2
      %v1208 = vsel %vm738, %v1206, %v1207
      %v1209 = vrot.slane %v1133, 2
      %v1210 = vrot.slane %v1134, 2
      %v1211 = vsel %vm738, %v1209, %v1210
      %v1212 = vrot.slane %v1135, 2
      %v1213 = vrot.slane %v1136, 2
      %v1214 = vsel %vm738, %v1212, %v1213
      %v1215 = vrot.slane %v1137, 2
      %v1216 = vrot.slane %v1138, 2
      %v1217 = vsel %vm738, %v1215, %v1216
      %v1218 = vrot.slane %v1139, 2
      %v1219 = vrot.slane %v1140, 2
      %v1220 = vsel %vm738, %v1218, %v1219
      %v1253 = vadd.f32 %v1071, %v1175
      %v1254 = vadd.f32 %v1072, %v1174
      %v1255 = vadd.f32 %v1073, %v1178
      %v1256 = vadd.f32 %v1074, %v1177
      %v1257 = vadd.f32 %v1075, %v1181
      %v1258 = vadd.f32 %v1076, %v1180
      %v1259 = vadd.f32 %v1077, %v1184
      %v1260 = vadd.f32 %v1078, %v1183
      %v1261 = vadd.f32 %v1079, %v1187
      %v1262 = vadd.f32 %v1080, %v1186
      %v1263 = vadd.f32 %v1081, %v1190
      %v1264 = vadd.f32 %v1082, %v1189
      %v1265 = vadd.f32 %v1083, %v1193
      %v1266 = vadd.f32 %v1084, %v1192
      %v1267 = vadd.f32 %v1085, %v1196
      %v1268 = vadd.f32 %v1086, %v1195
      %v1269 = vadd.f32 %v1087, %v1199
      %v1270 = vadd.f32 %v1088, %v1198
      %v1271 = vadd.f32 %v1089, %v1202
      %v1272 = vadd.f32 %v1090, %v1201
      %v1273 = vadd.f32 %v1091, %v1205
      %v1274 = vadd.f32 %v1092, %v1204
      %v1275 = vadd.f32 %v1093, %v1208
      %v1276 = vadd.f32 %v1094, %v1207
      %v1277 = vadd.f32 %v1095, %v1211
      %v1278 = vadd.f32 %v1096, %v1210
      %v1279 = vadd.f32 %v1097, %v1214
      %v1280 = vadd.f32 %v1098, %v1213
      %v1281 = vadd.f32 %v1099, %v1217
      %v1282 = vadd.f32 %v1100, %v1216
      %v1283 = vadd.f32 %v1101, %v1220
      %v1284 = vadd.f32 %v1102, %v1219
      %v1286 = vlaneseq
      %v1287 = vshrl.u32 %v1286, 7
      %v1288 = vsub.s32 0, %v1287
      %v1289 = vrot.slane %v404, %v1288
      %v1291 = vmul.f32 %v366, %v1289
      %v1292 = vmul.f32 %v367, %v1289
      %v1293 = vmul.f32 %v368, %v1289
      %v1294 = vmul.f32 %v369, %v1289
      %v1295 = vmul.f32 %v370, %v1289
      %v1296 = vmul.f32 %v371, %v1289
      %v1297 = vmul.f32 %v372, %v1289
      %v1298 = vmul.f32 %v373, %v1289
      %v1299 = vmul.f32 %v374, %v1289
      %v1300 = vmul.f32 %v375, %v1289
      %v1301 = vmul.f32 %v376, %v1289
      %v1302 = vmul.f32 %v377, %v1289
      %v1303 = vmul.f32 %v378, %v1289
      %v1304 = vmul.f32 %v379, %v1289
      %v1305 = vmul.f32 %v380, %v1289
      %v1306 = vmul.f32 %v381, %v1289
      %v1307 = vmul.f32 %v382, %v1289
      %v1308 = vmul.f32 %v383, %v1289
      %v1309 = vmul.f32 %v384, %v1289
      %v1310 = vmul.f32 %v385, %v1289
      %v1311 = vmul.f32 %v386, %v1289
      %v1312 = vmul.f32 %v387, %v1289
      %v1313 = vmul.f32 %v388, %v1289
      %v1314 = vmul.f32 %v389, %v1289
      %v1315 = vmul.f32 %v390, %v1289
      %v1316 = vmul.f32 %v391, %v1289
      %v1317 = vmul.f32 %v392, %v1289
      %v1318 = vmul.f32 %v393, %v1289
      %v1319 = vmul.f32 %v394, %v1289
      %v1320 = vmul.f32 %v395, %v1289
      %v1321 = vmul.f32 %v396, %v1289
      %v1322 = vmul.f32 %v397, %v1289
      %v1323 = vadd.f32 %v1253, %v1291
      %v1324 = vadd.f32 %v1254, %v1292
      %v1325 = vadd.f32 %v1255, %v1293
      %v1326 = vadd.f32 %v1256, %v1294
      %v1327 = vadd.f32 %v1257, %v1295
      %v1328 = vadd.f32 %v1258, %v1296
      %v1329 = vadd.f32 %v1259, %v1297
      %v1330 = vadd.f32 %v1260, %v1298
      %v1331 = vadd.f32 %v1261, %v1299
      %v1332 = vadd.f32 %v1262, %v1300
      %v1333 = vadd.f32 %v1263, %v1301
      %v1334 = vadd.f32 %v1264, %v1302
      %v1335 = vadd.f32 %v1265, %v1303
      %v1336 = vadd.f32 %v1266, %v1304
      %v1337 = vadd.f32 %v1267, %v1305
      %v1338 = vadd.f32 %v1268, %v1306
      %v1339 = vadd.f32 %v1269, %v1307
      %v1340 = vadd.f32 %v1270, %v1308
      %v1341 = vadd.f32 %v1271, %v1309
      %v1342 = vadd.f32 %v1272, %v1310
      %v1343 = vadd.f32 %v1273, %v1311
      %v1344 = vadd.f32 %v1274, %v1312
      %v1345 = vadd.f32 %v1275, %v1313
      %v1346 = vadd.f32 %v1276, %v1314
      %v1347 = vadd.f32 %v1277, %v1315
      %v1348 = vadd.f32 %v1278, %v1316
      %v1349 = vadd.f32 %v1279, %v1317
      %v1350 = vadd.f32 %v1280, %v1318
      %v1351 = vadd.f32 %v1281, %v1319
      %v1352 = vadd.f32 %v1282, %v1320
      %v1353 = vadd.f32 %v1283, %v1321
      %v1354 = vadd.f32 %v1284, %v1322
      %v1356 = vlaneseq
      %v1357 = vshrl.u32 %v1356, 7
      %v1358 = vsub.s32 0, %v1357
      %v1359 = vrot.slane %v405, %v1358
      %v1361 = vmul.f32 %v366, %v1359
      %v1362 = vmul.f32 %v367, %v1359
      %v1363 = vmul.f32 %v368, %v1359
      %v1364 = vmul.f32 %v369, %v1359
      %v1365 = vmul.f32 %v370, %v1359
      %v1366 = vmul.f32 %v371, %v1359
      %v1367 = vmul.f32 %v372, %v1359
      %v1368 = vmul.f32 %v373, %v1359
      %v1369 = vmul.f32 %v374, %v1359
      %v1370 = vmul.f32 %v375, %v1359
      %v1371 = vmul.f32 %v376, %v1359
      %v1372 = vmul.f32 %v377, %v1359
      %v1373 = vmul.f32 %v378, %v1359
      %v1374 = vmul.f32 %v379, %v1359
      %v1375 = vmul.f32 %v380, %v1359
      %v1376 = vmul.f32 %v381, %v1359
      %v1377 = vmul.f32 %v382, %v1359
      %v1378 = vmul.f32 %v383, %v1359
      %v1379 = vmul.f32 %v384, %v1359
      %v1380 = vmul.f32 %v385, %v1359
      %v1381 = vmul.f32 %v386, %v1359
      %v1382 = vmul.f32 %v387, %v1359
      %v1383 = vmul.f32 %v388, %v1359
      %v1384 = vmul.f32 %v389, %v1359
      %v1385 = vmul.f32 %v390, %v1359
      %v1386 = vmul.f32 %v391, %v1359
      %v1387 = vmul.f32 %v392, %v1359
      %v1388 = vmul.f32 %v393, %v1359
      %v1389 = vmul.f32 %v394, %v1359
      %v1390 = vmul.f32 %v395, %v1359
      %v1391 = vmul.f32 %v396, %v1359
      %v1392 = vmul.f32 %v397, %v1359
      %v1425 = vrot.slane %v1361, 1
      %v1426 = vrot.slane %v1362, 1
      %v1427 = vsel %vm555, %v1425, %v1426
      %v1428 = vrot.slane %v1363, 1
      %v1429 = vrot.slane %v1364, 1
      %v1430 = vsel %vm555, %v1428, %v1429
      %v1431 = vrot.slane %v1365, 1
      %v1432 = vrot.slane %v1366, 1
      %v1433 = vsel %vm555, %v1431, %v1432
      %v1434 = vrot.slane %v1367, 1
      %v1435 = vrot.slane %v1368, 1
      %v1436 = vsel %vm555, %v1434, %v1435
      %v1437 = vrot.slane %v1369, 1
      %v1438 = vrot.slane %v1370, 1
      %v1439 = vsel %vm555, %v1437, %v1438
      %v1440 = vrot.slane %v1371, 1
      %v1441 = vrot.slane %v1372, 1
      %v1442 = vsel %vm555, %v1440, %v1441
      %v1443 = vrot.slane %v1373, 1
      %v1444 = vrot.slane %v1374, 1
      %v1445 = vsel %vm555, %v1443, %v1444
      %v1446 = vrot.slane %v1375, 1
      %v1447 = vrot.slane %v1376, 1
      %v1448 = vsel %vm555, %v1446, %v1447
      %v1449 = vrot.slane %v1377, 1
      %v1450 = vrot.slane %v1378, 1
      %v1451 = vsel %vm555, %v1449, %v1450
      %v1452 = vrot.slane %v1379, 1
      %v1453 = vrot.slane %v1380, 1
      %v1454 = vsel %vm555, %v1452, %v1453
      %v1455 = vrot.slane %v1381, 1
      %v1456 = vrot.slane %v1382, 1
      %v1457 = vsel %vm555, %v1455, %v1456
      %v1458 = vrot.slane %v1383, 1
      %v1459 = vrot.slane %v1384, 1
      %v1460 = vsel %vm555, %v1458, %v1459
      %v1461 = vrot.slane %v1385, 1
      %v1462 = vrot.slane %v1386, 1
      %v1463 = vsel %vm555, %v1461, %v1462
      %v1464 = vrot.slane %v1387, 1
      %v1465 = vrot.slane %v1388, 1
      %v1466 = vsel %vm555, %v1464, %v1465
      %v1467 = vrot.slane %v1389, 1
      %v1468 = vrot.slane %v1390, 1
      %v1469 = vsel %vm555, %v1467, %v1468
      %v1470 = vrot.slane %v1391, 1
      %v1471 = vrot.slane %v1392, 1
      %v1472 = vsel %vm555, %v1470, %v1471
      %v1505 = vadd.f32 %v1323, %v1427
      %v1506 = vadd.f32 %v1324, %v1426
      %v1507 = vadd.f32 %v1325, %v1430
      %v1508 = vadd.f32 %v1326, %v1429
      %v1509 = vadd.f32 %v1327, %v1433
      %v1510 = vadd.f32 %v1328, %v1432
      %v1511 = vadd.f32 %v1329, %v1436
      %v1512 = vadd.f32 %v1330, %v1435
      %v1513 = vadd.f32 %v1331, %v1439
      %v1514 = vadd.f32 %v1332, %v1438
      %v1515 = vadd.f32 %v1333, %v1442
      %v1516 = vadd.f32 %v1334, %v1441
      %v1517 = vadd.f32 %v1335, %v1445
      %v1518 = vadd.f32 %v1336, %v1444
      %v1519 = vadd.f32 %v1337, %v1448
      %v1520 = vadd.f32 %v1338, %v1447
      %v1521 = vadd.f32 %v1339, %v1451
      %v1522 = vadd.f32 %v1340, %v1450
      %v1523 = vadd.f32 %v1341, %v1454
      %v1524 = vadd.f32 %v1342, %v1453
      %v1525 = vadd.f32 %v1343, %v1457
      %v1526 = vadd.f32 %v1344, %v1456
      %v1527 = vadd.f32 %v1345, %v1460
      %v1528 = vadd.f32 %v1346, %v1459
      %v1529 = vadd.f32 %v1347, %v1463
      %v1530 = vadd.f32 %v1348, %v1462
      %v1531 = vadd.f32 %v1349, %v1466
      %v1532 = vadd.f32 %v1350, %v1465
      %v1533 = vadd.f32 %v1351, %v1469
      %v1534 = vadd.f32 %v1352, %v1468
      %v1535 = vadd.f32 %v1353, %v1472
      %v1536 = vadd.f32 %v1354, %v1471
      %v1538 = vlaneseq
      %v1539 = vshrl.u32 %v1538, 7
      %v1540 = vsub.s32 0, %v1539
      %v1541 = vrot.slane %v406, %v1540
      %v1543 = vmul.f32 %v366, %v1541
      %v1544 = vmul.f32 %v367, %v1541
      %v1545 = vmul.f32 %v368, %v1541
      %v1546 = vmul.f32 %v369, %v1541
      %v1547 = vmul.f32 %v370, %v1541
      %v1548 = vmul.f32 %v371, %v1541
      %v1549 = vmul.f32 %v372, %v1541
      %v1550 = vmul.f32 %v373, %v1541
      %v1551 = vmul.f32 %v374, %v1541
      %v1552 = vmul.f32 %v375, %v1541
      %v1553 = vmul.f32 %v376, %v1541
      %v1554 = vmul.f32 %v377, %v1541
      %v1555 = vmul.f32 %v378, %v1541
      %v1556 = vmul.f32 %v379, %v1541
      %v1557 = vmul.f32 %v380, %v1541
      %v1558 = vmul.f32 %v381, %v1541
      %v1559 = vmul.f32 %v382, %v1541
      %v1560 = vmul.f32 %v383, %v1541
      %v1561 = vmul.f32 %v384, %v1541
      %v1562 = vmul.f32 %v385, %v1541
      %v1563 = vmul.f32 %v386, %v1541
      %v1564 = vmul.f32 %v387, %v1541
      %v1565 = vmul.f32 %v388, %v1541
      %v1566 = vmul.f32 %v389, %v1541
      %v1567 = vmul.f32 %v390, %v1541
      %v1568 = vmul.f32 %v391, %v1541
      %v1569 = vmul.f32 %v392, %v1541
      %v1570 = vmul.f32 %v393, %v1541
      %v1571 = vmul.f32 %v394, %v1541
      %v1572 = vmul.f32 %v395, %v1541
      %v1573 = vmul.f32 %v396, %v1541
      %v1574 = vmul.f32 %v397, %v1541
      %v1607 = vrot.slane %v1543, 2
      %v1608 = vrot.slane %v1544, 2
      %v1609 = vsel %vm738, %v1607, %v1608
      %v1610 = vrot.slane %v1545, 2
      %v1611 = vrot.slane %v1546, 2
      %v1612 = vsel %vm738, %v1610, %v1611
      %v1613 = vrot.slane %v1547, 2
      %v1614 = vrot.slane %v1548, 2
      %v1615 = vsel %vm738, %v1613, %v1614
      %v1616 = vrot.slane %v1549, 2
      %v1617 = vrot.slane %v1550, 2
      %v1618 = vsel %vm738, %v1616, %v1617
      %v1619 = vrot.slane %v1551, 2
      %v1620 = vrot.slane %v1552, 2
      %v1621 = vsel %vm738, %v1619, %v1620
      %v1622 = vrot.slane %v1553, 2
      %v1623 = vrot.slane %v1554, 2
      %v1624 = vsel %vm738, %v1622, %v1623
      %v1625 = vrot.slane %v1555, 2
      %v1626 = vrot.slane %v1556, 2
      %v1627 = vsel %vm738, %v1625, %v1626
      %v1628 = vrot.slane %v1557, 2
      %v1629 = vrot.slane %v1558, 2
      %v1630 = vsel %vm738, %v1628, %v1629
      %v1631 = vrot.slane %v1559, 2
      %v1632 = vrot.slane %v1560, 2
      %v1633 = vsel %vm738, %v1631, %v1632
      %v1634 = vrot.slane %v1561, 2
      %v1635 = vrot.slane %v1562, 2
      %v1636 = vsel %vm738, %v1634, %v1635
      %v1637 = vrot.slane %v1563, 2
      %v1638 = vrot.slane %v1564, 2
      %v1639 = vsel %vm738, %v1637, %v1638
      %v1640 = vrot.slane %v1565, 2
      %v1641 = vrot.slane %v1566, 2
      %v1642 = vsel %vm738, %v1640, %v1641
      %v1643 = vrot.slane %v1567, 2
      %v1644 = vrot.slane %v1568, 2
      %v1645 = vsel %vm738, %v1643, %v1644
      %v1646 = vrot.slane %v1569, 2
      %v1647 = vrot.slane %v1570, 2
      %v1648 = vsel %vm738, %v1646, %v1647
      %v1649 = vrot.slane %v1571, 2
      %v1650 = vrot.slane %v1572, 2
      %v1651 = vsel %vm738, %v1649, %v1650
      %v1652 = vrot.slane %v1573, 2
      %v1653 = vrot.slane %v1574, 2
      %v1654 = vsel %vm738, %v1652, %v1653
      %v1687 = vadd.f32 %v1505, %v1609
      %v1688 = vadd.f32 %v1506, %v1608
      %v1689 = vadd.f32 %v1507, %v1612
      %v1690 = vadd.f32 %v1508, %v1611
      %v1691 = vadd.f32 %v1509, %v1615
      %v1692 = vadd.f32 %v1510, %v1614
      %v1693 = vadd.f32 %v1511, %v1618
      %v1694 = vadd.f32 %v1512, %v1617
      %v1695 = vadd.f32 %v1513, %v1621
      %v1696 = vadd.f32 %v1514, %v1620
      %v1697 = vadd.f32 %v1515, %v1624
      %v1698 = vadd.f32 %v1516, %v1623
      %v1699 = vadd.f32 %v1517, %v1627
      %v1700 = vadd.f32 %v1518, %v1626
      %v1701 = vadd.f32 %v1519, %v1630
      %v1702 = vadd.f32 %v1520, %v1629
      %v1703 = vadd.f32 %v1521, %v1633
      %v1704 = vadd.f32 %v1522, %v1632
      %v1705 = vadd.f32 %v1523, %v1636
      %v1706 = vadd.f32 %v1524, %v1635
      %v1707 = vadd.f32 %v1525, %v1639
      %v1708 = vadd.f32 %v1526, %v1638
      %v1709 = vadd.f32 %v1527, %v1642
      %v1710 = vadd.f32 %v1528, %v1641
      %v1711 = vadd.f32 %v1529, %v1645
      %v1712 = vadd.f32 %v1530, %v1644
      %v1713 = vadd.f32 %v1531, %v1648
      %v1714 = vadd.f32 %v1532, %v1647
      %v1715 = vadd.f32 %v1533, %v1651
      %v1716 = vadd.f32 %v1534, %v1650
      %v1717 = vadd.f32 %v1535, %v1654
      %v1718 = vadd.f32 %v1536, %v1653
      %v1751 = vrot.slane %v364, 1
      %v1752 = vrot.slane %v365, 1
      %v1753 = vsel %vm555, %v1751, %v1752
      %v1754 = vrot.slane %v366, 1
      %v1755 = vrot.slane %v367, 1
      %v1756 = vsel %vm555, %v1754, %v1755
      %v1757 = vrot.slane %v368, 1
      %v1758 = vrot.slane %v369, 1
      %v1759 = vsel %vm555, %v1757, %v1758
      %v1760 = vrot.slane %v370, 1
      %v1761 = vrot.slane %v371, 1
      %v1762 = vsel %vm555, %v1760, %v1761
      %v1763 = vrot.slane %v372, 1
      %v1764 = vrot.slane %v373, 1
      %v1765 = vsel %vm555, %v1763, %v1764
      %v1766 = vrot.slane %v374, 1
      %v1767 = vrot.slane %v375, 1
      %v1768 = vsel %vm555, %v1766, %v1767
      %v1769 = vrot.slane %v376, 1
      %v1770 = vrot.slane %v377, 1
      %v1771 = vsel %vm555, %v1769, %v1770
      %v1772 = vrot.slane %v378, 1
      %v1773 = vrot.slane %v379, 1
      %v1774 = vsel %vm555, %v1772, %v1773
      %v1775 = vrot.slane %v380, 1
      %v1776 = vrot.slane %v381, 1
      %v1777 = vsel %vm555, %v1775, %v1776
      %v1778 = vrot.slane %v382, 1
      %v1779 = vrot.slane %v383, 1
      %v1780 = vsel %vm555, %v1778, %v1779
      %v1781 = vrot.slane %v384, 1
      %v1782 = vrot.slane %v385, 1
      %v1783 = vsel %vm555, %v1781, %v1782
      %v1784 = vrot.slane %v386, 1
      %v1785 = vrot.slane %v387, 1
      %v1786 = vsel %vm555, %v1784, %v1785
      %v1787 = vrot.slane %v388, 1
      %v1788 = vrot.slane %v389, 1
      %v1789 = vsel %vm555, %v1787, %v1788
      %v1790 = vrot.slane %v390, 1
      %v1791 = vrot.slane %v391, 1
      %v1792 = vsel %vm555, %v1790, %v1791
      %v1793 = vrot.slane %v392, 1
      %v1794 = vrot.slane %v393, 1
      %v1795 = vsel %vm555, %v1793, %v1794
      %v1796 = vrot.slane %v394, 1
      %v1797 = vrot.slane %v395, 1
      %v1798 = vsel %vm555, %v1796, %v1797
      %v1831 = vadd.f32 %v1687, %v1753
      %v1832 = vadd.f32 %v1688, %v1752
      %v1833 = vadd.f32 %v1689, %v1756
      %v1834 = vadd.f32 %v1690, %v1755
      %v1835 = vadd.f32 %v1691, %v1759
      %v1836 = vadd.f32 %v1692, %v1758
      %v1837 = vadd.f32 %v1693, %v1762
      %v1838 = vadd.f32 %v1694, %v1761
      %v1839 = vadd.f32 %v1695, %v1765
      %v1840 = vadd.f32 %v1696, %v1764
      %v1841 = vadd.f32 %v1697, %v1768
      %v1842 = vadd.f32 %v1698, %v1767
      %v1843 = vadd.f32 %v1699, %v1771
      %v1844 = vadd.f32 %v1700, %v1770
      %v1845 = vadd.f32 %v1701, %v1774
      %v1846 = vadd.f32 %v1702, %v1773
      %v1847 = vadd.f32 %v1703, %v1777
      %v1848 = vadd.f32 %v1704, %v1776
      %v1849 = vadd.f32 %v1705, %v1780
      %v1850 = vadd.f32 %v1706, %v1779
      %v1851 = vadd.f32 %v1707, %v1783
      %v1852 = vadd.f32 %v1708, %v1782
      %v1853 = vadd.f32 %v1709, %v1786
      %v1854 = vadd.f32 %v1710, %v1785
      %v1855 = vadd.f32 %v1711, %v1789
      %v1856 = vadd.f32 %v1712, %v1788
      %v1857 = vadd.f32 %v1713, %v1792
      %v1858 = vadd.f32 %v1714, %v1791
      %v1859 = vadd.f32 %v1715, %v1795
      %v1860 = vadd.f32 %v1716, %v1794
      %v1861 = vadd.f32 %v1717, %v1798
      %v1862 = vadd.f32 %v1718, %v1797
      %vm1863 = vcmask 261120
      %1864 = vst.msk [vmem:[%s224] sm:$0xff] %vm1863, %v1831
      %vm1865 = vcmask 253952
      %1866 = vst.msk [vmem:[%s224 + $0x8] sm:$0x1] %vm1865, %v1832
      %1867 = vst.msk [vmem:[%s224 + $0x10] sm:$0xff] %vm1863, %v1833
      %1868 = vst.msk [vmem:[%s224 + $0x18] sm:$0x1] %vm1865, %v1834
      %1869 = vst.msk [vmem:[%s224 + $0x20] sm:$0xff] %vm1863, %v1835
      %1870 = vst.msk [vmem:[%s224 + $0x28] sm:$0x1] %vm1865, %v1836
      %1871 = vst.msk [vmem:[%s224 + $0x30] sm:$0xff] %vm1863, %v1837
      %1872 = vst.msk [vmem:[%s224 + $0x38] sm:$0x1] %vm1865, %v1838
      %1873 = vst.msk [vmem:[%s224 + $0x40] sm:$0xff] %vm1863, %v1839
      %1874 = vst.msk [vmem:[%s224 + $0x48] sm:$0x1] %vm1865, %v1840
      %1875 = vst.msk [vmem:[%s224 + $0x50] sm:$0xff] %vm1863, %v1841
      %1876 = vst.msk [vmem:[%s224 + $0x58] sm:$0x1] %vm1865, %v1842
      %1877 = vst.msk [vmem:[%s224 + $0x60] sm:$0xff] %vm1863, %v1843
      %1878 = vst.msk [vmem:[%s224 + $0x68] sm:$0x1] %vm1865, %v1844
      %1879 = vst.msk [vmem:[%s224 + $0x70] sm:$0xff] %vm1863, %v1845
      %1880 = vst.msk [vmem:[%s224 + $0x78] sm:$0x1] %vm1865, %v1846
      %1881 = vst.msk [vmem:[%s224 + $0x80] sm:$0xff] %vm1863, %v1847
      %1882 = vst.msk [vmem:[%s224 + $0x88] sm:$0x1] %vm1865, %v1848
      %1883 = vst.msk [vmem:[%s224 + $0x90] sm:$0xff] %vm1863, %v1849
      %1884 = vst.msk [vmem:[%s224 + $0x98] sm:$0x1] %vm1865, %v1850
      %1885 = vst.msk [vmem:[%s224 + $0xa0] sm:$0xff] %vm1863, %v1851
      %1886 = vst.msk [vmem:[%s224 + $0xa8] sm:$0x1] %vm1865, %v1852
      %1887 = vst.msk [vmem:[%s224 + $0xb0] sm:$0xff] %vm1863, %v1853
      %1888 = vst.msk [vmem:[%s224 + $0xb8] sm:$0x1] %vm1865, %v1854
      %1889 = vst.msk [vmem:[%s224 + $0xc0] sm:$0xff] %vm1863, %v1855
      %1890 = vst.msk [vmem:[%s224 + $0xc8] sm:$0x1] %vm1865, %v1856
      %1891 = vst.msk [vmem:[%s224 + $0xd0] sm:$0xff] %vm1863, %v1857
      %1892 = vst.msk [vmem:[%s224 + $0xd8] sm:$0x1] %vm1865, %v1858
      %1893 = vst.msk [vmem:[%s224 + $0xe0] sm:$0xff] %vm1863, %v1859
      %1894 = vst.msk [vmem:[%s224 + $0xe8] sm:$0x1] %vm1865, %v1860
      %1895 = vst.msk [vmem:[%s224 + $0xf0] sm:$0xff] %vm1863, %v1861
      %1896 = vst.msk [vmem:[%s224 + $0xf8] sm:$0x1] %vm1865, %v1862
      %p1897 = scmp.lt.s32.totalorder %s16, 1
      %s1898 = scalar_select %p1897, %s16, 1
      %s1899 = smul.addr %s1898, 32
      %s1900 = smul.addr %s1899, 8
      %s1901 = scalar_lea.vmem %s5, %s1900
      // Predicated region
      $region41: #{lgpm_forward.7} parent=39 // pred_check
        %p1902 = pneg %p144
      $region42: #{lgpm_forward.7} parent=39 // pred_check_branch
        %1904 = sbr.rel (%p1902) target = $region44
      $region43: #{lgpm_forward.7} parent=39 // pred_region
        _
      $region44: #{lgpm_forward.7} parent=39 // pred_fallthru
        _
    $region40: #{lgpm_forward.7} parent=5 // pred_fallthru
      _
    %p1905 = scmp.le.s32.totalorder 2, %s11
    // Predicated region
    $region45: #{lgpm_forward.7} parent=5 // pred_check
      %p1906 = pneg %p1905
    $region46: #{lgpm_forward.7} parent=5 // pred_check_branch
      %1908 = sbr.rel (%p1906) target = $region48
    $region47: #{lgpm_forward.7} parent=5 // pred_region
      %s1909 = ssub.s32 %s11, 2
      // Predicated region
      $region49: #{lgpm_forward.7} parent=47 // pred_check
        %p1910 = pneg %p150
      $region50: #{lgpm_forward.7} parent=47 // pred_check_branch
        %1912 = sbr.rel (%p1910) target = $region52
      $region51: #{lgpm_forward.7} parent=47 // pred_region
        %p1913 = scmp.lt.s32.totalorder %s17, 1
        %s1914 = scalar_select %p1913, %s17, 1
        %s1915 = smul.addr %s1914, 32
        %s1916 = smul.addr %s1915, 8
        %s1917 = scalar_lea.vmem %s5, %s1916
      $region52: #{lgpm_forward.7} parent=47 // pred_fallthru
        _
    $region48: #{lgpm_forward.7} parent=5 // pred_fallthru
      _
  $region6: #{lgpm_forward.7} parent=0 // loop_footer
    %s15 = sadd.s32 1, %s11
  $region7: #{lgpm_forward.7} parent=0 // loop_footer_branch
    %10 = sbr.rel target = $region3
  $region8: #{lgpm_forward.7} parent=0 // loop_exit
    _

// kernel: lgpm_forward.8
$region0: #{lgpm_forward.8}
  #allocation0 [shape = 'u32[]', space=smem, size = 0x4, offset = 0x4, fixed_abs, tag = 'smem constant byte address 0x4 - core index']
  #allocation1 [shape = 'u32[144,128]{1,0:T(1,128)}', space=vmem, size = 0x12000, scoped, tag = 'internal scratch']
  %s0 = inlined_call_operand.vmem [shape: f32[288,32], index: 0, kind: input, shape index: {}]
  %s1 = inlined_call_operand.vmem [shape: f32[32,4], index: 1, kind: input, shape index: {}]
  %s2 = inlined_call_operand.vmem [shape: f32[1,4], index: 2, kind: input, shape index: {}]
  %s3 = inlined_call_operand.vmem [shape: f32[32,128], index: 3, kind: input, shape index: {}]
  %s4 = inlined_call_operand.vmem [shape: f32[1,128], index: 4, kind: input, shape index: {}]
  %s5 = inlined_call_operand.vmem [shape: f32[288,32], index: 5, kind: output, shape index: {}]
  %s6 = sld [smem:[#allocation0]]
  $region30: #{lgpm_forward.8} parent=0
    _
  %s8 = ssub.s32 1, %s6
  %s9 = scalar_select 0, %s8, %s6
  // Predicated region
  $region2: #{lgpm_forward.8} parent=0 // pred_check
    _
  $region3: #{lgpm_forward.8} parent=0 // pred_check_branch
    %11 = sbr.rel (0) target = $region5
  $region4: #{lgpm_forward.8} parent=0 // pred_region
    _
  $region5: #{lgpm_forward.8} parent=0 // pred_fallthru
    _
  // Predicated region
  $region6: #{lgpm_forward.8} parent=0 // pred_check
    _
  $region7: #{lgpm_forward.8} parent=0 // pred_check_branch
    %13 = sbr.rel (0) target = $region9
  $region8: #{lgpm_forward.8} parent=0 // pred_region
    _
  $region9: #{lgpm_forward.8} parent=0 // pred_fallthru
    _
  // Predicated region
  $region10: #{lgpm_forward.8} parent=0 // pred_check
    _
  $region11: #{lgpm_forward.8} parent=0 // pred_check_branch
    %15 = sbr.rel (0) target = $region13
  $region12: #{lgpm_forward.8} parent=0 // pred_region
    _
  $region13: #{lgpm_forward.8} parent=0 // pred_fallthru
    _
  // Predicated region
  $region14: #{lgpm_forward.8} parent=0 // pred_check
    _
  $region15: #{lgpm_forward.8} parent=0 // pred_check_branch
    %17 = sbr.rel (0) target = $region17
  $region16: #{lgpm_forward.8} parent=0 // pred_region
    _
  $region17: #{lgpm_forward.8} parent=0 // pred_fallthru
    _
  // Predicated region
  $region18: #{lgpm_forward.8} parent=0 // pred_check
    _
  $region19: #{lgpm_forward.8} parent=0 // pred_check_branch
    %19 = sbr.rel (0) target = $region21
  $region20: #{lgpm_forward.8} parent=0 // pred_region
    _
  $region21: #{lgpm_forward.8} parent=0 // pred_fallthru
    _
  %v21 = vld [vmem:[%s0] sm:$0xff]
  %v22 = vld [vmem:[%s0 + $0x8] sm:$0xff]
  %v23 = vld [vmem:[%s0 + $0x10] sm:$0xff]
  %v24 = vld [vmem:[%s0 + $0x18] sm:$0xff]
  %v25 = vld [vmem:[%s0 + $0x20] sm:$0xff]
  %v26 = vld [vmem:[%s0 + $0x28] sm:$0xff]
  %v27 = vld [vmem:[%s0 + $0x30] sm:$0xff]
  %v28 = vld [vmem:[%s0 + $0x38] sm:$0xff]
  %v29 = vld [vmem:[%s0 + $0x40] sm:$0xff]
  %v30 = vld [vmem:[%s0 + $0x48] sm:$0xff]
  %v31 = vld [vmem:[%s0 + $0x50] sm:$0xff]
  %v32 = vld [vmem:[%s0 + $0x58] sm:$0xff]
  %v33 = vld [vmem:[%s0 + $0x60] sm:$0xff]
  %v34 = vld [vmem:[%s0 + $0x68] sm:$0xff]
  %v35 = vld [vmem:[%s0 + $0x70] sm:$0xff]
  %v36 = vld [vmem:[%s0 + $0x78] sm:$0xff]
  %v37 = vld [vmem:[%s0 + $0x80] sm:$0xff]
  %v38 = vld [vmem:[%s0 + $0x88] sm:$0xff]
  %v39 = vld [vmem:[%s0 + $0x90] sm:$0xff]
  %v40 = vld [vmem:[%s0 + $0x98] sm:$0xff]
  %v41 = vld [vmem:[%s0 + $0xa0] sm:$0xff]
  %v42 = vld [vmem:[%s0 + $0xa8] sm:$0xff]
  %v43 = vld [vmem:[%s0 + $0xb0] sm:$0xff]
  %v44 = vld [vmem:[%s0 + $0xb8] sm:$0xff]
  %v45 = vld [vmem:[%s0 + $0xc0] sm:$0xff]
  %v46 = vld [vmem:[%s0 + $0xc8] sm:$0xff]
  %v47 = vld [vmem:[%s0 + $0xd0] sm:$0xff]
  %v48 = vld [vmem:[%s0 + $0xd8] sm:$0xff]
  %v49 = vld [vmem:[%s0 + $0xe0] sm:$0xff]
  %v50 = vld [vmem:[%s0 + $0xe8] sm:$0xff]
  %v51 = vld [vmem:[%s0 + $0xf0] sm:$0xff]
  %v52 = vld [vmem:[%s0 + $0xf8] sm:$0xff]
  %v53 = vld [vmem:[%s0 + $0x100] sm:$0xff]
  %v54 = vld [vmem:[%s0 + $0x108] sm:$0xff]
  %v55 = vld [vmem:[%s0 + $0x110] sm:$0xff]
  %v56 = vld [vmem:[%s0 + $0x118] sm:$0xff]
  %v57 = vld [vmem:[%s1] sm:$0xff]
  %v58 = vld [vmem:[%s1 + $0x8] sm:$0xff]
  %v59 = vld [vmem:[%s1 + $0x10] sm:$0xff]
  %v60 = vld [vmem:[%s1 + $0x18] sm:$0xff]
  %v61 = vpack.c.bf16 %v22, %v21
  %v62 = vpack.c.bf16 %v24, %v23
  %v63 = vpack.c.bf16 %v26, %v25
  %v64 = vpack.c.bf16 %v28, %v27
  %v65 = vpack.c.bf16 %v30, %v29
  %v66 = vpack.c.bf16 %v32, %v31
  %v67 = vpack.c.bf16 %v34, %v33
  %v68 = vpack.c.bf16 %v36, %v35
  %v69 = vpack.c.bf16 %v38, %v37
  %v70 = vpack.c.bf16 %v40, %v39
  %v71 = vpack.c.bf16 %v42, %v41
  %v72 = vpack.c.bf16 %v44, %v43
  %v73 = vpack.c.bf16 %v46, %v45
  %v74 = vpack.c.bf16 %v48, %v47
  %v75 = vpack.c.bf16 %v50, %v49
  %v76 = vpack.c.bf16 %v52, %v51
  %v77 = vpack.c.bf16 %v54, %v53
  %v78 = vpack.c.bf16 %v56, %v55
  %v79 = vpack.c.bf16 %v58, %v57
  %v80 = vpack.c.bf16 %v60, %v59
  %v81 = vld [vmem:[%s2] sm:$0x1]
  %v83 = vlaneseq
  %v84 = vshrl.u32 %v83, 7
  %v85 = vsub.s32 0, %v84
  %v86 = vrot.slane %v81, %v85
  %vm88 = vcmask 261120
  %v90 = vsel %vm88, %v61, 0
  %v93 = vsel %vm88, %v62, 0
  %v96 = vsel %vm88, %v63, 0
  %v99 = vsel %vm88, %v64, 0
  %v102 = vsel %vm88, %v65, 0
  %v105 = vsel %vm88, %v66, 0
  %v108 = vsel %vm88, %v67, 0
  %v111 = vsel %vm88, %v68, 0
  %v114 = vsel %vm88, %v69, 0
  %v117 = vsel %vm88, %v70, 0
  %v120 = vsel %vm88, %v71, 0
  %v123 = vsel %vm88, %v72, 0
  %v126 = vsel %vm88, %v73, 0
  %v129 = vsel %vm88, %v74, 0
  %v132 = vsel %vm88, %v75, 0
  %v135 = vsel %vm88, %v76, 0
  %v138 = vsel %vm88, %v77, 0
  %v141 = vsel %vm88, %v78, 0
  %143 = vmatprep.subr.bf16.mxu0 0
  %144 = vmatpush1.bf16.msra.mxu0 %v79
  %145 = vmatprep.subr.bf16.mxu0 0
  %146 = vmatpush1.bf16.msra.mxu0 %v80
  %147 = vmatprep.subr.bf16.mxu0 0
  %148 = vmatpush1.bf16.msra.mxu0 0
  %149 = vmatprep.subr.bf16.mxu0 0
  %150 = vmatpush1.bf16.msra.mxu0 0
  %151 = vmatprep.subr.bf16.mxu0 0
  %152 = vmatpush1.bf16.msra.mxu0 0
  %153 = vmatprep.subr.bf16.mxu0 0
  %154 = vmatpush1.bf16.msra.mxu0 0
  %155 = vmatprep.subr.bf16.mxu0 0
  %156 = vmatpush1.bf16.msra.mxu0 0
  %157 = vmatprep.subr.bf16.mxu0 0
  %158 = vmatpush1.bf16.msra.mxu0 0
  %159 = vmatprep.subr.bf16.mxu0 0
  %160 = vmatpush1.bf16.msra.mxu0 0
  %161 = vmatprep.subr.bf16.mxu0 0
  %162 = vmatpush1.bf16.msra.mxu0 0
  %163 = vmatprep.subr.bf16.mxu0 0
  %164 = vmatpush1.bf16.msra.mxu0 0
  %165 = vmatprep.subr.bf16.mxu0 0
  %166 = vmatpush1.bf16.msra.mxu0 0
  %167 = vmatprep.subr.bf16.mxu0 0
  %168 = vmatpush1.bf16.msra.mxu0 0
  %169 = vmatprep.subr.bf16.mxu0 0
  %170 = vmatpush1.bf16.msra.mxu0 0
  %171 = vmatprep.subr.bf16.mxu0 0
  %172 = vmatpush1.bf16.msra.mxu0 0
  %173 = vmatprep.subr.bf16.mxu0 0
  %174 = vmatpush1.bf16.msra.mxu0 0
  %175 = vmatprep.mubr.bf16.mxu0 0
  %176 = vmatmul.mubr.bf16.gmra.mrb[0].mxu0 %v90
  %v177 = vpop.f32.mrb[0].mxu0
  %v178 = vadd.f32 %v86, %v177
  %v179 = vpop.f32.mrb[0].mxu0
  %v180 = vpop.f32.mrb[0].mxu0
  %v181 = vadd.f32 %v86, %v180
  %v182 = vpop.f32.mrb[0].mxu0
  %183 = vmatprep.mubr.bf16.mxu0 0
  %184 = vmatmul.mubr.bf16.gmra.mrb[0].mxu0 %v93
  %v185 = vpop.f32.mrb[0].mxu0
  %v186 = vadd.f32 %v86, %v185
  %v187 = vpop.f32.mrb[0].mxu0
  %v188 = vpop.f32.mrb[0].mxu0
  %v189 = vadd.f32 %v86, %v188
  %v190 = vpop.f32.mrb[0].mxu0
  %191 = vmatprep.mubr.bf16.mxu0 0
  %192 = vmatmul.mubr.bf16.gmra.mrb[0].mxu0 %v96
  %v193 = vpop.f32.mrb[0].mxu0
  %v194 = vadd.f32 %v86, %v193
  %v195 = vpop.f32.mrb[0].mxu0
  %v196 = vpop.f32.mrb[0].mxu0
  %v197 = vadd.f32 %v86, %v196
  %v198 = vpop.f32.mrb[0].mxu0
  %199 = vmatprep.mubr.bf16.mxu0 0
  %200 = vmatmul.mubr.bf16.gmra.mrb[0].mxu0 %v99
  %v201 = vpop.f32.mrb[0].mxu0
  %v202 = vadd.f32 %v86, %v201
  %v203 = vpop.f32.mrb[0].mxu0
  %v204 = vpop.f32.mrb[0].mxu0
  %v205 = vadd.f32 %v86, %v204
  %v206 = vpop.f32.mrb[0].mxu0
  %207 = vmatprep.mubr.bf16.mxu0 0
  %208 = vmatmul.mubr.bf16.gmra.mrb[0].mxu0 %v102
  %v209 = vpop.f32.mrb[0].mxu0
  %v210 = vadd.f32 %v86, %v209
  %v211 = vpop.f32.mrb[0].mxu0
  %v212 = vpop.f32.mrb[0].mxu0
  %v213 = vadd.f32 %v86, %v212
  %v214 = vpop.f32.mrb[0].mxu0
  %215 = vmatprep.mubr.bf16.mxu0 0
  %216 = vmatmul.mubr.bf16.gmra.mrb[0].mxu0 %v105
  %v217 = vpop.f32.mrb[0].mxu0
  %v218 = vadd.f32 %v86, %v217
  %v219 = vpop.f32.mrb[0].mxu0
  %v220 = vpop.f32.mrb[0].mxu0
  %v221 = vadd.f32 %v86, %v220
  %v222 = vpop.f32.mrb[0].mxu0
  %223 = vmatprep.mubr.bf16.mxu0 0
  %224 = vmatmul.mubr.bf16.gmra.mrb[0].mxu0 %v108
  %v225 = vpop.f32.mrb[0].mxu0
  %v226 = vadd.f32 %v86, %v225
  %v227 = vpop.f32.mrb[0].mxu0
  %v228 = vpop.f32.mrb[0].mxu0
  %v229 = vadd.f32 %v86, %v228
  %v230 = vpop.f32.mrb[0].mxu0
  %231 = vmatprep.mubr.bf16.mxu0 0
  %232 = vmatmul.mubr.bf16.gmra.mrb[0].mxu0 %v111
  %v233 = vpop.f32.mrb[0].mxu0
  %v234 = vadd.f32 %v86, %v233
  %v235 = vpop.f32.mrb[0].mxu0
  %v236 = vpop.f32.mrb[0].mxu0
  %v237 = vadd.f32 %v86, %v236
  %v238 = vpop.f32.mrb[0].mxu0
  %239 = vmatprep.mubr.bf16.mxu0 0
  %240 = vmatmul.mubr.bf16.gmra.mrb[0].mxu0 %v114
  %v241 = vpop.f32.mrb[0].mxu0
  %v242 = vadd.f32 %v86, %v241
  %v243 = vpop.f32.mrb[0].mxu0
  %v244 = vpop.f32.mrb[0].mxu0
  %v245 = vadd.f32 %v86, %v244
  %v246 = vpop.f32.mrb[0].mxu0
  %247 = vmatprep.mubr.bf16.mxu0 0
  %248 = vmatmul.mubr.bf16.gmra.mrb[0].mxu0 %v117
  %v249 = vpop.f32.mrb[0].mxu0
  %v250 = vadd.f32 %v86, %v249
  %v251 = vpop.f32.mrb[0].mxu0
  %v252 = vpop.f32.mrb[0].mxu0
  %v253 = vadd.f32 %v86, %v252
  %v254 = vpop.f32.mrb[0].mxu0
  %255 = vmatprep.mubr.bf16.mxu0 0
  %256 = vmatmul.mubr.bf16.gmra.mrb[0].mxu0 %v120
  %v257 = vpop.f32.mrb[0].mxu0
  %v258 = vadd.f32 %v86, %v257
  %v259 = vpop.f32.mrb[0].mxu0
  %v260 = vpop.f32.mrb[0].mxu0
  %v261 = vadd.f32 %v86, %v260
  %v262 = vpop.f32.mrb[0].mxu0
  %263 = vmatprep.mubr.bf16.mxu0 0
  %264 = vmatmul.mubr.bf16.gmra.mrb[0].mxu0 %v123
  %v265 = vpop.f32.mrb[0].mxu0
  %v266 = vadd.f32 %v86, %v265
  %v267 = vpop.f32.mrb[0].mxu0
  %v268 = vpop.f32.mrb[0].mxu0
  %v269 = vadd.f32 %v86, %v268
  %v270 = vpop.f32.mrb[0].mxu0
  %271 = vmatprep.mubr.bf16.mxu0 0
  %272 = vmatmul.mubr.bf16.gmra.mrb[0].mxu0 %v126
  %v273 = vpop.f32.mrb[0].mxu0
  %v274 = vadd.f32 %v86, %v273
  %v275 = vpop.f32.mrb[0].mxu0
  %v276 = vpop.f32.mrb[0].mxu0
  %v277 = vadd.f32 %v86, %v276
  %v278 = vpop.f32.mrb[0].mxu0
  %279 = vmatprep.mubr.bf16.mxu0 0
  %280 = vmatmul.mubr.bf16.gmra.mrb[0].mxu0 %v129
  %v281 = vpop.f32.mrb[0].mxu0
  %v282 = vadd.f32 %v86, %v281
  %v283 = vpop.f32.mrb[0].mxu0
  %v284 = vpop.f32.mrb[0].mxu0
  %v285 = vadd.f32 %v86, %v284
  %v286 = vpop.f32.mrb[0].mxu0
  %287 = vmatprep.mubr.bf16.mxu0 0
  %288 = vmatmul.mubr.bf16.gmra.mrb[0].mxu0 %v132
  %v289 = vpop.f32.mrb[0].mxu0
  %v290 = vadd.f32 %v86, %v289
  %v291 = vpop.f32.mrb[0].mxu0
  %v292 = vpop.f32.mrb[0].mxu0
  %v293 = vadd.f32 %v86, %v292
  %v294 = vpop.f32.mrb[0].mxu0
  %295 = vmatprep.mubr.bf16.mxu0 0
  %296 = vmatmul.mubr.bf16.gmra.mrb[0].mxu0 %v135
  %v297 = vpop.f32.mrb[0].mxu0
  %v298 = vadd.f32 %v86, %v297
  %v299 = vpop.f32.mrb[0].mxu0
  %v300 = vpop.f32.mrb[0].mxu0
  %v301 = vadd.f32 %v86, %v300
  %v302 = vpop.f32.mrb[0].mxu0
  %303 = vmatprep.mubr.bf16.mxu0 0
  %304 = vmatmul.mubr.bf16.gmra.mrb[0].mxu0 %v138
  %v305 = vpop.f32.mrb[0].mxu0
  %v306 = vadd.f32 %v86, %v305
  %v307 = vpop.f32.mrb[0].mxu0
  %v308 = vpop.f32.mrb[0].mxu0
  %v309 = vadd.f32 %v86, %v308
  %v310 = vpop.f32.mrb[0].mxu0
  %311 = vmatprep.mubr.bf16.mxu0 0
  %312 = vmatmul.mubr.bf16.gmra.mrb[0].mxu0 %v141
  %v313 = vpop.f32.mrb[0].mxu0
  %v314 = vadd.f32 %v86, %v313
  %v315 = vpop.f32.mrb[0].mxu0
  %v316 = vpop.f32.mrb[0].mxu0
  %v317 = vadd.f32 %v86, %v316
  %v318 = vpop.f32.mrb[0].mxu0
  %319 = vdwg.mxu0
  %vm320 = vcmask 31744
  %v321 = vsel %vm320, %v178, -inf
  %322 = vmax.xlane.f32.xlu0 %v321
  %v323 = vpop.xlane.xlu0 %322
  %v324 = vsel %vm320, %v181, -inf
  %325 = vmax.xlane.f32.xlu0 %v324
  %v326 = vpop.xlane.xlu0 %325
  %v327 = vsel %vm320, %v186, -inf
  %328 = vmax.xlane.f32.xlu0 %v327
  %v329 = vpop.xlane.xlu0 %328
  %v330 = vsel %vm320, %v189, -inf
  %331 = vmax.xlane.f32.xlu0 %v330
  %v332 = vpop.xlane.xlu0 %331
  %v333 = vsel %vm320, %v194, -inf
  %334 = vmax.xlane.f32.xlu0 %v333
  %v335 = vpop.xlane.xlu0 %334
  %v336 = vsel %vm320, %v197, -inf
  %337 = vmax.xlane.f32.xlu0 %v336
  %v338 = vpop.xlane.xlu0 %337
  %v339 = vsel %vm320, %v202, -inf
  %340 = vmax.xlane.f32.xlu0 %v339
  %v341 = vpop.xlane.xlu0 %340
  %v342 = vsel %vm320, %v205, -inf
  %343 = vmax.xlane.f32.xlu0 %v342
  %v344 = vpop.xlane.xlu0 %343
  %v345 = vsel %vm320, %v210, -inf
  %346 = vmax.xlane.f32.xlu0 %v345
  %v347 = vpop.xlane.xlu0 %346
  %v348 = vsel %vm320, %v213, -inf
  %349 = vmax.xlane.f32.xlu0 %v348
  %v350 = vpop.xlane.xlu0 %349
  %v351 = vsel %vm320, %v218, -inf
  %352 = vmax.xlane.f32.xlu0 %v351
  %v353 = vpop.xlane.xlu0 %352
  %v354 = vsel %vm320, %v221, -inf
  %355 = vmax.xlane.f32.xlu0 %v354
  %v356 = vpop.xlane.xlu0 %355
  %v357 = vsel %vm320, %v226, -inf
  %358 = vmax.xlane.f32.xlu0 %v357
  %v359 = vpop.xlane.xlu0 %358
  %v360 = vsel %vm320, %v229, -inf
  %361 = vmax.xlane.f32.xlu0 %v360
  %v362 = vpop.xlane.xlu0 %361
  %v363 = vsel %vm320, %v234, -inf
  %364 = vmax.xlane.f32.xlu0 %v363
  %v365 = vpop.xlane.xlu0 %364
  %v366 = vsel %vm320, %v237, -inf
  %367 = vmax.xlane.f32.xlu0 %v366
  %v368 = vpop.xlane.xlu0 %367
  %v369 = vsel %vm320, %v242, -inf
  %370 = vmax.xlane.f32.xlu0 %v369
  %v371 = vpop.xlane.xlu0 %370
  %v372 = vsel %vm320, %v245, -inf
  %373 = vmax.xlane.f32.xlu0 %v372
  %v374 = vpop.xlane.xlu0 %373
  %v375 = vsel %vm320, %v250, -inf
  %376 = vmax.xlane.f32.xlu0 %v375
  %v377 = vpop.xlane.xlu0 %376
  %v378 = vsel %vm320, %v253, -inf
  %379 = vmax.xlane.f32.xlu0 %v378
  %v380 = vpop.xlane.xlu0 %379
  %v381 = vsel %vm320, %v258, -inf
  %382 = vmax.xlane.f32.xlu0 %v381
  %v383 = vpop.xlane.xlu0 %382
  %v384 = vsel %vm320, %v261, -inf
  %385 = vmax.xlane.f32.xlu0 %v384
  %v386 = vpop.xlane.xlu0 %385
  %v387 = vsel %vm320, %v266, -inf
  %388 = vmax.xlane.f32.xlu0 %v387
  %v389 = vpop.xlane.xlu0 %388
  %v390 = vsel %vm320, %v269, -inf
  %391 = vmax.xlane.f32.xlu0 %v390
  %v392 = vpop.xlane.xlu0 %391
  %v393 = vsel %vm320, %v274, -inf
  %394 = vmax.xlane.f32.xlu0 %v393
  %v395 = vpop.xlane.xlu0 %394
  %v396 = vsel %vm320, %v277, -inf
  %397 = vmax.xlane.f32.xlu0 %v396
  %v398 = vpop.xlane.xlu0 %397
  %v399 = vsel %vm320, %v282, -inf
  %400 = vmax.xlane.f32.xlu0 %v399
  %v401 = vpop.xlane.xlu0 %400
  %v402 = vsel %vm320, %v285, -inf
  %403 = vmax.xlane.f32.xlu0 %v402
  %v404 = vpop.xlane.xlu0 %403
  %v405 = vsel %vm320, %v290, -inf
  %406 = vmax.xlane.f32.xlu0 %v405
  %v407 = vpop.xlane.xlu0 %406
  %v408 = vsel %vm320, %v293, -inf
  %409 = vmax.xlane.f32.xlu0 %v408
  %v410 = vpop.xlane.xlu0 %409
  %v411 = vsel %vm320, %v298, -inf
  %412 = vmax.xlane.f32.xlu0 %v411
  %v413 = vpop.xlane.xlu0 %412
  %v414 = vsel %vm320, %v301, -inf
  %415 = vmax.xlane.f32.xlu0 %v414
  %v416 = vpop.xlane.xlu0 %415
  %v417 = vsel %vm320, %v306, -inf
  %418 = vmax.xlane.f32.xlu0 %v417
  %v419 = vpop.xlane.xlu0 %418
  %v420 = vsel %vm320, %v309, -inf
  %421 = vmax.xlane.f32.xlu0 %v420
  %v422 = vpop.xlane.xlu0 %421
  %v423 = vsel %vm320, %v314, -inf
  %424 = vmax.xlane.f32.xlu0 %v423
  %v425 = vpop.xlane.xlu0 %424
  %v426 = vsel %vm320, %v317, -inf
  %427 = vmax.xlane.f32.xlu0 %v426
  %v428 = vpop.xlane.xlu0 %427
  %v429 = vsub.f32 %v178, %v323
  %v430 = vsub.f32 %v181, %v326
  %v431 = vsub.f32 %v186, %v329
  %v432 = vsub.f32 %v189, %v332
  %v433 = vsub.f32 %v194, %v335
  %v434 = vsub.f32 %v197, %v338
  %v435 = vsub.f32 %v202, %v341
  %v436 = vsub.f32 %v205, %v344
  %v437 = vsub.f32 %v210, %v347
  %v438 = vsub.f32 %v213, %v350
  %v439 = vsub.f32 %v218, %v353
  %v440 = vsub.f32 %v221, %v356
  %v441 = vsub.f32 %v226, %v359
  %v442 = vsub.f32 %v229, %v362
  %v443 = vsub.f32 %v234, %v365
  %v444 = vsub.f32 %v237, %v368
  %v445 = vsub.f32 %v242, %v371
  %v446 = vsub.f32 %v245, %v374
  %v447 = vsub.f32 %v250, %v377
  %v448 = vsub.f32 %v253, %v380
  %v449 = vsub.f32 %v258, %v383
  %v450 = vsub.f32 %v261, %v386
  %v451 = vsub.f32 %v266, %v389
  %v452 = vsub.f32 %v269, %v392
  %v453 = vsub.f32 %v274, %v395
  %v454 = vsub.f32 %v277, %v398
  %v455 = vsub.f32 %v282, %v401
  %v456 = vsub.f32 %v285, %v404
  %v457 = vsub.f32 %v290, %v407
  %v458 = vsub.f32 %v293, %v410
  %v459 = vsub.f32 %v298, %v413
  %v460 = vsub.f32 %v301, %v416
  %v461 = vsub.f32 %v306, %v419
  %v462 = vsub.f32 %v309, %v422
  %v463 = vsub.f32 %v314, %v425
  %v464 = vsub.f32 %v317, %v428
  %v465 = vmul.f32 %v429, 1.442695
  %v466 = vpow.pop %v465
  %v467 = vmul.f32 %v430, 1.442695
  %v468 = vpow.pop %v467
  %v469 = vmul.f32 %v431, 1.442695
  %v470 = vpow.pop %v469
  %v471 = vmul.f32 %v432, 1.442695
  %v472 = vpow.pop %v471
  %v473 = vmul.f32 %v433, 1.442695
  %v474 = vpow.pop %v473
  %v475 = vmul.f32 %v434, 1.442695
  %v476 = vpow.pop %v475
  %v477 = vmul.f32 %v435, 1.442695
  %v478 = vpow.pop %v477
  %v479 = vmul.f32 %v436, 1.442695
  %v480 = vpow.pop %v479
  %v481 = vmul.f32 %v437, 1.442695
  %v482 = vpow.pop %v481
  %v483 = vmul.f32 %v438, 1.442695
  %v484 = vpow.pop %v483
  %v485 = vmul.f32 %v439, 1.442695
  %v486 = vpow.pop %v485
  %v487 = vmul.f32 %v440, 1.442695
  %v488 = vpow.pop %v487
  %v489 = vmul.f32 %v441, 1.442695
  %v490 = vpow.pop %v489
  %v491 = vmul.f32 %v442, 1.442695
  %v492 = vpow.pop %v491
  %v493 = vmul.f32 %v443, 1.442695
  %v494 = vpow.pop %v493
  %v495 = vmul.f32 %v444, 1.442695
  %v496 = vpow.pop %v495
  %v497 = vmul.f32 %v445, 1.442695
  %v498 = vpow.pop %v497
  %v499 = vmul.f32 %v446, 1.442695
  %v500 = vpow.pop %v499
  %v501 = vmul.f32 %v447, 1.442695
  %v502 = vpow.pop %v501
  %v503 = vmul.f32 %v448, 1.442695
  %v504 = vpow.pop %v503
  %v505 = vmul.f32 %v449, 1.442695
  %v506 = vpow.pop %v505
  %v507 = vmul.f32 %v450, 1.442695
  %v508 = vpow.pop %v507
  %v509 = vmul.f32 %v451, 1.442695
  %v510 = vpow.pop %v509
  %v511 = vmul.f32 %v452, 1.442695
  %v512 = vpow.pop %v511
  %v513 = vmul.f32 %v453, 1.442695
  %v514 = vpow.pop %v513
  %v515 = vmul.f32 %v454, 1.442695
  %v516 = vpow.pop %v515
  %v517 = vmul.f32 %v455, 1.442695
  %v518 = vpow.pop %v517
  %v519 = vmul.f32 %v456, 1.442695
  %v520 = vpow.pop %v519
  %v521 = vmul.f32 %v457, 1.442695
  %v522 = vpow.pop %v521
  %v523 = vmul.f32 %v458, 1.442695
  %v524 = vpow.pop %v523
  %v525 = vmul.f32 %v459, 1.442695
  %v526 = vpow.pop %v525
  %v527 = vmul.f32 %v460, 1.442695
  %v528 = vpow.pop %v527
  %v529 = vmul.f32 %v461, 1.442695
  %v530 = vpow.pop %v529
  %v531 = vmul.f32 %v462, 1.442695
  %v532 = vpow.pop %v531
  %v533 = vmul.f32 %v463, 1.442695
  %v534 = vpow.pop %v533
  %v535 = vmul.f32 %v464, 1.442695
  %v536 = vpow.pop %v535
  %v537 = vsel %vm320, %v466, 0.0
  %538 = vadd.xlane.f32.xlu0 %v537
  %v539 = vpop.xlane.xlu0 %538
  %v540 = vsel %vm320, %v468, 0.0
  %541 = vadd.xlane.f32.xlu0 %v540
  %v542 = vpop.xlane.xlu0 %541
  %v543 = vsel %vm320, %v470, 0.0
  %544 = vadd.xlane.f32.xlu0 %v543
  %v545 = vpop.xlane.xlu0 %544
  %v546 = vsel %vm320, %v472, 0.0
  %547 = vadd.xlane.f32.xlu0 %v546
  %v548 = vpop.xlane.xlu0 %547
  %v549 = vsel %vm320, %v474, 0.0
  %550 = vadd.xlane.f32.xlu0 %v549
  %v551 = vpop.xlane.xlu0 %550
  %v552 = vsel %vm320, %v476, 0.0
  %553 = vadd.xlane.f32.xlu0 %v552
  %v554 = vpop.xlane.xlu0 %553
  %v555 = vsel %vm320, %v478, 0.0
  %556 = vadd.xlane.f32.xlu0 %v555
  %v557 = vpop.xlane.xlu0 %556
  %v558 = vsel %vm320, %v480, 0.0
  %559 = vadd.xlane.f32.xlu0 %v558
  %v560 = vpop.xlane.xlu0 %559
  %v561 = vsel %vm320, %v482, 0.0
  %562 = vadd.xlane.f32.xlu0 %v561
  %v563 = vpop.xlane.xlu0 %562
  %v564 = vsel %vm320, %v484, 0.0
  %565 = vadd.xlane.f32.xlu0 %v564
  %v566 = vpop.xlane.xlu0 %565
  %v567 = vsel %vm320, %v486, 0.0
  %568 = vadd.xlane.f32.xlu0 %v567
  %v569 = vpop.xlane.xlu0 %568
  %v570 = vsel %vm320, %v488, 0.0
  %571 = vadd.xlane.f32.xlu0 %v570
  %v572 = vpop.xlane.xlu0 %571
  %v573 = vsel %vm320, %v490, 0.0
  %574 = vadd.xlane.f32.xlu0 %v573
  %v575 = vpop.xlane.xlu0 %574
  %v576 = vsel %vm320, %v492, 0.0
  %577 = vadd.xlane.f32.xlu0 %v576
  %v578 = vpop.xlane.xlu0 %577
  %v579 = vsel %vm320, %v494, 0.0
  %580 = vadd.xlane.f32.xlu0 %v579
  %v581 = vpop.xlane.xlu0 %580
  %v582 = vsel %vm320, %v496, 0.0
  %583 = vadd.xlane.f32.xlu0 %v582
  %v584 = vpop.xlane.xlu0 %583
  %v585 = vsel %vm320, %v498, 0.0
  %586 = vadd.xlane.f32.xlu0 %v585
  %v587 = vpop.xlane.xlu0 %586
  %v588 = vsel %vm320, %v500, 0.0
  %589 = vadd.xlane.f32.xlu0 %v588
  %v590 = vpop.xlane.xlu0 %589
  %v591 = vsel %vm320, %v502, 0.0
  %592 = vadd.xlane.f32.xlu0 %v591
  %v593 = vpop.xlane.xlu0 %592
  %v594 = vsel %vm320, %v504, 0.0
  %595 = vadd.xlane.f32.xlu0 %v594
  %v596 = vpop.xlane.xlu0 %595
  %v597 = vsel %vm320, %v506, 0.0
  %598 = vadd.xlane.f32.xlu0 %v597
  %v599 = vpop.xlane.xlu0 %598
  %v600 = vsel %vm320, %v508, 0.0
  %601 = vadd.xlane.f32.xlu0 %v600
  %v602 = vpop.xlane.xlu0 %601
  %v603 = vsel %vm320, %v510, 0.0
  %604 = vadd.xlane.f32.xlu0 %v603
  %v605 = vpop.xlane.xlu0 %604
  %v606 = vsel %vm320, %v512, 0.0
  %607 = vadd.xlane.f32.xlu0 %v606
  %v608 = vpop.xlane.xlu0 %607
  %v609 = vsel %vm320, %v514, 0.0
  %610 = vadd.xlane.f32.xlu0 %v609
  %v611 = vpop.xlane.xlu0 %610
  %v612 = vsel %vm320, %v516, 0.0
  %613 = vadd.xlane.f32.xlu0 %v612
  %v614 = vpop.xlane.xlu0 %613
  %v615 = vsel %vm320, %v518, 0.0
  %616 = vadd.xlane.f32.xlu0 %v615
  %v617 = vpop.xlane.xlu0 %616
  %v618 = vsel %vm320, %v520, 0.0
  %619 = vadd.xlane.f32.xlu0 %v618
  %v620 = vpop.xlane.xlu0 %619
  %v621 = vsel %vm320, %v522, 0.0
  %622 = vadd.xlane.f32.xlu0 %v621
  %v623 = vpop.xlane.xlu0 %622
  %v624 = vsel %vm320, %v524, 0.0
  %625 = vadd.xlane.f32.xlu0 %v624
  %v626 = vpop.xlane.xlu0 %625
  %v627 = vsel %vm320, %v526, 0.0
  %628 = vadd.xlane.f32.xlu0 %v627
  %v629 = vpop.xlane.xlu0 %628
  %v630 = vsel %vm320, %v528, 0.0
  %631 = vadd.xlane.f32.xlu0 %v630
  %v632 = vpop.xlane.xlu0 %631
  %v633 = vsel %vm320, %v530, 0.0
  %634 = vadd.xlane.f32.xlu0 %v633
  %v635 = vpop.xlane.xlu0 %634
  %v636 = vsel %vm320, %v532, 0.0
  %637 = vadd.xlane.f32.xlu0 %v636
  %v638 = vpop.xlane.xlu0 %637
  %v639 = vsel %vm320, %v534, 0.0
  %640 = vadd.xlane.f32.xlu0 %v639
  %v641 = vpop.xlane.xlu0 %640
  %v642 = vsel %vm320, %v536, 0.0
  %643 = vadd.xlane.f32.xlu0 %v642
  %v644 = vpop.xlane.xlu0 %643
  %v645 = vrcp.pop %v539
  %v646 = vmul.f32 %v466, %v645
  %v647 = vrcp.pop %v542
  %v648 = vmul.f32 %v468, %v647
  %v649 = vrcp.pop %v545
  %v650 = vmul.f32 %v470, %v649
  %v651 = vrcp.pop %v548
  %v652 = vmul.f32 %v472, %v651
  %v653 = vrcp.pop %v551
  %v654 = vmul.f32 %v474, %v653
  %v655 = vrcp.pop %v554
  %v656 = vmul.f32 %v476, %v655
  %v657 = vrcp.pop %v557
  %v658 = vmul.f32 %v478, %v657
  %v659 = vrcp.pop %v560
  %v660 = vmul.f32 %v480, %v659
  %v661 = vrcp.pop %v563
  %v662 = vmul.f32 %v482, %v661
  %v663 = vrcp.pop %v566
  %v664 = vmul.f32 %v484, %v663
  %v665 = vrcp.pop %v569
  %v666 = vmul.f32 %v486, %v665
  %v667 = vrcp.pop %v572
  %v668 = vmul.f32 %v488, %v667
  %v669 = vrcp.pop %v575
  %v670 = vmul.f32 %v490, %v669
  %v671 = vrcp.pop %v578
  %v672 = vmul.f32 %v492, %v671
  %v673 = vrcp.pop %v581
  %v674 = vmul.f32 %v494, %v673
  %v675 = vrcp.pop %v584
  %v676 = vmul.f32 %v496, %v675
  %v677 = vrcp.pop %v587
  %v678 = vmul.f32 %v498, %v677
  %v679 = vrcp.pop %v590
  %v680 = vmul.f32 %v500, %v679
  %v681 = vrcp.pop %v593
  %v682 = vmul.f32 %v502, %v681
  %v683 = vrcp.pop %v596
  %v684 = vmul.f32 %v504, %v683
  %v685 = vrcp.pop %v599
  %v686 = vmul.f32 %v506, %v685
  %v687 = vrcp.pop %v602
  %v688 = vmul.f32 %v508, %v687
  %v689 = vrcp.pop %v605
  %v690 = vmul.f32 %v510, %v689
  %v691 = vrcp.pop %v608
  %v692 = vmul.f32 %v512, %v691
  %v693 = vrcp.pop %v611
  %v694 = vmul.f32 %v514, %v693
  %v695 = vrcp.pop %v614
  %v696 = vmul.f32 %v516, %v695
  %v697 = vrcp.pop %v617
  %v698 = vmul.f32 %v518, %v697
  %v699 = vrcp.pop %v620
  %v700 = vmul.f32 %v520, %v699
  %v701 = vrcp.pop %v623
  %v702 = vmul.f32 %v522, %v701
  %v703 = vrcp.pop %v626
  %v704 = vmul.f32 %v524, %v703
  %v705 = vrcp.pop %v629
  %v706 = vmul.f32 %v526, %v705
  %v707 = vrcp.pop %v632
  %v708 = vmul.f32 %v528, %v707
  %v709 = vrcp.pop %v635
  %v710 = vmul.f32 %v530, %v709
  %v711 = vrcp.pop %v638
  %v712 = vmul.f32 %v532, %v711
  %v713 = vrcp.pop %v641
  %v714 = vmul.f32 %v534, %v713
  %v715 = vrcp.pop %v644
  %v716 = vmul.f32 %v536, %v715
  %v717 = vld [vmem:[%s3] sm:$0xff]
  %v718 = vld [vmem:[%s3 + $0x8] sm:$0xff]
  %v719 = vld [vmem:[%s3 + $0x10] sm:$0xff]
  %v720 = vld [vmem:[%s3 + $0x18] sm:$0xff]
  %v721 = vpack.c.bf16 %v718, %v717
  %v722 = vpack.c.bf16 %v720, %v719
  %v723 = vld [vmem:[%s4] sm:$0x1]
  %v725 = vlaneseq
  %v726 = vshrl.u32 %v725, 7
  %v727 = vsub.s32 0, %v726
  %v728 = vrot.slane %v723, %v727
  %730 = vmatprep.subr.bf16.mxu0 0
  %731 = vmatpush1.bf16.msra.mxu0 %v721
  %732 = vmatprep.subr.bf16.mxu0 0
  %733 = vmatpush1.bf16.msra.mxu0 %v722
  %734 = vmatprep.subr.bf16.mxu0 0
  %735 = vmatpush1.bf16.msra.mxu0 0
  %736 = vmatprep.subr.bf16.mxu0 0
  %737 = vmatpush1.bf16.msra.mxu0 0
  %738 = vmatprep.subr.bf16.mxu0 0
  %739 = vmatpush1.bf16.msra.mxu0 0
  %740 = vmatprep.subr.bf16.mxu0 0
  %741 = vmatpush1.bf16.msra.mxu0 0
  %742 = vmatprep.subr.bf16.mxu0 0
  %743 = vmatpush1.bf16.msra.mxu0 0
  %744 = vmatprep.subr.bf16.mxu0 0
  %745 = vmatpush1.bf16.msra.mxu0 0
  %746 = vmatprep.subr.bf16.mxu0 0
  %747 = vmatpush1.bf16.msra.mxu0 0
  %748 = vmatprep.subr.bf16.mxu0 0
  %749 = vmatpush1.bf16.msra.mxu0 0
  %750 = vmatprep.subr.bf16.mxu0 0
  %751 = vmatpush1.bf16.msra.mxu0 0
  %752 = vmatprep.subr.bf16.mxu0 0
  %753 = vmatpush1.bf16.msra.mxu0 0
  %754 = vmatprep.subr.bf16.mxu0 0
  %755 = vmatpush1.bf16.msra.mxu0 0
  %756 = vmatprep.subr.bf16.mxu0 0
  %757 = vmatpush1.bf16.msra.mxu0 0
  %758 = vmatprep.subr.bf16.mxu0 0
  %759 = vmatpush1.bf16.msra.mxu0 0
  %760 = vmatprep.subr.bf16.mxu0 0
  %761 = vmatpush1.bf16.msra.mxu0 0
  %762 = vmatprep.mubr.bf16.mxu0 0
  %763 = vmatmul.mubr.bf16.gmra.mrb[0].mxu0 %v90
  %v764 = vpop.f32.mrb[0].mxu0
  %v765 = vadd.f32 %v728, %v764
  %v766 = vpop.f32.mrb[0].mxu0
  %v767 = vpop.f32.mrb[0].mxu0
  %v768 = vadd.f32 %v728, %v767
  %v769 = vpop.f32.mrb[0].mxu0
  %770 = vmatprep.mubr.bf16.mxu0 0
  %771 = vmatmul.mubr.bf16.gmra.mrb[0].mxu0 %v93
  %v772 = vpop.f32.mrb[0].mxu0
  %v773 = vadd.f32 %v728, %v772
  %v774 = vpop.f32.mrb[0].mxu0
  %v775 = vpop.f32.mrb[0].mxu0
  %v776 = vadd.f32 %v728, %v775
  %v777 = vpop.f32.mrb[0].mxu0
  %778 = vmatprep.mubr.bf16.mxu0 0
  %779 = vmatmul.mubr.bf16.gmra.mrb[0].mxu0 %v96
  %v780 = vpop.f32.mrb[0].mxu0
  %v781 = vadd.f32 %v728, %v780
  %v782 = vpop.f32.mrb[0].mxu0
  %v783 = vpop.f32.mrb[0].mxu0
  %v784 = vadd.f32 %v728, %v783
  %v785 = vpop.f32.mrb[0].mxu0
  %786 = vmatprep.mubr.bf16.mxu0 0
  %787 = vmatmul.mubr.bf16.gmra.mrb[0].mxu0 %v99
  %v788 = vpop.f32.mrb[0].mxu0
  %v789 = vadd.f32 %v728, %v788
  %v790 = vpop.f32.mrb[0].mxu0
  %v791 = vpop.f32.mrb[0].mxu0
  %v792 = vadd.f32 %v728, %v791
  %v793 = vpop.f32.mrb[0].mxu0
  %794 = vmatprep.mubr.bf16.mxu0 0
  %795 = vmatmul.mubr.bf16.gmra.mrb[0].mxu0 %v102
  %v796 = vpop.f32.mrb[0].mxu0
  %v797 = vadd.f32 %v728, %v796
  %v798 = vpop.f32.mrb[0].mxu0
  %v799 = vpop.f32.mrb[0].mxu0
  %v800 = vadd.f32 %v728, %v799
  %v801 = vpop.f32.mrb[0].mxu0
  %802 = vmatprep.mubr.bf16.mxu0 0
  %803 = vmatmul.mubr.bf16.gmra.mrb[0].mxu0 %v105
  %v804 = vpop.f32.mrb[0].mxu0
  %v805 = vadd.f32 %v728, %v804
  %v806 = vpop.f32.mrb[0].mxu0
  %v807 = vpop.f32.mrb[0].mxu0
  %v808 = vadd.f32 %v728, %v807
  %v809 = vpop.f32.mrb[0].mxu0
  %810 = vmatprep.mubr.bf16.mxu0 0
  %811 = vmatmul.mubr.bf16.gmra.mrb[0].mxu0 %v108
  %v812 = vpop.f32.mrb[0].mxu0
  %v813 = vadd.f32 %v728, %v812
  %v814 = vpop.f32.mrb[0].mxu0
  %v815 = vpop.f32.mrb[0].mxu0
  %v816 = vadd.f32 %v728, %v815
  %v817 = vpop.f32.mrb[0].mxu0
  %818 = vmatprep.mubr.bf16.mxu0 0
  %819 = vmatmul.mubr.bf16.gmra.mrb[0].mxu0 %v111
  %v820 = vpop.f32.mrb[0].mxu0
  %v821 = vadd.f32 %v728, %v820
  %v822 = vpop.f32.mrb[0].mxu0
  %v823 = vpop.f32.mrb[0].mxu0
  %v824 = vadd.f32 %v728, %v823
  %v825 = vpop.f32.mrb[0].mxu0
  %826 = vmatprep.mubr.bf16.mxu0 0
  %827 = vmatmul.mubr.bf16.gmra.mrb[0].mxu0 %v114
  %v828 = vpop.f32.mrb[0].mxu0
  %v829 = vadd.f32 %v728, %v828
  %v830 = vpop.f32.mrb[0].mxu0
  %v831 = vpop.f32.mrb[0].mxu0
  %v832 = vadd.f32 %v728, %v831
  %v833 = vpop.f32.mrb[0].mxu0
  %834 = vmatprep.mubr.bf16.mxu0 0
  %835 = vmatmul.mubr.bf16.gmra.mrb[0].mxu0 %v117
  %v836 = vpop.f32.mrb[0].mxu0
  %v837 = vadd.f32 %v728, %v836
  %v838 = vpop.f32.mrb[0].mxu0
  %v839 = vpop.f32.mrb[0].mxu0
  %v840 = vadd.f32 %v728, %v839
  %v841 = vpop.f32.mrb[0].mxu0
  %842 = vmatprep.mubr.bf16.mxu0 0
  %843 = vmatmul.mubr.bf16.gmra.mrb[0].mxu0 %v120
  %v844 = vpop.f32.mrb[0].mxu0
  %v845 = vadd.f32 %v728, %v844
  %v846 = vpop.f32.mrb[0].mxu0
  %v847 = vpop.f32.mrb[0].mxu0
  %v848 = vadd.f32 %v728, %v847
  %v849 = vpop.f32.mrb[0].mxu0
  %850 = vmatprep.mubr.bf16.mxu0 0
  %851 = vmatmul.mubr.bf16.gmra.mrb[0].mxu0 %v123
  %v852 = vpop.f32.mrb[0].mxu0
  %v853 = vadd.f32 %v728, %v852
  %v854 = vpop.f32.mrb[0].mxu0
  %v855 = vpop.f32.mrb[0].mxu0
  %v856 = vadd.f32 %v728, %v855
  %v857 = vpop.f32.mrb[0].mxu0
  %858 = vmatprep.mubr.bf16.mxu0 0
  %859 = vmatmul.mubr.bf16.gmra.mrb[0].mxu0 %v126
  %v860 = vpop.f32.mrb[0].mxu0
  %v861 = vadd.f32 %v728, %v860
  %v862 = vpop.f32.mrb[0].mxu0
  %v863 = vpop.f32.mrb[0].mxu0
  %v864 = vadd.f32 %v728, %v863
  %v865 = vpop.f32.mrb[0].mxu0
  %866 = vmatprep.mubr.bf16.mxu0 0
  %867 = vmatmul.mubr.bf16.gmra.mrb[0].mxu0 %v129
  %v868 = vpop.f32.mrb[0].mxu0
  %v869 = vadd.f32 %v728, %v868
  %v870 = vpop.f32.mrb[0].mxu0
  %v871 = vpop.f32.mrb[0].mxu0
  %v872 = vadd.f32 %v728, %v871
  %v873 = vpop.f32.mrb[0].mxu0
  %874 = vmatprep.mubr.bf16.mxu0 0
  %875 = vmatmul.mubr.bf16.gmra.mrb[0].mxu0 %v132
  %v876 = vpop.f32.mrb[0].mxu0
  %v877 = vadd.f32 %v728, %v876
  %v878 = vpop.f32.mrb[0].mxu0
  %v879 = vpop.f32.mrb[0].mxu0
  %v880 = vadd.f32 %v728, %v879
  %v881 = vpop.f32.mrb[0].mxu0
  %882 = vmatprep.mubr.bf16.mxu0 0
  %883 = vmatmul.mubr.bf16.gmra.mrb[0].mxu0 %v135
  %v884 = vpop.f32.mrb[0].mxu0
  %v885 = vadd.f32 %v728, %v884
  %v886 = vpop.f32.mrb[0].mxu0
  %v887 = vpop.f32.mrb[0].mxu0
  %v888 = vadd.f32 %v728, %v887
  %v889 = vpop.f32.mrb[0].mxu0
  %890 = vmatprep.mubr.bf16.mxu0 0
  %891 = vmatmul.mubr.bf16.gmra.mrb[0].mxu0 %v138
  %v892 = vpop.f32.mrb[0].mxu0
  %v893 = vadd.f32 %v728, %v892
  %v894 = vpop.f32.mrb[0].mxu0
  %v895 = vpop.f32.mrb[0].mxu0
  %v896 = vadd.f32 %v728, %v895
  %v897 = vpop.f32.mrb[0].mxu0
  %898 = vmatprep.mubr.bf16.mxu0 0
  %899 = vmatmul.mubr.bf16.gmra.mrb[0].mxu0 %v141
  %v900 = vpop.f32.mrb[0].mxu0
  %v901 = vadd.f32 %v728, %v900
  %v902 = vpop.f32.mrb[0].mxu0
  %v903 = vpop.f32.mrb[0].mxu0
  %v904 = vadd.f32 %v728, %v903
  %v905 = vpop.f32.mrb[0].mxu0
  %906 = vdwg.mxu0
  %908 = vset.pattern.permute.xlu0 0
  %909 = vperm.xlu0 %908, %v646
  %v910 = vpop.permute.xlu0 %909
  %913 = vset.pattern.permute.xlu0 0
  %914 = vperm.xlu0 %913, %v648
  %v915 = vpop.permute.xlu0 %914
  %918 = vset.pattern.permute.xlu0 0
  %919 = vperm.xlu0 %918, %v650
  %v920 = vpop.permute.xlu0 %919
  %923 = vset.pattern.permute.xlu0 0
  %924 = vperm.xlu0 %923, %v652
  %v925 = vpop.permute.xlu0 %924
  %928 = vset.pattern.permute.xlu0 0
  %929 = vperm.xlu0 %928, %v654
  %v930 = vpop.permute.xlu0 %929
  %933 = vset.pattern.permute.xlu0 0
  %934 = vperm.xlu0 %933, %v656
  %v935 = vpop.permute.xlu0 %934
  %938 = vset.pattern.permute.xlu0 0
  %939 = vperm.xlu0 %938, %v658
  %v940 = vpop.permute.xlu0 %939
  %943 = vset.pattern.permute.xlu0 0
  %944 = vperm.xlu0 %943, %v660
  %v945 = vpop.permute.xlu0 %944
  %948 = vset.pattern.permute.xlu0 0
  %949 = vperm.xlu0 %948, %v662
  %v950 = vpop.permute.xlu0 %949
  %953 = vset.pattern.permute.xlu0 0
  %954 = vperm.xlu0 %953, %v664
  %v955 = vpop.permute.xlu0 %954
  %958 = vset.pattern.permute.xlu0 0
  %959 = vperm.xlu0 %958, %v666
  %v960 = vpop.permute.xlu0 %959
  %963 = vset.pattern.permute.xlu0 0
  %964 = vperm.xlu0 %963, %v668
  %v965 = vpop.permute.xlu0 %964
  %968 = vset.pattern.permute.xlu0 0
  %969 = vperm.xlu0 %968, %v670
  %v970 = vpop.permute.xlu0 %969
  %973 = vset.pattern.permute.xlu0 0
  %974 = vperm.xlu0 %973, %v672
  %v975 = vpop.permute.xlu0 %974
  %978 = vset.pattern.permute.xlu0 0
  %979 = vperm.xlu0 %978, %v674
  %v980 = vpop.permute.xlu0 %979
  %983 = vset.pattern.permute.xlu0 0
  %984 = vperm.xlu0 %983, %v676
  %v985 = vpop.permute.xlu0 %984
  %988 = vset.pattern.permute.xlu0 0
  %989 = vperm.xlu0 %988, %v678
  %v990 = vpop.permute.xlu0 %989
  %993 = vset.pattern.permute.xlu0 0
  %994 = vperm.xlu0 %993, %v680
  %v995 = vpop.permute.xlu0 %994
  %998 = vset.pattern.permute.xlu0 0
  %999 = vperm.xlu0 %998, %v682
  %v1000 = vpop.permute.xlu0 %999
  %1003 = vset.pattern.permute.xlu0 0
  %1004 = vperm.xlu0 %1003, %v684
  %v1005 = vpop.permute.xlu0 %1004
  %1008 = vset.pattern.permute.xlu0 0
  %1009 = vperm.xlu0 %1008, %v686
  %v1010 = vpop.permute.xlu0 %1009
  %1013 = vset.pattern.permute.xlu0 0
  %1014 = vperm.xlu0 %1013, %v688
  %v1015 = vpop.permute.xlu0 %1014
  %1018 = vset.pattern.permute.xlu0 0
  %1019 = vperm.xlu0 %1018, %v690
  %v1020 = vpop.permute.xlu0 %1019
  %1023 = vset.pattern.permute.xlu0 0
  %1024 = vperm.xlu0 %1023, %v692
  %v1025 = vpop.permute.xlu0 %1024
  %1028 = vset.pattern.permute.xlu0 0
  %1029 = vperm.xlu0 %1028, %v694
  %v1030 = vpop.permute.xlu0 %1029
  %1033 = vset.pattern.permute.xlu0 0
  %1034 = vperm.xlu0 %1033, %v696
  %v1035 = vpop.permute.xlu0 %1034
  %1038 = vset.pattern.permute.xlu0 0
  %1039 = vperm.xlu0 %1038, %v698
  %v1040 = vpop.permute.xlu0 %1039
  %1043 = vset.pattern.permute.xlu0 0
  %1044 = vperm.xlu0 %1043, %v700
  %v1045 = vpop.permute.xlu0 %1044
  %1048 = vset.pattern.permute.xlu0 0
  %1049 = vperm.xlu0 %1048, %v702
  %v1050 = vpop.permute.xlu0 %1049
  %1053 = vset.pattern.permute.xlu0 0
  %1054 = vperm.xlu0 %1053, %v704
  %v1055 = vpop.permute.xlu0 %1054
  %1058 = vset.pattern.permute.xlu0 0
  %1059 = vperm.xlu0 %1058, %v706
  %v1060 = vpop.permute.xlu0 %1059
  %1063 = vset.pattern.permute.xlu0 0
  %1064 = vperm.xlu0 %1063, %v708
  %v1065 = vpop.permute.xlu0 %1064
  %1068 = vset.pattern.permute.xlu0 0
  %1069 = vperm.xlu0 %1068, %v710
  %v1070 = vpop.permute.xlu0 %1069
  %1073 = vset.pattern.permute.xlu0 0
  %1074 = vperm.xlu0 %1073, %v712
  %v1075 = vpop.permute.xlu0 %1074
  %1078 = vset.pattern.permute.xlu0 0
  %1079 = vperm.xlu0 %1078, %v714
  %v1080 = vpop.permute.xlu0 %1079
  %1083 = vset.pattern.permute.xlu0 0
  %1084 = vperm.xlu0 %1083, %v716
  %v1085 = vpop.permute.xlu0 %1084
  %v1087 = vmul.f32 %v910, %v765
  %v1088 = vmul.f32 %v915, %v768
  %v1089 = vmul.f32 %v920, %v773
  %v1090 = vmul.f32 %v925, %v776
  %v1091 = vmul.f32 %v930, %v781
  %v1092 = vmul.f32 %v935, %v784
  %v1093 = vmul.f32 %v940, %v789
  %v1094 = vmul.f32 %v945, %v792
  %v1095 = vmul.f32 %v950, %v797
  %v1096 = vmul.f32 %v955, %v800
  %v1097 = vmul.f32 %v960, %v805
  %v1098 = vmul.f32 %v965, %v808
  %v1099 = vmul.f32 %v970, %v813
  %v1100 = vmul.f32 %v975, %v816
  %v1101 = vmul.f32 %v980, %v821
  %v1102 = vmul.f32 %v985, %v824
  %v1103 = vmul.f32 %v990, %v829
  %v1104 = vmul.f32 %v995, %v832
  %v1105 = vmul.f32 %v1000, %v837
  %v1106 = vmul.f32 %v1005, %v840
  %v1107 = vmul.f32 %v1010, %v845
  %v1108 = vmul.f32 %v1015, %v848
  %v1109 = vmul.f32 %v1020, %v853
  %v1110 = vmul.f32 %v1025, %v856
  %v1111 = vmul.f32 %v1030, %v861
  %v1112 = vmul.f32 %v1035, %v864
  %v1113 = vmul.f32 %v1040, %v869
  %v1114 = vmul.f32 %v1045, %v872
  %v1115 = vmul.f32 %v1050, %v877
  %v1116 = vmul.f32 %v1055, %v880
  %v1117 = vmul.f32 %v1060, %v885
  %v1118 = vmul.f32 %v1065, %v888
  %v1119 = vmul.f32 %v1070, %v893
  %v1120 = vmul.f32 %v1075, %v896
  %v1121 = vmul.f32 %v1080, %v901
  %v1122 = vmul.f32 %v1085, %v904
  %v1123 = vadd.f32 %v1087, 0.0
  %v1124 = vadd.f32 %v1088, 0.0
  %v1125 = vadd.f32 %v1089, 0.0
  %v1126 = vadd.f32 %v1090, 0.0
  %v1127 = vadd.f32 %v1091, 0.0
  %v1128 = vadd.f32 %v1092, 0.0
  %v1129 = vadd.f32 %v1093, 0.0
  %v1130 = vadd.f32 %v1094, 0.0
  %v1131 = vadd.f32 %v1095, 0.0
  %v1132 = vadd.f32 %v1096, 0.0
  %v1133 = vadd.f32 %v1097, 0.0
  %v1134 = vadd.f32 %v1098, 0.0
  %v1135 = vadd.f32 %v1099, 0.0
  %v1136 = vadd.f32 %v1100, 0.0
  %v1137 = vadd.f32 %v1101, 0.0
  %v1138 = vadd.f32 %v1102, 0.0
  %v1139 = vadd.f32 %v1103, 0.0
  %v1140 = vadd.f32 %v1104, 0.0
  %v1141 = vadd.f32 %v1105, 0.0
  %v1142 = vadd.f32 %v1106, 0.0
  %v1143 = vadd.f32 %v1107, 0.0
  %v1144 = vadd.f32 %v1108, 0.0
  %v1145 = vadd.f32 %v1109, 0.0
  %v1146 = vadd.f32 %v1110, 0.0
  %v1147 = vadd.f32 %v1111, 0.0
  %v1148 = vadd.f32 %v1112, 0.0
  %v1149 = vadd.f32 %v1113, 0.0
  %v1150 = vadd.f32 %v1114, 0.0
  %v1151 = vadd.f32 %v1115, 0.0
  %v1152 = vadd.f32 %v1116, 0.0
  %v1153 = vadd.f32 %v1117, 0.0
  %v1154 = vadd.f32 %v1118, 0.0
  %v1155 = vadd.f32 %v1119, 0.0
  %v1156 = vadd.f32 %v1120, 0.0
  %v1157 = vadd.f32 %v1121, 0.0
  %v1158 = vadd.f32 %v1122, 0.0
  %1159 = vset.pattern.permute.xlu0 1
  %1160 = vperm.xlu0 %1159, %v646
  %v1161 = vpop.permute.xlu0 %1160
  %1163 = vset.pattern.permute.xlu0 1
  %1164 = vperm.xlu0 %1163, %v648
  %v1165 = vpop.permute.xlu0 %1164
  %1167 = vset.pattern.permute.xlu0 1
  %1168 = vperm.xlu0 %1167, %v650
  %v1169 = vpop.permute.xlu0 %1168
  %1171 = vset.pattern.permute.xlu0 1
  %1172 = vperm.xlu0 %1171, %v652
  %v1173 = vpop.permute.xlu0 %1172
  %1175 = vset.pattern.permute.xlu0 1
  %1176 = vperm.xlu0 %1175, %v654
  %v1177 = vpop.permute.xlu0 %1176
  %1179 = vset.pattern.permute.xlu0 1
  %1180 = vperm.xlu0 %1179, %v656
  %v1181 = vpop.permute.xlu0 %1180
  %1183 = vset.pattern.permute.xlu0 1
  %1184 = vperm.xlu0 %1183, %v658
  %v1185 = vpop.permute.xlu0 %1184
  %1187 = vset.pattern.permute.xlu0 1
  %1188 = vperm.xlu0 %1187, %v660
  %v1189 = vpop.permute.xlu0 %1188
  %1191 = vset.pattern.permute.xlu0 1
  %1192 = vperm.xlu0 %1191, %v662
  %v1193 = vpop.permute.xlu0 %1192
  %1195 = vset.pattern.permute.xlu0 1
  %1196 = vperm.xlu0 %1195, %v664
  %v1197 = vpop.permute.xlu0 %1196
  %1199 = vset.pattern.permute.xlu0 1
  %1200 = vperm.xlu0 %1199, %v666
  %v1201 = vpop.permute.xlu0 %1200
  %1203 = vset.pattern.permute.xlu0 1
  %1204 = vperm.xlu0 %1203, %v668
  %v1205 = vpop.permute.xlu0 %1204
  %1207 = vset.pattern.permute.xlu0 1
  %1208 = vperm.xlu0 %1207, %v670
  %v1209 = vpop.permute.xlu0 %1208
  %1211 = vset.pattern.permute.xlu0 1
  %1212 = vperm.xlu0 %1211, %v672
  %v1213 = vpop.permute.xlu0 %1212
  %1215 = vset.pattern.permute.xlu0 1
  %1216 = vperm.xlu0 %1215, %v674
  %v1217 = vpop.permute.xlu0 %1216
  %1219 = vset.pattern.permute.xlu0 1
  %1220 = vperm.xlu0 %1219, %v676
  %v1221 = vpop.permute.xlu0 %1220
  %1223 = vset.pattern.permute.xlu0 1
  %1224 = vperm.xlu0 %1223, %v678
  %v1225 = vpop.permute.xlu0 %1224
  %1227 = vset.pattern.permute.xlu0 1
  %1228 = vperm.xlu0 %1227, %v680
  %v1229 = vpop.permute.xlu0 %1228
  %1231 = vset.pattern.permute.xlu0 1
  %1232 = vperm.xlu0 %1231, %v682
  %v1233 = vpop.permute.xlu0 %1232
  %1235 = vset.pattern.permute.xlu0 1
  %1236 = vperm.xlu0 %1235, %v684
  %v1237 = vpop.permute.xlu0 %1236
  %1239 = vset.pattern.permute.xlu0 1
  %1240 = vperm.xlu0 %1239, %v686
  %v1241 = vpop.permute.xlu0 %1240
  %1243 = vset.pattern.permute.xlu0 1
  %1244 = vperm.xlu0 %1243, %v688
  %v1245 = vpop.permute.xlu0 %1244
  %1247 = vset.pattern.permute.xlu0 1
  %1248 = vperm.xlu0 %1247, %v690
  %v1249 = vpop.permute.xlu0 %1248
  %1251 = vset.pattern.permute.xlu0 1
  %1252 = vperm.xlu0 %1251, %v692
  %v1253 = vpop.permute.xlu0 %1252
  %1255 = vset.pattern.permute.xlu0 1
  %1256 = vperm.xlu0 %1255, %v694
  %v1257 = vpop.permute.xlu0 %1256
  %1259 = vset.pattern.permute.xlu0 1
  %1260 = vperm.xlu0 %1259, %v696
  %v1261 = vpop.permute.xlu0 %1260
  %1263 = vset.pattern.permute.xlu0 1
  %1264 = vperm.xlu0 %1263, %v698
  %v1265 = vpop.permute.xlu0 %1264
  %1267 = vset.pattern.permute.xlu0 1
  %1268 = vperm.xlu0 %1267, %v700
  %v1269 = vpop.permute.xlu0 %1268
  %1271 = vset.pattern.permute.xlu0 1
  %1272 = vperm.xlu0 %1271, %v702
  %v1273 = vpop.permute.xlu0 %1272
  %1275 = vset.pattern.permute.xlu0 1
  %1276 = vperm.xlu0 %1275, %v704
  %v1277 = vpop.permute.xlu0 %1276
  %1279 = vset.pattern.permute.xlu0 1
  %1280 = vperm.xlu0 %1279, %v706
  %v1281 = vpop.permute.xlu0 %1280
  %1283 = vset.pattern.permute.xlu0 1
  %1284 = vperm.xlu0 %1283, %v708
  %v1285 = vpop.permute.xlu0 %1284
  %1287 = vset.pattern.permute.xlu0 1
  %1288 = vperm.xlu0 %1287, %v710
  %v1289 = vpop.permute.xlu0 %1288
  %1291 = vset.pattern.permute.xlu0 1
  %1292 = vperm.xlu0 %1291, %v712
  %v1293 = vpop.permute.xlu0 %1292
  %1295 = vset.pattern.permute.xlu0 1
  %1296 = vperm.xlu0 %1295, %v714
  %v1297 = vpop.permute.xlu0 %1296
  %1299 = vset.pattern.permute.xlu0 1
  %1300 = vperm.xlu0 %1299, %v716
  %v1301 = vpop.permute.xlu0 %1300
  %v1303 = vmul.f32 %v1161, %v765
  %v1304 = vmul.f32 %v1165, %v768
  %v1305 = vmul.f32 %v1169, %v773
  %v1306 = vmul.f32 %v1173, %v776
  %v1307 = vmul.f32 %v1177, %v781
  %v1308 = vmul.f32 %v1181, %v784
  %v1309 = vmul.f32 %v1185, %v789
  %v1310 = vmul.f32 %v1189, %v792
  %v1311 = vmul.f32 %v1193, %v797
  %v1312 = vmul.f32 %v1197, %v800
  %v1313 = vmul.f32 %v1201, %v805
  %v1314 = vmul.f32 %v1205, %v808
  %v1315 = vmul.f32 %v1209, %v813
  %v1316 = vmul.f32 %v1213, %v816
  %v1317 = vmul.f32 %v1217, %v821
  %v1318 = vmul.f32 %v1221, %v824
  %v1319 = vmul.f32 %v1225, %v829
  %v1320 = vmul.f32 %v1229, %v832
  %v1321 = vmul.f32 %v1233, %v837
  %v1322 = vmul.f32 %v1237, %v840
  %v1323 = vmul.f32 %v1241, %v845
  %v1324 = vmul.f32 %v1245, %v848
  %v1325 = vmul.f32 %v1249, %v853
  %v1326 = vmul.f32 %v1253, %v856
  %v1327 = vmul.f32 %v1257, %v861
  %v1328 = vmul.f32 %v1261, %v864
  %v1329 = vmul.f32 %v1265, %v869
  %v1330 = vmul.f32 %v1269, %v872
  %v1331 = vmul.f32 %v1273, %v877
  %v1332 = vmul.f32 %v1277, %v880
  %v1333 = vmul.f32 %v1281, %v885
  %v1334 = vmul.f32 %v1285, %v888
  %v1335 = vmul.f32 %v1289, %v893
  %v1336 = vmul.f32 %v1293, %v896
  %v1337 = vmul.f32 %v1297, %v901
  %v1338 = vmul.f32 %v1301, %v904
  %1375 = vrot.lane.b32.xlu0 %v1303, 96
  %v1376 = vpop.permute.xlu0 %1375
  %1377 = vrot.lane.b32.xlu0 %v1304, 96
  %v1378 = vpop.permute.xlu0 %1377
  %1379 = vrot.lane.b32.xlu0 %v1305, 96
  %v1380 = vpop.permute.xlu0 %1379
  %1381 = vrot.lane.b32.xlu0 %v1306, 96
  %v1382 = vpop.permute.xlu0 %1381
  %1383 = vrot.lane.b32.xlu0 %v1307, 96
  %v1384 = vpop.permute.xlu0 %1383
  %1385 = vrot.lane.b32.xlu0 %v1308, 96
  %v1386 = vpop.permute.xlu0 %1385
  %1387 = vrot.lane.b32.xlu0 %v1309, 96
  %v1388 = vpop.permute.xlu0 %1387
  %1389 = vrot.lane.b32.xlu0 %v1310, 96
  %v1390 = vpop.permute.xlu0 %1389
  %1391 = vrot.lane.b32.xlu0 %v1311, 96
  %v1392 = vpop.permute.xlu0 %1391
  %1393 = vrot.lane.b32.xlu0 %v1312, 96
  %v1394 = vpop.permute.xlu0 %1393
  %1395 = vrot.lane.b32.xlu0 %v1313, 96
  %v1396 = vpop.permute.xlu0 %1395
  %1397 = vrot.lane.b32.xlu0 %v1314, 96
  %v1398 = vpop.permute.xlu0 %1397
  %1399 = vrot.lane.b32.xlu0 %v1315, 96
  %v1400 = vpop.permute.xlu0 %1399
  %1401 = vrot.lane.b32.xlu0 %v1316, 96
  %v1402 = vpop.permute.xlu0 %1401
  %1403 = vrot.lane.b32.xlu0 %v1317, 96
  %v1404 = vpop.permute.xlu0 %1403
  %1405 = vrot.lane.b32.xlu0 %v1318, 96
  %v1406 = vpop.permute.xlu0 %1405
  %1407 = vrot.lane.b32.xlu0 %v1319, 96
  %v1408 = vpop.permute.xlu0 %1407
  %1409 = vrot.lane.b32.xlu0 %v1320, 96
  %v1410 = vpop.permute.xlu0 %1409
  %1411 = vrot.lane.b32.xlu0 %v1321, 96
  %v1412 = vpop.permute.xlu0 %1411
  %1413 = vrot.lane.b32.xlu0 %v1322, 96
  %v1414 = vpop.permute.xlu0 %1413
  %1415 = vrot.lane.b32.xlu0 %v1323, 96
  %v1416 = vpop.permute.xlu0 %1415
  %1417 = vrot.lane.b32.xlu0 %v1324, 96
  %v1418 = vpop.permute.xlu0 %1417
  %1419 = vrot.lane.b32.xlu0 %v1325, 96
  %v1420 = vpop.permute.xlu0 %1419
  %1421 = vrot.lane.b32.xlu0 %v1326, 96
  %v1422 = vpop.permute.xlu0 %1421
  %1423 = vrot.lane.b32.xlu0 %v1327, 96
  %v1424 = vpop.permute.xlu0 %1423
  %1425 = vrot.lane.b32.xlu0 %v1328, 96
  %v1426 = vpop.permute.xlu0 %1425
  %1427 = vrot.lane.b32.xlu0 %v1329, 96
  %v1428 = vpop.permute.xlu0 %1427
  %1429 = vrot.lane.b32.xlu0 %v1330, 96
  %v1430 = vpop.permute.xlu0 %1429
  %1431 = vrot.lane.b32.xlu0 %v1331, 96
  %v1432 = vpop.permute.xlu0 %1431
  %1433 = vrot.lane.b32.xlu0 %v1332, 96
  %v1434 = vpop.permute.xlu0 %1433
  %1435 = vrot.lane.b32.xlu0 %v1333, 96
  %v1436 = vpop.permute.xlu0 %1435
  %1437 = vrot.lane.b32.xlu0 %v1334, 96
  %v1438 = vpop.permute.xlu0 %1437
  %1439 = vrot.lane.b32.xlu0 %v1335, 96
  %v1440 = vpop.permute.xlu0 %1439
  %1441 = vrot.lane.b32.xlu0 %v1336, 96
  %v1442 = vpop.permute.xlu0 %1441
  %1443 = vrot.lane.b32.xlu0 %v1337, 96
  %v1444 = vpop.permute.xlu0 %1443
  %1445 = vrot.lane.b32.xlu0 %v1338, 96
  %v1446 = vpop.permute.xlu0 %1445
  %v1483 = vadd.f32 %v1123, %v1376
  %v1484 = vadd.f32 %v1124, %v1378
  %v1485 = vadd.f32 %v1125, %v1380
  %v1486 = vadd.f32 %v1126, %v1382
  %v1487 = vadd.f32 %v1127, %v1384
  %v1488 = vadd.f32 %v1128, %v1386
  %v1489 = vadd.f32 %v1129, %v1388
  %v1490 = vadd.f32 %v1130, %v1390
  %v1491 = vadd.f32 %v1131, %v1392
  %v1492 = vadd.f32 %v1132, %v1394
  %v1493 = vadd.f32 %v1133, %v1396
  %v1494 = vadd.f32 %v1134, %v1398
  %v1495 = vadd.f32 %v1135, %v1400
  %v1496 = vadd.f32 %v1136, %v1402
  %v1497 = vadd.f32 %v1137, %v1404
  %v1498 = vadd.f32 %v1138, %v1406
  %v1499 = vadd.f32 %v1139, %v1408
  %v1500 = vadd.f32 %v1140, %v1410
  %v1501 = vadd.f32 %v1141, %v1412
  %v1502 = vadd.f32 %v1142, %v1414
  %v1503 = vadd.f32 %v1143, %v1416
  %v1504 = vadd.f32 %v1144, %v1418
  %v1505 = vadd.f32 %v1145, %v1420
  %v1506 = vadd.f32 %v1146, %v1422
  %v1507 = vadd.f32 %v1147, %v1424
  %v1508 = vadd.f32 %v1148, %v1426
  %v1509 = vadd.f32 %v1149, %v1428
  %v1510 = vadd.f32 %v1150, %v1430
  %v1511 = vadd.f32 %v1151, %v1432
  %v1512 = vadd.f32 %v1152, %v1434
  %v1513 = vadd.f32 %v1153, %v1436
  %v1514 = vadd.f32 %v1154, %v1438
  %v1515 = vadd.f32 %v1155, %v1440
  %v1516 = vadd.f32 %v1156, %v1442
  %v1517 = vadd.f32 %v1157, %v1444
  %v1518 = vadd.f32 %v1158, %v1446
  %1519 = vset.pattern.permute.xlu0 2
  %1520 = vperm.xlu0 %1519, %v646
  %v1521 = vpop.permute.xlu0 %1520
  %1523 = vset.pattern.permute.xlu0 2
  %1524 = vperm.xlu0 %1523, %v648
  %v1525 = vpop.permute.xlu0 %1524
  %1527 = vset.pattern.permute.xlu0 2
  %1528 = vperm.xlu0 %1527, %v650
  %v1529 = vpop.permute.xlu0 %1528
  %1531 = vset.pattern.permute.xlu0 2
  %1532 = vperm.xlu0 %1531, %v652
  %v1533 = vpop.permute.xlu0 %1532
  %1535 = vset.pattern.permute.xlu0 2
  %1536 = vperm.xlu0 %1535, %v654
  %v1537 = vpop.permute.xlu0 %1536
  %1539 = vset.pattern.permute.xlu0 2
  %1540 = vperm.xlu0 %1539, %v656
  %v1541 = vpop.permute.xlu0 %1540
  %1543 = vset.pattern.permute.xlu0 2
  %1544 = vperm.xlu0 %1543, %v658
  %v1545 = vpop.permute.xlu0 %1544
  %1547 = vset.pattern.permute.xlu0 2
  %1548 = vperm.xlu0 %1547, %v660
  %v1549 = vpop.permute.xlu0 %1548
  %1551 = vset.pattern.permute.xlu0 2
  %1552 = vperm.xlu0 %1551, %v662
  %v1553 = vpop.permute.xlu0 %1552
  %1555 = vset.pattern.permute.xlu0 2
  %1556 = vperm.xlu0 %1555, %v664
  %v1557 = vpop.permute.xlu0 %1556
  %1559 = vset.pattern.permute.xlu0 2
  %1560 = vperm.xlu0 %1559, %v666
  %v1561 = vpop.permute.xlu0 %1560
  %1563 = vset.pattern.permute.xlu0 2
  %1564 = vperm.xlu0 %1563, %v668
  %v1565 = vpop.permute.xlu0 %1564
  %1567 = vset.pattern.permute.xlu0 2
  %1568 = vperm.xlu0 %1567, %v670
  %v1569 = vpop.permute.xlu0 %1568
  %1571 = vset.pattern.permute.xlu0 2
  %1572 = vperm.xlu0 %1571, %v672
  %v1573 = vpop.permute.xlu0 %1572
  %1575 = vset.pattern.permute.xlu0 2
  %1576 = vperm.xlu0 %1575, %v674
  %v1577 = vpop.permute.xlu0 %1576
  %1579 = vset.pattern.permute.xlu0 2
  %1580 = vperm.xlu0 %1579, %v676
  %v1581 = vpop.permute.xlu0 %1580
  %1583 = vset.pattern.permute.xlu0 2
  %1584 = vperm.xlu0 %1583, %v678
  %v1585 = vpop.permute.xlu0 %1584
  %1587 = vset.pattern.permute.xlu0 2
  %1588 = vperm.xlu0 %1587, %v680
  %v1589 = vpop.permute.xlu0 %1588
  %1591 = vset.pattern.permute.xlu0 2
  %1592 = vperm.xlu0 %1591, %v682
  %v1593 = vpop.permute.xlu0 %1592
  %1595 = vset.pattern.permute.xlu0 2
  %1596 = vperm.xlu0 %1595, %v684
  %v1597 = vpop.permute.xlu0 %1596
  %1599 = vset.pattern.permute.xlu0 2
  %1600 = vperm.xlu0 %1599, %v686
  %v1601 = vpop.permute.xlu0 %1600
  %1603 = vset.pattern.permute.xlu0 2
  %1604 = vperm.xlu0 %1603, %v688
  %v1605 = vpop.permute.xlu0 %1604
  %1607 = vset.pattern.permute.xlu0 2
  %1608 = vperm.xlu0 %1607, %v690
  %v1609 = vpop.permute.xlu0 %1608
  %1611 = vset.pattern.permute.xlu0 2
  %1612 = vperm.xlu0 %1611, %v692
  %v1613 = vpop.permute.xlu0 %1612
  %1615 = vset.pattern.permute.xlu0 2
  %1616 = vperm.xlu0 %1615, %v694
  %v1617 = vpop.permute.xlu0 %1616
  %1619 = vset.pattern.permute.xlu0 2
  %1620 = vperm.xlu0 %1619, %v696
  %v1621 = vpop.permute.xlu0 %1620
  %1623 = vset.pattern.permute.xlu0 2
  %1624 = vperm.xlu0 %1623, %v698
  %v1625 = vpop.permute.xlu0 %1624
  %1627 = vset.pattern.permute.xlu0 2
  %1628 = vperm.xlu0 %1627, %v700
  %v1629 = vpop.permute.xlu0 %1628
  %1631 = vset.pattern.permute.xlu0 2
  %1632 = vperm.xlu0 %1631, %v702
  %v1633 = vpop.permute.xlu0 %1632
  %1635 = vset.pattern.permute.xlu0 2
  %1636 = vperm.xlu0 %1635, %v704
  %v1637 = vpop.permute.xlu0 %1636
  %1639 = vset.pattern.permute.xlu0 2
  %1640 = vperm.xlu0 %1639, %v706
  %v1641 = vpop.permute.xlu0 %1640
  %1643 = vset.pattern.permute.xlu0 2
  %1644 = vperm.xlu0 %1643, %v708
  %v1645 = vpop.permute.xlu0 %1644
  %1647 = vset.pattern.permute.xlu0 2
  %1648 = vperm.xlu0 %1647, %v710
  %v1649 = vpop.permute.xlu0 %1648
  %1651 = vset.pattern.permute.xlu0 2
  %1652 = vperm.xlu0 %1651, %v712
  %v1653 = vpop.permute.xlu0 %1652
  %1655 = vset.pattern.permute.xlu0 2
  %1656 = vperm.xlu0 %1655, %v714
  %v1657 = vpop.permute.xlu0 %1656
  %1659 = vset.pattern.permute.xlu0 2
  %1660 = vperm.xlu0 %1659, %v716
  %v1661 = vpop.permute.xlu0 %1660
  %v1663 = vmul.f32 %v1521, %v765
  %v1664 = vmul.f32 %v1525, %v768
  %v1665 = vmul.f32 %v1529, %v773
  %v1666 = vmul.f32 %v1533, %v776
  %v1667 = vmul.f32 %v1537, %v781
  %v1668 = vmul.f32 %v1541, %v784
  %v1669 = vmul.f32 %v1545, %v789
  %v1670 = vmul.f32 %v1549, %v792
  %v1671 = vmul.f32 %v1553, %v797
  %v1672 = vmul.f32 %v1557, %v800
  %v1673 = vmul.f32 %v1561, %v805
  %v1674 = vmul.f32 %v1565, %v808
  %v1675 = vmul.f32 %v1569, %v813
  %v1676 = vmul.f32 %v1573, %v816
  %v1677 = vmul.f32 %v1577, %v821
  %v1678 = vmul.f32 %v1581, %v824
  %v1679 = vmul.f32 %v1585, %v829
  %v1680 = vmul.f32 %v1589, %v832
  %v1681 = vmul.f32 %v1593, %v837
  %v1682 = vmul.f32 %v1597, %v840
  %v1683 = vmul.f32 %v1601, %v845
  %v1684 = vmul.f32 %v1605, %v848
  %v1685 = vmul.f32 %v1609, %v853
  %v1686 = vmul.f32 %v1613, %v856
  %v1687 = vmul.f32 %v1617, %v861
  %v1688 = vmul.f32 %v1621, %v864
  %v1689 = vmul.f32 %v1625, %v869
  %v1690 = vmul.f32 %v1629, %v872
  %v1691 = vmul.f32 %v1633, %v877
  %v1692 = vmul.f32 %v1637, %v880
  %v1693 = vmul.f32 %v1641, %v885
  %v1694 = vmul.f32 %v1645, %v888
  %v1695 = vmul.f32 %v1649, %v893
  %v1696 = vmul.f32 %v1653, %v896
  %v1697 = vmul.f32 %v1657, %v901
  %v1698 = vmul.f32 %v1661, %v904
  %1735 = vrot.lane.b32.xlu0 %v1663, 64
  %v1736 = vpop.permute.xlu0 %1735
  %1737 = vrot.lane.b32.xlu0 %v1664, 64
  %v1738 = vpop.permute.xlu0 %1737
  %1739 = vrot.lane.b32.xlu0 %v1665, 64
  %v1740 = vpop.permute.xlu0 %1739
  %1741 = vrot.lane.b32.xlu0 %v1666, 64
  %v1742 = vpop.permute.xlu0 %1741
  %1743 = vrot.lane.b32.xlu0 %v1667, 64
  %v1744 = vpop.permute.xlu0 %1743
  %1745 = vrot.lane.b32.xlu0 %v1668, 64
  %v1746 = vpop.permute.xlu0 %1745
  %1747 = vrot.lane.b32.xlu0 %v1669, 64
  %v1748 = vpop.permute.xlu0 %1747
  %1749 = vrot.lane.b32.xlu0 %v1670, 64
  %v1750 = vpop.permute.xlu0 %1749
  %1751 = vrot.lane.b32.xlu0 %v1671, 64
  %v1752 = vpop.permute.xlu0 %1751
  %1753 = vrot.lane.b32.xlu0 %v1672, 64
  %v1754 = vpop.permute.xlu0 %1753
  %1755 = vrot.lane.b32.xlu0 %v1673, 64
  %v1756 = vpop.permute.xlu0 %1755
  %1757 = vrot.lane.b32.xlu0 %v1674, 64
  %v1758 = vpop.permute.xlu0 %1757
  %1759 = vrot.lane.b32.xlu0 %v1675, 64
  %v1760 = vpop.permute.xlu0 %1759
  %1761 = vrot.lane.b32.xlu0 %v1676, 64
  %v1762 = vpop.permute.xlu0 %1761
  %1763 = vrot.lane.b32.xlu0 %v1677, 64
  %v1764 = vpop.permute.xlu0 %1763
  %1765 = vrot.lane.b32.xlu0 %v1678, 64
  %v1766 = vpop.permute.xlu0 %1765
  %1767 = vrot.lane.b32.xlu0 %v1679, 64
  %v1768 = vpop.permute.xlu0 %1767
  %1769 = vrot.lane.b32.xlu0 %v1680, 64
  %v1770 = vpop.permute.xlu0 %1769
  %1771 = vrot.lane.b32.xlu0 %v1681, 64
  %v1772 = vpop.permute.xlu0 %1771
  %1773 = vrot.lane.b32.xlu0 %v1682, 64
  %v1774 = vpop.permute.xlu0 %1773
  %1775 = vrot.lane.b32.xlu0 %v1683, 64
  %v1776 = vpop.permute.xlu0 %1775
  %1777 = vrot.lane.b32.xlu0 %v1684, 64
  %v1778 = vpop.permute.xlu0 %1777
  %1779 = vrot.lane.b32.xlu0 %v1685, 64
  %v1780 = vpop.permute.xlu0 %1779
  %1781 = vrot.lane.b32.xlu0 %v1686, 64
  %v1782 = vpop.permute.xlu0 %1781
  %1783 = vrot.lane.b32.xlu0 %v1687, 64
  %v1784 = vpop.permute.xlu0 %1783
  %1785 = vrot.lane.b32.xlu0 %v1688, 64
  %v1786 = vpop.permute.xlu0 %1785
  %1787 = vrot.lane.b32.xlu0 %v1689, 64
  %v1788 = vpop.permute.xlu0 %1787
  %1789 = vrot.lane.b32.xlu0 %v1690, 64
  %v1790 = vpop.permute.xlu0 %1789
  %1791 = vrot.lane.b32.xlu0 %v1691, 64
  %v1792 = vpop.permute.xlu0 %1791
  %1793 = vrot.lane.b32.xlu0 %v1692, 64
  %v1794 = vpop.permute.xlu0 %1793
  %1795 = vrot.lane.b32.xlu0 %v1693, 64
  %v1796 = vpop.permute.xlu0 %1795
  %1797 = vrot.lane.b32.xlu0 %v1694, 64
  %v1798 = vpop.permute.xlu0 %1797
  %1799 = vrot.lane.b32.xlu0 %v1695, 64
  %v1800 = vpop.permute.xlu0 %1799
  %1801 = vrot.lane.b32.xlu0 %v1696, 64
  %v1802 = vpop.permute.xlu0 %1801
  %1803 = vrot.lane.b32.xlu0 %v1697, 64
  %v1804 = vpop.permute.xlu0 %1803
  %1805 = vrot.lane.b32.xlu0 %v1698, 64
  %v1806 = vpop.permute.xlu0 %1805
  %v1843 = vadd.f32 %v1483, %v1736
  %v1844 = vadd.f32 %v1484, %v1738
  %v1845 = vadd.f32 %v1485, %v1740
  %v1846 = vadd.f32 %v1486, %v1742
  %v1847 = vadd.f32 %v1487, %v1744
  %v1848 = vadd.f32 %v1488, %v1746
  %v1849 = vadd.f32 %v1489, %v1748
  %v1850 = vadd.f32 %v1490, %v1750
  %v1851 = vadd.f32 %v1491, %v1752
  %v1852 = vadd.f32 %v1492, %v1754
  %v1853 = vadd.f32 %v1493, %v1756
  %v1854 = vadd.f32 %v1494, %v1758
  %v1855 = vadd.f32 %v1495, %v1760
  %v1856 = vadd.f32 %v1496, %v1762
  %v1857 = vadd.f32 %v1497, %v1764
  %v1858 = vadd.f32 %v1498, %v1766
  %v1859 = vadd.f32 %v1499, %v1768
  %v1860 = vadd.f32 %v1500, %v1770
  %v1861 = vadd.f32 %v1501, %v1772
  %v1862 = vadd.f32 %v1502, %v1774
  %v1863 = vadd.f32 %v1503, %v1776
  %v1864 = vadd.f32 %v1504, %v1778
  %v1865 = vadd.f32 %v1505, %v1780
  %v1866 = vadd.f32 %v1506, %v1782
  %v1867 = vadd.f32 %v1507, %v1784
  %v1868 = vadd.f32 %v1508, %v1786
  %v1869 = vadd.f32 %v1509, %v1788
  %v1870 = vadd.f32 %v1510, %v1790
  %v1871 = vadd.f32 %v1511, %v1792
  %v1872 = vadd.f32 %v1512, %v1794
  %v1873 = vadd.f32 %v1513, %v1796
  %v1874 = vadd.f32 %v1514, %v1798
  %v1875 = vadd.f32 %v1515, %v1800
  %v1876 = vadd.f32 %v1516, %v1802
  %v1877 = vadd.f32 %v1517, %v1804
  %v1878 = vadd.f32 %v1518, %v1806
  %1879 = vset.pattern.permute.xlu0 3
  %1880 = vperm.xlu0 %1879, %v646
  %v1881 = vpop.permute.xlu0 %1880
  %1883 = vset.pattern.permute.xlu0 3
  %1884 = vperm.xlu0 %1883, %v648
  %v1885 = vpop.permute.xlu0 %1884
  %1887 = vset.pattern.permute.xlu0 3
  %1888 = vperm.xlu0 %1887, %v650
  %v1889 = vpop.permute.xlu0 %1888
  %1891 = vset.pattern.permute.xlu0 3
  %1892 = vperm.xlu0 %1891, %v652
  %v1893 = vpop.permute.xlu0 %1892
  %1895 = vset.pattern.permute.xlu0 3
  %1896 = vperm.xlu0 %1895, %v654
  %v1897 = vpop.permute.xlu0 %1896
  %1899 = vset.pattern.permute.xlu0 3
  %1900 = vperm.xlu0 %1899, %v656
  %v1901 = vpop.permute.xlu0 %1900
  %1903 = vset.pattern.permute.xlu0 3
  %1904 = vperm.xlu0 %1903, %v658
  %v1905 = vpop.permute.xlu0 %1904
  %1907 = vset.pattern.permute.xlu0 3
  %1908 = vperm.xlu0 %1907, %v660
  %v1909 = vpop.permute.xlu0 %1908
  %1911 = vset.pattern.permute.xlu0 3
  %1912 = vperm.xlu0 %1911, %v662
  %v1913 = vpop.permute.xlu0 %1912
  %1915 = vset.pattern.permute.xlu0 3
  %1916 = vperm.xlu0 %1915, %v664
  %v1917 = vpop.permute.xlu0 %1916
  %1919 = vset.pattern.permute.xlu0 3
  %1920 = vperm.xlu0 %1919, %v666
  %v1921 = vpop.permute.xlu0 %1920
  %1923 = vset.pattern.permute.xlu0 3
  %1924 = vperm.xlu0 %1923, %v668
  %v1925 = vpop.permute.xlu0 %1924
  %1927 = vset.pattern.permute.xlu0 3
  %1928 = vperm.xlu0 %1927, %v670
  %v1929 = vpop.permute.xlu0 %1928
  %1931 = vset.pattern.permute.xlu0 3
  %1932 = vperm.xlu0 %1931, %v672
  %v1933 = vpop.permute.xlu0 %1932
  %1935 = vset.pattern.permute.xlu0 3
  %1936 = vperm.xlu0 %1935, %v674
  %v1937 = vpop.permute.xlu0 %1936
  %1939 = vset.pattern.permute.xlu0 3
  %1940 = vperm.xlu0 %1939, %v676
  %v1941 = vpop.permute.xlu0 %1940
  %1943 = vset.pattern.permute.xlu0 3
  %1944 = vperm.xlu0 %1943, %v678
  %v1945 = vpop.permute.xlu0 %1944
  %1947 = vset.pattern.permute.xlu0 3
  %1948 = vperm.xlu0 %1947, %v680
  %v1949 = vpop.permute.xlu0 %1948
  %1951 = vset.pattern.permute.xlu0 3
  %1952 = vperm.xlu0 %1951, %v682
  %v1953 = vpop.permute.xlu0 %1952
  %1955 = vset.pattern.permute.xlu0 3
  %1956 = vperm.xlu0 %1955, %v684
  %v1957 = vpop.permute.xlu0 %1956
  %1959 = vset.pattern.permute.xlu0 3
  %1960 = vperm.xlu0 %1959, %v686
  %v1961 = vpop.permute.xlu0 %1960
  %1963 = vset.pattern.permute.xlu0 3
  %1964 = vperm.xlu0 %1963, %v688
  %v1965 = vpop.permute.xlu0 %1964
  %1967 = vset.pattern.permute.xlu0 3
  %1968 = vperm.xlu0 %1967, %v690
  %v1969 = vpop.permute.xlu0 %1968
  %1971 = vset.pattern.permute.xlu0 3
  %1972 = vperm.xlu0 %1971, %v692
  %v1973 = vpop.permute.xlu0 %1972
  %1975 = vset.pattern.permute.xlu0 3
  %1976 = vperm.xlu0 %1975, %v694
  %v1977 = vpop.permute.xlu0 %1976
  %1979 = vset.pattern.permute.xlu0 3
  %1980 = vperm.xlu0 %1979, %v696
  %v1981 = vpop.permute.xlu0 %1980
  %1983 = vset.pattern.permute.xlu0 3
  %1984 = vperm.xlu0 %1983, %v698
  %v1985 = vpop.permute.xlu0 %1984
  %1987 = vset.pattern.permute.xlu0 3
  %1988 = vperm.xlu0 %1987, %v700
  %v1989 = vpop.permute.xlu0 %1988
  %1991 = vset.pattern.permute.xlu0 3
  %1992 = vperm.xlu0 %1991, %v702
  %v1993 = vpop.permute.xlu0 %1992
  %1995 = vset.pattern.permute.xlu0 3
  %1996 = vperm.xlu0 %1995, %v704
  %v1997 = vpop.permute.xlu0 %1996
  %1999 = vset.pattern.permute.xlu0 3
  %2000 = vperm.xlu0 %1999, %v706
  %v2001 = vpop.permute.xlu0 %2000
  %2003 = vset.pattern.permute.xlu0 3
  %2004 = vperm.xlu0 %2003, %v708
  %v2005 = vpop.permute.xlu0 %2004
  %2007 = vset.pattern.permute.xlu0 3
  %2008 = vperm.xlu0 %2007, %v710
  %v2009 = vpop.permute.xlu0 %2008
  %2011 = vset.pattern.permute.xlu0 3
  %2012 = vperm.xlu0 %2011, %v712
  %v2013 = vpop.permute.xlu0 %2012
  %2015 = vset.pattern.permute.xlu0 3
  %2016 = vperm.xlu0 %2015, %v714
  %v2017 = vpop.permute.xlu0 %2016
  %2019 = vset.pattern.permute.xlu0 3
  %2020 = vperm.xlu0 %2019, %v716
  %v2021 = vpop.permute.xlu0 %2020
  %v2023 = vmul.f32 %v1881, %v765
  %v2024 = vmul.f32 %v1885, %v768
  %v2025 = vmul.f32 %v1889, %v773
  %v2026 = vmul.f32 %v1893, %v776
  %v2027 = vmul.f32 %v1897, %v781
  %v2028 = vmul.f32 %v1901, %v784
  %v2029 = vmul.f32 %v1905, %v789
  %v2030 = vmul.f32 %v1909, %v792
  %v2031 = vmul.f32 %v1913, %v797
  %v2032 = vmul.f32 %v1917, %v800
  %v2033 = vmul.f32 %v1921, %v805
  %v2034 = vmul.f32 %v1925, %v808
  %v2035 = vmul.f32 %v1929, %v813
  %v2036 = vmul.f32 %v1933, %v816
  %v2037 = vmul.f32 %v1937, %v821
  %v2038 = vmul.f32 %v1941, %v824
  %v2039 = vmul.f32 %v1945, %v829
  %v2040 = vmul.f32 %v1949, %v832
  %v2041 = vmul.f32 %v1953, %v837
  %v2042 = vmul.f32 %v1957, %v840
  %v2043 = vmul.f32 %v1961, %v845
  %v2044 = vmul.f32 %v1965, %v848
  %v2045 = vmul.f32 %v1969, %v853
  %v2046 = vmul.f32 %v1973, %v856
  %v2047 = vmul.f32 %v1977, %v861
  %v2048 = vmul.f32 %v1981, %v864
  %v2049 = vmul.f32 %v1985, %v869
  %v2050 = vmul.f32 %v1989, %v872
  %v2051 = vmul.f32 %v1993, %v877
  %v2052 = vmul.f32 %v1997, %v880
  %v2053 = vmul.f32 %v2001, %v885
  %v2054 = vmul.f32 %v2005, %v888
  %v2055 = vmul.f32 %v2009, %v893
  %v2056 = vmul.f32 %v2013, %v896
  %v2057 = vmul.f32 %v2017, %v901
  %v2058 = vmul.f32 %v2021, %v904
  %2095 = vrot.lane.b32.xlu0 %v2023, 32
  %v2096 = vpop.permute.xlu0 %2095
  %2097 = vrot.lane.b32.xlu0 %v2024, 32
  %v2098 = vpop.permute.xlu0 %2097
  %2099 = vrot.lane.b32.xlu0 %v2025, 32
  %v2100 = vpop.permute.xlu0 %2099
  %2101 = vrot.lane.b32.xlu0 %v2026, 32
  %v2102 = vpop.permute.xlu0 %2101
  %2103 = vrot.lane.b32.xlu0 %v2027, 32
  %v2104 = vpop.permute.xlu0 %2103
  %2105 = vrot.lane.b32.xlu0 %v2028, 32
  %v2106 = vpop.permute.xlu0 %2105
  %2107 = vrot.lane.b32.xlu0 %v2029, 32
  %v2108 = vpop.permute.xlu0 %2107
  %2109 = vrot.lane.b32.xlu0 %v2030, 32
  %v2110 = vpop.permute.xlu0 %2109
  %2111 = vrot.lane.b32.xlu0 %v2031, 32
  %v2112 = vpop.permute.xlu0 %2111
  %2113 = vrot.lane.b32.xlu0 %v2032, 32
  %v2114 = vpop.permute.xlu0 %2113
  %2115 = vrot.lane.b32.xlu0 %v2033, 32
  %v2116 = vpop.permute.xlu0 %2115
  %2117 = vrot.lane.b32.xlu0 %v2034, 32
  %v2118 = vpop.permute.xlu0 %2117
  %2119 = vrot.lane.b32.xlu0 %v2035, 32
  %v2120 = vpop.permute.xlu0 %2119
  %2121 = vrot.lane.b32.xlu0 %v2036, 32
  %v2122 = vpop.permute.xlu0 %2121
  %2123 = vrot.lane.b32.xlu0 %v2037, 32
  %v2124 = vpop.permute.xlu0 %2123
  %2125 = vrot.lane.b32.xlu0 %v2038, 32
  %v2126 = vpop.permute.xlu0 %2125
  %2127 = vrot.lane.b32.xlu0 %v2039, 32
  %v2128 = vpop.permute.xlu0 %2127
  %2129 = vrot.lane.b32.xlu0 %v2040, 32
  %v2130 = vpop.permute.xlu0 %2129
  %2131 = vrot.lane.b32.xlu0 %v2041, 32
  %v2132 = vpop.permute.xlu0 %2131
  %2133 = vrot.lane.b32.xlu0 %v2042, 32
  %v2134 = vpop.permute.xlu0 %2133
  %2135 = vrot.lane.b32.xlu0 %v2043, 32
  %v2136 = vpop.permute.xlu0 %2135
  %2137 = vrot.lane.b32.xlu0 %v2044, 32
  %v2138 = vpop.permute.xlu0 %2137
  %2139 = vrot.lane.b32.xlu0 %v2045, 32
  %v2140 = vpop.permute.xlu0 %2139
  %2141 = vrot.lane.b32.xlu0 %v2046, 32
  %v2142 = vpop.permute.xlu0 %2141
  %2143 = vrot.lane.b32.xlu0 %v2047, 32
  %v2144 = vpop.permute.xlu0 %2143
  %2145 = vrot.lane.b32.xlu0 %v2048, 32
  %v2146 = vpop.permute.xlu0 %2145
  %2147 = vrot.lane.b32.xlu0 %v2049, 32
  %v2148 = vpop.permute.xlu0 %2147
  %2149 = vrot.lane.b32.xlu0 %v2050, 32
  %v2150 = vpop.permute.xlu0 %2149
  %2151 = vrot.lane.b32.xlu0 %v2051, 32
  %v2152 = vpop.permute.xlu0 %2151
  %2153 = vrot.lane.b32.xlu0 %v2052, 32
  %v2154 = vpop.permute.xlu0 %2153
  %2155 = vrot.lane.b32.xlu0 %v2053, 32
  %v2156 = vpop.permute.xlu0 %2155
  %2157 = vrot.lane.b32.xlu0 %v2054, 32
  %v2158 = vpop.permute.xlu0 %2157
  %2159 = vrot.lane.b32.xlu0 %v2055, 32
  %v2160 = vpop.permute.xlu0 %2159
  %2161 = vrot.lane.b32.xlu0 %v2056, 32
  %v2162 = vpop.permute.xlu0 %2161
  %2163 = vrot.lane.b32.xlu0 %v2057, 32
  %v2164 = vpop.permute.xlu0 %2163
  %2165 = vrot.lane.b32.xlu0 %v2058, 32
  %v2166 = vpop.permute.xlu0 %2165
  %v2203 = vadd.f32 %v1843, %v2096
  %v2204 = vadd.f32 %v1844, %v2098
  %v2205 = vadd.f32 %v1845, %v2100
  %v2206 = vadd.f32 %v1846, %v2102
  %v2207 = vadd.f32 %v1847, %v2104
  %v2208 = vadd.f32 %v1848, %v2106
  %v2209 = vadd.f32 %v1849, %v2108
  %v2210 = vadd.f32 %v1850, %v2110
  %v2211 = vadd.f32 %v1851, %v2112
  %v2212 = vadd.f32 %v1852, %v2114
  %v2213 = vadd.f32 %v1853, %v2116
  %v2214 = vadd.f32 %v1854, %v2118
  %v2215 = vadd.f32 %v1855, %v2120
  %v2216 = vadd.f32 %v1856, %v2122
  %v2217 = vadd.f32 %v1857, %v2124
  %v2218 = vadd.f32 %v1858, %v2126
  %v2219 = vadd.f32 %v1859, %v2128
  %v2220 = vadd.f32 %v1860, %v2130
  %v2221 = vadd.f32 %v1861, %v2132
  %v2222 = vadd.f32 %v1862, %v2134
  %v2223 = vadd.f32 %v1863, %v2136
  %v2224 = vadd.f32 %v1864, %v2138
  %v2225 = vadd.f32 %v1865, %v2140
  %v2226 = vadd.f32 %v1866, %v2142
  %v2227 = vadd.f32 %v1867, %v2144
  %v2228 = vadd.f32 %v1868, %v2146
  %v2229 = vadd.f32 %v1869, %v2148
  %v2230 = vadd.f32 %v1870, %v2150
  %v2231 = vadd.f32 %v1871, %v2152
  %v2232 = vadd.f32 %v1872, %v2154
  %v2233 = vadd.f32 %v1873, %v2156
  %v2234 = vadd.f32 %v1874, %v2158
  %v2235 = vadd.f32 %v1875, %v2160
  %v2236 = vadd.f32 %v1876, %v2162
  %v2237 = vadd.f32 %v1877, %v2164
  %v2238 = vadd.f32 %v1878, %v2166
  %v2239 = vmul.f32 %v2203, 0.5
  %v2240 = vmul.f32 %v2204, 0.5
  %v2241 = vmul.f32 %v2205, 0.5
  %v2242 = vmul.f32 %v2206, 0.5
  %v2243 = vmul.f32 %v2207, 0.5
  %v2244 = vmul.f32 %v2208, 0.5
  %v2245 = vmul.f32 %v2209, 0.5
  %v2246 = vmul.f32 %v2210, 0.5
  %v2247 = vmul.f32 %v2211, 0.5
  %v2248 = vmul.f32 %v2212, 0.5
  %v2249 = vmul.f32 %v2213, 0.5
  %v2250 = vmul.f32 %v2214, 0.5
  %v2251 = vmul.f32 %v2215, 0.5
  %v2252 = vmul.f32 %v2216, 0.5
  %v2253 = vmul.f32 %v2217, 0.5
  %v2254 = vmul.f32 %v2218, 0.5
  %v2255 = vmul.f32 %v2219, 0.5
  %v2256 = vmul.f32 %v2220, 0.5
  %v2257 = vmul.f32 %v2221, 0.5
  %v2258 = vmul.f32 %v2222, 0.5
  %v2259 = vmul.f32 %v2223, 0.5
  %v2260 = vmul.f32 %v2224, 0.5
  %v2261 = vmul.f32 %v2225, 0.5
  %v2262 = vmul.f32 %v2226, 0.5
  %v2263 = vmul.f32 %v2227, 0.5
  %v2264 = vmul.f32 %v2228, 0.5
  %v2265 = vmul.f32 %v2229, 0.5
  %v2266 = vmul.f32 %v2230, 0.5
  %v2267 = vmul.f32 %v2231, 0.5
  %v2268 = vmul.f32 %v2232, 0.5
  %v2269 = vmul.f32 %v2233, 0.5
  %v2270 = vmul.f32 %v2234, 0.5
  %v2271 = vmul.f32 %v2235, 0.5
  %v2272 = vmul.f32 %v2236, 0.5
  %v2273 = vmul.f32 %v2237, 0.5
  %v2274 = vmul.f32 %v2238, 0.5
  %v2275 = vmul.f32 %v2203, 0.70710677
  %v2276 = vmul.f32 %v2204, 0.70710677
  %v2277 = vmul.f32 %v2205, 0.70710677
  %v2278 = vmul.f32 %v2206, 0.70710677
  %v2279 = vmul.f32 %v2207, 0.70710677
  %v2280 = vmul.f32 %v2208, 0.70710677
  %v2281 = vmul.f32 %v2209, 0.70710677
  %v2282 = vmul.f32 %v2210, 0.70710677
  %v2283 = vmul.f32 %v2211, 0.70710677
  %v2284 = vmul.f32 %v2212, 0.70710677
  %v2285 = vmul.f32 %v2213, 0.70710677
  %v2286 = vmul.f32 %v2214, 0.70710677
  %v2287 = vmul.f32 %v2215, 0.70710677
  %v2288 = vmul.f32 %v2216, 0.70710677
  %v2289 = vmul.f32 %v2217, 0.70710677
  %v2290 = vmul.f32 %v2218, 0.70710677
  %v2291 = vmul.f32 %v2219, 0.70710677
  %v2292 = vmul.f32 %v2220, 0.70710677
  %v2293 = vmul.f32 %v2221, 0.70710677
  %v2294 = vmul.f32 %v2222, 0.70710677
  %v2295 = vmul.f32 %v2223, 0.70710677
  %v2296 = vmul.f32 %v2224, 0.70710677
  %v2297 = vmul.f32 %v2225, 0.70710677
  %v2298 = vmul.f32 %v2226, 0.70710677
  %v2299 = vmul.f32 %v2227, 0.70710677
  %v2300 = vmul.f32 %v2228, 0.70710677
  %v2301 = vmul.f32 %v2229, 0.70710677
  %v2302 = vmul.f32 %v2230, 0.70710677
  %v2303 = vmul.f32 %v2231, 0.70710677
  %v2304 = vmul.f32 %v2232, 0.70710677
  %v2305 = vmul.f32 %v2233, 0.70710677
  %v2306 = vmul.f32 %v2234, 0.70710677
  %v2307 = vmul.f32 %v2235, 0.70710677
  %v2308 = vmul.f32 %v2236, 0.70710677
  %v2309 = vmul.f32 %v2237, 0.70710677
  %v2310 = vmul.f32 %v2238, 0.70710677
  %v2311 = verf.f32.pop %v2275
  %v2312 = verf.f32.pop %v2276
  %v2313 = verf.f32.pop %v2277
  %v2314 = verf.f32.pop %v2278
  %v2315 = verf.f32.pop %v2279
  %v2316 = verf.f32.pop %v2280
  %v2317 = verf.f32.pop %v2281
  %v2318 = verf.f32.pop %v2282
  %v2319 = verf.f32.pop %v2283
  %v2320 = verf.f32.pop %v2284
  %v2321 = verf.f32.pop %v2285
  %v2322 = verf.f32.pop %v2286
  %v2323 = verf.f32.pop %v2287
  %v2324 = verf.f32.pop %v2288
  %v2325 = verf.f32.pop %v2289
  %v2326 = verf.f32.pop %v2290
  %v2327 = verf.f32.pop %v2291
  %v2328 = verf.f32.pop %v2292
  %v2329 = verf.f32.pop %v2293
  %v2330 = verf.f32.pop %v2294
  %v2331 = verf.f32.pop %v2295
  %v2332 = verf.f32.pop %v2296
  %v2333 = verf.f32.pop %v2297
  %v2334 = verf.f32.pop %v2298
  %v2335 = verf.f32.pop %v2299
  %v2336 = verf.f32.pop %v2300
  %v2337 = verf.f32.pop %v2301
  %v2338 = verf.f32.pop %v2302
  %v2339 = verf.f32.pop %v2303
  %v2340 = verf.f32.pop %v2304
  %v2341 = verf.f32.pop %v2305
  %v2342 = verf.f32.pop %v2306
  %v2343 = verf.f32.pop %v2307
  %v2344 = verf.f32.pop %v2308
  %v2345 = verf.f32.pop %v2309
  %v2346 = verf.f32.pop %v2310
  %v2347 = vadd.f32 %v2311, 1.0
  %v2348 = vadd.f32 %v2312, 1.0
  %v2349 = vadd.f32 %v2313, 1.0
  %v2350 = vadd.f32 %v2314, 1.0
  %v2351 = vadd.f32 %v2315, 1.0
  %v2352 = vadd.f32 %v2316, 1.0
  %v2353 = vadd.f32 %v2317, 1.0
  %v2354 = vadd.f32 %v2318, 1.0
  %v2355 = vadd.f32 %v2319, 1.0
  %v2356 = vadd.f32 %v2320, 1.0
  %v2357 = vadd.f32 %v2321, 1.0
  %v2358 = vadd.f32 %v2322, 1.0
  %v2359 = vadd.f32 %v2323, 1.0
  %v2360 = vadd.f32 %v2324, 1.0
  %v2361 = vadd.f32 %v2325, 1.0
  %v2362 = vadd.f32 %v2326, 1.0
  %v2363 = vadd.f32 %v2327, 1.0
  %v2364 = vadd.f32 %v2328, 1.0
  %v2365 = vadd.f32 %v2329, 1.0
  %v2366 = vadd.f32 %v2330, 1.0
  %v2367 = vadd.f32 %v2331, 1.0
  %v2368 = vadd.f32 %v2332, 1.0
  %v2369 = vadd.f32 %v2333, 1.0
  %v2370 = vadd.f32 %v2334, 1.0
  %v2371 = vadd.f32 %v2335, 1.0
  %v2372 = vadd.f32 %v2336, 1.0
  %v2373 = vadd.f32 %v2337, 1.0
  %v2374 = vadd.f32 %v2338, 1.0
  %v2375 = vadd.f32 %v2339, 1.0
  %v2376 = vadd.f32 %v2340, 1.0
  %v2377 = vadd.f32 %v2341, 1.0
  %v2378 = vadd.f32 %v2342, 1.0
  %v2379 = vadd.f32 %v2343, 1.0
  %v2380 = vadd.f32 %v2344, 1.0
  %v2381 = vadd.f32 %v2345, 1.0
  %v2382 = vadd.f32 %v2346, 1.0
  %v2383 = vmul.f32 %v2239, %v2347
  %v2384 = vmul.f32 %v2240, %v2348
  %v2385 = vmul.f32 %v2241, %v2349
  %v2386 = vmul.f32 %v2242, %v2350
  %v2387 = vmul.f32 %v2243, %v2351
  %v2388 = vmul.f32 %v2244, %v2352
  %v2389 = vmul.f32 %v2245, %v2353
  %v2390 = vmul.f32 %v2246, %v2354
  %v2391 = vmul.f32 %v2247, %v2355
  %v2392 = vmul.f32 %v2248, %v2356
  %v2393 = vmul.f32 %v2249, %v2357
  %v2394 = vmul.f32 %v2250, %v2358
  %v2395 = vmul.f32 %v2251, %v2359
  %v2396 = vmul.f32 %v2252, %v2360
  %v2397 = vmul.f32 %v2253, %v2361
  %v2398 = vmul.f32 %v2254, %v2362
  %v2399 = vmul.f32 %v2255, %v2363
  %v2400 = vmul.f32 %v2256, %v2364
  %v2401 = vmul.f32 %v2257, %v2365
  %v2402 = vmul.f32 %v2258, %v2366
  %v2403 = vmul.f32 %v2259, %v2367
  %v2404 = vmul.f32 %v2260, %v2368
  %v2405 = vmul.f32 %v2261, %v2369
  %v2406 = vmul.f32 %v2262, %v2370
  %v2407 = vmul.f32 %v2263, %v2371
  %v2408 = vmul.f32 %v2264, %v2372
  %v2409 = vmul.f32 %v2265, %v2373
  %v2410 = vmul.f32 %v2266, %v2374
  %v2411 = vmul.f32 %v2267, %v2375
  %v2412 = vmul.f32 %v2268, %v2376
  %v2413 = vmul.f32 %v2269, %v2377
  %v2414 = vmul.f32 %v2270, %v2378
  %v2415 = vmul.f32 %v2271, %v2379
  %v2416 = vmul.f32 %v2272, %v2380
  %v2417 = vmul.f32 %v2273, %v2381
  %v2418 = vmul.f32 %v2274, %v2382
  %2419 = vst.msk [vmem:[%s5] sm:$0xff] %vm88, %v2383
  %2420 = vst.msk [vmem:[%s5 + $0x8] sm:$0xff] %vm88, %v2384
  %2421 = vst.msk [vmem:[%s5 + $0x10] sm:$0xff] %vm88, %v2385
  %2422 = vst.msk [vmem:[%s5 + $0x18] sm:$0xff] %vm88, %v2386
  %2423 = vst.msk [vmem:[%s5 + $0x20] sm:$0xff] %vm88, %v2387
  %2424 = vst.msk [vmem:[%s5 + $0x28] sm:$0xff] %vm88, %v2388
  %2425 = vst.msk [vmem:[%s5 + $0x30] sm:$0xff] %vm88, %v2389
  %2426 = vst.msk [vmem:[%s5 + $0x38] sm:$0xff] %vm88, %v2390
  %2427 = vst.msk [vmem:[%s5 + $0x40] sm:$0xff] %vm88, %v2391
  %2428 = vst.msk [vmem:[%s5 + $0x48] sm:$0xff] %vm88, %v2392
  %2429 = vst.msk [vmem:[%s5 + $0x50] sm:$0xff] %vm88, %v2393
  %2430 = vst.msk [vmem:[%s5 + $0x58] sm:$0xff] %vm88, %v2394
  %2431 = vst.msk [vmem:[%s5 + $0x60] sm:$0xff] %vm88, %v2395
  %2432 = vst.msk [vmem:[%s5 + $0x68] sm:$0xff] %vm88, %v2396
  %2433 = vst.msk [vmem:[%s5 + $0x70] sm:$0xff] %vm88, %v2397
  %2434 = vst.msk [vmem:[%s5 + $0x78] sm:$0xff] %vm88, %v2398
  %2435 = vst.msk [vmem:[%s5 + $0x80] sm:$0xff] %vm88, %v2399
  %2436 = vst.msk [vmem:[%s5 + $0x88] sm:$0xff] %vm88, %v2400
  %2437 = vst.msk [vmem:[%s5 + $0x90] sm:$0xff] %vm88, %v2401
  %2438 = vst.msk [vmem:[%s5 + $0x98] sm:$0xff] %vm88, %v2402
  %2439 = vst.msk [vmem:[%s5 + $0xa0] sm:$0xff] %vm88, %v2403
  %2440 = vst.msk [vmem:[%s5 + $0xa8] sm:$0xff] %vm88, %v2404
  %2441 = vst.msk [vmem:[%s5 + $0xb0] sm:$0xff] %vm88, %v2405
  %2442 = vst.msk [vmem:[%s5 + $0xb8] sm:$0xff] %vm88, %v2406
  %2443 = vst.msk [vmem:[%s5 + $0xc0] sm:$0xff] %vm88, %v2407
  %2444 = vst.msk [vmem:[%s5 + $0xc8] sm:$0xff] %vm88, %v2408
  %2445 = vst.msk [vmem:[%s5 + $0xd0] sm:$0xff] %vm88, %v2409
  %2446 = vst.msk [vmem:[%s5 + $0xd8] sm:$0xff] %vm88, %v2410
  %2447 = vst.msk [vmem:[%s5 + $0xe0] sm:$0xff] %vm88, %v2411
  %2448 = vst.msk [vmem:[%s5 + $0xe8] sm:$0xff] %vm88, %v2412
  %2449 = vst.msk [vmem:[%s5 + $0xf0] sm:$0xff] %vm88, %v2413
  %2450 = vst.msk [vmem:[%s5 + $0xf8] sm:$0xff] %vm88, %v2414
  %2451 = vst.msk [vmem:[%s5 + $0x100] sm:$0xff] %vm88, %v2415
  %2452 = vst.msk [vmem:[%s5 + $0x108] sm:$0xff] %vm88, %v2416
  %2453 = vst.msk [vmem:[%s5 + $0x110] sm:$0xff] %vm88, %v2417
  %2454 = vst.msk [vmem:[%s5 + $0x118] sm:$0xff] %vm88, %v2418
  // Predicated region
  $region22: #{lgpm_forward.8} parent=0 // pred_check
    _
  $region23: #{lgpm_forward.8} parent=0 // pred_check_branch
    %2456 = sbr.rel (0) target = $region25
  $region24: #{lgpm_forward.8} parent=0 // pred_region
    _
  $region25: #{lgpm_forward.8} parent=0 // pred_fallthru
    _
  // Predicated region
  $region26: #{lgpm_forward.8} parent=0 // pred_check
    _
  $region27: #{lgpm_forward.8} parent=0 // pred_check_branch
    %2458 = sbr.rel (0) target = $region29
  $region28: #{lgpm_forward.8} parent=0 // pred_region
    _
  $region29: #{lgpm_forward.8} parent=0 // pred_fallthru
    _

// kernel: reverse.1
$region0: #{reverse.1}
  #allocation0 [shape = 's32[1]{0}', space=sflag, size = 0x4, scoped, tag = 'scoped memory for reverse.1']
  %s0 = inlined_call_operand.vmem [shape: f32[2,16,16,7], index: 0, kind: input, shape index: {}]
  %s1 = inlined_call_operand.vmem [shape: f32[2,16,16,7], index: 1, kind: output, shape index: {}]
  %s2 = scalar_lea.vmem %s0, 96
  %v3 = vld [vmem:[%s2] sm:$0xff]
  %4 = vst [vmem:[%s1] sm:$0xff] %v3
  %s5 = scalar_lea.vmem %s0, 208
  %v6 = vld [vmem:[%s5] sm:$0xff]
  %s7 = scalar_lea.vmem %s1, 112
  %8 = vst [vmem:[%s7] sm:$0xff] %v6
  %s9 = scalar_lea.vmem %s0, 80
  %v10 = vld [vmem:[%s9] sm:$0xff]
  %s11 = scalar_lea.vmem %s1, 16
  %12 = vst [vmem:[%s11] sm:$0xff] %v10
  %s13 = scalar_lea.vmem %s0, 192
  %v14 = vld [vmem:[%s13] sm:$0xff]
  %s15 = scalar_lea.vmem %s1, 128
  %16 = vst [vmem:[%s15] sm:$0xff] %v14
  %s17 = scalar_lea.vmem %s0, 64
  %v18 = vld [vmem:[%s17] sm:$0xff]
  %s19 = scalar_lea.vmem %s1, 32
  %20 = vst [vmem:[%s19] sm:$0xff] %v18
  %s21 = scalar_lea.vmem %s0, 176
  %v22 = vld [vmem:[%s21] sm:$0xff]
  %s23 = scalar_lea.vmem %s1, 144
  %24 = vst [vmem:[%s23] sm:$0xff] %v22
  %s25 = scalar_lea.vmem %s0, 48
  %v26 = vld [vmem:[%s25] sm:$0xff]
  %s27 = scalar_lea.vmem %s1, 48
  %28 = vst [vmem:[%s27] sm:$0xff] %v26
  %s29 = scalar_lea.vmem %s0, 160
  %v30 = vld [vmem:[%s29] sm:$0xff]
  %s31 = scalar_lea.vmem %s1, 160
  %32 = vst [vmem:[%s31] sm:$0xff] %v30
  %s33 = scalar_lea.vmem %s0, 32
  %v34 = vld [vmem:[%s33] sm:$0xff]
  %s35 = scalar_lea.vmem %s1, 64
  %36 = vst [vmem:[%s35] sm:$0xff] %v34
  %s37 = scalar_lea.vmem %s0, 144
  %v38 = vld [vmem:[%s37] sm:$0xff]
  %s39 = scalar_lea.vmem %s1, 176
  %40 = vst [vmem:[%s39] sm:$0xff] %v38
  %s41 = scalar_lea.vmem %s0, 16
  %v42 = vld [vmem:[%s41] sm:$0xff]
  %s43 = scalar_lea.vmem %s1, 80
  %44 = vst [vmem:[%s43] sm:$0xff] %v42
  %s45 = scalar_lea.vmem %s0, 128
  %v46 = vld [vmem:[%s45] sm:$0xff]
  %s47 = scalar_lea.vmem %s1, 192
  %48 = vst [vmem:[%s47] sm:$0xff] %v46
  %v49 = vld [vmem:[%s0] sm:$0xff]
  %s50 = scalar_lea.vmem %s1, 96
  %51 = vst [vmem:[%s50] sm:$0xff] %v49
  %s52 = scalar_lea.vmem %s0, 112
  %v53 = vld [vmem:[%s52] sm:$0xff]
  %s54 = scalar_lea.vmem %s1, 208
  %55 = vst [vmem:[%s54] sm:$0xff] %v53
  %s56 = scalar_lea.vmem %s0, 104
  %v57 = vld [vmem:[%s56] sm:$0xff]
  %s58 = scalar_lea.vmem %s1, 8
  %59 = vst [vmem:[%s58] sm:$0xff] %v57
  %s60 = scalar_lea.vmem %s0, 216
  %v61 = vld [vmem:[%s60] sm:$0xff]
  %s62 = scalar_lea.vmem %s1, 120
  %63 = vst [vmem:[%s62] sm:$0xff] %v61
  %s64 = scalar_lea.vmem %s0, 88
  %v65 = vld [vmem:[%s64] sm:$0xff]
  %s66 = scalar_lea.vmem %s1, 24
  %67 = vst [vmem:[%s66] sm:$0xff] %v65
  %s68 = scalar_lea.vmem %s0, 200
  %v69 = vld [vmem:[%s68] sm:$0xff]
  %s70 = scalar_lea.vmem %s1, 136
  %71 = vst [vmem:[%s70] sm:$0xff] %v69
  %s72 = scalar_lea.vmem %s0, 72
  %v73 = vld [vmem:[%s72] sm:$0xff]
  %s74 = scalar_lea.vmem %s1, 40
  %75 = vst [vmem:[%s74] sm:$0xff] %v73
  %s76 = scalar_lea.vmem %s0, 184
  %v77 = vld [vmem:[%s76] sm:$0xff]
  %s78 = scalar_lea.vmem %s1, 152
  %79 = vst [vmem:[%s78] sm:$0xff] %v77
  %s80 = scalar_lea.vmem %s0, 56
  %v81 = vld [vmem:[%s80] sm:$0xff]
  %s82 = scalar_lea.vmem %s1, 56
  %83 = vst [vmem:[%s82] sm:$0xff] %v81
  %s84 = scalar_lea.vmem %s0, 168
  %v85 = vld [vmem:[%s84] sm:$0xff]
  %s86 = scalar_lea.vmem %s1, 168
  %87 = vst [vmem:[%s86] sm:$0xff] %v85
  %s88 = scalar_lea.vmem %s0, 40
  %v89 = vld [vmem:[%s88] sm:$0xff]
  %s90 = scalar_lea.vmem %s1, 72
  %91 = vst [vmem:[%s90] sm:$0xff] %v89
  %s92 = scalar_lea.vmem %s0, 152
  %v93 = vld [vmem:[%s92] sm:$0xff]
  %s94 = scalar_lea.vmem %s1, 184
  %95 = vst [vmem:[%s94] sm:$0xff] %v93
  %s96 = scalar_lea.vmem %s0, 24
  %v97 = vld [vmem:[%s96] sm:$0xff]
  %s98 = scalar_lea.vmem %s1, 88
  %99 = vst [vmem:[%s98] sm:$0xff] %v97
  %s100 = scalar_lea.vmem %s0, 136
  %v101 = vld [vmem:[%s100] sm:$0xff]
  %s102 = scalar_lea.vmem %s1, 200
  %103 = vst [vmem:[%s102] sm:$0xff] %v101
  %s104 = scalar_lea.vmem %s0, 8
  %v105 = vld [vmem:[%s104] sm:$0xff]
  %s106 = scalar_lea.vmem %s1, 104
  %107 = vst [vmem:[%s106] sm:$0xff] %v105
  %s108 = scalar_lea.vmem %s0, 120
  %v109 = vld [vmem:[%s108] sm:$0xff]
  %s110 = scalar_lea.vmem %s1, 216
  %111 = vst [vmem:[%s110] sm:$0xff] %v109

// kernel: lgpm_forward.9
$region0: #{lgpm_forward.9}
  #allocation0 [shape = 'u32[]', space=smem, size = 0x4, offset = 0x4, fixed_abs, tag = 'smem constant byte address 0x4 - core index']
  #allocation1 [shape = 'u32[144,128]{1,0:T(1,128)}', space=vmem, size = 0x12000, scoped, tag = 'internal scratch']
  %s0 = inlined_call_operand.vmem [shape: f32[2,256,8], index: 0, kind: input, shape index: {}]
  %s1 = inlined_call_operand.vmem [shape: f32[2,256,16], index: 1, kind: input, shape index: {}]
  %s2 = inlined_call_operand.vmem [shape: f32[2,256,16], index: 2, kind: input, shape index: {}]
  %s3 = inlined_call_operand.vmem [shape: f32[16,8], index: 3, kind: input, shape index: {}]
  %s4 = inlined_call_operand.vmem [shape: f32[1,8], index: 4, kind: input, shape index: {}]
  %s5 = inlined_call_operand.vmem [shape: f32[16,8], index: 5, kind: input, shape index: {}]
  %s6 = inlined_call_operand.vmem [shape: f32[1,8], index: 6, kind: input, shape index: {}]
  %s7 = inlined_call_operand.vmem [shape: f32[8,16], index: 7, kind: input, shape index: {}]
  %s8 = inlined_call_operand.vmem [shape: f32[1,16], index: 8, kind: input, shape index: {}]
  %s9 = inlined_call_operand.vmem [shape: f32[16,8], index: 9, kind: input, shape index: {}]
  %s10 = inlined_call_operand.vmem [shape: f32[1,8], index: 10, kind: input, shape index: {}]
  %s11 = inlined_call_operand.vmem [shape: f32[2,256,8], index: 11, kind: output, shape index: {}]
  %s12 = sld [smem:[#allocation0]]
  $region77: #{lgpm_forward.9} parent=0
    _
  %s14 = ssub.s32 1, %s12
  %s15 = scalar_select 0, %s14, %s12
  loop: start=0, step=1, limit=4
  $region2: #{lgpm_forward.9} parent=0 // loop_pre_header
    _
  $region3: #{lgpm_forward.9} parent=0 // loop_header
    %s17 = sphi 0, %s21
    %p18 = scmp.ge.s32.totalorder %s17, 4
    %s27 = sphi 0, %s29
    %s30 = sphi 0, %s27
    %s31 = sphi 0, %s30
    %s47 = sphi 0, %s31
    %s53 = sphi 0, %s55
    %s56 = sphi 0, %s53
    %s57 = sphi 0, %s56
    %s73 = sphi 0, %s57
    %s79 = sphi 0, %s81
    %s82 = sphi 0, %s79
    %s83 = sphi 0, %s82
    %s99 = sphi 0, %s83
    %s103 = sphi 0, %s103
    %s105 = sphi 0, %s103
    %s106 = sphi 0, %s105
    %s120 = sphi 0, %s106
    %s124 = sphi 0, %s124
    %s126 = sphi 0, %s124
    %s127 = sphi 0, %s126
    %s141 = sphi 0, %s127
    %s145 = sphi 0, %s145
    %s147 = sphi 0, %s145
    %s148 = sphi 0, %s147
    %s162 = sphi 0, %s148
    %s166 = sphi 0, %s166
    %s168 = sphi 0, %s166
    %s169 = sphi 0, %s168
    %s183 = sphi 0, %s169
    %s187 = sphi 0, %s187
    %s189 = sphi 0, %s187
    %s190 = sphi 0, %s189
    %s204 = sphi 0, %s190
    %s208 = sphi 0, %s208
    %s210 = sphi 0, %s208
    %s211 = sphi 0, %s210
    %s225 = sphi 0, %s211
    %s229 = sphi 0, %s229
    %s231 = sphi 0, %s229
    %s232 = sphi 0, %s231
    %s246 = sphi 0, %s232
    %s250 = sphi 0, %s250
    %s252 = sphi 0, %s250
    %s253 = sphi 0, %s252
    %s267 = sphi 0, %s253
    %s273 = sphi 0, %s275
    %s276 = sphi 0, %s273
    %s277 = sphi 0, %s276
    %s293 = sphi 0, %s277
  $region4: #{lgpm_forward.9} parent=0 // loop_header_branch
    %20 = sbr.rel (%p18) target = $region8
  $region5: #{lgpm_forward.9} parent=0 // loop_body
    %s22 = ssub.s32 %s17, 1
    %s23 = ssub.s32 %s17, 2
    %s24 = sadd.s32 %s17, 1
    %s25 = ssub.s32 %s17, %s24
    %p26 = scmp.eq.s32.totalorder %s25, 0
    %s28 = sadd.s32 %s27, 1
    %s29 = scalar_select %p26, %s27, %s28
    %p32 = pneg %p26
    %p33 = scmp.eq.s32.totalorder %s17, 1
    %p34 = por %p32, %p33
    %p35 = scmp.ne.s32.totalorder %s27, %s30
    %p36 = scmp.eq.s32.totalorder %s17, 0
    %p37 = por %p35, %p36
    %p38 = scmp.ne.s32.totalorder %s27, %s30
    %p39 = scmp.eq.s32.totalorder %s22, 1
    %p40 = por %p38, %p39
    %p41 = scmp.ne.s32.totalorder %s30, %s31
    %p42 = scmp.eq.s32.totalorder %s22, 0
    %p43 = por %p41, %p42
    %p44 = scmp.ne.s32.totalorder %s30, %s31
    %p45 = scmp.eq.s32.totalorder %s23, 1
    %p46 = por %p44, %p45
    %p48 = scmp.ne.s32.totalorder %s31, %s47
    %p49 = scmp.eq.s32.totalorder %s23, 0
    %p50 = por %p48, %p49
    %s51 = ssub.s32 %s17, %s24
    %p52 = scmp.eq.s32.totalorder %s51, 0
    %s54 = sadd.s32 %s53, 1
    %s55 = scalar_select %p52, %s53, %s54
    %p58 = pneg %p52
    %p59 = scmp.eq.s32.totalorder %s17, 1
    %p60 = por %p58, %p59
    %p61 = scmp.ne.s32.totalorder %s53, %s56
    %p62 = scmp.eq.s32.totalorder %s17, 0
    %p63 = por %p61, %p62
    %p64 = scmp.ne.s32.totalorder %s53, %s56
    %p65 = scmp.eq.s32.totalorder %s22, 1
    %p66 = por %p64, %p65
    %p67 = scmp.ne.s32.totalorder %s56, %s57
    %p68 = scmp.eq.s32.totalorder %s22, 0
    %p69 = por %p67, %p68
    %p70 = scmp.ne.s32.totalorder %s56, %s57
    %p71 = scmp.eq.s32.totalorder %s23, 1
    %p72 = por %p70, %p71
    %p74 = scmp.ne.s32.totalorder %s57, %s73
    %p75 = scmp.eq.s32.totalorder %s23, 0
    %p76 = por %p74, %p75
    %s77 = ssub.s32 %s17, %s24
    %p78 = scmp.eq.s32.totalorder %s77, 0
    %s80 = sadd.s32 %s79, 1
    %s81 = scalar_select %p78, %s79, %s80
    %p84 = pneg %p78
    %p85 = scmp.eq.s32.totalorder %s17, 1
    %p86 = por %p84, %p85
    %p87 = scmp.ne.s32.totalorder %s79, %s82
    %p88 = scmp.eq.s32.totalorder %s17, 0
    %p89 = por %p87, %p88
    %p90 = scmp.ne.s32.totalorder %s79, %s82
    %p91 = scmp.eq.s32.totalorder %s22, 1
    %p92 = por %p90, %p91
    %p93 = scmp.ne.s32.totalorder %s82, %s83
    %p94 = scmp.eq.s32.totalorder %s22, 0
    %p95 = por %p93, %p94
    %p96 = scmp.ne.s32.totalorder %s82, %s83
    %p97 = scmp.eq.s32.totalorder %s23, 1
    %p98 = por %p96, %p97
    %p100 = scmp.ne.s32.totalorder %s83, %s99
    %p101 = scmp.eq.s32.totalorder %s23, 0
    %p102 = por %p100, %p101
    %s104 = sadd.s32 %s103, 1
    %p107 = scmp.eq.s32.totalorder %s17, 1
    %p108 = scmp.ne.s32.totalorder %s103, %s105
    %p109 = scmp.eq.s32.totalorder %s17, 0
    %p110 = por %p108, %p109
    %p111 = scmp.ne.s32.totalorder %s103, %s105
    %p112 = scmp.eq.s32.totalorder %s22, 1
    %p113 = por %p111, %p112
    %p114 = scmp.ne.s32.totalorder %s105, %s106
    %p115 = scmp.eq.s32.totalorder %s22, 0
    %p116 = por %p114, %p115
    %p117 = scmp.ne.s32.totalorder %s105, %s106
    %p118 = scmp.eq.s32.totalorder %s23, 1
    %p119 = por %p117, %p118
    %p121 = scmp.ne.s32.totalorder %s106, %s120
    %p122 = scmp.eq.s32.totalorder %s23, 0
    %p123 = por %p121, %p122
    %s125 = sadd.s32 %s124, 1
    %p128 = scmp.eq.s32.totalorder %s17, 1
    %p129 = scmp.ne.s32.totalorder %s124, %s126
    %p130 = scmp.eq.s32.totalorder %s17, 0
    %p131 = por %p129, %p130
    %p132 = scmp.ne.s32.totalorder %s124, %s126
    %p133 = scmp.eq.s32.totalorder %s22, 1
    %p134 = por %p132, %p133
    %p135 = scmp.ne.s32.totalorder %s126, %s127
    %p136 = scmp.eq.s32.totalorder %s22, 0
    %p137 = por %p135, %p136
    %p138 = scmp.ne.s32.totalorder %s126, %s127
    %p139 = scmp.eq.s32.totalorder %s23, 1
    %p140 = por %p138, %p139
    %p142 = scmp.ne.s32.totalorder %s127, %s141
    %p143 = scmp.eq.s32.totalorder %s23, 0
    %p144 = por %p142, %p143
    %s146 = sadd.s32 %s145, 1
    %p149 = scmp.eq.s32.totalorder %s17, 1
    %p150 = scmp.ne.s32.totalorder %s145, %s147
    %p151 = scmp.eq.s32.totalorder %s17, 0
    %p152 = por %p150, %p151
    %p153 = scmp.ne.s32.totalorder %s145, %s147
    %p154 = scmp.eq.s32.totalorder %s22, 1
    %p155 = por %p153, %p154
    %p156 = scmp.ne.s32.totalorder %s147, %s148
    %p157 = scmp.eq.s32.totalorder %s22, 0
    %p158 = por %p156, %p157
    %p159 = scmp.ne.s32.totalorder %s147, %s148
    %p160 = scmp.eq.s32.totalorder %s23, 1
    %p161 = por %p159, %p160
    %p163 = scmp.ne.s32.totalorder %s148, %s162
    %p164 = scmp.eq.s32.totalorder %s23, 0
    %p165 = por %p163, %p164
    %s167 = sadd.s32 %s166, 1
    %p170 = scmp.eq.s32.totalorder %s17, 1
    %p171 = scmp.ne.s32.totalorder %s166, %s168
    %p172 = scmp.eq.s32.totalorder %s17, 0
    %p173 = por %p171, %p172
    %p174 = scmp.ne.s32.totalorder %s166, %s168
    %p175 = scmp.eq.s32.totalorder %s22, 1
    %p176 = por %p174, %p175
    %p177 = scmp.ne.s32.totalorder %s168, %s169
    %p178 = scmp.eq.s32.totalorder %s22, 0
    %p179 = por %p177, %p178
    %p180 = scmp.ne.s32.totalorder %s168, %s169
    %p181 = scmp.eq.s32.totalorder %s23, 1
    %p182 = por %p180, %p181
    %p184 = scmp.ne.s32.totalorder %s169, %s183
    %p185 = scmp.eq.s32.totalorder %s23, 0
    %p186 = por %p184, %p185
    %s188 = sadd.s32 %s187, 1
    %p191 = scmp.eq.s32.totalorder %s17, 1
    %p192 = scmp.ne.s32.totalorder %s187, %s189
    %p193 = scmp.eq.s32.totalorder %s17, 0
    %p194 = por %p192, %p193
    %p195 = scmp.ne.s32.totalorder %s187, %s189
    %p196 = scmp.eq.s32.totalorder %s22, 1
    %p197 = por %p195, %p196
    %p198 = scmp.ne.s32.totalorder %s189, %s190
    %p199 = scmp.eq.s32.totalorder %s22, 0
    %p200 = por %p198, %p199
    %p201 = scmp.ne.s32.totalorder %s189, %s190
    %p202 = scmp.eq.s32.totalorder %s23, 1
    %p203 = por %p201, %p202
    %p205 = scmp.ne.s32.totalorder %s190, %s204
    %p206 = scmp.eq.s32.totalorder %s23, 0
    %p207 = por %p205, %p206
    %s209 = sadd.s32 %s208, 1
    %p212 = scmp.eq.s32.totalorder %s17, 1
    %p213 = scmp.ne.s32.totalorder %s208, %s210
    %p214 = scmp.eq.s32.totalorder %s17, 0
    %p215 = por %p213, %p214
    %p216 = scmp.ne.s32.totalorder %s208, %s210
    %p217 = scmp.eq.s32.totalorder %s22, 1
    %p218 = por %p216, %p217
    %p219 = scmp.ne.s32.totalorder %s210, %s211
    %p220 = scmp.eq.s32.totalorder %s22, 0
    %p221 = por %p219, %p220
    %p222 = scmp.ne.s32.totalorder %s210, %s211
    %p223 = scmp.eq.s32.totalorder %s23, 1
    %p224 = por %p222, %p223
    %p226 = scmp.ne.s32.totalorder %s211, %s225
    %p227 = scmp.eq.s32.totalorder %s23, 0
    %p228 = por %p226, %p227
    %s230 = sadd.s32 %s229, 1
    %p233 = scmp.eq.s32.totalorder %s17, 1
    %p234 = scmp.ne.s32.totalorder %s229, %s231
    %p235 = scmp.eq.s32.totalorder %s17, 0
    %p236 = por %p234, %p235
    %p237 = scmp.ne.s32.totalorder %s229, %s231
    %p238 = scmp.eq.s32.totalorder %s22, 1
    %p239 = por %p237, %p238
    %p240 = scmp.ne.s32.totalorder %s231, %s232
    %p241 = scmp.eq.s32.totalorder %s22, 0
    %p242 = por %p240, %p241
    %p243 = scmp.ne.s32.totalorder %s231, %s232
    %p244 = scmp.eq.s32.totalorder %s23, 1
    %p245 = por %p243, %p244
    %p247 = scmp.ne.s32.totalorder %s232, %s246
    %p248 = scmp.eq.s32.totalorder %s23, 0
    %p249 = por %p247, %p248
    %s251 = sadd.s32 %s250, 1
    %p254 = scmp.eq.s32.totalorder %s17, 1
    %p255 = scmp.ne.s32.totalorder %s250, %s252
    %p256 = scmp.eq.s32.totalorder %s17, 0
    %p257 = por %p255, %p256
    %p258 = scmp.ne.s32.totalorder %s250, %s252
    %p259 = scmp.eq.s32.totalorder %s22, 1
    %p260 = por %p258, %p259
    %p261 = scmp.ne.s32.totalorder %s252, %s253
    %p262 = scmp.eq.s32.totalorder %s22, 0
    %p263 = por %p261, %p262
    %p264 = scmp.ne.s32.totalorder %s252, %s253
    %p265 = scmp.eq.s32.totalorder %s23, 1
    %p266 = por %p264, %p265
    %p268 = scmp.ne.s32.totalorder %s253, %s267
    %p269 = scmp.eq.s32.totalorder %s23, 0
    %p270 = por %p268, %p269
    %s271 = ssub.s32 %s17, %s24
    %p272 = scmp.eq.s32.totalorder %s271, 0
    %s274 = sadd.s32 %s273, 1
    %s275 = scalar_select %p272, %s273, %s274
    %p278 = pneg %p272
    %p279 = scmp.eq.s32.totalorder %s17, 1
    %p280 = por %p278, %p279
    %p281 = scmp.ne.s32.totalorder %s273, %s276
    %p282 = scmp.eq.s32.totalorder %s17, 0
    %p283 = por %p281, %p282
    %p284 = scmp.ne.s32.totalorder %s273, %s276
    %p285 = scmp.eq.s32.totalorder %s22, 1
    %p286 = por %p284, %p285
    %p287 = scmp.ne.s32.totalorder %s276, %s277
    %p288 = scmp.eq.s32.totalorder %s22, 0
    %p289 = por %p287, %p288
    %p290 = scmp.ne.s32.totalorder %s276, %s277
    %p291 = scmp.eq.s32.totalorder %s23, 1
    %p292 = por %p290, %p291
    %p294 = scmp.ne.s32.totalorder %s277, %s293
    %p295 = scmp.eq.s32.totalorder %s23, 0
    %p296 = por %p294, %p295
    %p297 = scmp.le.s32.totalorder 1, %s17
    %p298 = scmp.lt.s32.totalorder %s17, 3
    %p299 = pnand %p297, %p298
    %p300 = pneg %p299
    // Predicated region
    $region9: #{lgpm_forward.9} parent=5 // pred_check
      _
    $region10: #{lgpm_forward.9} parent=5 // pred_check_branch
      %302 = sbr.rel (%p299) target = $region12
    $region11: #{lgpm_forward.9} parent=5 // pred_region
      %s303 = ssub.s32 %s17, 1
      // Predicated region
      $region13: #{lgpm_forward.9} parent=11 // pred_check
        %p304 = pneg %p116
      $region14: #{lgpm_forward.9} parent=11 // pred_check_branch
        %306 = sbr.rel (%p304) target = $region16
      $region15: #{lgpm_forward.9} parent=11 // pred_region
        _
      $region16: #{lgpm_forward.9} parent=11 // pred_fallthru
        _
      // Predicated region
      $region17: #{lgpm_forward.9} parent=11 // pred_check
        %p307 = pneg %p137
      $region18: #{lgpm_forward.9} parent=11 // pred_check_branch
        %309 = sbr.rel (%p307) target = $region20
      $region19: #{lgpm_forward.9} parent=11 // pred_region
        _
      $region20: #{lgpm_forward.9} parent=11 // pred_fallthru
        _
      // Predicated region
      $region21: #{lgpm_forward.9} parent=11 // pred_check
        %p310 = pneg %p158
      $region22: #{lgpm_forward.9} parent=11 // pred_check_branch
        %312 = sbr.rel (%p310) target = $region24
      $region23: #{lgpm_forward.9} parent=11 // pred_region
        _
      $region24: #{lgpm_forward.9} parent=11 // pred_fallthru
        _
      // Predicated region
      $region25: #{lgpm_forward.9} parent=11 // pred_check
        %p313 = pneg %p179
      $region26: #{lgpm_forward.9} parent=11 // pred_check_branch
        %315 = sbr.rel (%p313) target = $region28
      $region27: #{lgpm_forward.9} parent=11 // pred_region
        _
      $region28: #{lgpm_forward.9} parent=11 // pred_fallthru
        _
      // Predicated region
      $region29: #{lgpm_forward.9} parent=11 // pred_check
        %p316 = pneg %p200
      $region30: #{lgpm_forward.9} parent=11 // pred_check_branch
        %318 = sbr.rel (%p316) target = $region32
      $region31: #{lgpm_forward.9} parent=11 // pred_region
        _
      $region32: #{lgpm_forward.9} parent=11 // pred_fallthru
        _
      // Predicated region
      $region33: #{lgpm_forward.9} parent=11 // pred_check
        %p319 = pneg %p221
      $region34: #{lgpm_forward.9} parent=11 // pred_check_branch
        %321 = sbr.rel (%p319) target = $region36
      $region35: #{lgpm_forward.9} parent=11 // pred_region
        _
      $region36: #{lgpm_forward.9} parent=11 // pred_fallthru
        _
      // Predicated region
      $region37: #{lgpm_forward.9} parent=11 // pred_check
        %p322 = pneg %p242
      $region38: #{lgpm_forward.9} parent=11 // pred_check_branch
        %324 = sbr.rel (%p322) target = $region40
      $region39: #{lgpm_forward.9} parent=11 // pred_region
        _
      $region40: #{lgpm_forward.9} parent=11 // pred_fallthru
        _
      // Predicated region
      $region41: #{lgpm_forward.9} parent=11 // pred_check
        %p325 = pneg %p263
      $region42: #{lgpm_forward.9} parent=11 // pred_check_branch
        %327 = sbr.rel (%p325) target = $region44
      $region43: #{lgpm_forward.9} parent=11 // pred_region
        _
      $region44: #{lgpm_forward.9} parent=11 // pred_fallthru
        _
    $region12: #{lgpm_forward.9} parent=5 // pred_fallthru
      _
    %p328 = scmp.lt.s32.totalorder %s17, 2
    // Predicated region
    $region45: #{lgpm_forward.9} parent=5 // pred_check
      %p329 = pneg %p328
    $region46: #{lgpm_forward.9} parent=5 // pred_check_branch
      %331 = sbr.rel (%p329) target = $region48
    $region47: #{lgpm_forward.9} parent=5 // pred_region
      // Predicated region
      $region49: #{lgpm_forward.9} parent=47 // pred_check
        %p332 = pneg %p37
      $region50: #{lgpm_forward.9} parent=47 // pred_check_branch
        %334 = sbr.rel (%p332) target = $region52
      $region51: #{lgpm_forward.9} parent=47 // pred_region
        %p335 = scmp.lt.s32.totalorder %s17, 1
        %s336 = scalar_select %p335, %s17, 1
        %s337 = smul.addr %s336, 32
        %s338 = smul.addr %s337, 8
        %s339 = scalar_lea.vmem %s0, %s338
      $region52: #{lgpm_forward.9} parent=47 // pred_fallthru
        _
      // Predicated region
      $region53: #{lgpm_forward.9} parent=47 // pred_check
        %p340 = pneg %p63
      $region54: #{lgpm_forward.9} parent=47 // pred_check_branch
        %342 = sbr.rel (%p340) target = $region56
      $region55: #{lgpm_forward.9} parent=47 // pred_region
        %p343 = scmp.lt.s32.totalorder %s17, 1
        %s344 = scalar_select %p343, %s17, 1
        %s345 = smul.addr %s344, 32
        %s346 = smul.addr %s345, 8
        %s347 = scalar_lea.vmem %s1, %s346
      $region56: #{lgpm_forward.9} parent=47 // pred_fallthru
        _
      // Predicated region
      $region57: #{lgpm_forward.9} parent=47 // pred_check
        %p348 = pneg %p89
      $region58: #{lgpm_forward.9} parent=47 // pred_check_branch
        %350 = sbr.rel (%p348) target = $region60
      $region59: #{lgpm_forward.9} parent=47 // pred_region
        %p351 = scmp.lt.s32.totalorder %s17, 1
        %s352 = scalar_select %p351, %s17, 1
        %s353 = smul.addr %s352, 32
        %s354 = smul.addr %s353, 8
        %s355 = scalar_lea.vmem %s2, %s354
      $region60: #{lgpm_forward.9} parent=47 // pred_fallthru
        _
    $region48: #{lgpm_forward.9} parent=5 // pred_fallthru
      _
    %p356 = scmp.le.s32.totalorder 1, %s17
    %p357 = scmp.lt.s32.totalorder %s17, 3
    %p358 = pnand %p356, %p357
    %p359 = pneg %p358
    // Predicated region
    $region61: #{lgpm_forward.9} parent=5 // pred_check
      _
    $region62: #{lgpm_forward.9} parent=5 // pred_check_branch
      %361 = sbr.rel (%p358) target = $region64
    $region63: #{lgpm_forward.9} parent=5 // pred_region
      %s362 = ssub.s32 %s17, 1
      %p363 = scmp.lt.s32.totalorder %s22, 1
      %s364 = scalar_select %p363, %s22, 1
      %s365 = smul.addr %s364, 32
      %s366 = smul.addr %s365, 8
      %s367 = scalar_lea.vmem %s0, %s366
      %p368 = pneg %p43
      %p369 = pneg %p40
      %p370 = scmp.lt.s32.totalorder %s22, 1
      %s371 = scalar_select %p370, %s22, 1
      %s372 = smul.addr %s371, 32
      %s373 = smul.addr %s372, 8
      %s374 = scalar_lea.vmem %s1, %s373
      %p375 = pneg %p69
      %p376 = pneg %p66
      %p377 = scmp.lt.s32.totalorder %s22, 1
      %s378 = scalar_select %p377, %s22, 1
      %s379 = smul.addr %s378, 32
      %s380 = smul.addr %s379, 8
      %s381 = scalar_lea.vmem %s2, %s380
      %p382 = pneg %p95
      %p383 = pneg %p92
      %p384 = pneg %p116
      %p385 = pneg %p113
      %p386 = pneg %p137
      %p387 = pneg %p134
      %p388 = pneg %p158
      %p389 = pneg %p155
      %p390 = pneg %p179
      %p391 = pneg %p176
      %p392 = pneg %p200
      %p393 = pneg %p197
      %p394 = pneg %p221
      %p395 = pneg %p218
      %p396 = pneg %p242
      %p397 = pneg %p239
      %p398 = pneg %p263
      %p399 = pneg %p260
      %p400 = pneg %p289
      %p401 = pneg %p286
      %p402 = scmp.lt.s32.totalorder %s22, 1
      %s403 = scalar_select %p402, %s22, 1
      %s404 = smul.addr %s403, 32
      %s405 = smul.addr %s404, 8
      %s406 = scalar_lea.vmem %s11, %s405
      %p407 = scmp.lt.s32.totalorder %s22, 1
      %s408 = scalar_select %p407, %s22, 1
      %s409 = smul.addr %s408, 32
      %s410 = smul.addr %s409, 8
      %s411 = scalar_lea.vmem %s0, %s410
      %p412 = scmp.lt.s32.totalorder %s22, 1
      %s413 = scalar_select %p412, %s22, 1
      %s414 = smul.addr %s413, 32
      %s415 = smul.addr %s414, 8
      %s416 = scalar_lea.vmem %s1, %s415
      %p417 = scmp.lt.s32.totalorder %s22, 1
      %s418 = scalar_select %p417, %s22, 1
      %s419 = smul.addr %s418, 32
      %s420 = smul.addr %s419, 8
      %s421 = scalar_lea.vmem %s2, %s420
      %p422 = scmp.lt.s32.totalorder %s22, 1
      %s423 = scalar_select %p422, %s22, 1
      %s424 = smul.addr %s423, 32
      %s425 = smul.addr %s424, 8
      %s426 = scalar_lea.vmem %s11, %s425
      %v428 = vld [vmem:[%s416] sm:$0xff]
      %v429 = vld [vmem:[%s416 + $0x8] sm:$0xff]
      %v430 = vld [vmem:[%s416 + $0x10] sm:$0xff]
      %v431 = vld [vmem:[%s416 + $0x18] sm:$0xff]
      %v432 = vld [vmem:[%s416 + $0x20] sm:$0xff]
      %v433 = vld [vmem:[%s416 + $0x28] sm:$0xff]
      %v434 = vld [vmem:[%s416 + $0x30] sm:$0xff]
      %v435 = vld [vmem:[%s416 + $0x38] sm:$0xff]
      %v436 = vld [vmem:[%s416 + $0x40] sm:$0xff]
      %v437 = vld [vmem:[%s416 + $0x48] sm:$0xff]
      %v438 = vld [vmem:[%s416 + $0x50] sm:$0xff]
      %v439 = vld [vmem:[%s416 + $0x58] sm:$0xff]
      %v440 = vld [vmem:[%s416 + $0x60] sm:$0xff]
      %v441 = vld [vmem:[%s416 + $0x68] sm:$0xff]
      %v442 = vld [vmem:[%s416 + $0x70] sm:$0xff]
      %v443 = vld [vmem:[%s416 + $0x78] sm:$0xff]
      %v444 = vld [vmem:[%s416 + $0x80] sm:$0xff]
      %v445 = vld [vmem:[%s416 + $0x88] sm:$0xff]
      %v446 = vld [vmem:[%s416 + $0x90] sm:$0xff]
      %v447 = vld [vmem:[%s416 + $0x98] sm:$0xff]
      %v448 = vld [vmem:[%s416 + $0xa0] sm:$0xff]
      %v449 = vld [vmem:[%s416 + $0xa8] sm:$0xff]
      %v450 = vld [vmem:[%s416 + $0xb0] sm:$0xff]
      %v451 = vld [vmem:[%s416 + $0xb8] sm:$0xff]
      %v452 = vld [vmem:[%s416 + $0xc0] sm:$0xff]
      %v453 = vld [vmem:[%s416 + $0xc8] sm:$0xff]
      %v454 = vld [vmem:[%s416 + $0xd0] sm:$0xff]
      %v455 = vld [vmem:[%s416 + $0xd8] sm:$0xff]
      %v456 = vld [vmem:[%s416 + $0xe0] sm:$0xff]
      %v457 = vld [vmem:[%s416 + $0xe8] sm:$0xff]
      %v458 = vld [vmem:[%s416 + $0xf0] sm:$0xff]
      %v459 = vld [vmem:[%s416 + $0xf8] sm:$0xff]
      %v460 = vld [vmem:[%s421] sm:$0xff]
      %v461 = vld [vmem:[%s421 + $0x8] sm:$0xff]
      %v462 = vld [vmem:[%s421 + $0x10] sm:$0xff]
      %v463 = vld [vmem:[%s421 + $0x18] sm:$0xff]
      %v464 = vld [vmem:[%s421 + $0x20] sm:$0xff]
      %v465 = vld [vmem:[%s421 + $0x28] sm:$0xff]
      %v466 = vld [vmem:[%s421 + $0x30] sm:$0xff]
      %v467 = vld [vmem:[%s421 + $0x38] sm:$0xff]
      %v468 = vld [vmem:[%s421 + $0x40] sm:$0xff]
      %v469 = vld [vmem:[%s421 + $0x48] sm:$0xff]
      %v470 = vld [vmem:[%s421 + $0x50] sm:$0xff]
      %v471 = vld [vmem:[%s421 + $0x58] sm:$0xff]
      %v472 = vld [vmem:[%s421 + $0x60] sm:$0xff]
      %v473 = vld [vmem:[%s421 + $0x68] sm:$0xff]
      %v474 = vld [vmem:[%s421 + $0x70] sm:$0xff]
      %v475 = vld [vmem:[%s421 + $0x78] sm:$0xff]
      %v476 = vld [vmem:[%s421 + $0x80] sm:$0xff]
      %v477 = vld [vmem:[%s421 + $0x88] sm:$0xff]
      %v478 = vld [vmem:[%s421 + $0x90] sm:$0xff]
      %v479 = vld [vmem:[%s421 + $0x98] sm:$0xff]
      %v480 = vld [vmem:[%s421 + $0xa0] sm:$0xff]
      %v481 = vld [vmem:[%s421 + $0xa8] sm:$0xff]
      %v482 = vld [vmem:[%s421 + $0xb0] sm:$0xff]
      %v483 = vld [vmem:[%s421 + $0xb8] sm:$0xff]
      %v484 = vld [vmem:[%s421 + $0xc0] sm:$0xff]
      %v485 = vld [vmem:[%s421 + $0xc8] sm:$0xff]
      %v486 = vld [vmem:[%s421 + $0xd0] sm:$0xff]
      %v487 = vld [vmem:[%s421 + $0xd8] sm:$0xff]
      %v488 = vld [vmem:[%s421 + $0xe0] sm:$0xff]
      %v489 = vld [vmem:[%s421 + $0xe8] sm:$0xff]
      %v490 = vld [vmem:[%s421 + $0xf0] sm:$0xff]
      %v491 = vld [vmem:[%s421 + $0xf8] sm:$0xff]
      %v492 = vadd.f32 %v428, %v460
      %v493 = vadd.f32 %v429, %v461
      %v494 = vadd.f32 %v430, %v462
      %v495 = vadd.f32 %v431, %v463
      %v496 = vadd.f32 %v432, %v464
      %v497 = vadd.f32 %v433, %v465
      %v498 = vadd.f32 %v434, %v466
      %v499 = vadd.f32 %v435, %v467
      %v500 = vadd.f32 %v436, %v468
      %v501 = vadd.f32 %v437, %v469
      %v502 = vadd.f32 %v438, %v470
      %v503 = vadd.f32 %v439, %v471
      %v504 = vadd.f32 %v440, %v472
      %v505 = vadd.f32 %v441, %v473
      %v506 = vadd.f32 %v442, %v474
      %v507 = vadd.f32 %v443, %v475
      %v508 = vadd.f32 %v444, %v476
      %v509 = vadd.f32 %v445, %v477
      %v510 = vadd.f32 %v446, %v478
      %v511 = vadd.f32 %v447, %v479
      %v512 = vadd.f32 %v448, %v480
      %v513 = vadd.f32 %v449, %v481
      %v514 = vadd.f32 %v450, %v482
      %v515 = vadd.f32 %v451, %v483
      %v516 = vadd.f32 %v452, %v484
      %v517 = vadd.f32 %v453, %v485
      %v518 = vadd.f32 %v454, %v486
      %v519 = vadd.f32 %v455, %v487
      %v520 = vadd.f32 %v456, %v488
      %v521 = vadd.f32 %v457, %v489
      %v522 = vadd.f32 %v458, %v490
      %v523 = vadd.f32 %v459, %v491
      %v524 = vld [vmem:[%s3] sm:$0xff]
      %v525 = vld [vmem:[%s3 + $0x8] sm:$0xff]
      %v526 = vpack.c.bf16 %v493, %v492
      %v527 = vpack.c.bf16 %v495, %v494
      %v528 = vpack.c.bf16 %v497, %v496
      %v529 = vpack.c.bf16 %v499, %v498
      %v530 = vpack.c.bf16 %v501, %v500
      %v531 = vpack.c.bf16 %v503, %v502
      %v532 = vpack.c.bf16 %v505, %v504
      %v533 = vpack.c.bf16 %v507, %v506
      %v534 = vpack.c.bf16 %v509, %v508
      %v535 = vpack.c.bf16 %v511, %v510
      %v536 = vpack.c.bf16 %v513, %v512
      %v537 = vpack.c.bf16 %v515, %v514
      %v538 = vpack.c.bf16 %v517, %v516
      %v539 = vpack.c.bf16 %v519, %v518
      %v540 = vpack.c.bf16 %v521, %v520
      %v541 = vpack.c.bf16 %v523, %v522
      %v542 = vpack.c.bf16 %v525, %v524
      %v543 = vld [vmem:[%s4] sm:$0x1]
      %v545 = vlaneseq
      %v546 = vshrl.u32 %v545, 7
      %v547 = vsub.s32 0, %v546
      %v548 = vrot.slane %v543, %v547
      %vm550 = vcmask 130048
      %v552 = vsel %vm550, %v526, 0
      %v555 = vsel %vm550, %v527, 0
      %v558 = vsel %vm550, %v528, 0
      %v561 = vsel %vm550, %v529, 0
      %v564 = vsel %vm550, %v530, 0
      %v567 = vsel %vm550, %v531, 0
      %v570 = vsel %vm550, %v532, 0
      %v573 = vsel %vm550, %v533, 0
      %v576 = vsel %vm550, %v534, 0
      %v579 = vsel %vm550, %v535, 0
      %v582 = vsel %vm550, %v536, 0
      %v585 = vsel %vm550, %v537, 0
      %v588 = vsel %vm550, %v538, 0
      %v591 = vsel %vm550, %v539, 0
      %v594 = vsel %vm550, %v540, 0
      %v597 = vsel %vm550, %v541, 0
      %599 = vmatprep.subr.bf16.mxu0 0
      %600 = vmatpush1.bf16.msra.mxu0 %v542
      %601 = vmatprep.subr.bf16.mxu0 0
      %602 = vmatpush1.bf16.msra.mxu0 0
      %603 = vmatprep.subr.bf16.mxu0 0
      %604 = vmatpush1.bf16.msra.mxu0 0
      %605 = vmatprep.subr.bf16.mxu0 0
      %606 = vmatpush1.bf16.msra.mxu0 0
      %607 = vmatprep.subr.bf16.mxu0 0
      %608 = vmatpush1.bf16.msra.mxu0 0
      %609 = vmatprep.subr.bf16.mxu0 0
      %610 = vmatpush1.bf16.msra.mxu0 0
      %611 = vmatprep.subr.bf16.mxu0 0
      %612 = vmatpush1.bf16.msra.mxu0 0
      %613 = vmatprep.subr.bf16.mxu0 0
      %614 = vmatpush1.bf16.msra.mxu0 0
      %615 = vmatprep.subr.bf16.mxu0 0
      %616 = vmatpush1.bf16.msra.mxu0 0
      %617 = vmatprep.subr.bf16.mxu0 0
      %618 = vmatpush1.bf16.msra.mxu0 0
      %619 = vmatprep.subr.bf16.mxu0 0
      %620 = vmatpush1.bf16.msra.mxu0 0
      %621 = vmatprep.subr.bf16.mxu0 0
      %622 = vmatpush1.bf16.msra.mxu0 0
      %623 = vmatprep.subr.bf16.mxu0 0
      %624 = vmatpush1.bf16.msra.mxu0 0
      %625 = vmatprep.subr.bf16.mxu0 0
      %626 = vmatpush1.bf16.msra.mxu0 0
      %627 = vmatprep.subr.bf16.mxu0 0
      %628 = vmatpush1.bf16.msra.mxu0 0
      %629 = vmatprep.subr.bf16.mxu0 0
      %630 = vmatpush1.bf16.msra.mxu0 0
      %631 = vmatprep.mubr.bf16.mxu0 0
      %632 = vmatmul.mubr.bf16.gmra.mrb[0].mxu0 %v552
      %v633 = vpop.f32.mrb[0].mxu0
      %v634 = vadd.f32 %v548, %v633
      %v635 = vpop.f32.mrb[0].mxu0
      %v636 = vpop.f32.mrb[0].mxu0
      %v637 = vadd.f32 %v548, %v636
      %v638 = vpop.f32.mrb[0].mxu0
      %639 = vmatprep.mubr.bf16.mxu0 0
      %640 = vmatmul.mubr.bf16.gmra.mrb[0].mxu0 %v555
      %v641 = vpop.f32.mrb[0].mxu0
      %v642 = vadd.f32 %v548, %v641
      %v643 = vpop.f32.mrb[0].mxu0
      %v644 = vpop.f32.mrb[0].mxu0
      %v645 = vadd.f32 %v548, %v644
      %v646 = vpop.f32.mrb[0].mxu0
      %647 = vmatprep.mubr.bf16.mxu0 0
      %648 = vmatmul.mubr.bf16.gmra.mrb[0].mxu0 %v558
      %v649 = vpop.f32.mrb[0].mxu0
      %v650 = vadd.f32 %v548, %v649
      %v651 = vpop.f32.mrb[0].mxu0
      %v652 = vpop.f32.mrb[0].mxu0
      %v653 = vadd.f32 %v548, %v652
      %v654 = vpop.f32.mrb[0].mxu0
      %655 = vmatprep.mubr.bf16.mxu0 0
      %656 = vmatmul.mubr.bf16.gmra.mrb[0].mxu0 %v561
      %v657 = vpop.f32.mrb[0].mxu0
      %v658 = vadd.f32 %v548, %v657
      %v659 = vpop.f32.mrb[0].mxu0
      %v660 = vpop.f32.mrb[0].mxu0
      %v661 = vadd.f32 %v548, %v660
      %v662 = vpop.f32.mrb[0].mxu0
      %663 = vmatprep.mubr.bf16.mxu0 0
      %664 = vmatmul.mubr.bf16.gmra.mrb[0].mxu0 %v564
      %v665 = vpop.f32.mrb[0].mxu0
      %v666 = vadd.f32 %v548, %v665
      %v667 = vpop.f32.mrb[0].mxu0
      %v668 = vpop.f32.mrb[0].mxu0
      %v669 = vadd.f32 %v548, %v668
      %v670 = vpop.f32.mrb[0].mxu0
      %671 = vmatprep.mubr.bf16.mxu0 0
      %672 = vmatmul.mubr.bf16.gmra.mrb[0].mxu0 %v567
      %v673 = vpop.f32.mrb[0].mxu0
      %v674 = vadd.f32 %v548, %v673
      %v675 = vpop.f32.mrb[0].mxu0
      %v676 = vpop.f32.mrb[0].mxu0
      %v677 = vadd.f32 %v548, %v676
      %v678 = vpop.f32.mrb[0].mxu0
      %679 = vmatprep.mubr.bf16.mxu0 0
      %680 = vmatmul.mubr.bf16.gmra.mrb[0].mxu0 %v570
      %v681 = vpop.f32.mrb[0].mxu0
      %v682 = vadd.f32 %v548, %v681
      %v683 = vpop.f32.mrb[0].mxu0
      %v684 = vpop.f32.mrb[0].mxu0
      %v685 = vadd.f32 %v548, %v684
      %v686 = vpop.f32.mrb[0].mxu0
      %687 = vmatprep.mubr.bf16.mxu0 0
      %688 = vmatmul.mubr.bf16.gmra.mrb[0].mxu0 %v573
      %v689 = vpop.f32.mrb[0].mxu0
      %v690 = vadd.f32 %v548, %v689
      %v691 = vpop.f32.mrb[0].mxu0
      %v692 = vpop.f32.mrb[0].mxu0
      %v693 = vadd.f32 %v548, %v692
      %v694 = vpop.f32.mrb[0].mxu0
      %695 = vmatprep.mubr.bf16.mxu0 0
      %696 = vmatmul.mubr.bf16.gmra.mrb[0].mxu0 %v576
      %v697 = vpop.f32.mrb[0].mxu0
      %v698 = vadd.f32 %v548, %v697
      %v699 = vpop.f32.mrb[0].mxu0
      %v700 = vpop.f32.mrb[0].mxu0
      %v701 = vadd.f32 %v548, %v700
      %v702 = vpop.f32.mrb[0].mxu0
      %703 = vmatprep.mubr.bf16.mxu0 0
      %704 = vmatmul.mubr.bf16.gmra.mrb[0].mxu0 %v579
      %v705 = vpop.f32.mrb[0].mxu0
      %v706 = vadd.f32 %v548, %v705
      %v707 = vpop.f32.mrb[0].mxu0
      %v708 = vpop.f32.mrb[0].mxu0
      %v709 = vadd.f32 %v548, %v708
      %v710 = vpop.f32.mrb[0].mxu0
      %711 = vmatprep.mubr.bf16.mxu0 0
      %712 = vmatmul.mubr.bf16.gmra.mrb[0].mxu0 %v582
      %v713 = vpop.f32.mrb[0].mxu0
      %v714 = vadd.f32 %v548, %v713
      %v715 = vpop.f32.mrb[0].mxu0
      %v716 = vpop.f32.mrb[0].mxu0
      %v717 = vadd.f32 %v548, %v716
      %v718 = vpop.f32.mrb[0].mxu0
      %719 = vmatprep.mubr.bf16.mxu0 0
      %720 = vmatmul.mubr.bf16.gmra.mrb[0].mxu0 %v585
      %v721 = vpop.f32.mrb[0].mxu0
      %v722 = vadd.f32 %v548, %v721
      %v723 = vpop.f32.mrb[0].mxu0
      %v724 = vpop.f32.mrb[0].mxu0
      %v725 = vadd.f32 %v548, %v724
      %v726 = vpop.f32.mrb[0].mxu0
      %727 = vmatprep.mubr.bf16.mxu0 0
      %728 = vmatmul.mubr.bf16.gmra.mrb[0].mxu0 %v588
      %v729 = vpop.f32.mrb[0].mxu0
      %v730 = vadd.f32 %v548, %v729
      %v731 = vpop.f32.mrb[0].mxu0
      %v732 = vpop.f32.mrb[0].mxu0
      %v733 = vadd.f32 %v548, %v732
      %v734 = vpop.f32.mrb[0].mxu0
      %735 = vmatprep.mubr.bf16.mxu0 0
      %736 = vmatmul.mubr.bf16.gmra.mrb[0].mxu0 %v591
      %v737 = vpop.f32.mrb[0].mxu0
      %v738 = vadd.f32 %v548, %v737
      %v739 = vpop.f32.mrb[0].mxu0
      %v740 = vpop.f32.mrb[0].mxu0
      %v741 = vadd.f32 %v548, %v740
      %v742 = vpop.f32.mrb[0].mxu0
      %743 = vmatprep.mubr.bf16.mxu0 0
      %744 = vmatmul.mubr.bf16.gmra.mrb[0].mxu0 %v594
      %v745 = vpop.f32.mrb[0].mxu0
      %v746 = vadd.f32 %v548, %v745
      %v747 = vpop.f32.mrb[0].mxu0
      %v748 = vpop.f32.mrb[0].mxu0
      %v749 = vadd.f32 %v548, %v748
      %v750 = vpop.f32.mrb[0].mxu0
      %751 = vmatprep.mubr.bf16.mxu0 0
      %752 = vmatmul.mubr.bf16.gmra.mrb[0].mxu0 %v597
      %v753 = vpop.f32.mrb[0].mxu0
      %v754 = vadd.f32 %v548, %v753
      %v755 = vpop.f32.mrb[0].mxu0
      %v756 = vpop.f32.mrb[0].mxu0
      %v757 = vadd.f32 %v548, %v756
      %v758 = vpop.f32.mrb[0].mxu0
      %759 = vdwg.mxu0
      %v760 = vmul.f32 %v634, 0.5
      %v761 = vmul.f32 %v637, 0.5
      %v762 = vmul.f32 %v642, 0.5
      %v763 = vmul.f32 %v645, 0.5
      %v764 = vmul.f32 %v650, 0.5
      %v765 = vmul.f32 %v653, 0.5
      %v766 = vmul.f32 %v658, 0.5
      %v767 = vmul.f32 %v661, 0.5
      %v768 = vmul.f32 %v666, 0.5
      %v769 = vmul.f32 %v669, 0.5
      %v770 = vmul.f32 %v674, 0.5
      %v771 = vmul.f32 %v677, 0.5
      %v772 = vmul.f32 %v682, 0.5
      %v773 = vmul.f32 %v685, 0.5
      %v774 = vmul.f32 %v690, 0.5
      %v775 = vmul.f32 %v693, 0.5
      %v776 = vmul.f32 %v698, 0.5
      %v777 = vmul.f32 %v701, 0.5
      %v778 = vmul.f32 %v706, 0.5
      %v779 = vmul.f32 %v709, 0.5
      %v780 = vmul.f32 %v714, 0.5
      %v781 = vmul.f32 %v717, 0.5
      %v782 = vmul.f32 %v722, 0.5
      %v783 = vmul.f32 %v725, 0.5
      %v784 = vmul.f32 %v730, 0.5
      %v785 = vmul.f32 %v733, 0.5
      %v786 = vmul.f32 %v738, 0.5
      %v787 = vmul.f32 %v741, 0.5
      %v788 = vmul.f32 %v746, 0.5
      %v789 = vmul.f32 %v749, 0.5
      %v790 = vmul.f32 %v754, 0.5
      %v791 = vmul.f32 %v757, 0.5
      %v792 = vmul.f32 %v634, 0.70710677
      %v793 = vmul.f32 %v637, 0.70710677
      %v794 = vmul.f32 %v642, 0.70710677
      %v795 = vmul.f32 %v645, 0.70710677
      %v796 = vmul.f32 %v650, 0.70710677
      %v797 = vmul.f32 %v653, 0.70710677
      %v798 = vmul.f32 %v658, 0.70710677
      %v799 = vmul.f32 %v661, 0.70710677
      %v800 = vmul.f32 %v666, 0.70710677
      %v801 = vmul.f32 %v669, 0.70710677
      %v802 = vmul.f32 %v674, 0.70710677
      %v803 = vmul.f32 %v677, 0.70710677
      %v804 = vmul.f32 %v682, 0.70710677
      %v805 = vmul.f32 %v685, 0.70710677
      %v806 = vmul.f32 %v690, 0.70710677
      %v807 = vmul.f32 %v693, 0.70710677
      %v808 = vmul.f32 %v698, 0.70710677
      %v809 = vmul.f32 %v701, 0.70710677
      %v810 = vmul.f32 %v706, 0.70710677
      %v811 = vmul.f32 %v709, 0.70710677
      %v812 = vmul.f32 %v714, 0.70710677
      %v813 = vmul.f32 %v717, 0.70710677
      %v814 = vmul.f32 %v722, 0.70710677
      %v815 = vmul.f32 %v725, 0.70710677
      %v816 = vmul.f32 %v730, 0.70710677
      %v817 = vmul.f32 %v733, 0.70710677
      %v818 = vmul.f32 %v738, 0.70710677
      %v819 = vmul.f32 %v741, 0.70710677
      %v820 = vmul.f32 %v746, 0.70710677
      %v821 = vmul.f32 %v749, 0.70710677
      %v822 = vmul.f32 %v754, 0.70710677
      %v823 = vmul.f32 %v757, 0.70710677
      %v824 = verf.f32.pop %v792
      %v825 = verf.f32.pop %v793
      %v826 = verf.f32.pop %v794
      %v827 = verf.f32.pop %v795
      %v828 = verf.f32.pop %v796
      %v829 = verf.f32.pop %v797
      %v830 = verf.f32.pop %v798
      %v831 = verf.f32.pop %v799
      %v832 = verf.f32.pop %v800
      %v833 = verf.f32.pop %v801
      %v834 = verf.f32.pop %v802
      %v835 = verf.f32.pop %v803
      %v836 = verf.f32.pop %v804
      %v837 = verf.f32.pop %v805
      %v838 = verf.f32.pop %v806
      %v839 = verf.f32.pop %v807
      %v840 = verf.f32.pop %v808
      %v841 = verf.f32.pop %v809
      %v842 = verf.f32.pop %v810
      %v843 = verf.f32.pop %v811
      %v844 = verf.f32.pop %v812
      %v845 = verf.f32.pop %v813
      %v846 = verf.f32.pop %v814
      %v847 = verf.f32.pop %v815
      %v848 = verf.f32.pop %v816
      %v849 = verf.f32.pop %v817
      %v850 = verf.f32.pop %v818
      %v851 = verf.f32.pop %v819
      %v852 = verf.f32.pop %v820
      %v853 = verf.f32.pop %v821
      %v854 = verf.f32.pop %v822
      %v855 = verf.f32.pop %v823
      %v856 = vadd.f32 %v824, 1.0
      %v857 = vadd.f32 %v825, 1.0
      %v858 = vadd.f32 %v826, 1.0
      %v859 = vadd.f32 %v827, 1.0
      %v860 = vadd.f32 %v828, 1.0
      %v861 = vadd.f32 %v829, 1.0
      %v862 = vadd.f32 %v830, 1.0
      %v863 = vadd.f32 %v831, 1.0
      %v864 = vadd.f32 %v832, 1.0
      %v865 = vadd.f32 %v833, 1.0
      %v866 = vadd.f32 %v834, 1.0
      %v867 = vadd.f32 %v835, 1.0
      %v868 = vadd.f32 %v836, 1.0
      %v869 = vadd.f32 %v837, 1.0
      %v870 = vadd.f32 %v838, 1.0
      %v871 = vadd.f32 %v839, 1.0
      %v872 = vadd.f32 %v840, 1.0
      %v873 = vadd.f32 %v841, 1.0
      %v874 = vadd.f32 %v842, 1.0
      %v875 = vadd.f32 %v843, 1.0
      %v876 = vadd.f32 %v844, 1.0
      %v877 = vadd.f32 %v845, 1.0
      %v878 = vadd.f32 %v846, 1.0
      %v879 = vadd.f32 %v847, 1.0
      %v880 = vadd.f32 %v848, 1.0
      %v881 = vadd.f32 %v849, 1.0
      %v882 = vadd.f32 %v850, 1.0
      %v883 = vadd.f32 %v851, 1.0
      %v884 = vadd.f32 %v852, 1.0
      %v885 = vadd.f32 %v853, 1.0
      %v886 = vadd.f32 %v854, 1.0
      %v887 = vadd.f32 %v855, 1.0
      %v888 = vmul.f32 %v760, %v856
      %v889 = vmul.f32 %v761, %v857
      %v890 = vmul.f32 %v762, %v858
      %v891 = vmul.f32 %v763, %v859
      %v892 = vmul.f32 %v764, %v860
      %v893 = vmul.f32 %v765, %v861
      %v894 = vmul.f32 %v766, %v862
      %v895 = vmul.f32 %v767, %v863
      %v896 = vmul.f32 %v768, %v864
      %v897 = vmul.f32 %v769, %v865
      %v898 = vmul.f32 %v770, %v866
      %v899 = vmul.f32 %v771, %v867
      %v900 = vmul.f32 %v772, %v868
      %v901 = vmul.f32 %v773, %v869
      %v902 = vmul.f32 %v774, %v870
      %v903 = vmul.f32 %v775, %v871
      %v904 = vmul.f32 %v776, %v872
      %v905 = vmul.f32 %v777, %v873
      %v906 = vmul.f32 %v778, %v874
      %v907 = vmul.f32 %v779, %v875
      %v908 = vmul.f32 %v780, %v876
      %v909 = vmul.f32 %v781, %v877
      %v910 = vmul.f32 %v782, %v878
      %v911 = vmul.f32 %v783, %v879
      %v912 = vmul.f32 %v784, %v880
      %v913 = vmul.f32 %v785, %v881
      %v914 = vmul.f32 %v786, %v882
      %v915 = vmul.f32 %v787, %v883
      %v916 = vmul.f32 %v788, %v884
      %v917 = vmul.f32 %v789, %v885
      %v918 = vmul.f32 %v790, %v886
      %v919 = vmul.f32 %v791, %v887
      %v920 = vld [vmem:[%s411] sm:$0xff]
      %v921 = vld [vmem:[%s411 + $0x8] sm:$0xff]
      %v922 = vld [vmem:[%s411 + $0x10] sm:$0xff]
      %v923 = vld [vmem:[%s411 + $0x18] sm:$0xff]
      %v924 = vld [vmem:[%s411 + $0x20] sm:$0xff]
      %v925 = vld [vmem:[%s411 + $0x28] sm:$0xff]
      %v926 = vld [vmem:[%s411 + $0x30] sm:$0xff]
      %v927 = vld [vmem:[%s411 + $0x38] sm:$0xff]
      %v928 = vld [vmem:[%s411 + $0x40] sm:$0xff]
      %v929 = vld [vmem:[%s411 + $0x48] sm:$0xff]
      %v930 = vld [vmem:[%s411 + $0x50] sm:$0xff]
      %v931 = vld [vmem:[%s411 + $0x58] sm:$0xff]
      %v932 = vld [vmem:[%s411 + $0x60] sm:$0xff]
      %v933 = vld [vmem:[%s411 + $0x68] sm:$0xff]
      %v934 = vld [vmem:[%s411 + $0x70] sm:$0xff]
      %v935 = vld [vmem:[%s411 + $0x78] sm:$0xff]
      %v936 = vld [vmem:[%s411 + $0x80] sm:$0xff]
      %v937 = vld [vmem:[%s411 + $0x88] sm:$0xff]
      %v938 = vld [vmem:[%s411 + $0x90] sm:$0xff]
      %v939 = vld [vmem:[%s411 + $0x98] sm:$0xff]
      %v940 = vld [vmem:[%s411 + $0xa0] sm:$0xff]
      %v941 = vld [vmem:[%s411 + $0xa8] sm:$0xff]
      %v942 = vld [vmem:[%s411 + $0xb0] sm:$0xff]
      %v943 = vld [vmem:[%s411 + $0xb8] sm:$0xff]
      %v944 = vld [vmem:[%s411 + $0xc0] sm:$0xff]
      %v945 = vld [vmem:[%s411 + $0xc8] sm:$0xff]
      %v946 = vld [vmem:[%s411 + $0xd0] sm:$0xff]
      %v947 = vld [vmem:[%s411 + $0xd8] sm:$0xff]
      %v948 = vld [vmem:[%s411 + $0xe0] sm:$0xff]
      %v949 = vld [vmem:[%s411 + $0xe8] sm:$0xff]
      %v950 = vld [vmem:[%s411 + $0xf0] sm:$0xff]
      %v951 = vld [vmem:[%s411 + $0xf8] sm:$0xff]
      %v952 = vmul.f32 %v920, 0.5
      %v953 = vmul.f32 %v921, 0.5
      %v954 = vmul.f32 %v922, 0.5
      %v955 = vmul.f32 %v923, 0.5
      %v956 = vmul.f32 %v924, 0.5
      %v957 = vmul.f32 %v925, 0.5
      %v958 = vmul.f32 %v926, 0.5
      %v959 = vmul.f32 %v927, 0.5
      %v960 = vmul.f32 %v928, 0.5
      %v961 = vmul.f32 %v929, 0.5
      %v962 = vmul.f32 %v930, 0.5
      %v963 = vmul.f32 %v931, 0.5
      %v964 = vmul.f32 %v932, 0.5
      %v965 = vmul.f32 %v933, 0.5
      %v966 = vmul.f32 %v934, 0.5
      %v967 = vmul.f32 %v935, 0.5
      %v968 = vmul.f32 %v936, 0.5
      %v969 = vmul.f32 %v937, 0.5
      %v970 = vmul.f32 %v938, 0.5
      %v971 = vmul.f32 %v939, 0.5
      %v972 = vmul.f32 %v940, 0.5
      %v973 = vmul.f32 %v941, 0.5
      %v974 = vmul.f32 %v942, 0.5
      %v975 = vmul.f32 %v943, 0.5
      %v976 = vmul.f32 %v944, 0.5
      %v977 = vmul.f32 %v945, 0.5
      %v978 = vmul.f32 %v946, 0.5
      %v979 = vmul.f32 %v947, 0.5
      %v980 = vmul.f32 %v948, 0.5
      %v981 = vmul.f32 %v949, 0.5
      %v982 = vmul.f32 %v950, 0.5
      %v983 = vmul.f32 %v951, 0.5
      %v984 = vmul.f32 %v920, 0.70710677
      %v985 = vmul.f32 %v921, 0.70710677
      %v986 = vmul.f32 %v922, 0.70710677
      %v987 = vmul.f32 %v923, 0.70710677
      %v988 = vmul.f32 %v924, 0.70710677
      %v989 = vmul.f32 %v925, 0.70710677
      %v990 = vmul.f32 %v926, 0.70710677
      %v991 = vmul.f32 %v927, 0.70710677
      %v992 = vmul.f32 %v928, 0.70710677
      %v993 = vmul.f32 %v929, 0.70710677
      %v994 = vmul.f32 %v930, 0.70710677
      %v995 = vmul.f32 %v931, 0.70710677
      %v996 = vmul.f32 %v932, 0.70710677
      %v997 = vmul.f32 %v933, 0.70710677
      %v998 = vmul.f32 %v934, 0.70710677
      %v999 = vmul.f32 %v935, 0.70710677
      %v1000 = vmul.f32 %v936, 0.70710677
      %v1001 = vmul.f32 %v937, 0.70710677
      %v1002 = vmul.f32 %v938, 0.70710677
      %v1003 = vmul.f32 %v939, 0.70710677
      %v1004 = vmul.f32 %v940, 0.70710677
      %v1005 = vmul.f32 %v941, 0.70710677
      %v1006 = vmul.f32 %v942, 0.70710677
      %v1007 = vmul.f32 %v943, 0.70710677
      %v1008 = vmul.f32 %v944, 0.70710677
      %v1009 = vmul.f32 %v945, 0.70710677
      %v1010 = vmul.f32 %v946, 0.70710677
      %v1011 = vmul.f32 %v947, 0.70710677
      %v1012 = vmul.f32 %v948, 0.70710677
      %v1013 = vmul.f32 %v949, 0.70710677
      %v1014 = vmul.f32 %v950, 0.70710677
      %v1015 = vmul.f32 %v951, 0.70710677
      %v1016 = verf.f32.pop %v984
      %v1017 = verf.f32.pop %v985
      %v1018 = verf.f32.pop %v986
      %v1019 = verf.f32.pop %v987
      %v1020 = verf.f32.pop %v988
      %v1021 = verf.f32.pop %v989
      %v1022 = verf.f32.pop %v990
      %v1023 = verf.f32.pop %v991
      %v1024 = verf.f32.pop %v992
      %v1025 = verf.f32.pop %v993
      %v1026 = verf.f32.pop %v994
      %v1027 = verf.f32.pop %v995
      %v1028 = verf.f32.pop %v996
      %v1029 = verf.f32.pop %v997
      %v1030 = verf.f32.pop %v998
      %v1031 = verf.f32.pop %v999
      %v1032 = verf.f32.pop %v1000
      %v1033 = verf.f32.pop %v1001
      %v1034 = verf.f32.pop %v1002
      %v1035 = verf.f32.pop %v1003
      %v1036 = verf.f32.pop %v1004
      %v1037 = verf.f32.pop %v1005
      %v1038 = verf.f32.pop %v1006
      %v1039 = verf.f32.pop %v1007
      %v1040 = verf.f32.pop %v1008
      %v1041 = verf.f32.pop %v1009
      %v1042 = verf.f32.pop %v1010
      %v1043 = verf.f32.pop %v1011
      %v1044 = verf.f32.pop %v1012
      %v1045 = verf.f32.pop %v1013
      %v1046 = verf.f32.pop %v1014
      %v1047 = verf.f32.pop %v1015
      %v1048 = vadd.f32 %v1016, 1.0
      %v1049 = vadd.f32 %v1017, 1.0
      %v1050 = vadd.f32 %v1018, 1.0
      %v1051 = vadd.f32 %v1019, 1.0
      %v1052 = vadd.f32 %v1020, 1.0
      %v1053 = vadd.f32 %v1021, 1.0
      %v1054 = vadd.f32 %v1022, 1.0
      %v1055 = vadd.f32 %v1023, 1.0
      %v1056 = vadd.f32 %v1024, 1.0
      %v1057 = vadd.f32 %v1025, 1.0
      %v1058 = vadd.f32 %v1026, 1.0
      %v1059 = vadd.f32 %v1027, 1.0
      %v1060 = vadd.f32 %v1028, 1.0
      %v1061 = vadd.f32 %v1029, 1.0
      %v1062 = vadd.f32 %v1030, 1.0
      %v1063 = vadd.f32 %v1031, 1.0
      %v1064 = vadd.f32 %v1032, 1.0
      %v1065 = vadd.f32 %v1033, 1.0
      %v1066 = vadd.f32 %v1034, 1.0
      %v1067 = vadd.f32 %v1035, 1.0
      %v1068 = vadd.f32 %v1036, 1.0
      %v1069 = vadd.f32 %v1037, 1.0
      %v1070 = vadd.f32 %v1038, 1.0
      %v1071 = vadd.f32 %v1039, 1.0
      %v1072 = vadd.f32 %v1040, 1.0
      %v1073 = vadd.f32 %v1041, 1.0
      %v1074 = vadd.f32 %v1042, 1.0
      %v1075 = vadd.f32 %v1043, 1.0
      %v1076 = vadd.f32 %v1044, 1.0
      %v1077 = vadd.f32 %v1045, 1.0
      %v1078 = vadd.f32 %v1046, 1.0
      %v1079 = vadd.f32 %v1047, 1.0
      %v1080 = vmul.f32 %v952, %v1048
      %v1081 = vmul.f32 %v953, %v1049
      %v1082 = vmul.f32 %v954, %v1050
      %v1083 = vmul.f32 %v955, %v1051
      %v1084 = vmul.f32 %v956, %v1052
      %v1085 = vmul.f32 %v957, %v1053
      %v1086 = vmul.f32 %v958, %v1054
      %v1087 = vmul.f32 %v959, %v1055
      %v1088 = vmul.f32 %v960, %v1056
      %v1089 = vmul.f32 %v961, %v1057
      %v1090 = vmul.f32 %v962, %v1058
      %v1091 = vmul.f32 %v963, %v1059
      %v1092 = vmul.f32 %v964, %v1060
      %v1093 = vmul.f32 %v965, %v1061
      %v1094 = vmul.f32 %v966, %v1062
      %v1095 = vmul.f32 %v967, %v1063
      %v1096 = vmul.f32 %v968, %v1064
      %v1097 = vmul.f32 %v969, %v1065
      %v1098 = vmul.f32 %v970, %v1066
      %v1099 = vmul.f32 %v971, %v1067
      %v1100 = vmul.f32 %v972, %v1068
      %v1101 = vmul.f32 %v973, %v1069
      %v1102 = vmul.f32 %v974, %v1070
      %v1103 = vmul.f32 %v975, %v1071
      %v1104 = vmul.f32 %v976, %v1072
      %v1105 = vmul.f32 %v977, %v1073
      %v1106 = vmul.f32 %v978, %v1074
      %v1107 = vmul.f32 %v979, %v1075
      %v1108 = vmul.f32 %v980, %v1076
      %v1109 = vmul.f32 %v981, %v1077
      %v1110 = vmul.f32 %v982, %v1078
      %v1111 = vmul.f32 %v983, %v1079
      %v1112 = vmul.f32 %v888, 0.5
      %v1113 = vmul.f32 %v889, 0.5
      %v1114 = vmul.f32 %v890, 0.5
      %v1115 = vmul.f32 %v891, 0.5
      %v1116 = vmul.f32 %v892, 0.5
      %v1117 = vmul.f32 %v893, 0.5
      %v1118 = vmul.f32 %v894, 0.5
      %v1119 = vmul.f32 %v895, 0.5
      %v1120 = vmul.f32 %v896, 0.5
      %v1121 = vmul.f32 %v897, 0.5
      %v1122 = vmul.f32 %v898, 0.5
      %v1123 = vmul.f32 %v899, 0.5
      %v1124 = vmul.f32 %v900, 0.5
      %v1125 = vmul.f32 %v901, 0.5
      %v1126 = vmul.f32 %v902, 0.5
      %v1127 = vmul.f32 %v903, 0.5
      %v1128 = vmul.f32 %v904, 0.5
      %v1129 = vmul.f32 %v905, 0.5
      %v1130 = vmul.f32 %v906, 0.5
      %v1131 = vmul.f32 %v907, 0.5
      %v1132 = vmul.f32 %v908, 0.5
      %v1133 = vmul.f32 %v909, 0.5
      %v1134 = vmul.f32 %v910, 0.5
      %v1135 = vmul.f32 %v911, 0.5
      %v1136 = vmul.f32 %v912, 0.5
      %v1137 = vmul.f32 %v913, 0.5
      %v1138 = vmul.f32 %v914, 0.5
      %v1139 = vmul.f32 %v915, 0.5
      %v1140 = vmul.f32 %v916, 0.5
      %v1141 = vmul.f32 %v917, 0.5
      %v1142 = vmul.f32 %v918, 0.5
      %v1143 = vmul.f32 %v919, 0.5
      %v1144 = vmul.f32 %v888, 0.70710677
      %v1145 = vmul.f32 %v889, 0.70710677
      %v1146 = vmul.f32 %v890, 0.70710677
      %v1147 = vmul.f32 %v891, 0.70710677
      %v1148 = vmul.f32 %v892, 0.70710677
      %v1149 = vmul.f32 %v893, 0.70710677
      %v1150 = vmul.f32 %v894, 0.70710677
      %v1151 = vmul.f32 %v895, 0.70710677
      %v1152 = vmul.f32 %v896, 0.70710677
      %v1153 = vmul.f32 %v897, 0.70710677
      %v1154 = vmul.f32 %v898, 0.70710677
      %v1155 = vmul.f32 %v899, 0.70710677
      %v1156 = vmul.f32 %v900, 0.70710677
      %v1157 = vmul.f32 %v901, 0.70710677
      %v1158 = vmul.f32 %v902, 0.70710677
      %v1159 = vmul.f32 %v903, 0.70710677
      %v1160 = vmul.f32 %v904, 0.70710677
      %v1161 = vmul.f32 %v905, 0.70710677
      %v1162 = vmul.f32 %v906, 0.70710677
      %v1163 = vmul.f32 %v907, 0.70710677
      %v1164 = vmul.f32 %v908, 0.70710677
      %v1165 = vmul.f32 %v909, 0.70710677
      %v1166 = vmul.f32 %v910, 0.70710677
      %v1167 = vmul.f32 %v911, 0.70710677
      %v1168 = vmul.f32 %v912, 0.70710677
      %v1169 = vmul.f32 %v913, 0.70710677
      %v1170 = vmul.f32 %v914, 0.70710677
      %v1171 = vmul.f32 %v915, 0.70710677
      %v1172 = vmul.f32 %v916, 0.70710677
      %v1173 = vmul.f32 %v917, 0.70710677
      %v1174 = vmul.f32 %v918, 0.70710677
      %v1175 = vmul.f32 %v919, 0.70710677
      %v1176 = verf.f32.pop %v1144
      %v1177 = verf.f32.pop %v1145
      %v1178 = verf.f32.pop %v1146
      %v1179 = verf.f32.pop %v1147
      %v1180 = verf.f32.pop %v1148
      %v1181 = verf.f32.pop %v1149
      %v1182 = verf.f32.pop %v1150
      %v1183 = verf.f32.pop %v1151
      %v1184 = verf.f32.pop %v1152
      %v1185 = verf.f32.pop %v1153
      %v1186 = verf.f32.pop %v1154
      %v1187 = verf.f32.pop %v1155
      %v1188 = verf.f32.pop %v1156
      %v1189 = verf.f32.pop %v1157
      %v1190 = verf.f32.pop %v1158
      %v1191 = verf.f32.pop %v1159
      %v1192 = verf.f32.pop %v1160
      %v1193 = verf.f32.pop %v1161
      %v1194 = verf.f32.pop %v1162
      %v1195 = verf.f32.pop %v1163
      %v1196 = verf.f32.pop %v1164
      %v1197 = verf.f32.pop %v1165
      %v1198 = verf.f32.pop %v1166
      %v1199 = verf.f32.pop %v1167
      %v1200 = verf.f32.pop %v1168
      %v1201 = verf.f32.pop %v1169
      %v1202 = verf.f32.pop %v1170
      %v1203 = verf.f32.pop %v1171
      %v1204 = verf.f32.pop %v1172
      %v1205 = verf.f32.pop %v1173
      %v1206 = verf.f32.pop %v1174
      %v1207 = verf.f32.pop %v1175
      %v1208 = vadd.f32 %v1176, 1.0
      %v1209 = vadd.f32 %v1177, 1.0
      %v1210 = vadd.f32 %v1178, 1.0
      %v1211 = vadd.f32 %v1179, 1.0
      %v1212 = vadd.f32 %v1180, 1.0
      %v1213 = vadd.f32 %v1181, 1.0
      %v1214 = vadd.f32 %v1182, 1.0
      %v1215 = vadd.f32 %v1183, 1.0
      %v1216 = vadd.f32 %v1184, 1.0
      %v1217 = vadd.f32 %v1185, 1.0
      %v1218 = vadd.f32 %v1186, 1.0
      %v1219 = vadd.f32 %v1187, 1.0
      %v1220 = vadd.f32 %v1188, 1.0
      %v1221 = vadd.f32 %v1189, 1.0
      %v1222 = vadd.f32 %v1190, 1.0
      %v1223 = vadd.f32 %v1191, 1.0
      %v1224 = vadd.f32 %v1192, 1.0
      %v1225 = vadd.f32 %v1193, 1.0
      %v1226 = vadd.f32 %v1194, 1.0
      %v1227 = vadd.f32 %v1195, 1.0
      %v1228 = vadd.f32 %v1196, 1.0
      %v1229 = vadd.f32 %v1197, 1.0
      %v1230 = vadd.f32 %v1198, 1.0
      %v1231 = vadd.f32 %v1199, 1.0
      %v1232 = vadd.f32 %v1200, 1.0
      %v1233 = vadd.f32 %v1201, 1.0
      %v1234 = vadd.f32 %v1202, 1.0
      %v1235 = vadd.f32 %v1203, 1.0
      %v1236 = vadd.f32 %v1204, 1.0
      %v1237 = vadd.f32 %v1205, 1.0
      %v1238 = vadd.f32 %v1206, 1.0
      %v1239 = vadd.f32 %v1207, 1.0
      %v1240 = vmul.f32 %v1112, %v1208
      %v1241 = vmul.f32 %v1113, %v1209
      %v1242 = vmul.f32 %v1114, %v1210
      %v1243 = vmul.f32 %v1115, %v1211
      %v1244 = vmul.f32 %v1116, %v1212
      %v1245 = vmul.f32 %v1117, %v1213
      %v1246 = vmul.f32 %v1118, %v1214
      %v1247 = vmul.f32 %v1119, %v1215
      %v1248 = vmul.f32 %v1120, %v1216
      %v1249 = vmul.f32 %v1121, %v1217
      %v1250 = vmul.f32 %v1122, %v1218
      %v1251 = vmul.f32 %v1123, %v1219
      %v1252 = vmul.f32 %v1124, %v1220
      %v1253 = vmul.f32 %v1125, %v1221
      %v1254 = vmul.f32 %v1126, %v1222
      %v1255 = vmul.f32 %v1127, %v1223
      %v1256 = vmul.f32 %v1128, %v1224
      %v1257 = vmul.f32 %v1129, %v1225
      %v1258 = vmul.f32 %v1130, %v1226
      %v1259 = vmul.f32 %v1131, %v1227
      %v1260 = vmul.f32 %v1132, %v1228
      %v1261 = vmul.f32 %v1133, %v1229
      %v1262 = vmul.f32 %v1134, %v1230
      %v1263 = vmul.f32 %v1135, %v1231
      %v1264 = vmul.f32 %v1136, %v1232
      %v1265 = vmul.f32 %v1137, %v1233
      %v1266 = vmul.f32 %v1138, %v1234
      %v1267 = vmul.f32 %v1139, %v1235
      %v1268 = vmul.f32 %v1140, %v1236
      %v1269 = vmul.f32 %v1141, %v1237
      %v1270 = vmul.f32 %v1142, %v1238
      %v1271 = vmul.f32 %v1143, %v1239
      %vm1272 = vcmask 64512
      %v1273 = vsel %vm1272, %v1080, 0.0
      %v1274 = vsel %vm1272, %v1081, 0.0
      %v1275 = vadd.f32 %v1273, %v1274
      %v1276 = vsel %vm1272, %v1082, 0.0
      %v1277 = vadd.f32 %v1275, %v1276
      %v1278 = vsel %vm1272, %v1083, 0.0
      %v1279 = vadd.f32 %v1277, %v1278
      %v1280 = vsel %vm1272, %v1084, 0.0
      %v1281 = vadd.f32 %v1279, %v1280
      %v1282 = vsel %vm1272, %v1085, 0.0
      %v1283 = vadd.f32 %v1281, %v1282
      %v1284 = vsel %vm1272, %v1086, 0.0
      %v1285 = vadd.f32 %v1283, %v1284
      %v1286 = vsel %vm1272, %v1087, 0.0
      %v1287 = vadd.f32 %v1285, %v1286
      %v1288 = vsel %vm1272, %v1088, 0.0
      %v1289 = vadd.f32 %v1287, %v1288
      %v1290 = vsel %vm1272, %v1089, 0.0
      %v1291 = vadd.f32 %v1289, %v1290
      %v1292 = vsel %vm1272, %v1090, 0.0
      %v1293 = vadd.f32 %v1291, %v1292
      %v1294 = vsel %vm1272, %v1091, 0.0
      %v1295 = vadd.f32 %v1293, %v1294
      %v1296 = vsel %vm1272, %v1092, 0.0
      %v1297 = vadd.f32 %v1295, %v1296
      %v1298 = vsel %vm1272, %v1093, 0.0
      %v1299 = vadd.f32 %v1297, %v1298
      %v1300 = vsel %vm1272, %v1094, 0.0
      %v1301 = vadd.f32 %v1299, %v1300
      %v1302 = vsel %vm1272, %v1095, 0.0
      %v1303 = vadd.f32 %v1301, %v1302
      %v1304 = vsel %vm1272, %v1096, 0.0
      %v1305 = vadd.f32 %v1303, %v1304
      %v1306 = vsel %vm1272, %v1097, 0.0
      %v1307 = vadd.f32 %v1305, %v1306
      %v1308 = vsel %vm1272, %v1098, 0.0
      %v1309 = vadd.f32 %v1307, %v1308
      %v1310 = vsel %vm1272, %v1099, 0.0
      %v1311 = vadd.f32 %v1309, %v1310
      %v1312 = vsel %vm1272, %v1100, 0.0
      %v1313 = vadd.f32 %v1311, %v1312
      %v1314 = vsel %vm1272, %v1101, 0.0
      %v1315 = vadd.f32 %v1313, %v1314
      %v1316 = vsel %vm1272, %v1102, 0.0
      %v1317 = vadd.f32 %v1315, %v1316
      %v1318 = vsel %vm1272, %v1103, 0.0
      %v1319 = vadd.f32 %v1317, %v1318
      %v1320 = vsel %vm1272, %v1104, 0.0
      %v1321 = vadd.f32 %v1319, %v1320
      %v1322 = vsel %vm1272, %v1105, 0.0
      %v1323 = vadd.f32 %v1321, %v1322
      %v1324 = vsel %vm1272, %v1106, 0.0
      %v1325 = vadd.f32 %v1323, %v1324
      %v1326 = vsel %vm1272, %v1107, 0.0
      %v1327 = vadd.f32 %v1325, %v1326
      %v1328 = vsel %vm1272, %v1108, 0.0
      %v1329 = vadd.f32 %v1327, %v1328
      %v1330 = vsel %vm1272, %v1109, 0.0
      %v1331 = vadd.f32 %v1329, %v1330
      %v1332 = vsel %vm1272, %v1110, 0.0
      %v1333 = vadd.f32 %v1331, %v1332
      %v1334 = vsel %vm1272, %v1111, 0.0
      %v1335 = vadd.f32 %v1333, %v1334
      %v1336 = vrot.slane %v1335, 4
      %v1337 = vadd.f32 %v1335, %v1336
      %v1338 = vrot.slane %v1337, 2
      %v1339 = vadd.f32 %v1337, %v1338
      %v1340 = vrot.slane %v1339, 1
      %v1341 = vadd.f32 %v1339, %v1340
      %v1342 = vmul.f32 %v1341, 0.00390625
      %v1343 = vsel %vm1272, %v1240, 0.0
      %v1344 = vsel %vm1272, %v1241, 0.0
      %v1345 = vadd.f32 %v1343, %v1344
      %v1346 = vsel %vm1272, %v1242, 0.0
      %v1347 = vadd.f32 %v1345, %v1346
      %v1348 = vsel %vm1272, %v1243, 0.0
      %v1349 = vadd.f32 %v1347, %v1348
      %v1350 = vsel %vm1272, %v1244, 0.0
      %v1351 = vadd.f32 %v1349, %v1350
      %v1352 = vsel %vm1272, %v1245, 0.0
      %v1353 = vadd.f32 %v1351, %v1352
      %v1354 = vsel %vm1272, %v1246, 0.0
      %v1355 = vadd.f32 %v1353, %v1354
      %v1356 = vsel %vm1272, %v1247, 0.0
      %v1357 = vadd.f32 %v1355, %v1356
      %v1358 = vsel %vm1272, %v1248, 0.0
      %v1359 = vadd.f32 %v1357, %v1358
      %v1360 = vsel %vm1272, %v1249, 0.0
      %v1361 = vadd.f32 %v1359, %v1360
      %v1362 = vsel %vm1272, %v1250, 0.0
      %v1363 = vadd.f32 %v1361, %v1362
      %v1364 = vsel %vm1272, %v1251, 0.0
      %v1365 = vadd.f32 %v1363, %v1364
      %v1366 = vsel %vm1272, %v1252, 0.0
      %v1367 = vadd.f32 %v1365, %v1366
      %v1368 = vsel %vm1272, %v1253, 0.0
      %v1369 = vadd.f32 %v1367, %v1368
      %v1370 = vsel %vm1272, %v1254, 0.0
      %v1371 = vadd.f32 %v1369, %v1370
      %v1372 = vsel %vm1272, %v1255, 0.0
      %v1373 = vadd.f32 %v1371, %v1372
      %v1374 = vsel %vm1272, %v1256, 0.0
      %v1375 = vadd.f32 %v1373, %v1374
      %v1376 = vsel %vm1272, %v1257, 0.0
      %v1377 = vadd.f32 %v1375, %v1376
      %v1378 = vsel %vm1272, %v1258, 0.0
      %v1379 = vadd.f32 %v1377, %v1378
      %v1380 = vsel %vm1272, %v1259, 0.0
      %v1381 = vadd.f32 %v1379, %v1380
      %v1382 = vsel %vm1272, %v1260, 0.0
      %v1383 = vadd.f32 %v1381, %v1382
      %v1384 = vsel %vm1272, %v1261, 0.0
      %v1385 = vadd.f32 %v1383, %v1384
      %v1386 = vsel %vm1272, %v1262, 0.0
      %v1387 = vadd.f32 %v1385, %v1386
      %v1388 = vsel %vm1272, %v1263, 0.0
      %v1389 = vadd.f32 %v1387, %v1388
      %v1390 = vsel %vm1272, %v1264, 0.0
      %v1391 = vadd.f32 %v1389, %v1390
      %v1392 = vsel %vm1272, %v1265, 0.0
      %v1393 = vadd.f32 %v1391, %v1392
      %v1394 = vsel %vm1272, %v1266, 0.0
      %v1395 = vadd.f32 %v1393, %v1394
      %v1396 = vsel %vm1272, %v1267, 0.0
      %v1397 = vadd.f32 %v1395, %v1396
      %v1398 = vsel %vm1272, %v1268, 0.0
      %v1399 = vadd.f32 %v1397, %v1398
      %v1400 = vsel %vm1272, %v1269, 0.0
      %v1401 = vadd.f32 %v1399, %v1400
      %v1402 = vsel %vm1272, %v1270, 0.0
      %v1403 = vadd.f32 %v1401, %v1402
      %v1404 = vsel %vm1272, %v1271, 0.0
      %v1405 = vadd.f32 %v1403, %v1404
      %v1406 = vrot.slane %v1405, 4
      %v1407 = vadd.f32 %v1405, %v1406
      %v1408 = vrot.slane %v1407, 2
      %v1409 = vadd.f32 %v1407, %v1408
      %v1410 = vrot.slane %v1409, 1
      %v1411 = vadd.f32 %v1409, %v1410
      %v1412 = vmul.f32 %v1411, 0.00390625
      %v1413 = vld [vmem:[%s5] sm:$0xff]
      %v1414 = vld [vmem:[%s5 + $0x8] sm:$0xff]
      %v1416 = vsel %vm1272, %v1412, 0
      %1418 = vmatprep.subr.mxu0 0.0
      %1419 = vmatpush1.msra.mxu0 %v1414
      %1420 = vmatprep.subr.mxu0 0.0
      %1421 = vmatpush1.msra.mxu0 0.0
      %1422 = vmatprep.subr.mxu0 0.0
      %1423 = vmatpush1.msra.mxu0 0.0
      %1424 = vmatprep.subr.mxu0 0.0
      %1425 = vmatpush1.msra.mxu0 0.0
      %1426 = vmatprep.subr.mxu0 0.0
      %1427 = vmatpush1.msra.mxu0 0.0
      %1428 = vmatprep.subr.mxu0 0.0
      %1429 = vmatpush1.msra.mxu0 0.0
      %1430 = vmatprep.subr.mxu0 0.0
      %1431 = vmatpush1.msra.mxu0 0.0
      %1432 = vmatprep.subr.mxu0 0.0
      %1433 = vmatpush1.msra.mxu0 0.0
      %1434 = vmatprep.subr.mxu0 0.0
      %1435 = vmatpush1.msra.mxu0 0.0
      %1436 = vmatprep.subr.mxu0 0.0
      %1437 = vmatpush1.msra.mxu0 0.0
      %1438 = vmatprep.subr.mxu0 0.0
      %1439 = vmatpush1.msra.mxu0 0.0
      %1440 = vmatprep.subr.mxu0 0.0
      %1441 = vmatpush1.msra.mxu0 0.0
      %1442 = vmatprep.subr.mxu0 0.0
      %1443 = vmatpush1.msra.mxu0 0.0
      %1444 = vmatprep.subr.mxu0 0.0
      %1445 = vmatpush1.msra.mxu0 0.0
      %1446 = vmatprep.subr.mxu0 0.0
      %1447 = vmatpush1.msra.mxu0 0.0
      %1448 = vmatprep.subr.mxu0 0.0
      %1449 = vmatpush1.msra.mxu0 0.0
      %1450 = vmatprep.subr.mxu0 0.0
      %1451 = vmatpush1.msra.mxu0 0.0
      %1452 = vmatprep.subr.mxu0 0.0
      %1453 = vmatpush1.msra.mxu0 0.0
      %1454 = vmatprep.subr.mxu0 0.0
      %1455 = vmatpush1.msra.mxu0 0.0
      %1456 = vmatprep.subr.mxu0 0.0
      %1457 = vmatpush1.msra.mxu0 0.0
      %1458 = vmatprep.subr.mxu0 0.0
      %1459 = vmatpush1.msra.mxu0 0.0
      %1460 = vmatprep.subr.mxu0 0.0
      %1461 = vmatpush1.msra.mxu0 0.0
      %1462 = vmatprep.subr.mxu0 0.0
      %1463 = vmatpush1.msra.mxu0 0.0
      %1464 = vmatprep.subr.mxu0 0.0
      %1465 = vmatpush1.msra.mxu0 0.0
      %1466 = vmatprep.subr.mxu0 0.0
      %1467 = vmatpush1.msra.mxu0 0.0
      %1468 = vmatprep.subr.mxu0 0.0
      %1469 = vmatpush1.msra.mxu0 0.0
      %1470 = vmatprep.subr.mxu0 0.0
      %1471 = vmatpush1.msra.mxu0 0.0
      %1472 = vmatprep.subr.mxu0 0.0
      %1473 = vmatpush1.msra.mxu0 0.0
      %1474 = vmatprep.subr.mxu0 0.0
      %1475 = vmatpush1.msra.mxu0 0.0
      %1476 = vmatprep.subr.mxu0 0.0
      %1477 = vmatpush1.msra.mxu0 0.0
      %1478 = vmatprep.subr.mxu0 0.0
      %1479 = vmatpush1.msra.mxu0 0.0
      %1480 = vmatprep.subr.mxu0 0.0
      %1481 = vmatpush1.msra.mxu0 0.0
      %1482 = vmatprep.mubr.f32.mxu0 0.0
      %1483 = vmatmul.mubr.f32.gmra.mrb[0].mxu0 %v1416
      %v1484 = vpop.f32.mrb[0].mxu0
      %v1485 = vadd.f32 0.0, %v1484
      %v1486 = vpop.f32.mrb[0].mxu0
      %1487 = vdwg.mxu0
      %v1489 = vsel %vm1272, %v1342, 0
      %1491 = vmatprep.subr.mxu0 0.0
      %1492 = vmatpush1.msra.mxu0 %v1413
      %1493 = vmatprep.subr.mxu0 0.0
      %1494 = vmatpush1.msra.mxu0 0.0
      %1495 = vmatprep.subr.mxu0 0.0
      %1496 = vmatpush1.msra.mxu0 0.0
      %1497 = vmatprep.subr.mxu0 0.0
      %1498 = vmatpush1.msra.mxu0 0.0
      %1499 = vmatprep.subr.mxu0 0.0
      %1500 = vmatpush1.msra.mxu0 0.0
      %1501 = vmatprep.subr.mxu0 0.0
      %1502 = vmatpush1.msra.mxu0 0.0
      %1503 = vmatprep.subr.mxu0 0.0
      %1504 = vmatpush1.msra.mxu0 0.0
      %1505 = vmatprep.subr.mxu0 0.0
      %1506 = vmatpush1.msra.mxu0 0.0
      %1507 = vmatprep.subr.mxu0 0.0
      %1508 = vmatpush1.msra.mxu0 0.0
      %1509 = vmatprep.subr.mxu0 0.0
      %1510 = vmatpush1.msra.mxu0 0.0
      %1511 = vmatprep.subr.mxu0 0.0
      %1512 = vmatpush1.msra.mxu0 0.0
      %1513 = vmatprep.subr.mxu0 0.0
      %1514 = vmatpush1.msra.mxu0 0.0
      %1515 = vmatprep.subr.mxu0 0.0
      %1516 = vmatpush1.msra.mxu0 0.0
      %1517 = vmatprep.subr.mxu0 0.0
      %1518 = vmatpush1.msra.mxu0 0.0
      %1519 = vmatprep.subr.mxu0 0.0
      %1520 = vmatpush1.msra.mxu0 0.0
      %1521 = vmatprep.subr.mxu0 0.0
      %1522 = vmatpush1.msra.mxu0 0.0
      %1523 = vmatprep.subr.mxu0 0.0
      %1524 = vmatpush1.msra.mxu0 0.0
      %1525 = vmatprep.subr.mxu0 0.0
      %1526 = vmatpush1.msra.mxu0 0.0
      %1527 = vmatprep.subr.mxu0 0.0
      %1528 = vmatpush1.msra.mxu0 0.0
      %1529 = vmatprep.subr.mxu0 0.0
      %1530 = vmatpush1.msra.mxu0 0.0
      %1531 = vmatprep.subr.mxu0 0.0
      %1532 = vmatpush1.msra.mxu0 0.0
      %1533 = vmatprep.subr.mxu0 0.0
      %1534 = vmatpush1.msra.mxu0 0.0
      %1535 = vmatprep.subr.mxu0 0.0
      %1536 = vmatpush1.msra.mxu0 0.0
      %1537 = vmatprep.subr.mxu0 0.0
      %1538 = vmatpush1.msra.mxu0 0.0
      %1539 = vmatprep.subr.mxu0 0.0
      %1540 = vmatpush1.msra.mxu0 0.0
      %1541 = vmatprep.subr.mxu0 0.0
      %1542 = vmatpush1.msra.mxu0 0.0
      %1543 = vmatprep.subr.mxu0 0.0
      %1544 = vmatpush1.msra.mxu0 0.0
      %1545 = vmatprep.subr.mxu0 0.0
      %1546 = vmatpush1.msra.mxu0 0.0
      %1547 = vmatprep.subr.mxu0 0.0
      %1548 = vmatpush1.msra.mxu0 0.0
      %1549 = vmatprep.subr.mxu0 0.0
      %1550 = vmatpush1.msra.mxu0 0.0
      %1551 = vmatprep.subr.mxu0 0.0
      %1552 = vmatpush1.msra.mxu0 0.0
      %1553 = vmatprep.subr.mxu0 0.0
      %1554 = vmatpush1.msra.mxu0 0.0
      %1555 = vmatprep.mubr.f32.mxu0 0.0
      %1556 = vmatmul.mubr.f32.gmra.mrb[0].mxu0 %v1489
      %v1557 = vpop.f32.mrb[0].mxu0
      %v1558 = vadd.f32 %v1485, %v1557
      %v1559 = vpop.f32.mrb[0].mxu0
      %1560 = vdwg.mxu0
      %v1561 = vld [vmem:[%s6] sm:$0x1]
      %v1562 = vadd.f32 %v1558, %v1561
      %v1563 = vmax.f32 %v1562, 0.0
      %v1564 = vld [vmem:[%s7] sm:$0xff]
      %v1565 = vld [vmem:[%s8] sm:$0x1]
      %v1567 = vsel %vm1272, %v1563, 0
      %1569 = vmatprep.subr.mxu0 0.0
      %1570 = vmatpush1.msra.mxu0 %v1564
      %1571 = vmatprep.subr.mxu0 0.0
      %1572 = vmatpush1.msra.mxu0 0.0
      %1573 = vmatprep.subr.mxu0 0.0
      %1574 = vmatpush1.msra.mxu0 0.0
      %1575 = vmatprep.subr.mxu0 0.0
      %1576 = vmatpush1.msra.mxu0 0.0
      %1577 = vmatprep.subr.mxu0 0.0
      %1578 = vmatpush1.msra.mxu0 0.0
      %1579 = vmatprep.subr.mxu0 0.0
      %1580 = vmatpush1.msra.mxu0 0.0
      %1581 = vmatprep.subr.mxu0 0.0
      %1582 = vmatpush1.msra.mxu0 0.0
      %1583 = vmatprep.subr.mxu0 0.0
      %1584 = vmatpush1.msra.mxu0 0.0
      %1585 = vmatprep.subr.mxu0 0.0
      %1586 = vmatpush1.msra.mxu0 0.0
      %1587 = vmatprep.subr.mxu0 0.0
      %1588 = vmatpush1.msra.mxu0 0.0
      %1589 = vmatprep.subr.mxu0 0.0
      %1590 = vmatpush1.msra.mxu0 0.0
      %1591 = vmatprep.subr.mxu0 0.0
      %1592 = vmatpush1.msra.mxu0 0.0
      %1593 = vmatprep.subr.mxu0 0.0
      %1594 = vmatpush1.msra.mxu0 0.0
      %1595 = vmatprep.subr.mxu0 0.0
      %1596 = vmatpush1.msra.mxu0 0.0
      %1597 = vmatprep.subr.mxu0 0.0
      %1598 = vmatpush1.msra.mxu0 0.0
      %1599 = vmatprep.subr.mxu0 0.0
      %1600 = vmatpush1.msra.mxu0 0.0
      %1601 = vmatprep.subr.mxu0 0.0
      %1602 = vmatpush1.msra.mxu0 0.0
      %1603 = vmatprep.subr.mxu0 0.0
      %1604 = vmatpush1.msra.mxu0 0.0
      %1605 = vmatprep.subr.mxu0 0.0
      %1606 = vmatpush1.msra.mxu0 0.0
      %1607 = vmatprep.subr.mxu0 0.0
      %1608 = vmatpush1.msra.mxu0 0.0
      %1609 = vmatprep.subr.mxu0 0.0
      %1610 = vmatpush1.msra.mxu0 0.0
      %1611 = vmatprep.subr.mxu0 0.0
      %1612 = vmatpush1.msra.mxu0 0.0
      %1613 = vmatprep.subr.mxu0 0.0
      %1614 = vmatpush1.msra.mxu0 0.0
      %1615 = vmatprep.subr.mxu0 0.0
      %1616 = vmatpush1.msra.mxu0 0.0
      %1617 = vmatprep.subr.mxu0 0.0
      %1618 = vmatpush1.msra.mxu0 0.0
      %1619 = vmatprep.subr.mxu0 0.0
      %1620 = vmatpush1.msra.mxu0 0.0
      %1621 = vmatprep.subr.mxu0 0.0
      %1622 = vmatpush1.msra.mxu0 0.0
      %1623 = vmatprep.subr.mxu0 0.0
      %1624 = vmatpush1.msra.mxu0 0.0
      %1625 = vmatprep.subr.mxu0 0.0
      %1626 = vmatpush1.msra.mxu0 0.0
      %1627 = vmatprep.subr.mxu0 0.0
      %1628 = vmatpush1.msra.mxu0 0.0
      %1629 = vmatprep.subr.mxu0 0.0
      %1630 = vmatpush1.msra.mxu0 0.0
      %1631 = vmatprep.subr.mxu0 0.0
      %1632 = vmatpush1.msra.mxu0 0.0
      %1633 = vmatprep.mubr.f32.mxu0 0.0
      %1634 = vmatmul.mubr.f32.gmra.mrb[0].mxu0 %v1567
      %v1635 = vpop.f32.mrb[0].mxu0
      %v1636 = vadd.f32 %v1565, %v1635
      %v1637 = vpop.f32.mrb[0].mxu0
      %1638 = vdwg.mxu0
      %v1639 = vsub.f32 0.0, %v1636
      %v1640 = vmul.f32 %v1639, 1.442695
      %v1641 = vpow.pop %v1640
      %v1642 = vadd.f32 %v1641, 1.0
      %v1643 = vrcp.pop %v1642
      %v1644 = vmul.f32 1.0, %v1643
      %v1645 = vld [vmem:[%s9] sm:$0xff]
      %v1646 = vld [vmem:[%s9 + $0x8] sm:$0xff]
      %v1647 = vlaneseq
      %v1648 = vshrl.u32 %v1647, 7
      %v1649 = vsub.s32 0, %v1648
      %v1650 = vrot.slane %v1644, %v1649
      %v1651 = vmul.f32 %v1080, %v1650
      %v1652 = vmul.f32 %v1081, %v1650
      %v1653 = vmul.f32 %v1082, %v1650
      %v1654 = vmul.f32 %v1083, %v1650
      %v1655 = vmul.f32 %v1084, %v1650
      %v1656 = vmul.f32 %v1085, %v1650
      %v1657 = vmul.f32 %v1086, %v1650
      %v1658 = vmul.f32 %v1087, %v1650
      %v1659 = vmul.f32 %v1088, %v1650
      %v1660 = vmul.f32 %v1089, %v1650
      %v1661 = vmul.f32 %v1090, %v1650
      %v1662 = vmul.f32 %v1091, %v1650
      %v1663 = vmul.f32 %v1092, %v1650
      %v1664 = vmul.f32 %v1093, %v1650
      %v1665 = vmul.f32 %v1094, %v1650
      %v1666 = vmul.f32 %v1095, %v1650
      %v1667 = vmul.f32 %v1096, %v1650
      %v1668 = vmul.f32 %v1097, %v1650
      %v1669 = vmul.f32 %v1098, %v1650
      %v1670 = vmul.f32 %v1099, %v1650
      %v1671 = vmul.f32 %v1100, %v1650
      %v1672 = vmul.f32 %v1101, %v1650
      %v1673 = vmul.f32 %v1102, %v1650
      %v1674 = vmul.f32 %v1103, %v1650
      %v1675 = vmul.f32 %v1104, %v1650
      %v1676 = vmul.f32 %v1105, %v1650
      %v1677 = vmul.f32 %v1106, %v1650
      %v1678 = vmul.f32 %v1107, %v1650
      %v1679 = vmul.f32 %v1108, %v1650
      %v1680 = vmul.f32 %v1109, %v1650
      %v1681 = vmul.f32 %v1110, %v1650
      %v1682 = vmul.f32 %v1111, %v1650
      %v1683 = vpack.c.bf16 %v1652, %v1651
      %v1684 = vpack.c.bf16 %v1654, %v1653
      %v1685 = vpack.c.bf16 %v1656, %v1655
      %v1686 = vpack.c.bf16 %v1658, %v1657
      %v1687 = vpack.c.bf16 %v1660, %v1659
      %v1688 = vpack.c.bf16 %v1662, %v1661
      %v1689 = vpack.c.bf16 %v1664, %v1663
      %v1690 = vpack.c.bf16 %v1666, %v1665
      %v1691 = vpack.c.bf16 %v1668, %v1667
      %v1692 = vpack.c.bf16 %v1670, %v1669
      %v1693 = vpack.c.bf16 %v1672, %v1671
      %v1694 = vpack.c.bf16 %v1674, %v1673
      %v1695 = vpack.c.bf16 %v1676, %v1675
      %v1696 = vpack.c.bf16 %v1678, %v1677
      %v1697 = vpack.c.bf16 %v1680, %v1679
      %v1698 = vpack.c.bf16 %v1682, %v1681
      %v1699 = vpack.c.bf16 %v1645, %v1645
      %1701 = vrot.lane.b32.xlu0 %v1650, 120
      %v1702 = vpop.permute.xlu0 %1701
      %v1704 = vmul.f32 %v1240, %v1702
      %v1705 = vmul.f32 %v1241, %v1702
      %v1706 = vmul.f32 %v1242, %v1702
      %v1707 = vmul.f32 %v1243, %v1702
      %v1708 = vmul.f32 %v1244, %v1702
      %v1709 = vmul.f32 %v1245, %v1702
      %v1710 = vmul.f32 %v1246, %v1702
      %v1711 = vmul.f32 %v1247, %v1702
      %v1712 = vmul.f32 %v1248, %v1702
      %v1713 = vmul.f32 %v1249, %v1702
      %v1714 = vmul.f32 %v1250, %v1702
      %v1715 = vmul.f32 %v1251, %v1702
      %v1716 = vmul.f32 %v1252, %v1702
      %v1717 = vmul.f32 %v1253, %v1702
      %v1718 = vmul.f32 %v1254, %v1702
      %v1719 = vmul.f32 %v1255, %v1702
      %v1720 = vmul.f32 %v1256, %v1702
      %v1721 = vmul.f32 %v1257, %v1702
      %v1722 = vmul.f32 %v1258, %v1702
      %v1723 = vmul.f32 %v1259, %v1702
      %v1724 = vmul.f32 %v1260, %v1702
      %v1725 = vmul.f32 %v1261, %v1702
      %v1726 = vmul.f32 %v1262, %v1702
      %v1727 = vmul.f32 %v1263, %v1702
      %v1728 = vmul.f32 %v1264, %v1702
      %v1729 = vmul.f32 %v1265, %v1702
      %v1730 = vmul.f32 %v1266, %v1702
      %v1731 = vmul.f32 %v1267, %v1702
      %v1732 = vmul.f32 %v1268, %v1702
      %v1733 = vmul.f32 %v1269, %v1702
      %v1734 = vmul.f32 %v1270, %v1702
      %v1735 = vmul.f32 %v1271, %v1702
      %v1736 = vpack.c.bf16 %v1705, %v1704
      %v1737 = vpack.c.bf16 %v1707, %v1706
      %v1738 = vpack.c.bf16 %v1709, %v1708
      %v1739 = vpack.c.bf16 %v1711, %v1710
      %v1740 = vpack.c.bf16 %v1713, %v1712
      %v1741 = vpack.c.bf16 %v1715, %v1714
      %v1742 = vpack.c.bf16 %v1717, %v1716
      %v1743 = vpack.c.bf16 %v1719, %v1718
      %v1744 = vpack.c.bf16 %v1721, %v1720
      %v1745 = vpack.c.bf16 %v1723, %v1722
      %v1746 = vpack.c.bf16 %v1725, %v1724
      %v1747 = vpack.c.bf16 %v1727, %v1726
      %v1748 = vpack.c.bf16 %v1729, %v1728
      %v1749 = vpack.c.bf16 %v1731, %v1730
      %v1750 = vpack.c.bf16 %v1733, %v1732
      %v1751 = vpack.c.bf16 %v1735, %v1734
      %v1752 = vpack.c.bf16 %v1646, %v1646
      %v1754 = vsel %vm1272, %v1736, 0
      %v1757 = vsel %vm1272, %v1737, 0
      %v1760 = vsel %vm1272, %v1738, 0
      %v1763 = vsel %vm1272, %v1739, 0
      %v1766 = vsel %vm1272, %v1740, 0
      %v1769 = vsel %vm1272, %v1741, 0
      %v1772 = vsel %vm1272, %v1742, 0
      %v1775 = vsel %vm1272, %v1743, 0
      %v1778 = vsel %vm1272, %v1744, 0
      %v1781 = vsel %vm1272, %v1745, 0
      %v1784 = vsel %vm1272, %v1746, 0
      %v1787 = vsel %vm1272, %v1747, 0
      %v1790 = vsel %vm1272, %v1748, 0
      %v1793 = vsel %vm1272, %v1749, 0
      %v1796 = vsel %vm1272, %v1750, 0
      %v1799 = vsel %vm1272, %v1751, 0
      %vm1801 = vcmask 1043456
      %v1803 = vsel %vm1801, %v1752, 0
      %1805 = vmatprep.subr.bf16.mxu0 0
      %1806 = vmatpush1.bf16.msra.mxu0 %v1803
      %1807 = vmatprep.subr.bf16.mxu0 0
      %1808 = vmatpush1.bf16.msra.mxu0 0
      %1809 = vmatprep.subr.bf16.mxu0 0
      %1810 = vmatpush1.bf16.msra.mxu0 0
      %1811 = vmatprep.subr.bf16.mxu0 0
      %1812 = vmatpush1.bf16.msra.mxu0 0
      %1813 = vmatprep.subr.bf16.mxu0 0
      %1814 = vmatpush1.bf16.msra.mxu0 0
      %1815 = vmatprep.subr.bf16.mxu0 0
      %1816 = vmatpush1.bf16.msra.mxu0 0
      %1817 = vmatprep.subr.bf16.mxu0 0
      %1818 = vmatpush1.bf16.msra.mxu0 0
      %1819 = vmatprep.subr.bf16.mxu0 0
      %1820 = vmatpush1.bf16.msra.mxu0 0
      %1821 = vmatprep.subr.bf16.mxu0 0
      %1822 = vmatpush1.bf16.msra.mxu0 0
      %1823 = vmatprep.subr.bf16.mxu0 0
      %1824 = vmatpush1.bf16.msra.mxu0 0
      %1825 = vmatprep.subr.bf16.mxu0 0
      %1826 = vmatpush1.bf16.msra.mxu0 0
      %1827 = vmatprep.subr.bf16.mxu0 0
      %1828 = vmatpush1.bf16.msra.mxu0 0
      %1829 = vmatprep.subr.bf16.mxu0 0
      %1830 = vmatpush1.bf16.msra.mxu0 0
      %1831 = vmatprep.subr.bf16.mxu0 0
      %1832 = vmatpush1.bf16.msra.mxu0 0
      %1833 = vmatprep.subr.bf16.mxu0 0
      %1834 = vmatpush1.bf16.msra.mxu0 0
      %1835 = vmatprep.subr.bf16.mxu0 0
      %1836 = vmatpush1.bf16.msra.mxu0 0
      %1837 = vmatprep.mubr.bf16.mxu0 0
      %1838 = vmatmul.mubr.bf16.gmra.mrb[0].mxu0 %v1754
      %v1839 = vpop.f32.mrb[0].mxu0
      %v1840 = vadd.f32 0.0, %v1839
      %v1841 = vpop.f32.mrb[0].mxu0
      %v1842 = vpop.f32.mrb[0].mxu0
      %v1843 = vadd.f32 0.0, %v1842
      %v1844 = vpop.f32.mrb[0].mxu0
      %1845 = vmatprep.mubr.bf16.mxu0 0
      %1846 = vmatmul.mubr.bf16.gmra.mrb[0].mxu0 %v1757
      %v1847 = vpop.f32.mrb[0].mxu0
      %v1848 = vadd.f32 0.0, %v1847
      %v1849 = vpop.f32.mrb[0].mxu0
      %v1850 = vpop.f32.mrb[0].mxu0
      %v1851 = vadd.f32 0.0, %v1850
      %v1852 = vpop.f32.mrb[0].mxu0
      %1853 = vmatprep.mubr.bf16.mxu0 0
      %1854 = vmatmul.mubr.bf16.gmra.mrb[0].mxu0 %v1760
      %v1855 = vpop.f32.mrb[0].mxu0
      %v1856 = vadd.f32 0.0, %v1855
      %v1857 = vpop.f32.mrb[0].mxu0
      %v1858 = vpop.f32.mrb[0].mxu0
      %v1859 = vadd.f32 0.0, %v1858
      %v1860 = vpop.f32.mrb[0].mxu0
      %1861 = vmatprep.mubr.bf16.mxu0 0
      %1862 = vmatmul.mubr.bf16.gmra.mrb[0].mxu0 %v1763
      %v1863 = vpop.f32.mrb[0].mxu0
      %v1864 = vadd.f32 0.0, %v1863
      %v1865 = vpop.f32.mrb[0].mxu0
      %v1866 = vpop.f32.mrb[0].mxu0
      %v1867 = vadd.f32 0.0, %v1866
      %v1868 = vpop.f32.mrb[0].mxu0
      %1869 = vmatprep.mubr.bf16.mxu0 0
      %1870 = vmatmul.mubr.bf16.gmra.mrb[0].mxu0 %v1766
      %v1871 = vpop.f32.mrb[0].mxu0
      %v1872 = vadd.f32 0.0, %v1871
      %v1873 = vpop.f32.mrb[0].mxu0
      %v1874 = vpop.f32.mrb[0].mxu0
      %v1875 = vadd.f32 0.0, %v1874
      %v1876 = vpop.f32.mrb[0].mxu0
      %1877 = vmatprep.mubr.bf16.mxu0 0
      %1878 = vmatmul.mubr.bf16.gmra.mrb[0].mxu0 %v1769
      %v1879 = vpop.f32.mrb[0].mxu0
      %v1880 = vadd.f32 0.0, %v1879
      %v1881 = vpop.f32.mrb[0].mxu0
      %v1882 = vpop.f32.mrb[0].mxu0
      %v1883 = vadd.f32 0.0, %v1882
      %v1884 = vpop.f32.mrb[0].mxu0
      %1885 = vmatprep.mubr.bf16.mxu0 0
      %1886 = vmatmul.mubr.bf16.gmra.mrb[0].mxu0 %v1772
      %v1887 = vpop.f32.mrb[0].mxu0
      %v1888 = vadd.f32 0.0, %v1887
      %v1889 = vpop.f32.mrb[0].mxu0
      %v1890 = vpop.f32.mrb[0].mxu0
      %v1891 = vadd.f32 0.0, %v1890
      %v1892 = vpop.f32.mrb[0].mxu0
      %1893 = vmatprep.mubr.bf16.mxu0 0
      %1894 = vmatmul.mubr.bf16.gmra.mrb[0].mxu0 %v1775
      %v1895 = vpop.f32.mrb[0].mxu0
      %v1896 = vadd.f32 0.0, %v1895
      %v1897 = vpop.f32.mrb[0].mxu0
      %v1898 = vpop.f32.mrb[0].mxu0
      %v1899 = vadd.f32 0.0, %v1898
      %v1900 = vpop.f32.mrb[0].mxu0
      %1901 = vmatprep.mubr.bf16.mxu0 0
      %1902 = vmatmul.mubr.bf16.gmra.mrb[0].mxu0 %v1778
      %v1903 = vpop.f32.mrb[0].mxu0
      %v1904 = vadd.f32 0.0, %v1903
      %v1905 = vpop.f32.mrb[0].mxu0
      %v1906 = vpop.f32.mrb[0].mxu0
      %v1907 = vadd.f32 0.0, %v1906
      %v1908 = vpop.f32.mrb[0].mxu0
      %1909 = vmatprep.mubr.bf16.mxu0 0
      %1910 = vmatmul.mubr.bf16.gmra.mrb[0].mxu0 %v1781
      %v1911 = vpop.f32.mrb[0].mxu0
      %v1912 = vadd.f32 0.0, %v1911
      %v1913 = vpop.f32.mrb[0].mxu0
      %v1914 = vpop.f32.mrb[0].mxu0
      %v1915 = vadd.f32 0.0, %v1914
      %v1916 = vpop.f32.mrb[0].mxu0
      %1917 = vmatprep.mubr.bf16.mxu0 0
      %1918 = vmatmul.mubr.bf16.gmra.mrb[0].mxu0 %v1784
      %v1919 = vpop.f32.mrb[0].mxu0
      %v1920 = vadd.f32 0.0, %v1919
      %v1921 = vpop.f32.mrb[0].mxu0
      %v1922 = vpop.f32.mrb[0].mxu0
      %v1923 = vadd.f32 0.0, %v1922
      %v1924 = vpop.f32.mrb[0].mxu0
      %1925 = vmatprep.mubr.bf16.mxu0 0
      %1926 = vmatmul.mubr.bf16.gmra.mrb[0].mxu0 %v1787
      %v1927 = vpop.f32.mrb[0].mxu0
      %v1928 = vadd.f32 0.0, %v1927
      %v1929 = vpop.f32.mrb[0].mxu0
      %v1930 = vpop.f32.mrb[0].mxu0
      %v1931 = vadd.f32 0.0, %v1930
      %v1932 = vpop.f32.mrb[0].mxu0
      %1933 = vmatprep.mubr.bf16.mxu0 0
      %1934 = vmatmul.mubr.bf16.gmra.mrb[0].mxu0 %v1790
      %v1935 = vpop.f32.mrb[0].mxu0
      %v1936 = vadd.f32 0.0, %v1935
      %v1937 = vpop.f32.mrb[0].mxu0
      %v1938 = vpop.f32.mrb[0].mxu0
      %v1939 = vadd.f32 0.0, %v1938
      %v1940 = vpop.f32.mrb[0].mxu0
      %1941 = vmatprep.mubr.bf16.mxu0 0
      %1942 = vmatmul.mubr.bf16.gmra.mrb[0].mxu0 %v1793
      %v1943 = vpop.f32.mrb[0].mxu0
      %v1944 = vadd.f32 0.0, %v1943
      %v1945 = vpop.f32.mrb[0].mxu0
      %v1946 = vpop.f32.mrb[0].mxu0
      %v1947 = vadd.f32 0.0, %v1946
      %v1948 = vpop.f32.mrb[0].mxu0
      %1949 = vmatprep.mubr.bf16.mxu0 0
      %1950 = vmatmul.mubr.bf16.gmra.mrb[0].mxu0 %v1796
      %v1951 = vpop.f32.mrb[0].mxu0
      %v1952 = vadd.f32 0.0, %v1951
      %v1953 = vpop.f32.mrb[0].mxu0
      %v1954 = vpop.f32.mrb[0].mxu0
      %v1955 = vadd.f32 0.0, %v1954
      %v1956 = vpop.f32.mrb[0].mxu0
      %1957 = vmatprep.mubr.bf16.mxu0 0
      %1958 = vmatmul.mubr.bf16.gmra.mrb[0].mxu0 %v1799
      %v1959 = vpop.f32.mrb[0].mxu0
      %v1960 = vadd.f32 0.0, %v1959
      %v1961 = vpop.f32.mrb[0].mxu0
      %v1962 = vpop.f32.mrb[0].mxu0
      %v1963 = vadd.f32 0.0, %v1962
      %v1964 = vpop.f32.mrb[0].mxu0
      %1965 = vdwg.mxu0
      %v1967 = vsel %vm1272, %v1683, 0
      %v1970 = vsel %vm1272, %v1684, 0
      %v1973 = vsel %vm1272, %v1685, 0
      %v1976 = vsel %vm1272, %v1686, 0
      %v1979 = vsel %vm1272, %v1687, 0
      %v1982 = vsel %vm1272, %v1688, 0
      %v1985 = vsel %vm1272, %v1689, 0
      %v1988 = vsel %vm1272, %v1690, 0
      %v1991 = vsel %vm1272, %v1691, 0
      %v1994 = vsel %vm1272, %v1692, 0
      %v1997 = vsel %vm1272, %v1693, 0
      %v2000 = vsel %vm1272, %v1694, 0
      %v2003 = vsel %vm1272, %v1695, 0
      %v2006 = vsel %vm1272, %v1696, 0
      %v2009 = vsel %vm1272, %v1697, 0
      %v2012 = vsel %vm1272, %v1698, 0
      %v2015 = vsel %vm1801, %v1699, 0
      %2017 = vmatprep.subr.bf16.mxu0 0
      %2018 = vmatpush1.bf16.msra.mxu0 %v2015
      %2019 = vmatprep.subr.bf16.mxu0 0
      %2020 = vmatpush1.bf16.msra.mxu0 0
      %2021 = vmatprep.subr.bf16.mxu0 0
      %2022 = vmatpush1.bf16.msra.mxu0 0
      %2023 = vmatprep.subr.bf16.mxu0 0
      %2024 = vmatpush1.bf16.msra.mxu0 0
      %2025 = vmatprep.subr.bf16.mxu0 0
      %2026 = vmatpush1.bf16.msra.mxu0 0
      %2027 = vmatprep.subr.bf16.mxu0 0
      %2028 = vmatpush1.bf16.msra.mxu0 0
      %2029 = vmatprep.subr.bf16.mxu0 0
      %2030 = vmatpush1.bf16.msra.mxu0 0
      %2031 = vmatprep.subr.bf16.mxu0 0
      %2032 = vmatpush1.bf16.msra.mxu0 0
      %2033 = vmatprep.subr.bf16.mxu0 0
      %2034 = vmatpush1.bf16.msra.mxu0 0
      %2035 = vmatprep.subr.bf16.mxu0 0
      %2036 = vmatpush1.bf16.msra.mxu0 0
      %2037 = vmatprep.subr.bf16.mxu0 0
      %2038 = vmatpush1.bf16.msra.mxu0 0
      %2039 = vmatprep.subr.bf16.mxu0 0
      %2040 = vmatpush1.bf16.msra.mxu0 0
      %2041 = vmatprep.subr.bf16.mxu0 0
      %2042 = vmatpush1.bf16.msra.mxu0 0
      %2043 = vmatprep.subr.bf16.mxu0 0
      %2044 = vmatpush1.bf16.msra.mxu0 0
      %2045 = vmatprep.subr.bf16.mxu0 0
      %2046 = vmatpush1.bf16.msra.mxu0 0
      %2047 = vmatprep.subr.bf16.mxu0 0
      %2048 = vmatpush1.bf16.msra.mxu0 0
      %2049 = vmatprep.mubr.bf16.mxu0 0
      %2050 = vmatmul.mubr.bf16.gmra.mrb[0].mxu0 %v1967
      %v2051 = vpop.f32.mrb[0].mxu0
      %v2052 = vadd.f32 %v1840, %v2051
      %v2053 = vpop.f32.mrb[0].mxu0
      %v2054 = vpop.f32.mrb[0].mxu0
      %v2055 = vadd.f32 %v1843, %v2054
      %v2056 = vpop.f32.mrb[0].mxu0
      %2057 = vmatprep.mubr.bf16.mxu0 0
      %2058 = vmatmul.mubr.bf16.gmra.mrb[0].mxu0 %v1970
      %v2059 = vpop.f32.mrb[0].mxu0
      %v2060 = vadd.f32 %v1848, %v2059
      %v2061 = vpop.f32.mrb[0].mxu0
      %v2062 = vpop.f32.mrb[0].mxu0
      %v2063 = vadd.f32 %v1851, %v2062
      %v2064 = vpop.f32.mrb[0].mxu0
      %2065 = vmatprep.mubr.bf16.mxu0 0
      %2066 = vmatmul.mubr.bf16.gmra.mrb[0].mxu0 %v1973
      %v2067 = vpop.f32.mrb[0].mxu0
      %v2068 = vadd.f32 %v1856, %v2067
      %v2069 = vpop.f32.mrb[0].mxu0
      %v2070 = vpop.f32.mrb[0].mxu0
      %v2071 = vadd.f32 %v1859, %v2070
      %v2072 = vpop.f32.mrb[0].mxu0
      %2073 = vmatprep.mubr.bf16.mxu0 0
      %2074 = vmatmul.mubr.bf16.gmra.mrb[0].mxu0 %v1976
      %v2075 = vpop.f32.mrb[0].mxu0
      %v2076 = vadd.f32 %v1864, %v2075
      %v2077 = vpop.f32.mrb[0].mxu0
      %v2078 = vpop.f32.mrb[0].mxu0
      %v2079 = vadd.f32 %v1867, %v2078
      %v2080 = vpop.f32.mrb[0].mxu0
      %2081 = vmatprep.mubr.bf16.mxu0 0
      %2082 = vmatmul.mubr.bf16.gmra.mrb[0].mxu0 %v1979
      %v2083 = vpop.f32.mrb[0].mxu0
      %v2084 = vadd.f32 %v1872, %v2083
      %v2085 = vpop.f32.mrb[0].mxu0
      %v2086 = vpop.f32.mrb[0].mxu0
      %v2087 = vadd.f32 %v1875, %v2086
      %v2088 = vpop.f32.mrb[0].mxu0
      %2089 = vmatprep.mubr.bf16.mxu0 0
      %2090 = vmatmul.mubr.bf16.gmra.mrb[0].mxu0 %v1982
      %v2091 = vpop.f32.mrb[0].mxu0
      %v2092 = vadd.f32 %v1880, %v2091
      %v2093 = vpop.f32.mrb[0].mxu0
      %v2094 = vpop.f32.mrb[0].mxu0
      %v2095 = vadd.f32 %v1883, %v2094
      %v2096 = vpop.f32.mrb[0].mxu0
      %2097 = vmatprep.mubr.bf16.mxu0 0
      %2098 = vmatmul.mubr.bf16.gmra.mrb[0].mxu0 %v1985
      %v2099 = vpop.f32.mrb[0].mxu0
      %v2100 = vadd.f32 %v1888, %v2099
      %v2101 = vpop.f32.mrb[0].mxu0
      %v2102 = vpop.f32.mrb[0].mxu0
      %v2103 = vadd.f32 %v1891, %v2102
      %v2104 = vpop.f32.mrb[0].mxu0
      %2105 = vmatprep.mubr.bf16.mxu0 0
      %2106 = vmatmul.mubr.bf16.gmra.mrb[0].mxu0 %v1988
      %v2107 = vpop.f32.mrb[0].mxu0
      %v2108 = vadd.f32 %v1896, %v2107
      %v2109 = vpop.f32.mrb[0].mxu0
      %v2110 = vpop.f32.mrb[0].mxu0
      %v2111 = vadd.f32 %v1899, %v2110
      %v2112 = vpop.f32.mrb[0].mxu0
      %2113 = vmatprep.mubr.bf16.mxu0 0
      %2114 = vmatmul.mubr.bf16.gmra.mrb[0].mxu0 %v1991
      %v2115 = vpop.f32.mrb[0].mxu0
      %v2116 = vadd.f32 %v1904, %v2115
      %v2117 = vpop.f32.mrb[0].mxu0
      %v2118 = vpop.f32.mrb[0].mxu0
      %v2119 = vadd.f32 %v1907, %v2118
      %v2120 = vpop.f32.mrb[0].mxu0
      %2121 = vmatprep.mubr.bf16.mxu0 0
      %2122 = vmatmul.mubr.bf16.gmra.mrb[0].mxu0 %v1994
      %v2123 = vpop.f32.mrb[0].mxu0
      %v2124 = vadd.f32 %v1912, %v2123
      %v2125 = vpop.f32.mrb[0].mxu0
      %v2126 = vpop.f32.mrb[0].mxu0
      %v2127 = vadd.f32 %v1915, %v2126
      %v2128 = vpop.f32.mrb[0].mxu0
      %2129 = vmatprep.mubr.bf16.mxu0 0
      %2130 = vmatmul.mubr.bf16.gmra.mrb[0].mxu0 %v1997
      %v2131 = vpop.f32.mrb[0].mxu0
      %v2132 = vadd.f32 %v1920, %v2131
      %v2133 = vpop.f32.mrb[0].mxu0
      %v2134 = vpop.f32.mrb[0].mxu0
      %v2135 = vadd.f32 %v1923, %v2134
      %v2136 = vpop.f32.mrb[0].mxu0
      %2137 = vmatprep.mubr.bf16.mxu0 0
      %2138 = vmatmul.mubr.bf16.gmra.mrb[0].mxu0 %v2000
      %v2139 = vpop.f32.mrb[0].mxu0
      %v2140 = vadd.f32 %v1928, %v2139
      %v2141 = vpop.f32.mrb[0].mxu0
      %v2142 = vpop.f32.mrb[0].mxu0
      %v2143 = vadd.f32 %v1931, %v2142
      %v2144 = vpop.f32.mrb[0].mxu0
      %2145 = vmatprep.mubr.bf16.mxu0 0
      %2146 = vmatmul.mubr.bf16.gmra.mrb[0].mxu0 %v2003
      %v2147 = vpop.f32.mrb[0].mxu0
      %v2148 = vadd.f32 %v1936, %v2147
      %v2149 = vpop.f32.mrb[0].mxu0
      %v2150 = vpop.f32.mrb[0].mxu0
      %v2151 = vadd.f32 %v1939, %v2150
      %v2152 = vpop.f32.mrb[0].mxu0
      %2153 = vmatprep.mubr.bf16.mxu0 0
      %2154 = vmatmul.mubr.bf16.gmra.mrb[0].mxu0 %v2006
      %v2155 = vpop.f32.mrb[0].mxu0
      %v2156 = vadd.f32 %v1944, %v2155
      %v2157 = vpop.f32.mrb[0].mxu0
      %v2158 = vpop.f32.mrb[0].mxu0
      %v2159 = vadd.f32 %v1947, %v2158
      %v2160 = vpop.f32.mrb[0].mxu0
      %2161 = vmatprep.mubr.bf16.mxu0 0
      %2162 = vmatmul.mubr.bf16.gmra.mrb[0].mxu0 %v2009
      %v2163 = vpop.f32.mrb[0].mxu0
      %v2164 = vadd.f32 %v1952, %v2163
      %v2165 = vpop.f32.mrb[0].mxu0
      %v2166 = vpop.f32.mrb[0].mxu0
      %v2167 = vadd.f32 %v1955, %v2166
      %v2168 = vpop.f32.mrb[0].mxu0
      %2169 = vmatprep.mubr.bf16.mxu0 0
      %2170 = vmatmul.mubr.bf16.gmra.mrb[0].mxu0 %v2012
      %v2171 = vpop.f32.mrb[0].mxu0
      %v2172 = vadd.f32 %v1960, %v2171
      %v2173 = vpop.f32.mrb[0].mxu0
      %v2174 = vpop.f32.mrb[0].mxu0
      %v2175 = vadd.f32 %v1963, %v2174
      %v2176 = vpop.f32.mrb[0].mxu0
      %2177 = vdwg.mxu0
      %v2178 = vld [vmem:[%s10] sm:$0x1]
      %v2180 = vlaneseq
      %v2181 = vshrl.u32 %v2180, 7
      %v2182 = vsub.s32 0, %v2181
      %v2183 = vrot.slane %v2178, %v2182
      %v2185 = vadd.f32 %v2052, %v2183
      %v2186 = vadd.f32 %v2055, %v2183
      %v2187 = vadd.f32 %v2060, %v2183
      %v2188 = vadd.f32 %v2063, %v2183
      %v2189 = vadd.f32 %v2068, %v2183
      %v2190 = vadd.f32 %v2071, %v2183
      %v2191 = vadd.f32 %v2076, %v2183
      %v2192 = vadd.f32 %v2079, %v2183
      %v2193 = vadd.f32 %v2084, %v2183
      %v2194 = vadd.f32 %v2087, %v2183
      %v2195 = vadd.f32 %v2092, %v2183
      %v2196 = vadd.f32 %v2095, %v2183
      %v2197 = vadd.f32 %v2100, %v2183
      %v2198 = vadd.f32 %v2103, %v2183
      %v2199 = vadd.f32 %v2108, %v2183
      %v2200 = vadd.f32 %v2111, %v2183
      %v2201 = vadd.f32 %v2116, %v2183
      %v2202 = vadd.f32 %v2119, %v2183
      %v2203 = vadd.f32 %v2124, %v2183
      %v2204 = vadd.f32 %v2127, %v2183
      %v2205 = vadd.f32 %v2132, %v2183
      %v2206 = vadd.f32 %v2135, %v2183
      %v2207 = vadd.f32 %v2140, %v2183
      %v2208 = vadd.f32 %v2143, %v2183
      %v2209 = vadd.f32 %v2148, %v2183
      %v2210 = vadd.f32 %v2151, %v2183
      %v2211 = vadd.f32 %v2156, %v2183
      %v2212 = vadd.f32 %v2159, %v2183
      %v2213 = vadd.f32 %v2164, %v2183
      %v2214 = vadd.f32 %v2167, %v2183
      %v2215 = vadd.f32 %v2172, %v2183
      %v2216 = vadd.f32 %v2175, %v2183
      %2217 = vst.msk [vmem:[%s426] sm:$0xff] %vm1272, %v2185
      %2218 = vst.msk [vmem:[%s426 + $0x8] sm:$0xff] %vm1272, %v2186
      %2219 = vst.msk [vmem:[%s426 + $0x10] sm:$0xff] %vm1272, %v2187
      %2220 = vst.msk [vmem:[%s426 + $0x18] sm:$0xff] %vm1272, %v2188
      %2221 = vst.msk [vmem:[%s426 + $0x20] sm:$0xff] %vm1272, %v2189
      %2222 = vst.msk [vmem:[%s426 + $0x28] sm:$0xff] %vm1272, %v2190
      %2223 = vst.msk [vmem:[%s426 + $0x30] sm:$0xff] %vm1272, %v2191
      %2224 = vst.msk [vmem:[%s426 + $0x38] sm:$0xff] %vm1272, %v2192
      %2225 = vst.msk [vmem:[%s426 + $0x40] sm:$0xff] %vm1272, %v2193
      %2226 = vst.msk [vmem:[%s426 + $0x48] sm:$0xff] %vm1272, %v2194
      %2227 = vst.msk [vmem:[%s426 + $0x50] sm:$0xff] %vm1272, %v2195
      %2228 = vst.msk [vmem:[%s426 + $0x58] sm:$0xff] %vm1272, %v2196
      %2229 = vst.msk [vmem:[%s426 + $0x60] sm:$0xff] %vm1272, %v2197
      %2230 = vst.msk [vmem:[%s426 + $0x68] sm:$0xff] %vm1272, %v2198
      %2231 = vst.msk [vmem:[%s426 + $0x70] sm:$0xff] %vm1272, %v2199
      %2232 = vst.msk [vmem:[%s426 + $0x78] sm:$0xff] %vm1272, %v2200
      %2233 = vst.msk [vmem:[%s426 + $0x80] sm:$0xff] %vm1272, %v2201
      %2234 = vst.msk [vmem:[%s426 + $0x88] sm:$0xff] %vm1272, %v2202
      %2235 = vst.msk [vmem:[%s426 + $0x90] sm:$0xff] %vm1272, %v2203
      %2236 = vst.msk [vmem:[%s426 + $0x98] sm:$0xff] %vm1272, %v2204
      %2237 = vst.msk [vmem:[%s426 + $0xa0] sm:$0xff] %vm1272, %v2205
      %2238 = vst.msk [vmem:[%s426 + $0xa8] sm:$0xff] %vm1272, %v2206
      %2239 = vst.msk [vmem:[%s426 + $0xb0] sm:$0xff] %vm1272, %v2207
      %2240 = vst.msk [vmem:[%s426 + $0xb8] sm:$0xff] %vm1272, %v2208
      %2241 = vst.msk [vmem:[%s426 + $0xc0] sm:$0xff] %vm1272, %v2209
      %2242 = vst.msk [vmem:[%s426 + $0xc8] sm:$0xff] %vm1272, %v2210
      %2243 = vst.msk [vmem:[%s426 + $0xd0] sm:$0xff] %vm1272, %v2211
      %2244 = vst.msk [vmem:[%s426 + $0xd8] sm:$0xff] %vm1272, %v2212
      %2245 = vst.msk [vmem:[%s426 + $0xe0] sm:$0xff] %vm1272, %v2213
      %2246 = vst.msk [vmem:[%s426 + $0xe8] sm:$0xff] %vm1272, %v2214
      %2247 = vst.msk [vmem:[%s426 + $0xf0] sm:$0xff] %vm1272, %v2215
      %2248 = vst.msk [vmem:[%s426 + $0xf8] sm:$0xff] %vm1272, %v2216
      %p2249 = scmp.lt.s32.totalorder %s22, 1
      %s2250 = scalar_select %p2249, %s22, 1
      %s2251 = smul.addr %s2250, 32
      %s2252 = smul.addr %s2251, 8
      %s2253 = scalar_lea.vmem %s11, %s2252
      // Predicated region
      $region65: #{lgpm_forward.9} parent=63 // pred_check
        %p2254 = pneg %p286
      $region66: #{lgpm_forward.9} parent=63 // pred_check_branch
        %2256 = sbr.rel (%p2254) target = $region68
      $region67: #{lgpm_forward.9} parent=63 // pred_region
        _
      $region68: #{lgpm_forward.9} parent=63 // pred_fallthru
        _
    $region64: #{lgpm_forward.9} parent=5 // pred_fallthru
      _
    %p2257 = scmp.le.s32.totalorder 2, %s17
    // Predicated region
    $region69: #{lgpm_forward.9} parent=5 // pred_check
      %p2258 = pneg %p2257
    $region70: #{lgpm_forward.9} parent=5 // pred_check_branch
      %2260 = sbr.rel (%p2258) target = $region72
    $region71: #{lgpm_forward.9} parent=5 // pred_region
      %s2261 = ssub.s32 %s17, 2
      // Predicated region
      $region73: #{lgpm_forward.9} parent=71 // pred_check
        %p2262 = pneg %p292
      $region74: #{lgpm_forward.9} parent=71 // pred_check_branch
        %2264 = sbr.rel (%p2262) target = $region76
      $region75: #{lgpm_forward.9} parent=71 // pred_region
        %p2265 = scmp.lt.s32.totalorder %s23, 1
        %s2266 = scalar_select %p2265, %s23, 1
        %s2267 = smul.addr %s2266, 32
        %s2268 = smul.addr %s2267, 8
        %s2269 = scalar_lea.vmem %s11, %s2268
      $region76: #{lgpm_forward.9} parent=71 // pred_fallthru
        _
    $region72: #{lgpm_forward.9} parent=5 // pred_fallthru
      _
  $region6: #{lgpm_forward.9} parent=0 // loop_footer
    %s21 = sadd.s32 1, %s17
  $region7: #{lgpm_forward.9} parent=0 // loop_footer_branch
    %16 = sbr.rel target = $region3
  $region8: #{lgpm_forward.9} parent=0 // loop_exit
    _

</llo_original>
